<compile_context>
chip_gen: v5e
topology: v5e:2x2
jax: 0.10.0
libtpu: 0.0.40
codegen_flags: <defaults>
</compile_context>

<pallas_src>
import jax
import jax.numpy as jnp
import numpy as np
from jax import lax
from jax.experimental import pallas as pl
from jax.experimental.pallas import tpu as pltpu


HIDDEN = 512
NEG_SLOPE = 0.01  # torch.nn.LeakyReLU default


def _leaky_relu(v):
    return jnp.where(v >= 0, v, NEG_SLOPE * v)


def rnd_kernel(
    x_ref,        # (TB, d)   f32   states tile
    wt1_ref,      # (d, H)    f32   target layer 1 (cos-sensitive path)
    bt1_ref,      # (1, H)    f32
    wt2_ref,      # (H, H)    f32   target layer 2 (cos-sensitive path)
    bt2_ref,      # (1, H)    f32
    wp1_ref,      # (d, H)    bf16  predictor layer 1
    bp1_ref,      # (1, H)    f32
    wpmid_ref,    # (H, 2H)   bf16  [wp2 | wp3]
    bpmid_ref,    # (1, 2H)   f32   [bp2 | bp3]
    wdiff_ref,    # (2H, L)   bf16  [[-wt3], [wp4]]  (fused last-layer diff)
    bdiff_ref,    # (1, L)    f32   bp4 - bt3
    out_ref,      # (1, TB)   f32   per-row mean squared error (lane-dense)
):
    """Whole RND forward for one batch tile: two MLP towers + squared-error mean."""
    H = HIDDEN
    x = x_ref[...]                                   # f32 (TB, d)

    # ---- target tower pre-cos: MUST be real f32 (cos(100*h) amplifies any
    #      bf16 demotion by 100x), so force HIGHEST precision on these two dots.
    hi = lax.Precision.HIGHEST
    ht = _leaky_relu(
        jnp.dot(x, wt1_ref[...], preferred_element_type=jnp.float32, precision=hi)
        + bt1_ref[...]
    )
    ht = _leaky_relu(
        jnp.dot(ht, wt2_ref[...], preferred_element_type=jnp.float32, precision=hi)
        + bt2_ref[...]
    )
    cos_ht = jnp.cos(ht * 100.0)                     # Coskx(k=100), f32

    # ---- predictor tower: single-pass bf16 MXU, f32 accumulation, f32 VPU math.
    xb = x.astype(jnp.bfloat16)
    hp = _leaky_relu(
        jnp.dot(xb, wp1_ref[...], preferred_element_type=jnp.float32) + bp1_ref[...]
    )
    hp = _leaky_relu(
        jnp.dot(hp.astype(jnp.bfloat16), wpmid_ref[:, :H],
                preferred_element_type=jnp.float32)
        + bpmid_ref[:, :H]
    )
    hp = _leaky_relu(
        jnp.dot(hp.astype(jnp.bfloat16), wpmid_ref[:, H:],
                preferred_element_type=jnp.float32)
        + bpmid_ref[:, H:]
    )

    # ---- fused last layers: diff = [cos_ht | hp] @ [[-wt3],[wp4]] + (bp4 - bt3)
    #      One K=1024 MXU launch instead of two K=512 launches + subtract.
    cat = jnp.concatenate([cos_ht, hp], axis=-1).astype(jnp.bfloat16)   # (TB, 2H)
    diff = (
        jnp.dot(cat, wdiff_ref[...], preferred_element_type=jnp.float32)
        + bdiff_ref[...]
    )

    mse = jnp.mean(diff * diff, axis=-1)             # (TB,)
    out_ref[...] = mse.reshape(1, -1)                # lane-dense (1, TB) store


def _pick_batch_tile(B):
    """Batch-tile size in rows (always a multiple of 8).

    - tiny batches (< 128 rows): pad only to the sublane granularity (8), one
      tile -> no 16x wasted MXU/VPU work on a 128-row pad.
    - 128..1024 rows: split into exactly 2 tiles with minimal padding so the
      ("parallel",) batch axis keeps both v7x TensorCores busy (no-op on the
      single-core v5e/v6e parts).
    - larger: 512-row tiles (big M-stream through the MXU, bounded VMEM).
    """
    B8 = ((B + 7) // 8) * 8
    if B8 < 128:
        return B8
    if B8 <= 1024:
        return ((B8 + 15) // 16) * 8     # ceil(B8 / 2) rounded up to multiple of 8
    return 512


def pack_rnd_params(p):
    """One-time packing of raw parameters into the kernel layout.

    Do this once after init (NOT per forward): removes per-step concat /
    negate / cast HBM traffic.  Cos-sensitive weights (wt1, wt2) stay f32;
    everything else is stored bf16 (single-pass MXU, half the VMEM/DMA)."""
    f32, bf16 = jnp.float32, jnp.bfloat16
    return {
        "wt1": p["wt1"].astype(f32),
        "bt1": p["bt1"].astype(f32),
        "wt2": p["wt2"].astype(f32),
        "bt2": p["bt2"].astype(f32),
        "wp1": p["wp1"].astype(bf16),
        "bp1": p["bp1"].astype(f32),
        "wp_mid": jnp.concatenate([p["wp2"], p["wp3"]], axis=1).astype(bf16),  # (H, 2H)
        "bp_mid": jnp.concatenate([p["bp2"], p["bp3"]], axis=1).astype(f32),   # (1, 2H)
        "w_diff": jnp.concatenate([-p["wt3"], p["wp4"]], axis=0).astype(bf16), # (2H, L)
        "b_diff": (p["bp4"] - p["bt3"]).astype(f32),                           # (1, L)
    }


def rnd_forward(states, packed):
    """states: (B, d) f32, packed = pack_rnd_params(raw).  Returns (B,) f32."""
    B, d = states.shape

    TB = _pick_batch_tile(B)
    num_tiles = pl.cdiv(B, TB)
    B_pad = num_tiles * TB
    x = states
    if B_pad != B:
        x = jnp.pad(states, ((0, B_pad - B), (0, 0)))

    def resident(arr):
        # Full-array block with constant index_map -> stays VMEM-resident
        # across all batch-tile grid steps (no refetch).
        return pl.BlockSpec(arr.shape, lambda i: (0, 0))

    weight_order = ("wt1", "bt1", "wt2", "bt2", "wp1", "bp1",
                    "wp_mid", "bp_mid", "w_diff", "b_diff")
    weight_args = [packed[k] for k in weight_order]

    out = pl.pallas_call(
        rnd_kernel,
        out_shape=jax.ShapeDtypeStruct((num_tiles, TB), jnp.float32),
        grid_spec=pltpu.PrefetchScalarGridSpec(
            num_scalar_prefetch=0,
            grid=(num_tiles,),
            in_specs=[pl.BlockSpec((TB, d), lambda i: (i, 0))]     # states tile
                     + [resident(w) for w in weight_args],
            out_specs=pl.BlockSpec((1, TB), lambda i: (i, 0)),
        ),
        compiler_params=pltpu.CompilerParams(
            dimension_semantics=("parallel",),   # shard batch tiles across TCs (v7x)
            vmem_limit_bytes=32 << 20,           # valid on v5e/v6e/v7x; actual use well below
        ),
    )(x, *weight_args)

    return out.reshape(B_pad)[:B]


# ------------------------- deterministic parameter init -------------------------

def _orthogonal(key, shape, gain):
    """Orthogonal init (rows/cols orthonormal) scaled by gain, like init.orthogonal_."""
    out_f, in_f = shape  # torch weight shape (out, in)
    a = jax.random.normal(key, (max(out_f, in_f), min(out_f, in_f)), dtype=jnp.float32)
    q, r = jnp.linalg.qr(a)
    q = q * jnp.sign(jnp.diagonal(r))  # deterministic / uniform Haar
    if out_f < in_f:
        q = q.T
    w = gain * q[:out_f, :in_f]        # torch layout (out, in)
    return w.T                         # store as (in, out) for x @ W


def _bias(key, fan_in, out_f):
    bound = 1.0 / np.sqrt(fan_in)
    return jax.random.uniform(
        key, (1, out_f), minval=-bound, maxval=bound, dtype=jnp.float32
    )


def init_rnd_params(key, d, last_size=HIDDEN):
    gain = float(np.sqrt(2.0))
    keys = jax.random.split(key, 14)
    p = {}
    # target: d->512, 512->512, 512->last_size
    p["wt1"] = _orthogonal(keys[0], (HIDDEN, d), gain)
    p["bt1"] = _bias(keys[1], d, HIDDEN)
    p["wt2"] = _orthogonal(keys[2], (HIDDEN, HIDDEN), gain)
    p["bt2"] = _bias(keys[3], HIDDEN, HIDDEN)
    p["wt3"] = _orthogonal(keys[4], (last_size, HIDDEN), gain)
    p["bt3"] = _bias(keys[5], HIDDEN, last_size)
    # predictor: d->512, 512->512, 512->512, 512->last_size
    p["wp1"] = _orthogonal(keys[6], (HIDDEN, d), gain)
    p["bp1"] = _bias(keys[7], d, HIDDEN)
    p["wp2"] = _orthogonal(keys[8], (HIDDEN, HIDDEN), gain)
    p["bp2"] = _bias(keys[9], HIDDEN, HIDDEN)
    p["wp3"] = _orthogonal(keys[10], (HIDDEN, HIDDEN), gain)
    p["bp3"] = _bias(keys[11], HIDDEN, HIDDEN)
    p["wp4"] = _orthogonal(keys[12], (last_size, HIDDEN), gain)
    p["bp4"] = _bias(keys[13], HIDDEN, last_size)
    return p


def rnd_forward_ref(states, p):
    """Pure-JAX full-f32 (precision=HIGHEST) reference of RND.forward,
    i.e. the PyTorch f32 ground truth."""
    hi = lax.Precision.HIGHEST
    h = _leaky_relu(jnp.dot(states, p["wt1"], precision=hi) + p["bt1"])
    h = _leaky_relu(jnp.dot(h, p["wt2"], precision=hi) + p["bt2"])
    h = jnp.cos(h * 100.0)
    target = jnp.dot(h, p["wt3"], precision=hi) + p["bt3"]

    q = _leaky_relu(jnp.dot(states, p["wp1"], precision=hi) + p["bp1"])
    q = _leaky_relu(jnp.dot(q, p["wp2"], precision=hi) + p["bp2"])
    q = _leaky_relu(jnp.dot(q, p["wp3"], precision=hi) + p["bp3"])
    pred = jnp.dot(q, p["wp4"], precision=hi) + p["bp4"]
    return jnp.mean((pred - target) ** 2, axis=-1)


if __name__ == "__main__":
    key = jax.random.PRNGKey(0)
    k_param, k_x, k_x2 = jax.random.split(key, 3)

    B, d, last_size = 8, 32, 512
    raw_params = init_rnd_params(k_param, d, last_size)
    packed = pack_rnd_params(raw_params)          # one-time packing, reused across calls
    states = jax.random.normal(k_x, (B, d), dtype=jnp.float32)

    # Tolerance note: the cos-sensitive target path runs in true f32 (HIGHEST),
    # while the predictor tower and the fused last layers intentionally use
    # bf16 operands (f32 accumulation).  Versus the f32 ground truth that gives
    # a few-1e-3 relative error on the final MSE, so 3e-2 / 1e-2 is a safe
    # (>5x margin) correctness bound.
    RTOL, ATOL = 3e-2, 1e-2

    # small-batch path (single tiny tile, padded only to 8 rows)
    err = jax.block_until_ready(rnd_forward(states, packed))
    err_ref = jax.block_until_ready(rnd_forward_ref(states, raw_params))
    np.testing.assert_allclose(np.asarray(err), np.asarray(err_ref),
                               rtol=RTOL, atol=ATOL)
    assert err.shape == (B,)

    # multi-tile grid path (2 batch tiles -> both v7x TCs, exercises padding
    # + VMEM-resident weights across grid steps)
    B2 = 200
    states2 = jax.random.normal(k_x2, (B2, d), dtype=jnp.float32)
    err2 = jax.block_until_ready(rnd_forward(states2, packed))
    err2_ref = jax.block_until_ready(rnd_forward_ref(states2, raw_params))
    np.testing.assert_allclose(np.asarray(err2), np.asarray(err2_ref),
                               rtol=RTOL, atol=ATOL)
    assert err2.shape == (B2,)

    # get_q equivalent (plain JAX glue): exp(-10 * err)
    _ = jax.block_until_ready(jnp.exp(-10.0 * err))

    print("KERNEL_OK")
</pallas_src>

<mosaic_0001>
module attributes {stable_mosaic.version = 11 : i64} {
  func.func @rnd_kernel(%arg0: i32, %arg1: memref<8x32xf32, #tpu.memory_space<vmem>>, %arg2: memref<32x512xf32, #tpu.memory_space<vmem>>, %arg3: memref<1x512xf32, #tpu.memory_space<vmem>>, %arg4: memref<512x512xf32, #tpu.memory_space<vmem>>, %arg5: memref<1x512xf32, #tpu.memory_space<vmem>>, %arg6: memref<32x512xbf16, #tpu.memory_space<vmem>>, %arg7: memref<1x512xf32, #tpu.memory_space<vmem>>, %arg8: memref<512x1024xbf16, #tpu.memory_space<vmem>>, %arg9: memref<1x1024xf32, #tpu.memory_space<vmem>>, %arg10: memref<1024x512xbf16, #tpu.memory_space<vmem>>, %arg11: memref<1x512xf32, #tpu.memory_space<vmem>>, %arg12: memref<1x8xf32, #tpu.memory_space<vmem>>) attributes {dimension_semantics = [#tpu.dimension_semantics<parallel>], iteration_bounds = array<i64: 1>, scalar_prefetch = 0 : i64, scratch_operands = 0 : i64, tpu.core_type = #tpu.core_type<tc>, window_params = [{transform_indices = @transform_0, window_bounds = array<i64: 8, 32>}, {pipeline_mode = #tpu.pipeline_mode<synchronous>, transform_indices = @transform_1, window_bounds = array<i64: 32, 512>}, {pipeline_mode = #tpu.pipeline_mode<synchronous>, transform_indices = @transform_2, window_bounds = array<i64: 1, 512>}, {pipeline_mode = #tpu.pipeline_mode<synchronous>, transform_indices = @transform_3, window_bounds = array<i64: 512, 512>}, {pipeline_mode = #tpu.pipeline_mode<synchronous>, transform_indices = @transform_4, window_bounds = array<i64: 1, 512>}, {pipeline_mode = #tpu.pipeline_mode<synchronous>, transform_indices = @transform_5, window_bounds = array<i64: 32, 512>}, {pipeline_mode = #tpu.pipeline_mode<synchronous>, transform_indices = @transform_6, window_bounds = array<i64: 1, 512>}, {pipeline_mode = #tpu.pipeline_mode<synchronous>, transform_indices = @transform_7, window_bounds = array<i64: 512, 1024>}, {pipeline_mode = #tpu.pipeline_mode<synchronous>, transform_indices = @transform_8, window_bounds = array<i64: 1, 1024>}, {pipeline_mode = #tpu.pipeline_mode<synchronous>, transform_indices = @transform_9, window_bounds = array<i64: 1024, 512>}, {pipeline_mode = #tpu.pipeline_mode<synchronous>, transform_indices = @transform_10, window_bounds = array<i64: 1, 512>}, {transform_indices = @transform_11, window_bounds = array<i64: 1, 8>}]} {
    %c0 = arith.constant 0 : index
    %c0_0 = arith.constant 0 : index
    %0 = vector.load %arg1[%c0, %c0_0] : memref<8x32xf32, #tpu.memory_space<vmem>>, vector<8x32xf32>
    %c0_1 = arith.constant 0 : index
    %c0_2 = arith.constant 0 : index
    %1 = vector.load %arg2[%c0_1, %c0_2] : memref<32x512xf32, #tpu.memory_space<vmem>>, vector<32x512xf32>
    %cst = arith.constant dense<0.000000e+00> : vector<8x512xf32>
    %2 = tpu.matmul %0, %1, %cst {dimension_numbers = #tpu.dot_dimension_numbers<[1], [0], [0], [1], [0, 0, 1, 1], [], []>, precision = #tpu.contract_precision<fp32>} : vector<8x32xf32>, vector<32x512xf32>, vector<8x512xf32> -> vector<8x512xf32>
    %c0_3 = arith.constant 0 : index
    %c0_4 = arith.constant 0 : index
    %3 = vector.load %arg3[%c0_3, %c0_4] : memref<1x512xf32, #tpu.memory_space<vmem>>, vector<1x512xf32>
    %4 = vector.broadcast %3 : vector<1x512xf32> to vector<8x512xf32>
    %5 = arith.addf %2, %4 : vector<8x512xf32>
    %cst_5 = arith.constant 0.000000e+00 : f32
    %6 = vector.broadcast %cst_5 : f32 to vector<8x512xf32>
    %7 = arith.cmpf oge, %5, %6 : vector<8x512xf32>
    %cst_6 = arith.constant 0.00999999977 : f32
    %8 = vector.broadcast %cst_6 : f32 to vector<8x512xf32>
    %9 = arith.mulf %8, %5 : vector<8x512xf32>
    %10 = arith.select %7, %5, %9 : vector<8x512xi1>, vector<8x512xf32>
    %c0_7 = arith.constant 0 : index
    %c0_8 = arith.constant 0 : index
    %11 = vector.load %arg4[%c0_7, %c0_8] : memref<512x512xf32, #tpu.memory_space<vmem>>, vector<512x512xf32>
    %cst_9 = arith.constant dense<0.000000e+00> : vector<8x512xf32>
    %12 = tpu.matmul %10, %11, %cst_9 {dimension_numbers = #tpu.dot_dimension_numbers<[1], [0], [0], [1], [0, 0, 1, 1], [], []>, precision = #tpu.contract_precision<fp32>} : vector<8x512xf32>, vector<512x512xf32>, vector<8x512xf32> -> vector<8x512xf32>
    %c0_10 = arith.constant 0 : index
    %c0_11 = arith.constant 0 : index
    %13 = vector.load %arg5[%c0_10, %c0_11] : memref<1x512xf32, #tpu.memory_space<vmem>>, vector<1x512xf32>
    %14 = vector.broadcast %13 : vector<1x512xf32> to vector<8x512xf32>
    %15 = arith.addf %12, %14 : vector<8x512xf32>
    %cst_12 = arith.constant 0.000000e+00 : f32
    %16 = vector.broadcast %cst_12 : f32 to vector<8x512xf32>
    %17 = arith.cmpf oge, %15, %16 : vector<8x512xf32>
    %cst_13 = arith.constant 0.00999999977 : f32
    %18 = vector.broadcast %cst_13 : f32 to vector<8x512xf32>
    %19 = arith.mulf %18, %15 : vector<8x512xf32>
    %20 = arith.select %17, %15, %19 : vector<8x512xi1>, vector<8x512xf32>
    %cst_14 = arith.constant 1.000000e+02 : f32
    %21 = vector.broadcast %cst_14 : f32 to vector<8x512xf32>
    %22 = arith.mulf %20, %21 : vector<8x512xf32>
    %23 = math.cos %22 : vector<8x512xf32>
    %24 = arith.truncf %0 : vector<8x32xf32> to vector<8x32xbf16>
    %c0_15 = arith.constant 0 : index
    %c0_16 = arith.constant 0 : index
    %25 = vector.load %arg6[%c0_15, %c0_16] : memref<32x512xbf16, #tpu.memory_space<vmem>>, vector<32x512xbf16>
    %cst_17 = arith.constant dense<0.000000e+00> : vector<8x512xf32>
    %26 = tpu.matmul %24, %25, %cst_17 {dimension_numbers = #tpu.dot_dimension_numbers<[1], [0], [0], [1], [0, 0, 1, 1], [], []>} : vector<8x32xbf16>, vector<32x512xbf16>, vector<8x512xf32> -> vector<8x512xf32>
    %c0_18 = arith.constant 0 : index
    %c0_19 = arith.constant 0 : index
    %27 = vector.load %arg7[%c0_18, %c0_19] : memref<1x512xf32, #tpu.memory_space<vmem>>, vector<1x512xf32>
    %28 = vector.broadcast %27 : vector<1x512xf32> to vector<8x512xf32>
    %29 = arith.addf %26, %28 : vector<8x512xf32>
    %cst_20 = arith.constant 0.000000e+00 : f32
    %30 = vector.broadcast %cst_20 : f32 to vector<8x512xf32>
    %31 = arith.cmpf oge, %29, %30 : vector<8x512xf32>
    %cst_21 = arith.constant 0.00999999977 : f32
    %32 = vector.broadcast %cst_21 : f32 to vector<8x512xf32>
    %33 = arith.mulf %32, %29 : vector<8x512xf32>
    %34 = arith.select %31, %29, %33 : vector<8x512xi1>, vector<8x512xf32>
    %35 = arith.truncf %34 : vector<8x512xf32> to vector<8x512xbf16>
    %c0_22 = arith.constant 0 : index
    %c0_23 = arith.constant 0 : index
    %36 = vector.load %arg8[%c0_22, %c0_23] : memref<512x1024xbf16, #tpu.memory_space<vmem>>, vector<512x512xbf16>
    %cst_24 = arith.constant dense<0.000000e+00> : vector<8x512xf32>
    %37 = tpu.matmul %35, %36, %cst_24 {dimension_numbers = #tpu.dot_dimension_numbers<[1], [0], [0], [1], [0, 0, 1, 1], [], []>} : vector<8x512xbf16>, vector<512x512xbf16>, vector<8x512xf32> -> vector<8x512xf32>
    %c0_25 = arith.constant 0 : index
    %c0_26 = arith.constant 0 : index
    %38 = vector.load %arg9[%c0_25, %c0_26] : memref<1x1024xf32, #tpu.memory_space<vmem>>, vector<1x512xf32>
    %39 = vector.broadcast %38 : vector<1x512xf32> to vector<8x512xf32>
    %40 = arith.addf %37, %39 : vector<8x512xf32>
    %cst_27 = arith.constant 0.000000e+00 : f32
    %41 = vector.broadcast %cst_27 : f32 to vector<8x512xf32>
    %42 = arith.cmpf oge, %40, %41 : vector<8x512xf32>
    %cst_28 = arith.constant 0.00999999977 : f32
    %43 = vector.broadcast %cst_28 : f32 to vector<8x512xf32>
    %44 = arith.mulf %43, %40 : vector<8x512xf32>
    %45 = arith.select %42, %40, %44 : vector<8x512xi1>, vector<8x512xf32>
    %46 = arith.truncf %45 : vector<8x512xf32> to vector<8x512xbf16>
    %c0_29 = arith.constant 0 : index
    %c512 = arith.constant 512 : index
    %47 = vector.load %arg8[%c0_29, %c512] : memref<512x1024xbf16, #tpu.memory_space<vmem>>, vector<512x512xbf16>
    %cst_30 = arith.constant dense<0.000000e+00> : vector<8x512xf32>
    %48 = tpu.matmul %46, %47, %cst_30 {dimension_numbers = #tpu.dot_dimension_numbers<[1], [0], [0], [1], [0, 0, 1, 1], [], []>} : vector<8x512xbf16>, vector<512x512xbf16>, vector<8x512xf32> -> vector<8x512xf32>
    %c0_31 = arith.constant 0 : index
    %c512_32 = arith.constant 512 : index
    %49 = vector.load %arg9[%c0_31, %c512_32] : memref<1x1024xf32, #tpu.memory_space<vmem>>, vector<1x512xf32>
    %50 = vector.broadcast %49 : vector<1x512xf32> to vector<8x512xf32>
    %51 = arith.addf %48, %50 : vector<8x512xf32>
    %cst_33 = arith.constant 0.000000e+00 : f32
    %52 = vector.broadcast %cst_33 : f32 to vector<8x512xf32>
    %53 = arith.cmpf oge, %51, %52 : vector<8x512xf32>
    %cst_34 = arith.constant 0.00999999977 : f32
    %54 = vector.broadcast %cst_34 : f32 to vector<8x512xf32>
    %55 = arith.mulf %54, %51 : vector<8x512xf32>
    %56 = arith.select %53, %51, %55 : vector<8x512xi1>, vector<8x512xf32>
    %57 = tpu.concatenate %23, %56 in 1 : vector<8x512xf32>, vector<8x512xf32> -> vector<8x1024xf32>
    %58 = arith.truncf %57 : vector<8x1024xf32> to vector<8x1024xbf16>
    %c0_35 = arith.constant 0 : index
    %c0_36 = arith.constant 0 : index
    %59 = vector.load %arg10[%c0_35, %c0_36] : memref<1024x512xbf16, #tpu.memory_space<vmem>>, vector<1024x512xbf16>
    %cst_37 = arith.constant dense<0.000000e+00> : vector<8x512xf32>
    %60 = tpu.matmul %58, %59, %cst_37 {dimension_numbers = #tpu.dot_dimension_numbers<[1], [0], [0], [1], [0, 0, 1, 1], [], []>} : vector<8x1024xbf16>, vector<1024x512xbf16>, vector<8x512xf32> -> vector<8x512xf32>
    %c0_38 = arith.constant 0 : index
    %c0_39 = arith.constant 0 : index
    %61 = vector.load %arg11[%c0_38, %c0_39] : memref<1x512xf32, #tpu.memory_space<vmem>>, vector<1x512xf32>
    %62 = vector.broadcast %61 : vector<1x512xf32> to vector<8x512xf32>
    %63 = arith.addf %60, %62 : vector<8x512xf32>
    %64 = arith.mulf %63, %63 : vector<8x512xf32>
    %cst_40 = arith.constant dense<0.000000e+00> : vector<8xf32>
    %65 = vector.multi_reduction <add>, %64, %cst_40 [1] : vector<8x512xf32> to vector<8xf32>
    %cst_41 = arith.constant 5.120000e+02 : f32
    %66 = vector.broadcast %cst_41 : f32 to vector<8xf32>
    %67 = arith.divf %65, %66 : vector<8xf32>
    %68 = vector.shape_cast %67 : vector<8xf32> to vector<1x8xf32>
    %c0_42 = arith.constant 0 : index
    %c0_43 = arith.constant 0 : index
    %69 = vector.load %arg12[%c0_42, %c0_43] : memref<1x8xf32, #tpu.memory_space<vmem>>, vector<1x8xf32>
    tpu.vector_store %arg12[%c0_42, %c0_43], %68 {strides = array<i32>} : memref<1x8xf32, #tpu.memory_space<vmem>>, vector<1x8xf32>,
    return
  }
  func.func @transform_0(%arg0: i32) -> (i32, i32) {
    %c0_i32 = arith.constant 0 : i32
    %c0_i32_0 = arith.constant 0 : i32
    return %arg0, %c0_i32 : i32, i32
  }
  func.func @transform_1(%arg0: i32) -> (i32, i32) {
    %c0_i32 = arith.constant 0 : i32
    %c0_i32_0 = arith.constant 0 : i32
    %c0_i32_1 = arith.constant 0 : i32
    return %c0_i32, %c0_i32_0 : i32, i32
  }
  func.func @transform_2(%arg0: i32) -> (i32, i32) {
    %c0_i32 = arith.constant 0 : i32
    %c0_i32_0 = arith.constant 0 : i32
    %c0_i32_1 = arith.constant 0 : i32
    return %c0_i32, %c0_i32_0 : i32, i32
  }
  func.func @transform_3(%arg0: i32) -> (i32, i32) {
    %c0_i32 = arith.constant 0 : i32
    %c0_i32_0 = arith.constant 0 : i32
    %c0_i32_1 = arith.constant 0 : i32
    return %c0_i32, %c0_i32_0 : i32, i32
  }
  func.func @transform_4(%arg0: i32) -> (i32, i32) {
    %c0_i32 = arith.constant 0 : i32
    %c0_i32_0 = arith.constant 0 : i32
    %c0_i32_1 = arith.constant 0 : i32
    return %c0_i32, %c0_i32_0 : i32, i32
  }
  func.func @transform_5(%arg0: i32) -> (i32, i32) {
    %c0_i32 = arith.constant 0 : i32
    %c0_i32_0 = arith.constant 0 : i32
    %c0_i32_1 = arith.constant 0 : i32
    return %c0_i32, %c0_i32_0 : i32, i32
  }
  func.func @transform_6(%arg0: i32) -> (i32, i32) {
    %c0_i32 = arith.constant 0 : i32
    %c0_i32_0 = arith.constant 0 : i32
    %c0_i32_1 = arith.constant 0 : i32
    return %c0_i32, %c0_i32_0 : i32, i32
  }
  func.func @transform_7(%arg0: i32) -> (i32, i32) {
    %c0_i32 = arith.constant 0 : i32
    %c0_i32_0 = arith.constant 0 : i32
    %c0_i32_1 = arith.constant 0 : i32
    return %c0_i32, %c0_i32_0 : i32, i32
  }
  func.func @transform_8(%arg0: i32) -> (i32, i32) {
    %c0_i32 = arith.constant 0 : i32
    %c0_i32_0 = arith.constant 0 : i32
    %c0_i32_1 = arith.constant 0 : i32
    return %c0_i32, %c0_i32_0 : i32, i32
  }
  func.func @transform_9(%arg0: i32) -> (i32, i32) {
    %c0_i32 = arith.constant 0 : i32
    %c0_i32_0 = arith.constant 0 : i32
    %c0_i32_1 = arith.constant 0 : i32
    return %c0_i32, %c0_i32_0 : i32, i32
  }
  func.func @transform_10(%arg0: i32) -> (i32, i32) {
    %c0_i32 = arith.constant 0 : i32
    %c0_i32_0 = arith.constant 0 : i32
    %c0_i32_1 = arith.constant 0 : i32
    return %c0_i32, %c0_i32_0 : i32, i32
  }
  func.func @transform_11(%arg0: i32) -> (i32, i32) {
    %c0_i32 = arith.constant 0 : i32
    %c0_i32_0 = arith.constant 0 : i32
    return %arg0, %c0_i32 : i32, i32
  }
}

</mosaic_0001>

<llo_original>
// kernel: tpu_custom_call.1
$region0: #{tpu_custom_call.1}
  #allocation0 [shape = 'u32[]', space=smem, size = 0x4, offset = 0x4, fixed_abs, tag = 'smem constant byte address 0x4 - core index']
  #allocation1 [shape = 'u32[72,128]{1,0:T(1,128)}', space=vmem, size = 0x9000, scoped, tag = 'internal scratch']
  %s0 = inlined_call_operand.hbm [shape: f32[8,32], index: 0, kind: input, shape index: {}]
  %s1 = inlined_call_operand.hbm [shape: f32[32,512], index: 1, kind: input, shape index: {}]
  %s2 = inlined_call_operand.hbm [shape: f32[1,512], index: 2, kind: input, shape index: {}]
  %s3 = inlined_call_operand.hbm [shape: f32[512,512], index: 3, kind: input, shape index: {}]
  %s4 = inlined_call_operand.hbm [shape: f32[1,512], index: 4, kind: input, shape index: {}]
  %s5 = inlined_call_operand.hbm [shape: bf16[32,512], index: 5, kind: input, shape index: {}]
  %s6 = inlined_call_operand.vmem [shape: f32[1,512], index: 6, kind: input, shape index: {}]
  %s7 = inlined_call_operand.hbm [shape: bf16[512,1024], index: 7, kind: input, shape index: {}]
  %s8 = inlined_call_operand.hbm [shape: f32[1,1024], index: 8, kind: input, shape index: {}]
  %s9 = inlined_call_operand.hbm [shape: bf16[1024,512], index: 9, kind: input, shape index: {}]
  %s10 = inlined_call_operand.vmem [shape: f32[1,512], index: 10, kind: input, shape index: {}]
  %s11 = inlined_call_operand.hbm [shape: f32[1,8], index: 11, kind: output, shape index: {}]
  %s12 = sld [smem:[#allocation0]]
  $region90: #{tpu_custom_call.1} parent=0
    _
  %s14 = ssub.s32 1, %s12
  %s15 = scalar_select 0, %s14, %s12
  $region1: #{tpu_custom_call.1} parent=0
    #allocation2 [shape = 'u8[4096]{0}', space=vmem, size = 0x1000, scoped, tag = 'input window, operand 0, single buffered']
    #allocation3 [shape = 's32[1]{0}', space=sflag, size = 0x4, scoped, tag = 'scoped memory for tpu_custom_call.1']
    #allocation4 [shape = 's32[1]{0}', space=sflag, size = 0x4, scoped, tag = 'scoped memory for tpu_custom_call.1']
    #allocation5 [shape = 'u8[65536]{0}', space=vmem, size = 0x10000, scoped, tag = 'input window, operand 1, single buffered']
    #allocation6 [shape = 's32[1]{0}', space=sflag, size = 0x4, scoped, tag = 'scoped memory for tpu_custom_call.1']
    #allocation7 [shape = 'u8[2048]{0}', space=vmem, size = 0x800, scoped, tag = 'input window, operand 2, single buffered']
    #allocation8 [shape = 'u8[1048576]{0}', space=vmem, size = 0x100000, scoped, tag = 'input window, operand 3, single buffered']
    #allocation9 [shape = 's32[1]{0}', space=sflag, size = 0x4, scoped, tag = 'scoped memory for tpu_custom_call.1']
    #allocation10 [shape = 'u8[2048]{0}', space=vmem, size = 0x800, scoped, tag = 'input window, operand 4, single buffered']
    #allocation11 [shape = 'u8[32768]{0}', space=vmem, size = 0x8000, scoped, tag = 'input window, operand 5, single buffered']
    #allocation12 [shape = 's32[1]{0}', space=sflag, size = 0x4, scoped, tag = 'scoped memory for tpu_custom_call.1']
    #allocation13 [shape = 'u8[1048576]{0}', space=vmem, size = 0x100000, scoped, tag = 'input window, operand 7, single buffered']
    #allocation14 [shape = 'u8[4096]{0}', space=vmem, size = 0x1000, scoped, tag = 'input window, operand 8, single buffered']
    #allocation15 [shape = 's32[1]{0}', space=sflag, size = 0x4, scoped, tag = 'scoped memory for tpu_custom_call.1']
    #allocation16 [shape = 'u8[1048576]{0}', space=vmem, size = 0x100000, scoped, tag = 'input window, operand 9, single buffered']
    #allocation17 [shape = 'u8[512]{0}', space=vmem, size = 0x400, scoped, tag = 'output window, operand 0, single buffered']
    %16 = vsyncpa [#allocation3], 0
    %17 = vsyncpa [#allocation6], 0
    %18 = vsyncpa [#allocation9], 0
    %19 = vsyncpa [#allocation12], 0
    %20 = vsyncpa [#allocation15], 0
    %21 = vsyncpa [#allocation4], 0
    // Predicated region
    $region2: #{tpu_custom_call.1} parent=1 // pred_check
      _
    $region3: #{tpu_custom_call.1} parent=1 // pred_check_branch
      %23 = sbr.rel (0) target = $region5
    $region4: #{tpu_custom_call.1} parent=1 // pred_region
      %25 = vsyncadd [#allocation3], 0
      %s27 = sshll.u32 %s0, 4
      %s28 = int_to_ptr.hbm [resolvable:$true] %s27
      %s29 = sshll.u32 [#allocation2], 4
      %s30 = int_to_ptr.vmem [resolvable:$true] %s29
      %32 = dma.hbm_to_vmem [thread:$0]  %s28, 128, %s30, [#allocation3]
    $region5: #{tpu_custom_call.1} parent=1 // pred_fallthru
      _
    // Predicated region
    $region6: #{tpu_custom_call.1} parent=1 // pred_check
      _
    $region7: #{tpu_custom_call.1} parent=1 // pred_check_branch
      %34 = sbr.rel (0) target = $region9
    $region8: #{tpu_custom_call.1} parent=1 // pred_region
      %36 = vsyncadd [#allocation6], 0
      %s37 = sshll.u32 %s1, 4
      %s38 = int_to_ptr.hbm [resolvable:$true] %s37
      %s39 = sshll.u32 [#allocation5], 4
      %s40 = int_to_ptr.vmem [resolvable:$true] %s39
      %45 = dma.hbm_to_vmem [thread:$0]  %s38, 2048, %s40, [#allocation6], 512, 512, 32
    $region9: #{tpu_custom_call.1} parent=1 // pred_fallthru
      _
    // Predicated region
    $region10: #{tpu_custom_call.1} parent=1 // pred_check
      _
    $region11: #{tpu_custom_call.1} parent=1 // pred_check_branch
      %47 = sbr.rel (0) target = $region13
    $region12: #{tpu_custom_call.1} parent=1 // pred_region
      %49 = vsyncadd [#allocation6], 0
      %s51 = sshll.u32 %s2, 4
      %s52 = int_to_ptr.hbm [resolvable:$true] %s51
      %s53 = sshll.u32 [#allocation7], 4
      %s54 = int_to_ptr.vmem [resolvable:$true] %s53
      %56 = dma.hbm_to_vmem [thread:$0]  %s52, 64, %s54, [#allocation6]
    $region13: #{tpu_custom_call.1} parent=1 // pred_fallthru
      _
    // Predicated region
    $region14: #{tpu_custom_call.1} parent=1 // pred_check
      _
    $region15: #{tpu_custom_call.1} parent=1 // pred_check_branch
      %58 = sbr.rel (0) target = $region17
    $region16: #{tpu_custom_call.1} parent=1 // pred_region
      %60 = vsyncadd [#allocation9], 0
      %s61 = sshll.u32 %s3, 4
      %s62 = int_to_ptr.hbm [resolvable:$true] %s61
      %s63 = sshll.u32 [#allocation8], 4
      %s64 = int_to_ptr.vmem [resolvable:$true] %s63
      %69 = dma.hbm_to_vmem [thread:$0]  %s62, 32768, %s64, [#allocation9], 512, 512, 32
    $region17: #{tpu_custom_call.1} parent=1 // pred_fallthru
      _
    // Predicated region
    $region18: #{tpu_custom_call.1} parent=1 // pred_check
      _
    $region19: #{tpu_custom_call.1} parent=1 // pred_check_branch
      %71 = sbr.rel (0) target = $region21
    $region20: #{tpu_custom_call.1} parent=1 // pred_region
      %73 = vsyncadd [#allocation9], 0
      %s75 = sshll.u32 %s4, 4
      %s76 = int_to_ptr.hbm [resolvable:$true] %s75
      %s77 = sshll.u32 [#allocation10], 4
      %s78 = int_to_ptr.vmem [resolvable:$true] %s77
      %80 = dma.hbm_to_vmem [thread:$0]  %s76, 64, %s78, [#allocation9]
    $region21: #{tpu_custom_call.1} parent=1 // pred_fallthru
      _
    // Predicated region
    $region22: #{tpu_custom_call.1} parent=1 // pred_check
      _
    $region23: #{tpu_custom_call.1} parent=1 // pred_check_branch
      %82 = sbr.rel (0) target = $region25
    $region24: #{tpu_custom_call.1} parent=1 // pred_region
      %84 = vsyncadd [#allocation12], 0
      %s85 = sshll.u32 %s5, 4
      %s86 = int_to_ptr.hbm [resolvable:$true] %s85
      %s87 = sshll.u32 [#allocation11], 4
      %s88 = int_to_ptr.vmem [resolvable:$true] %s87
      %93 = dma.hbm_to_vmem [thread:$0]  %s86, 1024, %s88, [#allocation12], 256, 256, 16
    $region25: #{tpu_custom_call.1} parent=1 // pred_fallthru
      _
    // Predicated region
    $region26: #{tpu_custom_call.1} parent=1 // pred_check
      _
    $region27: #{tpu_custom_call.1} parent=1 // pred_check_branch
      %95 = sbr.rel (0) target = $region29
    $region28: #{tpu_custom_call.1} parent=1 // pred_region
      _
    $region29: #{tpu_custom_call.1} parent=1 // pred_fallthru
      _
    // Predicated region
    $region30: #{tpu_custom_call.1} parent=1 // pred_check
      _
    $region31: #{tpu_custom_call.1} parent=1 // pred_check_branch
      %97 = sbr.rel (0) target = $region33
    $region32: #{tpu_custom_call.1} parent=1 // pred_region
      %99 = vsyncadd [#allocation12], 0
      %s100 = sshll.u32 %s7, 4
      %s101 = int_to_ptr.hbm [resolvable:$true] %s100
      %s102 = sshll.u32 [#allocation13], 4
      %s103 = int_to_ptr.vmem [resolvable:$true] %s102
      %108 = dma.hbm_to_vmem [thread:$0]  %s101, 32768, %s103, [#allocation12], 512, 512, 32
    $region33: #{tpu_custom_call.1} parent=1 // pred_fallthru
      _
    // Predicated region
    $region34: #{tpu_custom_call.1} parent=1 // pred_check
      _
    $region35: #{tpu_custom_call.1} parent=1 // pred_check_branch
      %110 = sbr.rel (0) target = $region37
    $region36: #{tpu_custom_call.1} parent=1 // pred_region
      %112 = vsyncadd [#allocation15], 0
      %s114 = sshll.u32 %s8, 4
      %s115 = int_to_ptr.hbm [resolvable:$true] %s114
      %s116 = sshll.u32 [#allocation14], 4
      %s117 = int_to_ptr.vmem [resolvable:$true] %s116
      %119 = dma.hbm_to_vmem [thread:$0]  %s115, 128, %s117, [#allocation15]
    $region37: #{tpu_custom_call.1} parent=1 // pred_fallthru
      _
    // Predicated region
    $region38: #{tpu_custom_call.1} parent=1 // pred_check
      _
    $region39: #{tpu_custom_call.1} parent=1 // pred_check_branch
      %121 = sbr.rel (0) target = $region41
    $region40: #{tpu_custom_call.1} parent=1 // pred_region
      %123 = vsyncadd [#allocation15], 0
      %s124 = sshll.u32 %s9, 4
      %s125 = int_to_ptr.hbm [resolvable:$true] %s124
      %s126 = sshll.u32 [#allocation16], 4
      %s127 = int_to_ptr.vmem [resolvable:$true] %s126
      %132 = dma.hbm_to_vmem [thread:$0]  %s125, 32768, %s127, [#allocation15], 256, 256, 16
    $region41: #{tpu_custom_call.1} parent=1 // pred_fallthru
      _
    // Predicated region
    $region42: #{tpu_custom_call.1} parent=1 // pred_check
      _
    $region43: #{tpu_custom_call.1} parent=1 // pred_check_branch
      %134 = sbr.rel (0) target = $region45
    $region44: #{tpu_custom_call.1} parent=1 // pred_region
      _
    $region45: #{tpu_custom_call.1} parent=1 // pred_fallthru
      _
    // Predicated region
    $region46: #{tpu_custom_call.1} parent=1 // pred_check
      _
    $region47: #{tpu_custom_call.1} parent=1 // pred_check_branch
      %136 = sbr.rel (0) target = $region49
    $region48: #{tpu_custom_call.1} parent=1 // pred_region
      %138 = dma.done [#allocation3], 128
    $region49: #{tpu_custom_call.1} parent=1 // pred_fallthru
      _
    // Predicated region
    $region50: #{tpu_custom_call.1} parent=1 // pred_check
      _
    $region51: #{tpu_custom_call.1} parent=1 // pred_check_branch
      %140 = sbr.rel (0) target = $region53
    $region52: #{tpu_custom_call.1} parent=1 // pred_region
      %142 = dma.done [#allocation6], 2048
    $region53: #{tpu_custom_call.1} parent=1 // pred_fallthru
      _
    // Predicated region
    $region54: #{tpu_custom_call.1} parent=1 // pred_check
      _
    $region55: #{tpu_custom_call.1} parent=1 // pred_check_branch
      %144 = sbr.rel (0) target = $region57
    $region56: #{tpu_custom_call.1} parent=1 // pred_region
      %146 = dma.done [#allocation6], 64
    $region57: #{tpu_custom_call.1} parent=1 // pred_fallthru
      _
    // Predicated region
    $region58: #{tpu_custom_call.1} parent=1 // pred_check
      _
    $region59: #{tpu_custom_call.1} parent=1 // pred_check_branch
      %148 = sbr.rel (0) target = $region61
    $region60: #{tpu_custom_call.1} parent=1 // pred_region
      %150 = dma.done [#allocation9], 32768
    $region61: #{tpu_custom_call.1} parent=1 // pred_fallthru
      _
    // Predicated region
    $region62: #{tpu_custom_call.1} parent=1 // pred_check
      _
    $region63: #{tpu_custom_call.1} parent=1 // pred_check_branch
      %152 = sbr.rel (0) target = $region65
    $region64: #{tpu_custom_call.1} parent=1 // pred_region
      %154 = dma.done [#allocation9], 64
    $region65: #{tpu_custom_call.1} parent=1 // pred_fallthru
      _
    // Predicated region
    $region66: #{tpu_custom_call.1} parent=1 // pred_check
      _
    $region67: #{tpu_custom_call.1} parent=1 // pred_check_branch
      %156 = sbr.rel (0) target = $region69
    $region68: #{tpu_custom_call.1} parent=1 // pred_region
      %158 = dma.done [#allocation12], 1024
    $region69: #{tpu_custom_call.1} parent=1 // pred_fallthru
      _
    // Predicated region
    $region70: #{tpu_custom_call.1} parent=1 // pred_check
      _
    $region71: #{tpu_custom_call.1} parent=1 // pred_check_branch
      %160 = sbr.rel (0) target = $region73
    $region72: #{tpu_custom_call.1} parent=1 // pred_region
      %162 = dma.done [#allocation12], 32768
    $region73: #{tpu_custom_call.1} parent=1 // pred_fallthru
      _
    // Predicated region
    $region74: #{tpu_custom_call.1} parent=1 // pred_check
      _
    $region75: #{tpu_custom_call.1} parent=1 // pred_check_branch
      %164 = sbr.rel (0) target = $region77
    $region76: #{tpu_custom_call.1} parent=1 // pred_region
      %166 = dma.done [#allocation15], 128
    $region77: #{tpu_custom_call.1} parent=1 // pred_fallthru
      _
    // Predicated region
    $region78: #{tpu_custom_call.1} parent=1 // pred_check
      _
    $region79: #{tpu_custom_call.1} parent=1 // pred_check_branch
      %168 = sbr.rel (0) target = $region81
    $region80: #{tpu_custom_call.1} parent=1 // pred_region
      %170 = dma.done [#allocation15], 32768
    $region81: #{tpu_custom_call.1} parent=1 // pred_fallthru
      _
    %v172 = vld [vmem:[#allocation2] sm:$0xff]
    %v173 = vld [vmem:[#allocation5] sm:$0xff]
    %v174 = vld [vmem:[#allocation5 + $0x8] sm:$0xff]
    %v175 = vld [vmem:[#allocation5 + $0x10] sm:$0xff]
    %v176 = vld [vmem:[#allocation5 + $0x18] sm:$0xff]
    %v177 = vld [vmem:[#allocation5 + $0x20] sm:$0xff]
    %v178 = vld [vmem:[#allocation5 + $0x28] sm:$0xff]
    %v179 = vld [vmem:[#allocation5 + $0x30] sm:$0xff]
    %v180 = vld [vmem:[#allocation5 + $0x38] sm:$0xff]
    %v181 = vld [vmem:[#allocation5 + $0x40] sm:$0xff]
    %v182 = vld [vmem:[#allocation5 + $0x48] sm:$0xff]
    %v183 = vld [vmem:[#allocation5 + $0x50] sm:$0xff]
    %v184 = vld [vmem:[#allocation5 + $0x58] sm:$0xff]
    %v185 = vld [vmem:[#allocation5 + $0x60] sm:$0xff]
    %v186 = vld [vmem:[#allocation5 + $0x68] sm:$0xff]
    %v187 = vld [vmem:[#allocation5 + $0x70] sm:$0xff]
    %v188 = vld [vmem:[#allocation5 + $0x78] sm:$0xff]
    %v189 = vld [vmem:[#allocation7] sm:$0xf]
    %v191 = vperm.slane %v189, 0
    %v192 = vperm.slane %v189, 1
    %v193 = vperm.slane %v189, 2
    %v194 = vperm.slane %v189, 3
    %vm199 = vcmask 261120
    %v201 = vsel %vm199, %v172, 0
    %203 = vmatpush.msra.mxu0 0.0
    %204 = vmatpush.msra.mxu0 0.0
    %205 = vmatpush.msra.mxu0 0.0
    %206 = vmatpush.msra.mxu0 0.0
    %207 = vmatpush.msra.mxu0 0.0
    %208 = vmatpush.msra.mxu0 0.0
    %209 = vmatpush.msra.mxu0 0.0
    %210 = vmatpush.msra.mxu0 0.0
    %211 = vmatpush.msra.mxu0 0.0
    %212 = vmatpush.msra.mxu0 0.0
    %213 = vmatpush.msra.mxu0 0.0
    %214 = vmatpush.msra.mxu0 0.0
    %v215 = vand.u32 %v185, 4294901760
    %216 = vmatpush.msra.mxu0 %v215
    %v217 = vand.u32 %v181, 4294901760
    %218 = vmatpush.msra.mxu0 %v217
    %v219 = vand.u32 %v177, 4294901760
    %220 = vmatpush.msra.mxu0 %v219
    %v221 = vand.u32 %v173, 4294901760
    %222 = vmatpush.msra.mxu0 %v221
    %v223 = vand.u32 %v201, 4294901760
    %v224 = vsub.f32 %v201, %v223
    %v225 = vand.u32 %v224, 4294901760
    %v226 = vsub.f32 %v224, %v225
    %v227 = vand.u32 %v226, 4294901760
    %228 = vmatmul.f32.gmra.mxu0 %v227
    %v229 = vpop.f32.mrf.mxu0
    %v230 = vadd.f32 %v191, %v229
    %231 = vdwg.mxu0
    %232 = vmatpush.msra.mxu0 0.0
    %233 = vmatpush.msra.mxu0 0.0
    %234 = vmatpush.msra.mxu0 0.0
    %235 = vmatpush.msra.mxu0 0.0
    %236 = vmatpush.msra.mxu0 0.0
    %237 = vmatpush.msra.mxu0 0.0
    %238 = vmatpush.msra.mxu0 0.0
    %239 = vmatpush.msra.mxu0 0.0
    %240 = vmatpush.msra.mxu0 0.0
    %241 = vmatpush.msra.mxu0 0.0
    %242 = vmatpush.msra.mxu0 0.0
    %243 = vmatpush.msra.mxu0 0.0
    %v244 = vand.u32 %v185, 4294901760
    %v245 = vsub.f32 %v185, %v244
    %v246 = vand.u32 %v245, 4294901760
    %v247 = vsub.f32 %v245, %v246
    %v248 = vand.u32 %v247, 4294901760
    %249 = vmatpush.msra.mxu0 %v248
    %v250 = vand.u32 %v181, 4294901760
    %v251 = vsub.f32 %v181, %v250
    %v252 = vand.u32 %v251, 4294901760
    %v253 = vsub.f32 %v251, %v252
    %v254 = vand.u32 %v253, 4294901760
    %255 = vmatpush.msra.mxu0 %v254
    %v256 = vand.u32 %v177, 4294901760
    %v257 = vsub.f32 %v177, %v256
    %v258 = vand.u32 %v257, 4294901760
    %v259 = vsub.f32 %v257, %v258
    %v260 = vand.u32 %v259, 4294901760
    %261 = vmatpush.msra.mxu0 %v260
    %v262 = vand.u32 %v173, 4294901760
    %v263 = vsub.f32 %v173, %v262
    %v264 = vand.u32 %v263, 4294901760
    %v265 = vsub.f32 %v263, %v264
    %v266 = vand.u32 %v265, 4294901760
    %267 = vmatpush.msra.mxu0 %v266
    %v268 = vand.u32 %v201, 4294901760
    %269 = vmatmul.f32.gmra.mxu0 %v268
    %v270 = vpop.f32.mrf.mxu0
    %v271 = vadd.f32 %v230, %v270
    %272 = vdwg.mxu0
    %273 = vmatpush.msra.mxu0 0.0
    %274 = vmatpush.msra.mxu0 0.0
    %275 = vmatpush.msra.mxu0 0.0
    %276 = vmatpush.msra.mxu0 0.0
    %277 = vmatpush.msra.mxu0 0.0
    %278 = vmatpush.msra.mxu0 0.0
    %279 = vmatpush.msra.mxu0 0.0
    %280 = vmatpush.msra.mxu0 0.0
    %281 = vmatpush.msra.mxu0 0.0
    %282 = vmatpush.msra.mxu0 0.0
    %283 = vmatpush.msra.mxu0 0.0
    %284 = vmatpush.msra.mxu0 0.0
    %v285 = vand.u32 %v185, 4294901760
    %v286 = vsub.f32 %v185, %v285
    %287 = vmatpush.msra.mxu0 %v286
    %v288 = vand.u32 %v181, 4294901760
    %v289 = vsub.f32 %v181, %v288
    %290 = vmatpush.msra.mxu0 %v289
    %v291 = vand.u32 %v177, 4294901760
    %v292 = vsub.f32 %v177, %v291
    %293 = vmatpush.msra.mxu0 %v292
    %v294 = vand.u32 %v173, 4294901760
    %v295 = vsub.f32 %v173, %v294
    %296 = vmatpush.msra.mxu0 %v295
    %v297 = vand.u32 %v201, 4294901760
    %v298 = vsub.f32 %v201, %v297
    %299 = vmatmul.f32.gmra.mxu0 %v298
    %v300 = vpop.f32.mrf.mxu0
    %v301 = vadd.f32 %v271, %v300
    %302 = vdwg.mxu0
    %303 = vmatpush.msra.mxu0 0.0
    %304 = vmatpush.msra.mxu0 0.0
    %305 = vmatpush.msra.mxu0 0.0
    %306 = vmatpush.msra.mxu0 0.0
    %307 = vmatpush.msra.mxu0 0.0
    %308 = vmatpush.msra.mxu0 0.0
    %309 = vmatpush.msra.mxu0 0.0
    %310 = vmatpush.msra.mxu0 0.0
    %311 = vmatpush.msra.mxu0 0.0
    %312 = vmatpush.msra.mxu0 0.0
    %313 = vmatpush.msra.mxu0 0.0
    %314 = vmatpush.msra.mxu0 0.0
    %v315 = vand.u32 %v185, 4294901760
    %316 = vmatpush.msra.mxu0 %v315
    %v317 = vand.u32 %v181, 4294901760
    %318 = vmatpush.msra.mxu0 %v317
    %v319 = vand.u32 %v177, 4294901760
    %320 = vmatpush.msra.mxu0 %v319
    %v321 = vand.u32 %v173, 4294901760
    %322 = vmatpush.msra.mxu0 %v321
    %v323 = vand.u32 %v201, 4294901760
    %v324 = vsub.f32 %v201, %v323
    %v325 = vand.u32 %v324, 4294901760
    %326 = vmatmul.f32.gmra.mxu0 %v325
    %v327 = vpop.f32.mrf.mxu0
    %v328 = vadd.f32 %v301, %v327
    %329 = vdwg.mxu0
    %330 = vmatpush.msra.mxu0 0.0
    %331 = vmatpush.msra.mxu0 0.0
    %332 = vmatpush.msra.mxu0 0.0
    %333 = vmatpush.msra.mxu0 0.0
    %334 = vmatpush.msra.mxu0 0.0
    %335 = vmatpush.msra.mxu0 0.0
    %336 = vmatpush.msra.mxu0 0.0
    %337 = vmatpush.msra.mxu0 0.0
    %338 = vmatpush.msra.mxu0 0.0
    %339 = vmatpush.msra.mxu0 0.0
    %340 = vmatpush.msra.mxu0 0.0
    %341 = vmatpush.msra.mxu0 0.0
    %v342 = vand.u32 %v185, 4294901760
    %v343 = vsub.f32 %v185, %v342
    %v344 = vand.u32 %v343, 4294901760
    %345 = vmatpush.msra.mxu0 %v344
    %v346 = vand.u32 %v181, 4294901760
    %v347 = vsub.f32 %v181, %v346
    %v348 = vand.u32 %v347, 4294901760
    %349 = vmatpush.msra.mxu0 %v348
    %v350 = vand.u32 %v177, 4294901760
    %v351 = vsub.f32 %v177, %v350
    %v352 = vand.u32 %v351, 4294901760
    %353 = vmatpush.msra.mxu0 %v352
    %v354 = vand.u32 %v173, 4294901760
    %v355 = vsub.f32 %v173, %v354
    %v356 = vand.u32 %v355, 4294901760
    %357 = vmatpush.msra.mxu0 %v356
    %v358 = vand.u32 %v201, 4294901760
    %359 = vmatmul.f32.gmra.mxu0 %v358
    %v360 = vpop.f32.mrf.mxu0
    %v361 = vadd.f32 %v328, %v360
    %362 = vdwg.mxu0
    %363 = vmatpush.msra.mxu0 0.0
    %364 = vmatpush.msra.mxu0 0.0
    %365 = vmatpush.msra.mxu0 0.0
    %366 = vmatpush.msra.mxu0 0.0
    %367 = vmatpush.msra.mxu0 0.0
    %368 = vmatpush.msra.mxu0 0.0
    %369 = vmatpush.msra.mxu0 0.0
    %370 = vmatpush.msra.mxu0 0.0
    %371 = vmatpush.msra.mxu0 0.0
    %372 = vmatpush.msra.mxu0 0.0
    %373 = vmatpush.msra.mxu0 0.0
    %374 = vmatpush.msra.mxu0 0.0
    %v375 = vand.u32 %v185, 4294901760
    %376 = vmatpush.msra.mxu0 %v375
    %v377 = vand.u32 %v181, 4294901760
    %378 = vmatpush.msra.mxu0 %v377
    %v379 = vand.u32 %v177, 4294901760
    %380 = vmatpush.msra.mxu0 %v379
    %v381 = vand.u32 %v173, 4294901760
    %382 = vmatpush.msra.mxu0 %v381
    %v383 = vand.u32 %v201, 4294901760
    %384 = vmatmul.f32.gmra.mxu0 %v383
    %v385 = vpop.f32.mrf.mxu0
    %v386 = vadd.f32 %v361, %v385
    %387 = vdwg.mxu0
    %388 = vmatpush.msra.mxu0 0.0
    %389 = vmatpush.msra.mxu0 0.0
    %390 = vmatpush.msra.mxu0 0.0
    %391 = vmatpush.msra.mxu0 0.0
    %392 = vmatpush.msra.mxu0 0.0
    %393 = vmatpush.msra.mxu0 0.0
    %394 = vmatpush.msra.mxu0 0.0
    %395 = vmatpush.msra.mxu0 0.0
    %396 = vmatpush.msra.mxu0 0.0
    %397 = vmatpush.msra.mxu0 0.0
    %398 = vmatpush.msra.mxu0 0.0
    %399 = vmatpush.msra.mxu0 0.0
    %v400 = vand.u32 %v186, 4294901760
    %401 = vmatpush.msra.mxu0 %v400
    %v402 = vand.u32 %v182, 4294901760
    %403 = vmatpush.msra.mxu0 %v402
    %v404 = vand.u32 %v178, 4294901760
    %405 = vmatpush.msra.mxu0 %v404
    %v406 = vand.u32 %v174, 4294901760
    %407 = vmatpush.msra.mxu0 %v406
    %v408 = vand.u32 %v201, 4294901760
    %v409 = vsub.f32 %v201, %v408
    %v410 = vand.u32 %v409, 4294901760
    %v411 = vsub.f32 %v409, %v410
    %v412 = vand.u32 %v411, 4294901760
    %413 = vmatmul.f32.gmra.mxu0 %v412
    %v414 = vpop.f32.mrf.mxu0
    %v415 = vadd.f32 %v192, %v414
    %416 = vdwg.mxu0
    %417 = vmatpush.msra.mxu0 0.0
    %418 = vmatpush.msra.mxu0 0.0
    %419 = vmatpush.msra.mxu0 0.0
    %420 = vmatpush.msra.mxu0 0.0
    %421 = vmatpush.msra.mxu0 0.0
    %422 = vmatpush.msra.mxu0 0.0
    %423 = vmatpush.msra.mxu0 0.0
    %424 = vmatpush.msra.mxu0 0.0
    %425 = vmatpush.msra.mxu0 0.0
    %426 = vmatpush.msra.mxu0 0.0
    %427 = vmatpush.msra.mxu0 0.0
    %428 = vmatpush.msra.mxu0 0.0
    %v429 = vand.u32 %v186, 4294901760
    %v430 = vsub.f32 %v186, %v429
    %v431 = vand.u32 %v430, 4294901760
    %v432 = vsub.f32 %v430, %v431
    %v433 = vand.u32 %v432, 4294901760
    %434 = vmatpush.msra.mxu0 %v433
    %v435 = vand.u32 %v182, 4294901760
    %v436 = vsub.f32 %v182, %v435
    %v437 = vand.u32 %v436, 4294901760
    %v438 = vsub.f32 %v436, %v437
    %v439 = vand.u32 %v438, 4294901760
    %440 = vmatpush.msra.mxu0 %v439
    %v441 = vand.u32 %v178, 4294901760
    %v442 = vsub.f32 %v178, %v441
    %v443 = vand.u32 %v442, 4294901760
    %v444 = vsub.f32 %v442, %v443
    %v445 = vand.u32 %v444, 4294901760
    %446 = vmatpush.msra.mxu0 %v445
    %v447 = vand.u32 %v174, 4294901760
    %v448 = vsub.f32 %v174, %v447
    %v449 = vand.u32 %v448, 4294901760
    %v450 = vsub.f32 %v448, %v449
    %v451 = vand.u32 %v450, 4294901760
    %452 = vmatpush.msra.mxu0 %v451
    %v453 = vand.u32 %v201, 4294901760
    %454 = vmatmul.f32.gmra.mxu0 %v453
    %v455 = vpop.f32.mrf.mxu0
    %v456 = vadd.f32 %v415, %v455
    %457 = vdwg.mxu0
    %458 = vmatpush.msra.mxu0 0.0
    %459 = vmatpush.msra.mxu0 0.0
    %460 = vmatpush.msra.mxu0 0.0
    %461 = vmatpush.msra.mxu0 0.0
    %462 = vmatpush.msra.mxu0 0.0
    %463 = vmatpush.msra.mxu0 0.0
    %464 = vmatpush.msra.mxu0 0.0
    %465 = vmatpush.msra.mxu0 0.0
    %466 = vmatpush.msra.mxu0 0.0
    %467 = vmatpush.msra.mxu0 0.0
    %468 = vmatpush.msra.mxu0 0.0
    %469 = vmatpush.msra.mxu0 0.0
    %v470 = vand.u32 %v186, 4294901760
    %v471 = vsub.f32 %v186, %v470
    %472 = vmatpush.msra.mxu0 %v471
    %v473 = vand.u32 %v182, 4294901760
    %v474 = vsub.f32 %v182, %v473
    %475 = vmatpush.msra.mxu0 %v474
    %v476 = vand.u32 %v178, 4294901760
    %v477 = vsub.f32 %v178, %v476
    %478 = vmatpush.msra.mxu0 %v477
    %v479 = vand.u32 %v174, 4294901760
    %v480 = vsub.f32 %v174, %v479
    %481 = vmatpush.msra.mxu0 %v480
    %v482 = vand.u32 %v201, 4294901760
    %v483 = vsub.f32 %v201, %v482
    %484 = vmatmul.f32.gmra.mxu0 %v483
    %v485 = vpop.f32.mrf.mxu0
    %v486 = vadd.f32 %v456, %v485
    %487 = vdwg.mxu0
    %488 = vmatpush.msra.mxu0 0.0
    %489 = vmatpush.msra.mxu0 0.0
    %490 = vmatpush.msra.mxu0 0.0
    %491 = vmatpush.msra.mxu0 0.0
    %492 = vmatpush.msra.mxu0 0.0
    %493 = vmatpush.msra.mxu0 0.0
    %494 = vmatpush.msra.mxu0 0.0
    %495 = vmatpush.msra.mxu0 0.0
    %496 = vmatpush.msra.mxu0 0.0
    %497 = vmatpush.msra.mxu0 0.0
    %498 = vmatpush.msra.mxu0 0.0
    %499 = vmatpush.msra.mxu0 0.0
    %v500 = vand.u32 %v186, 4294901760
    %501 = vmatpush.msra.mxu0 %v500
    %v502 = vand.u32 %v182, 4294901760
    %503 = vmatpush.msra.mxu0 %v502
    %v504 = vand.u32 %v178, 4294901760
    %505 = vmatpush.msra.mxu0 %v504
    %v506 = vand.u32 %v174, 4294901760
    %507 = vmatpush.msra.mxu0 %v506
    %v508 = vand.u32 %v201, 4294901760
    %v509 = vsub.f32 %v201, %v508
    %v510 = vand.u32 %v509, 4294901760
    %511 = vmatmul.f32.gmra.mxu0 %v510
    %v512 = vpop.f32.mrf.mxu0
    %v513 = vadd.f32 %v486, %v512
    %514 = vdwg.mxu0
    %515 = vmatpush.msra.mxu0 0.0
    %516 = vmatpush.msra.mxu0 0.0
    %517 = vmatpush.msra.mxu0 0.0
    %518 = vmatpush.msra.mxu0 0.0
    %519 = vmatpush.msra.mxu0 0.0
    %520 = vmatpush.msra.mxu0 0.0
    %521 = vmatpush.msra.mxu0 0.0
    %522 = vmatpush.msra.mxu0 0.0
    %523 = vmatpush.msra.mxu0 0.0
    %524 = vmatpush.msra.mxu0 0.0
    %525 = vmatpush.msra.mxu0 0.0
    %526 = vmatpush.msra.mxu0 0.0
    %v527 = vand.u32 %v186, 4294901760
    %v528 = vsub.f32 %v186, %v527
    %v529 = vand.u32 %v528, 4294901760
    %530 = vmatpush.msra.mxu0 %v529
    %v531 = vand.u32 %v182, 4294901760
    %v532 = vsub.f32 %v182, %v531
    %v533 = vand.u32 %v532, 4294901760
    %534 = vmatpush.msra.mxu0 %v533
    %v535 = vand.u32 %v178, 4294901760
    %v536 = vsub.f32 %v178, %v535
    %v537 = vand.u32 %v536, 4294901760
    %538 = vmatpush.msra.mxu0 %v537
    %v539 = vand.u32 %v174, 4294901760
    %v540 = vsub.f32 %v174, %v539
    %v541 = vand.u32 %v540, 4294901760
    %542 = vmatpush.msra.mxu0 %v541
    %v543 = vand.u32 %v201, 4294901760
    %544 = vmatmul.f32.gmra.mxu0 %v543
    %v545 = vpop.f32.mrf.mxu0
    %v546 = vadd.f32 %v513, %v545
    %547 = vdwg.mxu0
    %548 = vmatpush.msra.mxu0 0.0
    %549 = vmatpush.msra.mxu0 0.0
    %550 = vmatpush.msra.mxu0 0.0
    %551 = vmatpush.msra.mxu0 0.0
    %552 = vmatpush.msra.mxu0 0.0
    %553 = vmatpush.msra.mxu0 0.0
    %554 = vmatpush.msra.mxu0 0.0
    %555 = vmatpush.msra.mxu0 0.0
    %556 = vmatpush.msra.mxu0 0.0
    %557 = vmatpush.msra.mxu0 0.0
    %558 = vmatpush.msra.mxu0 0.0
    %559 = vmatpush.msra.mxu0 0.0
    %v560 = vand.u32 %v186, 4294901760
    %561 = vmatpush.msra.mxu0 %v560
    %v562 = vand.u32 %v182, 4294901760
    %563 = vmatpush.msra.mxu0 %v562
    %v564 = vand.u32 %v178, 4294901760
    %565 = vmatpush.msra.mxu0 %v564
    %v566 = vand.u32 %v174, 4294901760
    %567 = vmatpush.msra.mxu0 %v566
    %v568 = vand.u32 %v201, 4294901760
    %569 = vmatmul.f32.gmra.mxu0 %v568
    %v570 = vpop.f32.mrf.mxu0
    %v571 = vadd.f32 %v546, %v570
    %572 = vdwg.mxu0
    %573 = vmatpush.msra.mxu0 0.0
    %574 = vmatpush.msra.mxu0 0.0
    %575 = vmatpush.msra.mxu0 0.0
    %576 = vmatpush.msra.mxu0 0.0
    %577 = vmatpush.msra.mxu0 0.0
    %578 = vmatpush.msra.mxu0 0.0
    %579 = vmatpush.msra.mxu0 0.0
    %580 = vmatpush.msra.mxu0 0.0
    %581 = vmatpush.msra.mxu0 0.0
    %582 = vmatpush.msra.mxu0 0.0
    %583 = vmatpush.msra.mxu0 0.0
    %584 = vmatpush.msra.mxu0 0.0
    %v585 = vand.u32 %v187, 4294901760
    %586 = vmatpush.msra.mxu0 %v585
    %v587 = vand.u32 %v183, 4294901760
    %588 = vmatpush.msra.mxu0 %v587
    %v589 = vand.u32 %v179, 4294901760
    %590 = vmatpush.msra.mxu0 %v589
    %v591 = vand.u32 %v175, 4294901760
    %592 = vmatpush.msra.mxu0 %v591
    %v593 = vand.u32 %v201, 4294901760
    %v594 = vsub.f32 %v201, %v593
    %v595 = vand.u32 %v594, 4294901760
    %v596 = vsub.f32 %v594, %v595
    %v597 = vand.u32 %v596, 4294901760
    %598 = vmatmul.f32.gmra.mxu0 %v597
    %v599 = vpop.f32.mrf.mxu0
    %v600 = vadd.f32 %v193, %v599
    %601 = vdwg.mxu0
    %602 = vmatpush.msra.mxu0 0.0
    %603 = vmatpush.msra.mxu0 0.0
    %604 = vmatpush.msra.mxu0 0.0
    %605 = vmatpush.msra.mxu0 0.0
    %606 = vmatpush.msra.mxu0 0.0
    %607 = vmatpush.msra.mxu0 0.0
    %608 = vmatpush.msra.mxu0 0.0
    %609 = vmatpush.msra.mxu0 0.0
    %610 = vmatpush.msra.mxu0 0.0
    %611 = vmatpush.msra.mxu0 0.0
    %612 = vmatpush.msra.mxu0 0.0
    %613 = vmatpush.msra.mxu0 0.0
    %v614 = vand.u32 %v187, 4294901760
    %v615 = vsub.f32 %v187, %v614
    %v616 = vand.u32 %v615, 4294901760
    %v617 = vsub.f32 %v615, %v616
    %v618 = vand.u32 %v617, 4294901760
    %619 = vmatpush.msra.mxu0 %v618
    %v620 = vand.u32 %v183, 4294901760
    %v621 = vsub.f32 %v183, %v620
    %v622 = vand.u32 %v621, 4294901760
    %v623 = vsub.f32 %v621, %v622
    %v624 = vand.u32 %v623, 4294901760
    %625 = vmatpush.msra.mxu0 %v624
    %v626 = vand.u32 %v179, 4294901760
    %v627 = vsub.f32 %v179, %v626
    %v628 = vand.u32 %v627, 4294901760
    %v629 = vsub.f32 %v627, %v628
    %v630 = vand.u32 %v629, 4294901760
    %631 = vmatpush.msra.mxu0 %v630
    %v632 = vand.u32 %v175, 4294901760
    %v633 = vsub.f32 %v175, %v632
    %v634 = vand.u32 %v633, 4294901760
    %v635 = vsub.f32 %v633, %v634
    %v636 = vand.u32 %v635, 4294901760
    %637 = vmatpush.msra.mxu0 %v636
    %v638 = vand.u32 %v201, 4294901760
    %639 = vmatmul.f32.gmra.mxu0 %v638
    %v640 = vpop.f32.mrf.mxu0
    %v641 = vadd.f32 %v600, %v640
    %642 = vdwg.mxu0
    %643 = vmatpush.msra.mxu0 0.0
    %644 = vmatpush.msra.mxu0 0.0
    %645 = vmatpush.msra.mxu0 0.0
    %646 = vmatpush.msra.mxu0 0.0
    %647 = vmatpush.msra.mxu0 0.0
    %648 = vmatpush.msra.mxu0 0.0
    %649 = vmatpush.msra.mxu0 0.0
    %650 = vmatpush.msra.mxu0 0.0
    %651 = vmatpush.msra.mxu0 0.0
    %652 = vmatpush.msra.mxu0 0.0
    %653 = vmatpush.msra.mxu0 0.0
    %654 = vmatpush.msra.mxu0 0.0
    %v655 = vand.u32 %v187, 4294901760
    %v656 = vsub.f32 %v187, %v655
    %657 = vmatpush.msra.mxu0 %v656
    %v658 = vand.u32 %v183, 4294901760
    %v659 = vsub.f32 %v183, %v658
    %660 = vmatpush.msra.mxu0 %v659
    %v661 = vand.u32 %v179, 4294901760
    %v662 = vsub.f32 %v179, %v661
    %663 = vmatpush.msra.mxu0 %v662
    %v664 = vand.u32 %v175, 4294901760
    %v665 = vsub.f32 %v175, %v664
    %666 = vmatpush.msra.mxu0 %v665
    %v667 = vand.u32 %v201, 4294901760
    %v668 = vsub.f32 %v201, %v667
    %669 = vmatmul.f32.gmra.mxu0 %v668
    %v670 = vpop.f32.mrf.mxu0
    %v671 = vadd.f32 %v641, %v670
    %672 = vdwg.mxu0
    %673 = vmatpush.msra.mxu0 0.0
    %674 = vmatpush.msra.mxu0 0.0
    %675 = vmatpush.msra.mxu0 0.0
    %676 = vmatpush.msra.mxu0 0.0
    %677 = vmatpush.msra.mxu0 0.0
    %678 = vmatpush.msra.mxu0 0.0
    %679 = vmatpush.msra.mxu0 0.0
    %680 = vmatpush.msra.mxu0 0.0
    %681 = vmatpush.msra.mxu0 0.0
    %682 = vmatpush.msra.mxu0 0.0
    %683 = vmatpush.msra.mxu0 0.0
    %684 = vmatpush.msra.mxu0 0.0
    %v685 = vand.u32 %v187, 4294901760
    %686 = vmatpush.msra.mxu0 %v685
    %v687 = vand.u32 %v183, 4294901760
    %688 = vmatpush.msra.mxu0 %v687
    %v689 = vand.u32 %v179, 4294901760
    %690 = vmatpush.msra.mxu0 %v689
    %v691 = vand.u32 %v175, 4294901760
    %692 = vmatpush.msra.mxu0 %v691
    %v693 = vand.u32 %v201, 4294901760
    %v694 = vsub.f32 %v201, %v693
    %v695 = vand.u32 %v694, 4294901760
    %696 = vmatmul.f32.gmra.mxu0 %v695
    %v697 = vpop.f32.mrf.mxu0
    %v698 = vadd.f32 %v671, %v697
    %699 = vdwg.mxu0
    %700 = vmatpush.msra.mxu0 0.0
    %701 = vmatpush.msra.mxu0 0.0
    %702 = vmatpush.msra.mxu0 0.0
    %703 = vmatpush.msra.mxu0 0.0
    %704 = vmatpush.msra.mxu0 0.0
    %705 = vmatpush.msra.mxu0 0.0
    %706 = vmatpush.msra.mxu0 0.0
    %707 = vmatpush.msra.mxu0 0.0
    %708 = vmatpush.msra.mxu0 0.0
    %709 = vmatpush.msra.mxu0 0.0
    %710 = vmatpush.msra.mxu0 0.0
    %711 = vmatpush.msra.mxu0 0.0
    %v712 = vand.u32 %v187, 4294901760
    %v713 = vsub.f32 %v187, %v712
    %v714 = vand.u32 %v713, 4294901760
    %715 = vmatpush.msra.mxu0 %v714
    %v716 = vand.u32 %v183, 4294901760
    %v717 = vsub.f32 %v183, %v716
    %v718 = vand.u32 %v717, 4294901760
    %719 = vmatpush.msra.mxu0 %v718
    %v720 = vand.u32 %v179, 4294901760
    %v721 = vsub.f32 %v179, %v720
    %v722 = vand.u32 %v721, 4294901760
    %723 = vmatpush.msra.mxu0 %v722
    %v724 = vand.u32 %v175, 4294901760
    %v725 = vsub.f32 %v175, %v724
    %v726 = vand.u32 %v725, 4294901760
    %727 = vmatpush.msra.mxu0 %v726
    %v728 = vand.u32 %v201, 4294901760
    %729 = vmatmul.f32.gmra.mxu0 %v728
    %v730 = vpop.f32.mrf.mxu0
    %v731 = vadd.f32 %v698, %v730
    %732 = vdwg.mxu0
    %733 = vmatpush.msra.mxu0 0.0
    %734 = vmatpush.msra.mxu0 0.0
    %735 = vmatpush.msra.mxu0 0.0
    %736 = vmatpush.msra.mxu0 0.0
    %737 = vmatpush.msra.mxu0 0.0
    %738 = vmatpush.msra.mxu0 0.0
    %739 = vmatpush.msra.mxu0 0.0
    %740 = vmatpush.msra.mxu0 0.0
    %741 = vmatpush.msra.mxu0 0.0
    %742 = vmatpush.msra.mxu0 0.0
    %743 = vmatpush.msra.mxu0 0.0
    %744 = vmatpush.msra.mxu0 0.0
    %v745 = vand.u32 %v187, 4294901760
    %746 = vmatpush.msra.mxu0 %v745
    %v747 = vand.u32 %v183, 4294901760
    %748 = vmatpush.msra.mxu0 %v747
    %v749 = vand.u32 %v179, 4294901760
    %750 = vmatpush.msra.mxu0 %v749
    %v751 = vand.u32 %v175, 4294901760
    %752 = vmatpush.msra.mxu0 %v751
    %v753 = vand.u32 %v201, 4294901760
    %754 = vmatmul.f32.gmra.mxu0 %v753
    %v755 = vpop.f32.mrf.mxu0
    %v756 = vadd.f32 %v731, %v755
    %757 = vdwg.mxu0
    %758 = vmatpush.msra.mxu0 0.0
    %759 = vmatpush.msra.mxu0 0.0
    %760 = vmatpush.msra.mxu0 0.0
    %761 = vmatpush.msra.mxu0 0.0
    %762 = vmatpush.msra.mxu0 0.0
    %763 = vmatpush.msra.mxu0 0.0
    %764 = vmatpush.msra.mxu0 0.0
    %765 = vmatpush.msra.mxu0 0.0
    %766 = vmatpush.msra.mxu0 0.0
    %767 = vmatpush.msra.mxu0 0.0
    %768 = vmatpush.msra.mxu0 0.0
    %769 = vmatpush.msra.mxu0 0.0
    %v770 = vand.u32 %v188, 4294901760
    %771 = vmatpush.msra.mxu0 %v770
    %v772 = vand.u32 %v184, 4294901760
    %773 = vmatpush.msra.mxu0 %v772
    %v774 = vand.u32 %v180, 4294901760
    %775 = vmatpush.msra.mxu0 %v774
    %v776 = vand.u32 %v176, 4294901760
    %777 = vmatpush.msra.mxu0 %v776
    %v778 = vand.u32 %v201, 4294901760
    %v779 = vsub.f32 %v201, %v778
    %v780 = vand.u32 %v779, 4294901760
    %v781 = vsub.f32 %v779, %v780
    %v782 = vand.u32 %v781, 4294901760
    %783 = vmatmul.f32.gmra.mxu0 %v782
    %v784 = vpop.f32.mrf.mxu0
    %v785 = vadd.f32 %v194, %v784
    %786 = vdwg.mxu0
    %787 = vmatpush.msra.mxu0 0.0
    %788 = vmatpush.msra.mxu0 0.0
    %789 = vmatpush.msra.mxu0 0.0
    %790 = vmatpush.msra.mxu0 0.0
    %791 = vmatpush.msra.mxu0 0.0
    %792 = vmatpush.msra.mxu0 0.0
    %793 = vmatpush.msra.mxu0 0.0
    %794 = vmatpush.msra.mxu0 0.0
    %795 = vmatpush.msra.mxu0 0.0
    %796 = vmatpush.msra.mxu0 0.0
    %797 = vmatpush.msra.mxu0 0.0
    %798 = vmatpush.msra.mxu0 0.0
    %v799 = vand.u32 %v188, 4294901760
    %v800 = vsub.f32 %v188, %v799
    %v801 = vand.u32 %v800, 4294901760
    %v802 = vsub.f32 %v800, %v801
    %v803 = vand.u32 %v802, 4294901760
    %804 = vmatpush.msra.mxu0 %v803
    %v805 = vand.u32 %v184, 4294901760
    %v806 = vsub.f32 %v184, %v805
    %v807 = vand.u32 %v806, 4294901760
    %v808 = vsub.f32 %v806, %v807
    %v809 = vand.u32 %v808, 4294901760
    %810 = vmatpush.msra.mxu0 %v809
    %v811 = vand.u32 %v180, 4294901760
    %v812 = vsub.f32 %v180, %v811
    %v813 = vand.u32 %v812, 4294901760
    %v814 = vsub.f32 %v812, %v813
    %v815 = vand.u32 %v814, 4294901760
    %816 = vmatpush.msra.mxu0 %v815
    %v817 = vand.u32 %v176, 4294901760
    %v818 = vsub.f32 %v176, %v817
    %v819 = vand.u32 %v818, 4294901760
    %v820 = vsub.f32 %v818, %v819
    %v821 = vand.u32 %v820, 4294901760
    %822 = vmatpush.msra.mxu0 %v821
    %v823 = vand.u32 %v201, 4294901760
    %824 = vmatmul.f32.gmra.mxu0 %v823
    %v825 = vpop.f32.mrf.mxu0
    %v826 = vadd.f32 %v785, %v825
    %827 = vdwg.mxu0
    %828 = vmatpush.msra.mxu0 0.0
    %829 = vmatpush.msra.mxu0 0.0
    %830 = vmatpush.msra.mxu0 0.0
    %831 = vmatpush.msra.mxu0 0.0
    %832 = vmatpush.msra.mxu0 0.0
    %833 = vmatpush.msra.mxu0 0.0
    %834 = vmatpush.msra.mxu0 0.0
    %835 = vmatpush.msra.mxu0 0.0
    %836 = vmatpush.msra.mxu0 0.0
    %837 = vmatpush.msra.mxu0 0.0
    %838 = vmatpush.msra.mxu0 0.0
    %839 = vmatpush.msra.mxu0 0.0
    %v840 = vand.u32 %v188, 4294901760
    %v841 = vsub.f32 %v188, %v840
    %842 = vmatpush.msra.mxu0 %v841
    %v843 = vand.u32 %v184, 4294901760
    %v844 = vsub.f32 %v184, %v843
    %845 = vmatpush.msra.mxu0 %v844
    %v846 = vand.u32 %v180, 4294901760
    %v847 = vsub.f32 %v180, %v846
    %848 = vmatpush.msra.mxu0 %v847
    %v849 = vand.u32 %v176, 4294901760
    %v850 = vsub.f32 %v176, %v849
    %851 = vmatpush.msra.mxu0 %v850
    %v852 = vand.u32 %v201, 4294901760
    %v853 = vsub.f32 %v201, %v852
    %854 = vmatmul.f32.gmra.mxu0 %v853
    %v855 = vpop.f32.mrf.mxu0
    %v856 = vadd.f32 %v826, %v855
    %857 = vdwg.mxu0
    %858 = vmatpush.msra.mxu0 0.0
    %859 = vmatpush.msra.mxu0 0.0
    %860 = vmatpush.msra.mxu0 0.0
    %861 = vmatpush.msra.mxu0 0.0
    %862 = vmatpush.msra.mxu0 0.0
    %863 = vmatpush.msra.mxu0 0.0
    %864 = vmatpush.msra.mxu0 0.0
    %865 = vmatpush.msra.mxu0 0.0
    %866 = vmatpush.msra.mxu0 0.0
    %867 = vmatpush.msra.mxu0 0.0
    %868 = vmatpush.msra.mxu0 0.0
    %869 = vmatpush.msra.mxu0 0.0
    %v870 = vand.u32 %v188, 4294901760
    %871 = vmatpush.msra.mxu0 %v870
    %v872 = vand.u32 %v184, 4294901760
    %873 = vmatpush.msra.mxu0 %v872
    %v874 = vand.u32 %v180, 4294901760
    %875 = vmatpush.msra.mxu0 %v874
    %v876 = vand.u32 %v176, 4294901760
    %877 = vmatpush.msra.mxu0 %v876
    %v878 = vand.u32 %v201, 4294901760
    %v879 = vsub.f32 %v201, %v878
    %v880 = vand.u32 %v879, 4294901760
    %881 = vmatmul.f32.gmra.mxu0 %v880
    %v882 = vpop.f32.mrf.mxu0
    %v883 = vadd.f32 %v856, %v882
    %884 = vdwg.mxu0
    %885 = vmatpush.msra.mxu0 0.0
    %886 = vmatpush.msra.mxu0 0.0
    %887 = vmatpush.msra.mxu0 0.0
    %888 = vmatpush.msra.mxu0 0.0
    %889 = vmatpush.msra.mxu0 0.0
    %890 = vmatpush.msra.mxu0 0.0
    %891 = vmatpush.msra.mxu0 0.0
    %892 = vmatpush.msra.mxu0 0.0
    %893 = vmatpush.msra.mxu0 0.0
    %894 = vmatpush.msra.mxu0 0.0
    %895 = vmatpush.msra.mxu0 0.0
    %896 = vmatpush.msra.mxu0 0.0
    %v897 = vand.u32 %v188, 4294901760
    %v898 = vsub.f32 %v188, %v897
    %v899 = vand.u32 %v898, 4294901760
    %900 = vmatpush.msra.mxu0 %v899
    %v901 = vand.u32 %v184, 4294901760
    %v902 = vsub.f32 %v184, %v901
    %v903 = vand.u32 %v902, 4294901760
    %904 = vmatpush.msra.mxu0 %v903
    %v905 = vand.u32 %v180, 4294901760
    %v906 = vsub.f32 %v180, %v905
    %v907 = vand.u32 %v906, 4294901760
    %908 = vmatpush.msra.mxu0 %v907
    %v909 = vand.u32 %v176, 4294901760
    %v910 = vsub.f32 %v176, %v909
    %v911 = vand.u32 %v910, 4294901760
    %912 = vmatpush.msra.mxu0 %v911
    %v913 = vand.u32 %v201, 4294901760
    %914 = vmatmul.f32.gmra.mxu0 %v913
    %v915 = vpop.f32.mrf.mxu0
    %v916 = vadd.f32 %v883, %v915
    %917 = vdwg.mxu0
    %918 = vmatpush.msra.mxu0 0.0
    %919 = vmatpush.msra.mxu0 0.0
    %920 = vmatpush.msra.mxu0 0.0
    %921 = vmatpush.msra.mxu0 0.0
    %922 = vmatpush.msra.mxu0 0.0
    %923 = vmatpush.msra.mxu0 0.0
    %924 = vmatpush.msra.mxu0 0.0
    %925 = vmatpush.msra.mxu0 0.0
    %926 = vmatpush.msra.mxu0 0.0
    %927 = vmatpush.msra.mxu0 0.0
    %928 = vmatpush.msra.mxu0 0.0
    %929 = vmatpush.msra.mxu0 0.0
    %v930 = vand.u32 %v188, 4294901760
    %931 = vmatpush.msra.mxu0 %v930
    %v932 = vand.u32 %v184, 4294901760
    %933 = vmatpush.msra.mxu0 %v932
    %v934 = vand.u32 %v180, 4294901760
    %935 = vmatpush.msra.mxu0 %v934
    %v936 = vand.u32 %v176, 4294901760
    %937 = vmatpush.msra.mxu0 %v936
    %v938 = vand.u32 %v201, 4294901760
    %939 = vmatmul.f32.gmra.mxu0 %v938
    %v940 = vpop.f32.mrf.mxu0
    %v941 = vadd.f32 %v916, %v940
    %942 = vdwg.mxu0
    %vm943 = vcmp.ge.f32.partialorder %v386, 0.0
    %vm944 = vcmp.ge.f32.partialorder %v571, 0.0
    %vm945 = vcmp.ge.f32.partialorder %v756, 0.0
    %vm946 = vcmp.ge.f32.partialorder %v941, 0.0
    %v947 = vmul.f32 %v386, 0.01
    %v948 = vmul.f32 %v571, 0.01
    %v949 = vmul.f32 %v756, 0.01
    %v950 = vmul.f32 %v941, 0.01
    %v951 = vsel %vm943, %v386, %v947
    %v952 = vsel %vm944, %v571, %v948
    %v953 = vsel %vm945, %v756, %v949
    %v954 = vsel %vm946, %v941, %v950
    %v955 = vld [vmem:[#allocation8] sm:$0xff]
    %v956 = vld [vmem:[#allocation8 + $0x8] sm:$0xff]
    %v957 = vld [vmem:[#allocation8 + $0x10] sm:$0xff]
    %v958 = vld [vmem:[#allocation8 + $0x18] sm:$0xff]
    %v959 = vld [vmem:[#allocation8 + $0x20] sm:$0xff]
    %v960 = vld [vmem:[#allocation8 + $0x28] sm:$0xff]
    %v961 = vld [vmem:[#allocation8 + $0x30] sm:$0xff]
    %v962 = vld [vmem:[#allocation8 + $0x38] sm:$0xff]
    %v963 = vld [vmem:[#allocation8 + $0x40] sm:$0xff]
    %v964 = vld [vmem:[#allocation8 + $0x48] sm:$0xff]
    %v965 = vld [vmem:[#allocation8 + $0x50] sm:$0xff]
    %v966 = vld [vmem:[#allocation8 + $0x58] sm:$0xff]
    %v967 = vld [vmem:[#allocation8 + $0x60] sm:$0xff]
    %v968 = vld [vmem:[#allocation8 + $0x68] sm:$0xff]
    %v969 = vld [vmem:[#allocation8 + $0x70] sm:$0xff]
    %v970 = vld [vmem:[#allocation8 + $0x78] sm:$0xff]
    %v971 = vld [vmem:[#allocation8 + $0x80] sm:$0xff]
    %v972 = vld [vmem:[#allocation8 + $0x88] sm:$0xff]
    %v973 = vld [vmem:[#allocation8 + $0x90] sm:$0xff]
    %v974 = vld [vmem:[#allocation8 + $0x98] sm:$0xff]
    %v975 = vld [vmem:[#allocation8 + $0xa0] sm:$0xff]
    %v976 = vld [vmem:[#allocation8 + $0xa8] sm:$0xff]
    %v977 = vld [vmem:[#allocation8 + $0xb0] sm:$0xff]
    %v978 = vld [vmem:[#allocation8 + $0xb8] sm:$0xff]
    %v979 = vld [vmem:[#allocation8 + $0xc0] sm:$0xff]
    %v980 = vld [vmem:[#allocation8 + $0xc8] sm:$0xff]
    %v981 = vld [vmem:[#allocation8 + $0xd0] sm:$0xff]
    %v982 = vld [vmem:[#allocation8 + $0xd8] sm:$0xff]
    %v983 = vld [vmem:[#allocation8 + $0xe0] sm:$0xff]
    %v984 = vld [vmem:[#allocation8 + $0xe8] sm:$0xff]
    %v985 = vld [vmem:[#allocation8 + $0xf0] sm:$0xff]
    %v986 = vld [vmem:[#allocation8 + $0xf8] sm:$0xff]
    %v987 = vld [vmem:[#allocation8 + $0x100] sm:$0xff]
    %v988 = vld [vmem:[#allocation8 + $0x108] sm:$0xff]
    %v989 = vld [vmem:[#allocation8 + $0x110] sm:$0xff]
    %v990 = vld [vmem:[#allocation8 + $0x118] sm:$0xff]
    %v991 = vld [vmem:[#allocation8 + $0x120] sm:$0xff]
    %v992 = vld [vmem:[#allocation8 + $0x128] sm:$0xff]
    %v993 = vld [vmem:[#allocation8 + $0x130] sm:$0xff]
    %v994 = vld [vmem:[#allocation8 + $0x138] sm:$0xff]
    %v995 = vld [vmem:[#allocation8 + $0x140] sm:$0xff]
    %v996 = vld [vmem:[#allocation8 + $0x148] sm:$0xff]
    %v997 = vld [vmem:[#allocation8 + $0x150] sm:$0xff]
    %v998 = vld [vmem:[#allocation8 + $0x158] sm:$0xff]
    %v999 = vld [vmem:[#allocation8 + $0x160] sm:$0xff]
    %v1000 = vld [vmem:[#allocation8 + $0x168] sm:$0xff]
    %v1001 = vld [vmem:[#allocation8 + $0x170] sm:$0xff]
    %v1002 = vld [vmem:[#allocation8 + $0x178] sm:$0xff]
    %v1003 = vld [vmem:[#allocation8 + $0x180] sm:$0xff]
    %v1004 = vld [vmem:[#allocation8 + $0x188] sm:$0xff]
    %v1005 = vld [vmem:[#allocation8 + $0x190] sm:$0xff]
    %v1006 = vld [vmem:[#allocation8 + $0x198] sm:$0xff]
    %v1007 = vld [vmem:[#allocation8 + $0x1a0] sm:$0xff]
    %v1008 = vld [vmem:[#allocation8 + $0x1a8] sm:$0xff]
    %v1009 = vld [vmem:[#allocation8 + $0x1b0] sm:$0xff]
    %v1010 = vld [vmem:[#allocation8 + $0x1b8] sm:$0xff]
    %v1011 = vld [vmem:[#allocation8 + $0x1c0] sm:$0xff]
    %v1012 = vld [vmem:[#allocation8 + $0x1c8] sm:$0xff]
    %v1013 = vld [vmem:[#allocation8 + $0x1d0] sm:$0xff]
    %v1014 = vld [vmem:[#allocation8 + $0x1d8] sm:$0xff]
    %v1015 = vld [vmem:[#allocation8 + $0x1e0] sm:$0xff]
    %v1016 = vld [vmem:[#allocation8 + $0x1e8] sm:$0xff]
    %v1017 = vld [vmem:[#allocation8 + $0x1f0] sm:$0xff]
    %v1018 = vld [vmem:[#allocation8 + $0x1f8] sm:$0xff]
    %v1019 = vld [vmem:[#allocation8 + $0x200] sm:$0xff]
    %v1020 = vld [vmem:[#allocation8 + $0x208] sm:$0xff]
    %v1021 = vld [vmem:[#allocation8 + $0x210] sm:$0xff]
    %v1022 = vld [vmem:[#allocation8 + $0x218] sm:$0xff]
    %v1023 = vld [vmem:[#allocation8 + $0x220] sm:$0xff]
    %v1024 = vld [vmem:[#allocation8 + $0x228] sm:$0xff]
    %v1025 = vld [vmem:[#allocation8 + $0x230] sm:$0xff]
    %v1026 = vld [vmem:[#allocation8 + $0x238] sm:$0xff]
    %v1027 = vld [vmem:[#allocation8 + $0x240] sm:$0xff]
    %v1028 = vld [vmem:[#allocation8 + $0x248] sm:$0xff]
    %v1029 = vld [vmem:[#allocation8 + $0x250] sm:$0xff]
    %v1030 = vld [vmem:[#allocation8 + $0x258] sm:$0xff]
    %v1031 = vld [vmem:[#allocation8 + $0x260] sm:$0xff]
    %v1032 = vld [vmem:[#allocation8 + $0x268] sm:$0xff]
    %v1033 = vld [vmem:[#allocation8 + $0x270] sm:$0xff]
    %v1034 = vld [vmem:[#allocation8 + $0x278] sm:$0xff]
    %v1035 = vld [vmem:[#allocation8 + $0x280] sm:$0xff]
    %v1036 = vld [vmem:[#allocation8 + $0x288] sm:$0xff]
    %v1037 = vld [vmem:[#allocation8 + $0x290] sm:$0xff]
    %v1038 = vld [vmem:[#allocation8 + $0x298] sm:$0xff]
    %v1039 = vld [vmem:[#allocation8 + $0x2a0] sm:$0xff]
    %v1040 = vld [vmem:[#allocation8 + $0x2a8] sm:$0xff]
    %v1041 = vld [vmem:[#allocation8 + $0x2b0] sm:$0xff]
    %v1042 = vld [vmem:[#allocation8 + $0x2b8] sm:$0xff]
    %v1043 = vld [vmem:[#allocation8 + $0x2c0] sm:$0xff]
    %v1044 = vld [vmem:[#allocation8 + $0x2c8] sm:$0xff]
    %v1045 = vld [vmem:[#allocation8 + $0x2d0] sm:$0xff]
    %v1046 = vld [vmem:[#allocation8 + $0x2d8] sm:$0xff]
    %v1047 = vld [vmem:[#allocation8 + $0x2e0] sm:$0xff]
    %v1048 = vld [vmem:[#allocation8 + $0x2e8] sm:$0xff]
    %v1049 = vld [vmem:[#allocation8 + $0x2f0] sm:$0xff]
    %v1050 = vld [vmem:[#allocation8 + $0x2f8] sm:$0xff]
    %v1051 = vld [vmem:[#allocation8 + $0x300] sm:$0xff]
    %v1052 = vld [vmem:[#allocation8 + $0x308] sm:$0xff]
    %v1053 = vld [vmem:[#allocation8 + $0x310] sm:$0xff]
    %v1054 = vld [vmem:[#allocation8 + $0x318] sm:$0xff]
    %v1055 = vld [vmem:[#allocation8 + $0x320] sm:$0xff]
    %v1056 = vld [vmem:[#allocation8 + $0x328] sm:$0xff]
    %v1057 = vld [vmem:[#allocation8 + $0x330] sm:$0xff]
    %v1058 = vld [vmem:[#allocation8 + $0x338] sm:$0xff]
    %v1059 = vld [vmem:[#allocation8 + $0x340] sm:$0xff]
    %v1060 = vld [vmem:[#allocation8 + $0x348] sm:$0xff]
    %v1061 = vld [vmem:[#allocation8 + $0x350] sm:$0xff]
    %v1062 = vld [vmem:[#allocation8 + $0x358] sm:$0xff]
    %v1063 = vld [vmem:[#allocation8 + $0x360] sm:$0xff]
    %v1064 = vld [vmem:[#allocation8 + $0x368] sm:$0xff]
    %v1065 = vld [vmem:[#allocation8 + $0x370] sm:$0xff]
    %v1066 = vld [vmem:[#allocation8 + $0x378] sm:$0xff]
    %v1067 = vld [vmem:[#allocation8 + $0x380] sm:$0xff]
    %v1068 = vld [vmem:[#allocation8 + $0x388] sm:$0xff]
    %v1069 = vld [vmem:[#allocation8 + $0x390] sm:$0xff]
    %v1070 = vld [vmem:[#allocation8 + $0x398] sm:$0xff]
    %v1071 = vld [vmem:[#allocation8 + $0x3a0] sm:$0xff]
    %v1072 = vld [vmem:[#allocation8 + $0x3a8] sm:$0xff]
    %v1073 = vld [vmem:[#allocation8 + $0x3b0] sm:$0xff]
    %v1074 = vld [vmem:[#allocation8 + $0x3b8] sm:$0xff]
    %v1075 = vld [vmem:[#allocation8 + $0x3c0] sm:$0xff]
    %v1076 = vld [vmem:[#allocation8 + $0x3c8] sm:$0xff]
    %v1077 = vld [vmem:[#allocation8 + $0x3d0] sm:$0xff]
    %v1078 = vld [vmem:[#allocation8 + $0x3d8] sm:$0xff]
    %v1079 = vld [vmem:[#allocation8 + $0x3e0] sm:$0xff]
    %v1080 = vld [vmem:[#allocation8 + $0x3e8] sm:$0xff]
    %v1081 = vld [vmem:[#allocation8 + $0x3f0] sm:$0xff]
    %v1082 = vld [vmem:[#allocation8 + $0x3f8] sm:$0xff]
    %v1083 = vld [vmem:[#allocation8 + $0x400] sm:$0xff]
    %v1084 = vld [vmem:[#allocation8 + $0x408] sm:$0xff]
    %v1085 = vld [vmem:[#allocation8 + $0x410] sm:$0xff]
    %v1086 = vld [vmem:[#allocation8 + $0x418] sm:$0xff]
    %v1087 = vld [vmem:[#allocation8 + $0x420] sm:$0xff]
    %v1088 = vld [vmem:[#allocation8 + $0x428] sm:$0xff]
    %v1089 = vld [vmem:[#allocation8 + $0x430] sm:$0xff]
    %v1090 = vld [vmem:[#allocation8 + $0x438] sm:$0xff]
    %v1091 = vld [vmem:[#allocation8 + $0x440] sm:$0xff]
    %v1092 = vld [vmem:[#allocation8 + $0x448] sm:$0xff]
    %v1093 = vld [vmem:[#allocation8 + $0x450] sm:$0xff]
    %v1094 = vld [vmem:[#allocation8 + $0x458] sm:$0xff]
    %v1095 = vld [vmem:[#allocation8 + $0x460] sm:$0xff]
    %v1096 = vld [vmem:[#allocation8 + $0x468] sm:$0xff]
    %v1097 = vld [vmem:[#allocation8 + $0x470] sm:$0xff]
    %v1098 = vld [vmem:[#allocation8 + $0x478] sm:$0xff]
    %v1099 = vld [vmem:[#allocation8 + $0x480] sm:$0xff]
    %v1100 = vld [vmem:[#allocation8 + $0x488] sm:$0xff]
    %v1101 = vld [vmem:[#allocation8 + $0x490] sm:$0xff]
    %v1102 = vld [vmem:[#allocation8 + $0x498] sm:$0xff]
    %v1103 = vld [vmem:[#allocation8 + $0x4a0] sm:$0xff]
    %v1104 = vld [vmem:[#allocation8 + $0x4a8] sm:$0xff]
    %v1105 = vld [vmem:[#allocation8 + $0x4b0] sm:$0xff]
    %v1106 = vld [vmem:[#allocation8 + $0x4b8] sm:$0xff]
    %v1107 = vld [vmem:[#allocation8 + $0x4c0] sm:$0xff]
    %v1108 = vld [vmem:[#allocation8 + $0x4c8] sm:$0xff]
    %v1109 = vld [vmem:[#allocation8 + $0x4d0] sm:$0xff]
    %v1110 = vld [vmem:[#allocation8 + $0x4d8] sm:$0xff]
    %v1111 = vld [vmem:[#allocation8 + $0x4e0] sm:$0xff]
    %v1112 = vld [vmem:[#allocation8 + $0x4e8] sm:$0xff]
    %v1113 = vld [vmem:[#allocation8 + $0x4f0] sm:$0xff]
    %v1114 = vld [vmem:[#allocation8 + $0x4f8] sm:$0xff]
    %v1115 = vld [vmem:[#allocation8 + $0x500] sm:$0xff]
    %v1116 = vld [vmem:[#allocation8 + $0x508] sm:$0xff]
    %v1117 = vld [vmem:[#allocation8 + $0x510] sm:$0xff]
    %v1118 = vld [vmem:[#allocation8 + $0x518] sm:$0xff]
    %v1119 = vld [vmem:[#allocation8 + $0x520] sm:$0xff]
    %v1120 = vld [vmem:[#allocation8 + $0x528] sm:$0xff]
    %v1121 = vld [vmem:[#allocation8 + $0x530] sm:$0xff]
    %v1122 = vld [vmem:[#allocation8 + $0x538] sm:$0xff]
    %v1123 = vld [vmem:[#allocation8 + $0x540] sm:$0xff]
    %v1124 = vld [vmem:[#allocation8 + $0x548] sm:$0xff]
    %v1125 = vld [vmem:[#allocation8 + $0x550] sm:$0xff]
    %v1126 = vld [vmem:[#allocation8 + $0x558] sm:$0xff]
    %v1127 = vld [vmem:[#allocation8 + $0x560] sm:$0xff]
    %v1128 = vld [vmem:[#allocation8 + $0x568] sm:$0xff]
    %v1129 = vld [vmem:[#allocation8 + $0x570] sm:$0xff]
    %v1130 = vld [vmem:[#allocation8 + $0x578] sm:$0xff]
    %v1131 = vld [vmem:[#allocation8 + $0x580] sm:$0xff]
    %v1132 = vld [vmem:[#allocation8 + $0x588] sm:$0xff]
    %v1133 = vld [vmem:[#allocation8 + $0x590] sm:$0xff]
    %v1134 = vld [vmem:[#allocation8 + $0x598] sm:$0xff]
    %v1135 = vld [vmem:[#allocation8 + $0x5a0] sm:$0xff]
    %v1136 = vld [vmem:[#allocation8 + $0x5a8] sm:$0xff]
    %v1137 = vld [vmem:[#allocation8 + $0x5b0] sm:$0xff]
    %v1138 = vld [vmem:[#allocation8 + $0x5b8] sm:$0xff]
    %v1139 = vld [vmem:[#allocation8 + $0x5c0] sm:$0xff]
    %v1140 = vld [vmem:[#allocation8 + $0x5c8] sm:$0xff]
    %v1141 = vld [vmem:[#allocation8 + $0x5d0] sm:$0xff]
    %v1142 = vld [vmem:[#allocation8 + $0x5d8] sm:$0xff]
    %v1143 = vld [vmem:[#allocation8 + $0x5e0] sm:$0xff]
    %v1144 = vld [vmem:[#allocation8 + $0x5e8] sm:$0xff]
    %v1145 = vld [vmem:[#allocation8 + $0x5f0] sm:$0xff]
    %v1146 = vld [vmem:[#allocation8 + $0x5f8] sm:$0xff]
    %v1147 = vld [vmem:[#allocation8 + $0x600] sm:$0xff]
    %v1148 = vld [vmem:[#allocation8 + $0x608] sm:$0xff]
    %v1149 = vld [vmem:[#allocation8 + $0x610] sm:$0xff]
    %v1150 = vld [vmem:[#allocation8 + $0x618] sm:$0xff]
    %v1151 = vld [vmem:[#allocation8 + $0x620] sm:$0xff]
    %v1152 = vld [vmem:[#allocation8 + $0x628] sm:$0xff]
    %v1153 = vld [vmem:[#allocation8 + $0x630] sm:$0xff]
    %v1154 = vld [vmem:[#allocation8 + $0x638] sm:$0xff]
    %v1155 = vld [vmem:[#allocation8 + $0x640] sm:$0xff]
    %v1156 = vld [vmem:[#allocation8 + $0x648] sm:$0xff]
    %v1157 = vld [vmem:[#allocation8 + $0x650] sm:$0xff]
    %v1158 = vld [vmem:[#allocation8 + $0x658] sm:$0xff]
    %v1159 = vld [vmem:[#allocation8 + $0x660] sm:$0xff]
    %v1160 = vld [vmem:[#allocation8 + $0x668] sm:$0xff]
    %v1161 = vld [vmem:[#allocation8 + $0x670] sm:$0xff]
    %v1162 = vld [vmem:[#allocation8 + $0x678] sm:$0xff]
    %v1163 = vld [vmem:[#allocation8 + $0x680] sm:$0xff]
    %v1164 = vld [vmem:[#allocation8 + $0x688] sm:$0xff]
    %v1165 = vld [vmem:[#allocation8 + $0x690] sm:$0xff]
    %v1166 = vld [vmem:[#allocation8 + $0x698] sm:$0xff]
    %v1167 = vld [vmem:[#allocation8 + $0x6a0] sm:$0xff]
    %v1168 = vld [vmem:[#allocation8 + $0x6a8] sm:$0xff]
    %v1169 = vld [vmem:[#allocation8 + $0x6b0] sm:$0xff]
    %v1170 = vld [vmem:[#allocation8 + $0x6b8] sm:$0xff]
    %v1171 = vld [vmem:[#allocation8 + $0x6c0] sm:$0xff]
    %v1172 = vld [vmem:[#allocation8 + $0x6c8] sm:$0xff]
    %v1173 = vld [vmem:[#allocation8 + $0x6d0] sm:$0xff]
    %v1174 = vld [vmem:[#allocation8 + $0x6d8] sm:$0xff]
    %v1175 = vld [vmem:[#allocation8 + $0x6e0] sm:$0xff]
    %v1176 = vld [vmem:[#allocation8 + $0x6e8] sm:$0xff]
    %v1177 = vld [vmem:[#allocation8 + $0x6f0] sm:$0xff]
    %v1178 = vld [vmem:[#allocation8 + $0x6f8] sm:$0xff]
    %v1179 = vld [vmem:[#allocation8 + $0x700] sm:$0xff]
    %v1180 = vld [vmem:[#allocation8 + $0x708] sm:$0xff]
    %v1181 = vld [vmem:[#allocation8 + $0x710] sm:$0xff]
    %v1182 = vld [vmem:[#allocation8 + $0x718] sm:$0xff]
    %v1183 = vld [vmem:[#allocation8 + $0x720] sm:$0xff]
    %v1184 = vld [vmem:[#allocation8 + $0x728] sm:$0xff]
    %v1185 = vld [vmem:[#allocation8 + $0x730] sm:$0xff]
    %v1186 = vld [vmem:[#allocation8 + $0x738] sm:$0xff]
    %v1187 = vld [vmem:[#allocation8 + $0x740] sm:$0xff]
    %v1188 = vld [vmem:[#allocation8 + $0x748] sm:$0xff]
    %v1189 = vld [vmem:[#allocation8 + $0x750] sm:$0xff]
    %v1190 = vld [vmem:[#allocation8 + $0x758] sm:$0xff]
    %v1191 = vld [vmem:[#allocation8 + $0x760] sm:$0xff]
    %v1192 = vld [vmem:[#allocation8 + $0x768] sm:$0xff]
    %v1193 = vld [vmem:[#allocation8 + $0x770] sm:$0xff]
    %v1194 = vld [vmem:[#allocation8 + $0x778] sm:$0xff]
    %v1195 = vld [vmem:[#allocation8 + $0x780] sm:$0xff]
    %v1196 = vld [vmem:[#allocation8 + $0x788] sm:$0xff]
    %v1197 = vld [vmem:[#allocation8 + $0x790] sm:$0xff]
    %v1198 = vld [vmem:[#allocation8 + $0x798] sm:$0xff]
    %v1199 = vld [vmem:[#allocation8 + $0x7a0] sm:$0xff]
    %v1200 = vld [vmem:[#allocation8 + $0x7a8] sm:$0xff]
    %v1201 = vld [vmem:[#allocation8 + $0x7b0] sm:$0xff]
    %v1202 = vld [vmem:[#allocation8 + $0x7b8] sm:$0xff]
    %v1203 = vld [vmem:[#allocation8 + $0x7c0] sm:$0xff]
    %v1204 = vld [vmem:[#allocation8 + $0x7c8] sm:$0xff]
    %v1205 = vld [vmem:[#allocation8 + $0x7d0] sm:$0xff]
    %v1206 = vld [vmem:[#allocation8 + $0x7d8] sm:$0xff]
    %v1207 = vld [vmem:[#allocation8 + $0x7e0] sm:$0xff]
    %v1208 = vld [vmem:[#allocation8 + $0x7e8] sm:$0xff]
    %v1209 = vld [vmem:[#allocation8 + $0x7f0] sm:$0xff]
    %v1210 = vld [vmem:[#allocation8 + $0x7f8] sm:$0xff]
    %v1211 = vld [vmem:[#allocation10] sm:$0xf]
    %v1213 = vperm.slane %v1211, 0
    %v1214 = vperm.slane %v1211, 1
    %v1215 = vperm.slane %v1211, 2
    %v1216 = vperm.slane %v1211, 3
    %v1221 = vand.u32 %v1015, 4294901760
    %1222 = vmatpush.msra.mxu0 %v1221
    %v1223 = vand.u32 %v1011, 4294901760
    %1224 = vmatpush.msra.mxu0 %v1223
    %v1225 = vand.u32 %v1007, 4294901760
    %1226 = vmatpush.msra.mxu0 %v1225
    %v1227 = vand.u32 %v1003, 4294901760
    %1228 = vmatpush.msra.mxu0 %v1227
    %v1229 = vand.u32 %v999, 4294901760
    %1230 = vmatpush.msra.mxu0 %v1229
    %v1231 = vand.u32 %v995, 4294901760
    %1232 = vmatpush.msra.mxu0 %v1231
    %v1233 = vand.u32 %v991, 4294901760
    %1234 = vmatpush.msra.mxu0 %v1233
    %v1235 = vand.u32 %v987, 4294901760
    %1236 = vmatpush.msra.mxu0 %v1235
    %v1237 = vand.u32 %v983, 4294901760
    %1238 = vmatpush.msra.mxu0 %v1237
    %v1239 = vand.u32 %v979, 4294901760
    %1240 = vmatpush.msra.mxu0 %v1239
    %v1241 = vand.u32 %v975, 4294901760
    %1242 = vmatpush.msra.mxu0 %v1241
    %v1243 = vand.u32 %v971, 4294901760
    %1244 = vmatpush.msra.mxu0 %v1243
    %v1245 = vand.u32 %v967, 4294901760
    %1246 = vmatpush.msra.mxu0 %v1245
    %v1247 = vand.u32 %v963, 4294901760
    %1248 = vmatpush.msra.mxu0 %v1247
    %v1249 = vand.u32 %v959, 4294901760
    %1250 = vmatpush.msra.mxu0 %v1249
    %v1251 = vand.u32 %v955, 4294901760
    %1252 = vmatpush.msra.mxu0 %v1251
    %v1253 = vand.u32 %v951, 4294901760
    %v1254 = vsub.f32 %v951, %v1253
    %v1255 = vand.u32 %v1254, 4294901760
    %v1256 = vsub.f32 %v1254, %v1255
    %v1257 = vand.u32 %v1256, 4294901760
    %1258 = vmatmul.f32.gmra.mxu0 %v1257
    %v1259 = vpop.f32.mrf.mxu0
    %v1260 = vadd.f32 %v1213, %v1259
    %1261 = vdwg.mxu0
    %v1262 = vand.u32 %v1015, 4294901760
    %v1263 = vsub.f32 %v1015, %v1262
    %v1264 = vand.u32 %v1263, 4294901760
    %v1265 = vsub.f32 %v1263, %v1264
    %v1266 = vand.u32 %v1265, 4294901760
    %1267 = vmatpush.msra.mxu0 %v1266
    %v1268 = vand.u32 %v1011, 4294901760
    %v1269 = vsub.f32 %v1011, %v1268
    %v1270 = vand.u32 %v1269, 4294901760
    %v1271 = vsub.f32 %v1269, %v1270
    %v1272 = vand.u32 %v1271, 4294901760
    %1273 = vmatpush.msra.mxu0 %v1272
    %v1274 = vand.u32 %v1007, 4294901760
    %v1275 = vsub.f32 %v1007, %v1274
    %v1276 = vand.u32 %v1275, 4294901760
    %v1277 = vsub.f32 %v1275, %v1276
    %v1278 = vand.u32 %v1277, 4294901760
    %1279 = vmatpush.msra.mxu0 %v1278
    %v1280 = vand.u32 %v1003, 4294901760
    %v1281 = vsub.f32 %v1003, %v1280
    %v1282 = vand.u32 %v1281, 4294901760
    %v1283 = vsub.f32 %v1281, %v1282
    %v1284 = vand.u32 %v1283, 4294901760
    %1285 = vmatpush.msra.mxu0 %v1284
    %v1286 = vand.u32 %v999, 4294901760
    %v1287 = vsub.f32 %v999, %v1286
    %v1288 = vand.u32 %v1287, 4294901760
    %v1289 = vsub.f32 %v1287, %v1288
    %v1290 = vand.u32 %v1289, 4294901760
    %1291 = vmatpush.msra.mxu0 %v1290
    %v1292 = vand.u32 %v995, 4294901760
    %v1293 = vsub.f32 %v995, %v1292
    %v1294 = vand.u32 %v1293, 4294901760
    %v1295 = vsub.f32 %v1293, %v1294
    %v1296 = vand.u32 %v1295, 4294901760
    %1297 = vmatpush.msra.mxu0 %v1296
    %v1298 = vand.u32 %v991, 4294901760
    %v1299 = vsub.f32 %v991, %v1298
    %v1300 = vand.u32 %v1299, 4294901760
    %v1301 = vsub.f32 %v1299, %v1300
    %v1302 = vand.u32 %v1301, 4294901760
    %1303 = vmatpush.msra.mxu0 %v1302
    %v1304 = vand.u32 %v987, 4294901760
    %v1305 = vsub.f32 %v987, %v1304
    %v1306 = vand.u32 %v1305, 4294901760
    %v1307 = vsub.f32 %v1305, %v1306
    %v1308 = vand.u32 %v1307, 4294901760
    %1309 = vmatpush.msra.mxu0 %v1308
    %v1310 = vand.u32 %v983, 4294901760
    %v1311 = vsub.f32 %v983, %v1310
    %v1312 = vand.u32 %v1311, 4294901760
    %v1313 = vsub.f32 %v1311, %v1312
    %v1314 = vand.u32 %v1313, 4294901760
    %1315 = vmatpush.msra.mxu0 %v1314
    %v1316 = vand.u32 %v979, 4294901760
    %v1317 = vsub.f32 %v979, %v1316
    %v1318 = vand.u32 %v1317, 4294901760
    %v1319 = vsub.f32 %v1317, %v1318
    %v1320 = vand.u32 %v1319, 4294901760
    %1321 = vmatpush.msra.mxu0 %v1320
    %v1322 = vand.u32 %v975, 4294901760
    %v1323 = vsub.f32 %v975, %v1322
    %v1324 = vand.u32 %v1323, 4294901760
    %v1325 = vsub.f32 %v1323, %v1324
    %v1326 = vand.u32 %v1325, 4294901760
    %1327 = vmatpush.msra.mxu0 %v1326
    %v1328 = vand.u32 %v971, 4294901760
    %v1329 = vsub.f32 %v971, %v1328
    %v1330 = vand.u32 %v1329, 4294901760
    %v1331 = vsub.f32 %v1329, %v1330
    %v1332 = vand.u32 %v1331, 4294901760
    %1333 = vmatpush.msra.mxu0 %v1332
    %v1334 = vand.u32 %v967, 4294901760
    %v1335 = vsub.f32 %v967, %v1334
    %v1336 = vand.u32 %v1335, 4294901760
    %v1337 = vsub.f32 %v1335, %v1336
    %v1338 = vand.u32 %v1337, 4294901760
    %1339 = vmatpush.msra.mxu0 %v1338
    %v1340 = vand.u32 %v963, 4294901760
    %v1341 = vsub.f32 %v963, %v1340
    %v1342 = vand.u32 %v1341, 4294901760
    %v1343 = vsub.f32 %v1341, %v1342
    %v1344 = vand.u32 %v1343, 4294901760
    %1345 = vmatpush.msra.mxu0 %v1344
    %v1346 = vand.u32 %v959, 4294901760
    %v1347 = vsub.f32 %v959, %v1346
    %v1348 = vand.u32 %v1347, 4294901760
    %v1349 = vsub.f32 %v1347, %v1348
    %v1350 = vand.u32 %v1349, 4294901760
    %1351 = vmatpush.msra.mxu0 %v1350
    %v1352 = vand.u32 %v955, 4294901760
    %v1353 = vsub.f32 %v955, %v1352
    %v1354 = vand.u32 %v1353, 4294901760
    %v1355 = vsub.f32 %v1353, %v1354
    %v1356 = vand.u32 %v1355, 4294901760
    %1357 = vmatpush.msra.mxu0 %v1356
    %v1358 = vand.u32 %v951, 4294901760
    %1359 = vmatmul.f32.gmra.mxu0 %v1358
    %v1360 = vpop.f32.mrf.mxu0
    %v1361 = vadd.f32 %v1260, %v1360
    %1362 = vdwg.mxu0
    %v1363 = vand.u32 %v1015, 4294901760
    %v1364 = vsub.f32 %v1015, %v1363
    %1365 = vmatpush.msra.mxu0 %v1364
    %v1366 = vand.u32 %v1011, 4294901760
    %v1367 = vsub.f32 %v1011, %v1366
    %1368 = vmatpush.msra.mxu0 %v1367
    %v1369 = vand.u32 %v1007, 4294901760
    %v1370 = vsub.f32 %v1007, %v1369
    %1371 = vmatpush.msra.mxu0 %v1370
    %v1372 = vand.u32 %v1003, 4294901760
    %v1373 = vsub.f32 %v1003, %v1372
    %1374 = vmatpush.msra.mxu0 %v1373
    %v1375 = vand.u32 %v999, 4294901760
    %v1376 = vsub.f32 %v999, %v1375
    %1377 = vmatpush.msra.mxu0 %v1376
    %v1378 = vand.u32 %v995, 4294901760
    %v1379 = vsub.f32 %v995, %v1378
    %1380 = vmatpush.msra.mxu0 %v1379
    %v1381 = vand.u32 %v991, 4294901760
    %v1382 = vsub.f32 %v991, %v1381
    %1383 = vmatpush.msra.mxu0 %v1382
    %v1384 = vand.u32 %v987, 4294901760
    %v1385 = vsub.f32 %v987, %v1384
    %1386 = vmatpush.msra.mxu0 %v1385
    %v1387 = vand.u32 %v983, 4294901760
    %v1388 = vsub.f32 %v983, %v1387
    %1389 = vmatpush.msra.mxu0 %v1388
    %v1390 = vand.u32 %v979, 4294901760
    %v1391 = vsub.f32 %v979, %v1390
    %1392 = vmatpush.msra.mxu0 %v1391
    %v1393 = vand.u32 %v975, 4294901760
    %v1394 = vsub.f32 %v975, %v1393
    %1395 = vmatpush.msra.mxu0 %v1394
    %v1396 = vand.u32 %v971, 4294901760
    %v1397 = vsub.f32 %v971, %v1396
    %1398 = vmatpush.msra.mxu0 %v1397
    %v1399 = vand.u32 %v967, 4294901760
    %v1400 = vsub.f32 %v967, %v1399
    %1401 = vmatpush.msra.mxu0 %v1400
    %v1402 = vand.u32 %v963, 4294901760
    %v1403 = vsub.f32 %v963, %v1402
    %1404 = vmatpush.msra.mxu0 %v1403
    %v1405 = vand.u32 %v959, 4294901760
    %v1406 = vsub.f32 %v959, %v1405
    %1407 = vmatpush.msra.mxu0 %v1406
    %v1408 = vand.u32 %v955, 4294901760
    %v1409 = vsub.f32 %v955, %v1408
    %1410 = vmatpush.msra.mxu0 %v1409
    %v1411 = vand.u32 %v951, 4294901760
    %v1412 = vsub.f32 %v951, %v1411
    %1413 = vmatmul.f32.gmra.mxu0 %v1412
    %v1414 = vpop.f32.mrf.mxu0
    %v1415 = vadd.f32 %v1361, %v1414
    %1416 = vdwg.mxu0
    %v1417 = vand.u32 %v1015, 4294901760
    %1418 = vmatpush.msra.mxu0 %v1417
    %v1419 = vand.u32 %v1011, 4294901760
    %1420 = vmatpush.msra.mxu0 %v1419
    %v1421 = vand.u32 %v1007, 4294901760
    %1422 = vmatpush.msra.mxu0 %v1421
    %v1423 = vand.u32 %v1003, 4294901760
    %1424 = vmatpush.msra.mxu0 %v1423
    %v1425 = vand.u32 %v999, 4294901760
    %1426 = vmatpush.msra.mxu0 %v1425
    %v1427 = vand.u32 %v995, 4294901760
    %1428 = vmatpush.msra.mxu0 %v1427
    %v1429 = vand.u32 %v991, 4294901760
    %1430 = vmatpush.msra.mxu0 %v1429
    %v1431 = vand.u32 %v987, 4294901760
    %1432 = vmatpush.msra.mxu0 %v1431
    %v1433 = vand.u32 %v983, 4294901760
    %1434 = vmatpush.msra.mxu0 %v1433
    %v1435 = vand.u32 %v979, 4294901760
    %1436 = vmatpush.msra.mxu0 %v1435
    %v1437 = vand.u32 %v975, 4294901760
    %1438 = vmatpush.msra.mxu0 %v1437
    %v1439 = vand.u32 %v971, 4294901760
    %1440 = vmatpush.msra.mxu0 %v1439
    %v1441 = vand.u32 %v967, 4294901760
    %1442 = vmatpush.msra.mxu0 %v1441
    %v1443 = vand.u32 %v963, 4294901760
    %1444 = vmatpush.msra.mxu0 %v1443
    %v1445 = vand.u32 %v959, 4294901760
    %1446 = vmatpush.msra.mxu0 %v1445
    %v1447 = vand.u32 %v955, 4294901760
    %1448 = vmatpush.msra.mxu0 %v1447
    %v1449 = vand.u32 %v951, 4294901760
    %v1450 = vsub.f32 %v951, %v1449
    %v1451 = vand.u32 %v1450, 4294901760
    %1452 = vmatmul.f32.gmra.mxu0 %v1451
    %v1453 = vpop.f32.mrf.mxu0
    %v1454 = vadd.f32 %v1415, %v1453
    %1455 = vdwg.mxu0
    %v1456 = vand.u32 %v1015, 4294901760
    %v1457 = vsub.f32 %v1015, %v1456
    %v1458 = vand.u32 %v1457, 4294901760
    %1459 = vmatpush.msra.mxu0 %v1458
    %v1460 = vand.u32 %v1011, 4294901760
    %v1461 = vsub.f32 %v1011, %v1460
    %v1462 = vand.u32 %v1461, 4294901760
    %1463 = vmatpush.msra.mxu0 %v1462
    %v1464 = vand.u32 %v1007, 4294901760
    %v1465 = vsub.f32 %v1007, %v1464
    %v1466 = vand.u32 %v1465, 4294901760
    %1467 = vmatpush.msra.mxu0 %v1466
    %v1468 = vand.u32 %v1003, 4294901760
    %v1469 = vsub.f32 %v1003, %v1468
    %v1470 = vand.u32 %v1469, 4294901760
    %1471 = vmatpush.msra.mxu0 %v1470
    %v1472 = vand.u32 %v999, 4294901760
    %v1473 = vsub.f32 %v999, %v1472
    %v1474 = vand.u32 %v1473, 4294901760
    %1475 = vmatpush.msra.mxu0 %v1474
    %v1476 = vand.u32 %v995, 4294901760
    %v1477 = vsub.f32 %v995, %v1476
    %v1478 = vand.u32 %v1477, 4294901760
    %1479 = vmatpush.msra.mxu0 %v1478
    %v1480 = vand.u32 %v991, 4294901760
    %v1481 = vsub.f32 %v991, %v1480
    %v1482 = vand.u32 %v1481, 4294901760
    %1483 = vmatpush.msra.mxu0 %v1482
    %v1484 = vand.u32 %v987, 4294901760
    %v1485 = vsub.f32 %v987, %v1484
    %v1486 = vand.u32 %v1485, 4294901760
    %1487 = vmatpush.msra.mxu0 %v1486
    %v1488 = vand.u32 %v983, 4294901760
    %v1489 = vsub.f32 %v983, %v1488
    %v1490 = vand.u32 %v1489, 4294901760
    %1491 = vmatpush.msra.mxu0 %v1490
    %v1492 = vand.u32 %v979, 4294901760
    %v1493 = vsub.f32 %v979, %v1492
    %v1494 = vand.u32 %v1493, 4294901760
    %1495 = vmatpush.msra.mxu0 %v1494
    %v1496 = vand.u32 %v975, 4294901760
    %v1497 = vsub.f32 %v975, %v1496
    %v1498 = vand.u32 %v1497, 4294901760
    %1499 = vmatpush.msra.mxu0 %v1498
    %v1500 = vand.u32 %v971, 4294901760
    %v1501 = vsub.f32 %v971, %v1500
    %v1502 = vand.u32 %v1501, 4294901760
    %1503 = vmatpush.msra.mxu0 %v1502
    %v1504 = vand.u32 %v967, 4294901760
    %v1505 = vsub.f32 %v967, %v1504
    %v1506 = vand.u32 %v1505, 4294901760
    %1507 = vmatpush.msra.mxu0 %v1506
    %v1508 = vand.u32 %v963, 4294901760
    %v1509 = vsub.f32 %v963, %v1508
    %v1510 = vand.u32 %v1509, 4294901760
    %1511 = vmatpush.msra.mxu0 %v1510
    %v1512 = vand.u32 %v959, 4294901760
    %v1513 = vsub.f32 %v959, %v1512
    %v1514 = vand.u32 %v1513, 4294901760
    %1515 = vmatpush.msra.mxu0 %v1514
    %v1516 = vand.u32 %v955, 4294901760
    %v1517 = vsub.f32 %v955, %v1516
    %v1518 = vand.u32 %v1517, 4294901760
    %1519 = vmatpush.msra.mxu0 %v1518
    %v1520 = vand.u32 %v951, 4294901760
    %1521 = vmatmul.f32.gmra.mxu0 %v1520
    %v1522 = vpop.f32.mrf.mxu0
    %v1523 = vadd.f32 %v1454, %v1522
    %1524 = vdwg.mxu0
    %v1525 = vand.u32 %v1015, 4294901760
    %1526 = vmatpush.msra.mxu0 %v1525
    %v1527 = vand.u32 %v1011, 4294901760
    %1528 = vmatpush.msra.mxu0 %v1527
    %v1529 = vand.u32 %v1007, 4294901760
    %1530 = vmatpush.msra.mxu0 %v1529
    %v1531 = vand.u32 %v1003, 4294901760
    %1532 = vmatpush.msra.mxu0 %v1531
    %v1533 = vand.u32 %v999, 4294901760
    %1534 = vmatpush.msra.mxu0 %v1533
    %v1535 = vand.u32 %v995, 4294901760
    %1536 = vmatpush.msra.mxu0 %v1535
    %v1537 = vand.u32 %v991, 4294901760
    %1538 = vmatpush.msra.mxu0 %v1537
    %v1539 = vand.u32 %v987, 4294901760
    %1540 = vmatpush.msra.mxu0 %v1539
    %v1541 = vand.u32 %v983, 4294901760
    %1542 = vmatpush.msra.mxu0 %v1541
    %v1543 = vand.u32 %v979, 4294901760
    %1544 = vmatpush.msra.mxu0 %v1543
    %v1545 = vand.u32 %v975, 4294901760
    %1546 = vmatpush.msra.mxu0 %v1545
    %v1547 = vand.u32 %v971, 4294901760
    %1548 = vmatpush.msra.mxu0 %v1547
    %v1549 = vand.u32 %v967, 4294901760
    %1550 = vmatpush.msra.mxu0 %v1549
    %v1551 = vand.u32 %v963, 4294901760
    %1552 = vmatpush.msra.mxu0 %v1551
    %v1553 = vand.u32 %v959, 4294901760
    %1554 = vmatpush.msra.mxu0 %v1553
    %v1555 = vand.u32 %v955, 4294901760
    %1556 = vmatpush.msra.mxu0 %v1555
    %v1557 = vand.u32 %v951, 4294901760
    %1558 = vmatmul.f32.gmra.mxu0 %v1557
    %v1559 = vpop.f32.mrf.mxu0
    %v1560 = vadd.f32 %v1523, %v1559
    %1561 = vdwg.mxu0
    %v1562 = vand.u32 %v1079, 4294901760
    %1563 = vmatpush.msra.mxu0 %v1562
    %v1564 = vand.u32 %v1075, 4294901760
    %1565 = vmatpush.msra.mxu0 %v1564
    %v1566 = vand.u32 %v1071, 4294901760
    %1567 = vmatpush.msra.mxu0 %v1566
    %v1568 = vand.u32 %v1067, 4294901760
    %1569 = vmatpush.msra.mxu0 %v1568
    %v1570 = vand.u32 %v1063, 4294901760
    %1571 = vmatpush.msra.mxu0 %v1570
    %v1572 = vand.u32 %v1059, 4294901760
    %1573 = vmatpush.msra.mxu0 %v1572
    %v1574 = vand.u32 %v1055, 4294901760
    %1575 = vmatpush.msra.mxu0 %v1574
    %v1576 = vand.u32 %v1051, 4294901760
    %1577 = vmatpush.msra.mxu0 %v1576
    %v1578 = vand.u32 %v1047, 4294901760
    %1579 = vmatpush.msra.mxu0 %v1578
    %v1580 = vand.u32 %v1043, 4294901760
    %1581 = vmatpush.msra.mxu0 %v1580
    %v1582 = vand.u32 %v1039, 4294901760
    %1583 = vmatpush.msra.mxu0 %v1582
    %v1584 = vand.u32 %v1035, 4294901760
    %1585 = vmatpush.msra.mxu0 %v1584
    %v1586 = vand.u32 %v1031, 4294901760
    %1587 = vmatpush.msra.mxu0 %v1586
    %v1588 = vand.u32 %v1027, 4294901760
    %1589 = vmatpush.msra.mxu0 %v1588
    %v1590 = vand.u32 %v1023, 4294901760
    %1591 = vmatpush.msra.mxu0 %v1590
    %v1592 = vand.u32 %v1019, 4294901760
    %1593 = vmatpush.msra.mxu0 %v1592
    %v1594 = vand.u32 %v952, 4294901760
    %v1595 = vsub.f32 %v952, %v1594
    %v1596 = vand.u32 %v1595, 4294901760
    %v1597 = vsub.f32 %v1595, %v1596
    %v1598 = vand.u32 %v1597, 4294901760
    %1599 = vmatmul.f32.gmra.mxu0 %v1598
    %v1600 = vpop.f32.mrf.mxu0
    %v1601 = vadd.f32 %v1560, %v1600
    %1602 = vdwg.mxu0
    %v1603 = vand.u32 %v1079, 4294901760
    %v1604 = vsub.f32 %v1079, %v1603
    %v1605 = vand.u32 %v1604, 4294901760
    %v1606 = vsub.f32 %v1604, %v1605
    %v1607 = vand.u32 %v1606, 4294901760
    %1608 = vmatpush.msra.mxu0 %v1607
    %v1609 = vand.u32 %v1075, 4294901760
    %v1610 = vsub.f32 %v1075, %v1609
    %v1611 = vand.u32 %v1610, 4294901760
    %v1612 = vsub.f32 %v1610, %v1611
    %v1613 = vand.u32 %v1612, 4294901760
    %1614 = vmatpush.msra.mxu0 %v1613
    %v1615 = vand.u32 %v1071, 4294901760
    %v1616 = vsub.f32 %v1071, %v1615
    %v1617 = vand.u32 %v1616, 4294901760
    %v1618 = vsub.f32 %v1616, %v1617
    %v1619 = vand.u32 %v1618, 4294901760
    %1620 = vmatpush.msra.mxu0 %v1619
    %v1621 = vand.u32 %v1067, 4294901760
    %v1622 = vsub.f32 %v1067, %v1621
    %v1623 = vand.u32 %v1622, 4294901760
    %v1624 = vsub.f32 %v1622, %v1623
    %v1625 = vand.u32 %v1624, 4294901760
    %1626 = vmatpush.msra.mxu0 %v1625
    %v1627 = vand.u32 %v1063, 4294901760
    %v1628 = vsub.f32 %v1063, %v1627
    %v1629 = vand.u32 %v1628, 4294901760
    %v1630 = vsub.f32 %v1628, %v1629
    %v1631 = vand.u32 %v1630, 4294901760
    %1632 = vmatpush.msra.mxu0 %v1631
    %v1633 = vand.u32 %v1059, 4294901760
    %v1634 = vsub.f32 %v1059, %v1633
    %v1635 = vand.u32 %v1634, 4294901760
    %v1636 = vsub.f32 %v1634, %v1635
    %v1637 = vand.u32 %v1636, 4294901760
    %1638 = vmatpush.msra.mxu0 %v1637
    %v1639 = vand.u32 %v1055, 4294901760
    %v1640 = vsub.f32 %v1055, %v1639
    %v1641 = vand.u32 %v1640, 4294901760
    %v1642 = vsub.f32 %v1640, %v1641
    %v1643 = vand.u32 %v1642, 4294901760
    %1644 = vmatpush.msra.mxu0 %v1643
    %v1645 = vand.u32 %v1051, 4294901760
    %v1646 = vsub.f32 %v1051, %v1645
    %v1647 = vand.u32 %v1646, 4294901760
    %v1648 = vsub.f32 %v1646, %v1647
    %v1649 = vand.u32 %v1648, 4294901760
    %1650 = vmatpush.msra.mxu0 %v1649
    %v1651 = vand.u32 %v1047, 4294901760
    %v1652 = vsub.f32 %v1047, %v1651
    %v1653 = vand.u32 %v1652, 4294901760
    %v1654 = vsub.f32 %v1652, %v1653
    %v1655 = vand.u32 %v1654, 4294901760
    %1656 = vmatpush.msra.mxu0 %v1655
    %v1657 = vand.u32 %v1043, 4294901760
    %v1658 = vsub.f32 %v1043, %v1657
    %v1659 = vand.u32 %v1658, 4294901760
    %v1660 = vsub.f32 %v1658, %v1659
    %v1661 = vand.u32 %v1660, 4294901760
    %1662 = vmatpush.msra.mxu0 %v1661
    %v1663 = vand.u32 %v1039, 4294901760
    %v1664 = vsub.f32 %v1039, %v1663
    %v1665 = vand.u32 %v1664, 4294901760
    %v1666 = vsub.f32 %v1664, %v1665
    %v1667 = vand.u32 %v1666, 4294901760
    %1668 = vmatpush.msra.mxu0 %v1667
    %v1669 = vand.u32 %v1035, 4294901760
    %v1670 = vsub.f32 %v1035, %v1669
    %v1671 = vand.u32 %v1670, 4294901760
    %v1672 = vsub.f32 %v1670, %v1671
    %v1673 = vand.u32 %v1672, 4294901760
    %1674 = vmatpush.msra.mxu0 %v1673
    %v1675 = vand.u32 %v1031, 4294901760
    %v1676 = vsub.f32 %v1031, %v1675
    %v1677 = vand.u32 %v1676, 4294901760
    %v1678 = vsub.f32 %v1676, %v1677
    %v1679 = vand.u32 %v1678, 4294901760
    %1680 = vmatpush.msra.mxu0 %v1679
    %v1681 = vand.u32 %v1027, 4294901760
    %v1682 = vsub.f32 %v1027, %v1681
    %v1683 = vand.u32 %v1682, 4294901760
    %v1684 = vsub.f32 %v1682, %v1683
    %v1685 = vand.u32 %v1684, 4294901760
    %1686 = vmatpush.msra.mxu0 %v1685
    %v1687 = vand.u32 %v1023, 4294901760
    %v1688 = vsub.f32 %v1023, %v1687
    %v1689 = vand.u32 %v1688, 4294901760
    %v1690 = vsub.f32 %v1688, %v1689
    %v1691 = vand.u32 %v1690, 4294901760
    %1692 = vmatpush.msra.mxu0 %v1691
    %v1693 = vand.u32 %v1019, 4294901760
    %v1694 = vsub.f32 %v1019, %v1693
    %v1695 = vand.u32 %v1694, 4294901760
    %v1696 = vsub.f32 %v1694, %v1695
    %v1697 = vand.u32 %v1696, 4294901760
    %1698 = vmatpush.msra.mxu0 %v1697
    %v1699 = vand.u32 %v952, 4294901760
    %1700 = vmatmul.f32.gmra.mxu0 %v1699
    %v1701 = vpop.f32.mrf.mxu0
    %v1702 = vadd.f32 %v1601, %v1701
    %1703 = vdwg.mxu0
    %v1704 = vand.u32 %v1079, 4294901760
    %v1705 = vsub.f32 %v1079, %v1704
    %1706 = vmatpush.msra.mxu0 %v1705
    %v1707 = vand.u32 %v1075, 4294901760
    %v1708 = vsub.f32 %v1075, %v1707
    %1709 = vmatpush.msra.mxu0 %v1708
    %v1710 = vand.u32 %v1071, 4294901760
    %v1711 = vsub.f32 %v1071, %v1710
    %1712 = vmatpush.msra.mxu0 %v1711
    %v1713 = vand.u32 %v1067, 4294901760
    %v1714 = vsub.f32 %v1067, %v1713
    %1715 = vmatpush.msra.mxu0 %v1714
    %v1716 = vand.u32 %v1063, 4294901760
    %v1717 = vsub.f32 %v1063, %v1716
    %1718 = vmatpush.msra.mxu0 %v1717
    %v1719 = vand.u32 %v1059, 4294901760
    %v1720 = vsub.f32 %v1059, %v1719
    %1721 = vmatpush.msra.mxu0 %v1720
    %v1722 = vand.u32 %v1055, 4294901760
    %v1723 = vsub.f32 %v1055, %v1722
    %1724 = vmatpush.msra.mxu0 %v1723
    %v1725 = vand.u32 %v1051, 4294901760
    %v1726 = vsub.f32 %v1051, %v1725
    %1727 = vmatpush.msra.mxu0 %v1726
    %v1728 = vand.u32 %v1047, 4294901760
    %v1729 = vsub.f32 %v1047, %v1728
    %1730 = vmatpush.msra.mxu0 %v1729
    %v1731 = vand.u32 %v1043, 4294901760
    %v1732 = vsub.f32 %v1043, %v1731
    %1733 = vmatpush.msra.mxu0 %v1732
    %v1734 = vand.u32 %v1039, 4294901760
    %v1735 = vsub.f32 %v1039, %v1734
    %1736 = vmatpush.msra.mxu0 %v1735
    %v1737 = vand.u32 %v1035, 4294901760
    %v1738 = vsub.f32 %v1035, %v1737
    %1739 = vmatpush.msra.mxu0 %v1738
    %v1740 = vand.u32 %v1031, 4294901760
    %v1741 = vsub.f32 %v1031, %v1740
    %1742 = vmatpush.msra.mxu0 %v1741
    %v1743 = vand.u32 %v1027, 4294901760
    %v1744 = vsub.f32 %v1027, %v1743
    %1745 = vmatpush.msra.mxu0 %v1744
    %v1746 = vand.u32 %v1023, 4294901760
    %v1747 = vsub.f32 %v1023, %v1746
    %1748 = vmatpush.msra.mxu0 %v1747
    %v1749 = vand.u32 %v1019, 4294901760
    %v1750 = vsub.f32 %v1019, %v1749
    %1751 = vmatpush.msra.mxu0 %v1750
    %v1752 = vand.u32 %v952, 4294901760
    %v1753 = vsub.f32 %v952, %v1752
    %1754 = vmatmul.f32.gmra.mxu0 %v1753
    %v1755 = vpop.f32.mrf.mxu0
    %v1756 = vadd.f32 %v1702, %v1755
    %1757 = vdwg.mxu0
    %v1758 = vand.u32 %v1079, 4294901760
    %1759 = vmatpush.msra.mxu0 %v1758
    %v1760 = vand.u32 %v1075, 4294901760
    %1761 = vmatpush.msra.mxu0 %v1760
    %v1762 = vand.u32 %v1071, 4294901760
    %1763 = vmatpush.msra.mxu0 %v1762
    %v1764 = vand.u32 %v1067, 4294901760
    %1765 = vmatpush.msra.mxu0 %v1764
    %v1766 = vand.u32 %v1063, 4294901760
    %1767 = vmatpush.msra.mxu0 %v1766
    %v1768 = vand.u32 %v1059, 4294901760
    %1769 = vmatpush.msra.mxu0 %v1768
    %v1770 = vand.u32 %v1055, 4294901760
    %1771 = vmatpush.msra.mxu0 %v1770
    %v1772 = vand.u32 %v1051, 4294901760
    %1773 = vmatpush.msra.mxu0 %v1772
    %v1774 = vand.u32 %v1047, 4294901760
    %1775 = vmatpush.msra.mxu0 %v1774
    %v1776 = vand.u32 %v1043, 4294901760
    %1777 = vmatpush.msra.mxu0 %v1776
    %v1778 = vand.u32 %v1039, 4294901760
    %1779 = vmatpush.msra.mxu0 %v1778
    %v1780 = vand.u32 %v1035, 4294901760
    %1781 = vmatpush.msra.mxu0 %v1780
    %v1782 = vand.u32 %v1031, 4294901760
    %1783 = vmatpush.msra.mxu0 %v1782
    %v1784 = vand.u32 %v1027, 4294901760
    %1785 = vmatpush.msra.mxu0 %v1784
    %v1786 = vand.u32 %v1023, 4294901760
    %1787 = vmatpush.msra.mxu0 %v1786
    %v1788 = vand.u32 %v1019, 4294901760
    %1789 = vmatpush.msra.mxu0 %v1788
    %v1790 = vand.u32 %v952, 4294901760
    %v1791 = vsub.f32 %v952, %v1790
    %v1792 = vand.u32 %v1791, 4294901760
    %1793 = vmatmul.f32.gmra.mxu0 %v1792
    %v1794 = vpop.f32.mrf.mxu0
    %v1795 = vadd.f32 %v1756, %v1794
    %1796 = vdwg.mxu0
    %v1797 = vand.u32 %v1079, 4294901760
    %v1798 = vsub.f32 %v1079, %v1797
    %v1799 = vand.u32 %v1798, 4294901760
    %1800 = vmatpush.msra.mxu0 %v1799
    %v1801 = vand.u32 %v1075, 4294901760
    %v1802 = vsub.f32 %v1075, %v1801
    %v1803 = vand.u32 %v1802, 4294901760
    %1804 = vmatpush.msra.mxu0 %v1803
    %v1805 = vand.u32 %v1071, 4294901760
    %v1806 = vsub.f32 %v1071, %v1805
    %v1807 = vand.u32 %v1806, 4294901760
    %1808 = vmatpush.msra.mxu0 %v1807
    %v1809 = vand.u32 %v1067, 4294901760
    %v1810 = vsub.f32 %v1067, %v1809
    %v1811 = vand.u32 %v1810, 4294901760
    %1812 = vmatpush.msra.mxu0 %v1811
    %v1813 = vand.u32 %v1063, 4294901760
    %v1814 = vsub.f32 %v1063, %v1813
    %v1815 = vand.u32 %v1814, 4294901760
    %1816 = vmatpush.msra.mxu0 %v1815
    %v1817 = vand.u32 %v1059, 4294901760
    %v1818 = vsub.f32 %v1059, %v1817
    %v1819 = vand.u32 %v1818, 4294901760
    %1820 = vmatpush.msra.mxu0 %v1819
    %v1821 = vand.u32 %v1055, 4294901760
    %v1822 = vsub.f32 %v1055, %v1821
    %v1823 = vand.u32 %v1822, 4294901760
    %1824 = vmatpush.msra.mxu0 %v1823
    %v1825 = vand.u32 %v1051, 4294901760
    %v1826 = vsub.f32 %v1051, %v1825
    %v1827 = vand.u32 %v1826, 4294901760
    %1828 = vmatpush.msra.mxu0 %v1827
    %v1829 = vand.u32 %v1047, 4294901760
    %v1830 = vsub.f32 %v1047, %v1829
    %v1831 = vand.u32 %v1830, 4294901760
    %1832 = vmatpush.msra.mxu0 %v1831
    %v1833 = vand.u32 %v1043, 4294901760
    %v1834 = vsub.f32 %v1043, %v1833
    %v1835 = vand.u32 %v1834, 4294901760
    %1836 = vmatpush.msra.mxu0 %v1835
    %v1837 = vand.u32 %v1039, 4294901760
    %v1838 = vsub.f32 %v1039, %v1837
    %v1839 = vand.u32 %v1838, 4294901760
    %1840 = vmatpush.msra.mxu0 %v1839
    %v1841 = vand.u32 %v1035, 4294901760
    %v1842 = vsub.f32 %v1035, %v1841
    %v1843 = vand.u32 %v1842, 4294901760
    %1844 = vmatpush.msra.mxu0 %v1843
    %v1845 = vand.u32 %v1031, 4294901760
    %v1846 = vsub.f32 %v1031, %v1845
    %v1847 = vand.u32 %v1846, 4294901760
    %1848 = vmatpush.msra.mxu0 %v1847
    %v1849 = vand.u32 %v1027, 4294901760
    %v1850 = vsub.f32 %v1027, %v1849
    %v1851 = vand.u32 %v1850, 4294901760
    %1852 = vmatpush.msra.mxu0 %v1851
    %v1853 = vand.u32 %v1023, 4294901760
    %v1854 = vsub.f32 %v1023, %v1853
    %v1855 = vand.u32 %v1854, 4294901760
    %1856 = vmatpush.msra.mxu0 %v1855
    %v1857 = vand.u32 %v1019, 4294901760
    %v1858 = vsub.f32 %v1019, %v1857
    %v1859 = vand.u32 %v1858, 4294901760
    %1860 = vmatpush.msra.mxu0 %v1859
    %v1861 = vand.u32 %v952, 4294901760
    %1862 = vmatmul.f32.gmra.mxu0 %v1861
    %v1863 = vpop.f32.mrf.mxu0
    %v1864 = vadd.f32 %v1795, %v1863
    %1865 = vdwg.mxu0
    %v1866 = vand.u32 %v1079, 4294901760
    %1867 = vmatpush.msra.mxu0 %v1866
    %v1868 = vand.u32 %v1075, 4294901760
    %1869 = vmatpush.msra.mxu0 %v1868
    %v1870 = vand.u32 %v1071, 4294901760
    %1871 = vmatpush.msra.mxu0 %v1870
    %v1872 = vand.u32 %v1067, 4294901760
    %1873 = vmatpush.msra.mxu0 %v1872
    %v1874 = vand.u32 %v1063, 4294901760
    %1875 = vmatpush.msra.mxu0 %v1874
    %v1876 = vand.u32 %v1059, 4294901760
    %1877 = vmatpush.msra.mxu0 %v1876
    %v1878 = vand.u32 %v1055, 4294901760
    %1879 = vmatpush.msra.mxu0 %v1878
    %v1880 = vand.u32 %v1051, 4294901760
    %1881 = vmatpush.msra.mxu0 %v1880
    %v1882 = vand.u32 %v1047, 4294901760
    %1883 = vmatpush.msra.mxu0 %v1882
    %v1884 = vand.u32 %v1043, 4294901760
    %1885 = vmatpush.msra.mxu0 %v1884
    %v1886 = vand.u32 %v1039, 4294901760
    %1887 = vmatpush.msra.mxu0 %v1886
    %v1888 = vand.u32 %v1035, 4294901760
    %1889 = vmatpush.msra.mxu0 %v1888
    %v1890 = vand.u32 %v1031, 4294901760
    %1891 = vmatpush.msra.mxu0 %v1890
    %v1892 = vand.u32 %v1027, 4294901760
    %1893 = vmatpush.msra.mxu0 %v1892
    %v1894 = vand.u32 %v1023, 4294901760
    %1895 = vmatpush.msra.mxu0 %v1894
    %v1896 = vand.u32 %v1019, 4294901760
    %1897 = vmatpush.msra.mxu0 %v1896
    %v1898 = vand.u32 %v952, 4294901760
    %1899 = vmatmul.f32.gmra.mxu0 %v1898
    %v1900 = vpop.f32.mrf.mxu0
    %v1901 = vadd.f32 %v1864, %v1900
    %1902 = vdwg.mxu0
    %v1903 = vand.u32 %v1143, 4294901760
    %1904 = vmatpush.msra.mxu0 %v1903
    %v1905 = vand.u32 %v1139, 4294901760
    %1906 = vmatpush.msra.mxu0 %v1905
    %v1907 = vand.u32 %v1135, 4294901760
    %1908 = vmatpush.msra.mxu0 %v1907
    %v1909 = vand.u32 %v1131, 4294901760
    %1910 = vmatpush.msra.mxu0 %v1909
    %v1911 = vand.u32 %v1127, 4294901760
    %1912 = vmatpush.msra.mxu0 %v1911
    %v1913 = vand.u32 %v1123, 4294901760
    %1914 = vmatpush.msra.mxu0 %v1913
    %v1915 = vand.u32 %v1119, 4294901760
    %1916 = vmatpush.msra.mxu0 %v1915
    %v1917 = vand.u32 %v1115, 4294901760
    %1918 = vmatpush.msra.mxu0 %v1917
    %v1919 = vand.u32 %v1111, 4294901760
    %1920 = vmatpush.msra.mxu0 %v1919
    %v1921 = vand.u32 %v1107, 4294901760
    %1922 = vmatpush.msra.mxu0 %v1921
    %v1923 = vand.u32 %v1103, 4294901760
    %1924 = vmatpush.msra.mxu0 %v1923
    %v1925 = vand.u32 %v1099, 4294901760
    %1926 = vmatpush.msra.mxu0 %v1925
    %v1927 = vand.u32 %v1095, 4294901760
    %1928 = vmatpush.msra.mxu0 %v1927
    %v1929 = vand.u32 %v1091, 4294901760
    %1930 = vmatpush.msra.mxu0 %v1929
    %v1931 = vand.u32 %v1087, 4294901760
    %1932 = vmatpush.msra.mxu0 %v1931
    %v1933 = vand.u32 %v1083, 4294901760
    %1934 = vmatpush.msra.mxu0 %v1933
    %v1935 = vand.u32 %v953, 4294901760
    %v1936 = vsub.f32 %v953, %v1935
    %v1937 = vand.u32 %v1936, 4294901760
    %v1938 = vsub.f32 %v1936, %v1937
    %v1939 = vand.u32 %v1938, 4294901760
    %1940 = vmatmul.f32.gmra.mxu0 %v1939
    %v1941 = vpop.f32.mrf.mxu0
    %v1942 = vadd.f32 %v1901, %v1941
    %1943 = vdwg.mxu0
    %v1944 = vand.u32 %v1143, 4294901760
    %v1945 = vsub.f32 %v1143, %v1944
    %v1946 = vand.u32 %v1945, 4294901760
    %v1947 = vsub.f32 %v1945, %v1946
    %v1948 = vand.u32 %v1947, 4294901760
    %1949 = vmatpush.msra.mxu0 %v1948
    %v1950 = vand.u32 %v1139, 4294901760
    %v1951 = vsub.f32 %v1139, %v1950
    %v1952 = vand.u32 %v1951, 4294901760
    %v1953 = vsub.f32 %v1951, %v1952
    %v1954 = vand.u32 %v1953, 4294901760
    %1955 = vmatpush.msra.mxu0 %v1954
    %v1956 = vand.u32 %v1135, 4294901760
    %v1957 = vsub.f32 %v1135, %v1956
    %v1958 = vand.u32 %v1957, 4294901760
    %v1959 = vsub.f32 %v1957, %v1958
    %v1960 = vand.u32 %v1959, 4294901760
    %1961 = vmatpush.msra.mxu0 %v1960
    %v1962 = vand.u32 %v1131, 4294901760
    %v1963 = vsub.f32 %v1131, %v1962
    %v1964 = vand.u32 %v1963, 4294901760
    %v1965 = vsub.f32 %v1963, %v1964
    %v1966 = vand.u32 %v1965, 4294901760
    %1967 = vmatpush.msra.mxu0 %v1966
    %v1968 = vand.u32 %v1127, 4294901760
    %v1969 = vsub.f32 %v1127, %v1968
    %v1970 = vand.u32 %v1969, 4294901760
    %v1971 = vsub.f32 %v1969, %v1970
    %v1972 = vand.u32 %v1971, 4294901760
    %1973 = vmatpush.msra.mxu0 %v1972
    %v1974 = vand.u32 %v1123, 4294901760
    %v1975 = vsub.f32 %v1123, %v1974
    %v1976 = vand.u32 %v1975, 4294901760
    %v1977 = vsub.f32 %v1975, %v1976
    %v1978 = vand.u32 %v1977, 4294901760
    %1979 = vmatpush.msra.mxu0 %v1978
    %v1980 = vand.u32 %v1119, 4294901760
    %v1981 = vsub.f32 %v1119, %v1980
    %v1982 = vand.u32 %v1981, 4294901760
    %v1983 = vsub.f32 %v1981, %v1982
    %v1984 = vand.u32 %v1983, 4294901760
    %1985 = vmatpush.msra.mxu0 %v1984
    %v1986 = vand.u32 %v1115, 4294901760
    %v1987 = vsub.f32 %v1115, %v1986
    %v1988 = vand.u32 %v1987, 4294901760
    %v1989 = vsub.f32 %v1987, %v1988
    %v1990 = vand.u32 %v1989, 4294901760
    %1991 = vmatpush.msra.mxu0 %v1990
    %v1992 = vand.u32 %v1111, 4294901760
    %v1993 = vsub.f32 %v1111, %v1992
    %v1994 = vand.u32 %v1993, 4294901760
    %v1995 = vsub.f32 %v1993, %v1994
    %v1996 = vand.u32 %v1995, 4294901760
    %1997 = vmatpush.msra.mxu0 %v1996
    %v1998 = vand.u32 %v1107, 4294901760
    %v1999 = vsub.f32 %v1107, %v1998
    %v2000 = vand.u32 %v1999, 4294901760
    %v2001 = vsub.f32 %v1999, %v2000
    %v2002 = vand.u32 %v2001, 4294901760
    %2003 = vmatpush.msra.mxu0 %v2002
    %v2004 = vand.u32 %v1103, 4294901760
    %v2005 = vsub.f32 %v1103, %v2004
    %v2006 = vand.u32 %v2005, 4294901760
    %v2007 = vsub.f32 %v2005, %v2006
    %v2008 = vand.u32 %v2007, 4294901760
    %2009 = vmatpush.msra.mxu0 %v2008
    %v2010 = vand.u32 %v1099, 4294901760
    %v2011 = vsub.f32 %v1099, %v2010
    %v2012 = vand.u32 %v2011, 4294901760
    %v2013 = vsub.f32 %v2011, %v2012
    %v2014 = vand.u32 %v2013, 4294901760
    %2015 = vmatpush.msra.mxu0 %v2014
    %v2016 = vand.u32 %v1095, 4294901760
    %v2017 = vsub.f32 %v1095, %v2016
    %v2018 = vand.u32 %v2017, 4294901760
    %v2019 = vsub.f32 %v2017, %v2018
    %v2020 = vand.u32 %v2019, 4294901760
    %2021 = vmatpush.msra.mxu0 %v2020
    %v2022 = vand.u32 %v1091, 4294901760
    %v2023 = vsub.f32 %v1091, %v2022
    %v2024 = vand.u32 %v2023, 4294901760
    %v2025 = vsub.f32 %v2023, %v2024
    %v2026 = vand.u32 %v2025, 4294901760
    %2027 = vmatpush.msra.mxu0 %v2026
    %v2028 = vand.u32 %v1087, 4294901760
    %v2029 = vsub.f32 %v1087, %v2028
    %v2030 = vand.u32 %v2029, 4294901760
    %v2031 = vsub.f32 %v2029, %v2030
    %v2032 = vand.u32 %v2031, 4294901760
    %2033 = vmatpush.msra.mxu0 %v2032
    %v2034 = vand.u32 %v1083, 4294901760
    %v2035 = vsub.f32 %v1083, %v2034
    %v2036 = vand.u32 %v2035, 4294901760
    %v2037 = vsub.f32 %v2035, %v2036
    %v2038 = vand.u32 %v2037, 4294901760
    %2039 = vmatpush.msra.mxu0 %v2038
    %v2040 = vand.u32 %v953, 4294901760
    %2041 = vmatmul.f32.gmra.mxu0 %v2040
    %v2042 = vpop.f32.mrf.mxu0
    %v2043 = vadd.f32 %v1942, %v2042
    %2044 = vdwg.mxu0
    %v2045 = vand.u32 %v1143, 4294901760
    %v2046 = vsub.f32 %v1143, %v2045
    %2047 = vmatpush.msra.mxu0 %v2046
    %v2048 = vand.u32 %v1139, 4294901760
    %v2049 = vsub.f32 %v1139, %v2048
    %2050 = vmatpush.msra.mxu0 %v2049
    %v2051 = vand.u32 %v1135, 4294901760
    %v2052 = vsub.f32 %v1135, %v2051
    %2053 = vmatpush.msra.mxu0 %v2052
    %v2054 = vand.u32 %v1131, 4294901760
    %v2055 = vsub.f32 %v1131, %v2054
    %2056 = vmatpush.msra.mxu0 %v2055
    %v2057 = vand.u32 %v1127, 4294901760
    %v2058 = vsub.f32 %v1127, %v2057
    %2059 = vmatpush.msra.mxu0 %v2058
    %v2060 = vand.u32 %v1123, 4294901760
    %v2061 = vsub.f32 %v1123, %v2060
    %2062 = vmatpush.msra.mxu0 %v2061
    %v2063 = vand.u32 %v1119, 4294901760
    %v2064 = vsub.f32 %v1119, %v2063
    %2065 = vmatpush.msra.mxu0 %v2064
    %v2066 = vand.u32 %v1115, 4294901760
    %v2067 = vsub.f32 %v1115, %v2066
    %2068 = vmatpush.msra.mxu0 %v2067
    %v2069 = vand.u32 %v1111, 4294901760
    %v2070 = vsub.f32 %v1111, %v2069
    %2071 = vmatpush.msra.mxu0 %v2070
    %v2072 = vand.u32 %v1107, 4294901760
    %v2073 = vsub.f32 %v1107, %v2072
    %2074 = vmatpush.msra.mxu0 %v2073
    %v2075 = vand.u32 %v1103, 4294901760
    %v2076 = vsub.f32 %v1103, %v2075
    %2077 = vmatpush.msra.mxu0 %v2076
    %v2078 = vand.u32 %v1099, 4294901760
    %v2079 = vsub.f32 %v1099, %v2078
    %2080 = vmatpush.msra.mxu0 %v2079
    %v2081 = vand.u32 %v1095, 4294901760
    %v2082 = vsub.f32 %v1095, %v2081
    %2083 = vmatpush.msra.mxu0 %v2082
    %v2084 = vand.u32 %v1091, 4294901760
    %v2085 = vsub.f32 %v1091, %v2084
    %2086 = vmatpush.msra.mxu0 %v2085
    %v2087 = vand.u32 %v1087, 4294901760
    %v2088 = vsub.f32 %v1087, %v2087
    %2089 = vmatpush.msra.mxu0 %v2088
    %v2090 = vand.u32 %v1083, 4294901760
    %v2091 = vsub.f32 %v1083, %v2090
    %2092 = vmatpush.msra.mxu0 %v2091
    %v2093 = vand.u32 %v953, 4294901760
    %v2094 = vsub.f32 %v953, %v2093
    %2095 = vmatmul.f32.gmra.mxu0 %v2094
    %v2096 = vpop.f32.mrf.mxu0
    %v2097 = vadd.f32 %v2043, %v2096
    %2098 = vdwg.mxu0
    %v2099 = vand.u32 %v1143, 4294901760
    %2100 = vmatpush.msra.mxu0 %v2099
    %v2101 = vand.u32 %v1139, 4294901760
    %2102 = vmatpush.msra.mxu0 %v2101
    %v2103 = vand.u32 %v1135, 4294901760
    %2104 = vmatpush.msra.mxu0 %v2103
    %v2105 = vand.u32 %v1131, 4294901760
    %2106 = vmatpush.msra.mxu0 %v2105
    %v2107 = vand.u32 %v1127, 4294901760
    %2108 = vmatpush.msra.mxu0 %v2107
    %v2109 = vand.u32 %v1123, 4294901760
    %2110 = vmatpush.msra.mxu0 %v2109
    %v2111 = vand.u32 %v1119, 4294901760
    %2112 = vmatpush.msra.mxu0 %v2111
    %v2113 = vand.u32 %v1115, 4294901760
    %2114 = vmatpush.msra.mxu0 %v2113
    %v2115 = vand.u32 %v1111, 4294901760
    %2116 = vmatpush.msra.mxu0 %v2115
    %v2117 = vand.u32 %v1107, 4294901760
    %2118 = vmatpush.msra.mxu0 %v2117
    %v2119 = vand.u32 %v1103, 4294901760
    %2120 = vmatpush.msra.mxu0 %v2119
    %v2121 = vand.u32 %v1099, 4294901760
    %2122 = vmatpush.msra.mxu0 %v2121
    %v2123 = vand.u32 %v1095, 4294901760
    %2124 = vmatpush.msra.mxu0 %v2123
    %v2125 = vand.u32 %v1091, 4294901760
    %2126 = vmatpush.msra.mxu0 %v2125
    %v2127 = vand.u32 %v1087, 4294901760
    %2128 = vmatpush.msra.mxu0 %v2127
    %v2129 = vand.u32 %v1083, 4294901760
    %2130 = vmatpush.msra.mxu0 %v2129
    %v2131 = vand.u32 %v953, 4294901760
    %v2132 = vsub.f32 %v953, %v2131
    %v2133 = vand.u32 %v2132, 4294901760
    %2134 = vmatmul.f32.gmra.mxu0 %v2133
    %v2135 = vpop.f32.mrf.mxu0
    %v2136 = vadd.f32 %v2097, %v2135
    %2137 = vdwg.mxu0
    %v2138 = vand.u32 %v1143, 4294901760
    %v2139 = vsub.f32 %v1143, %v2138
    %v2140 = vand.u32 %v2139, 4294901760
    %2141 = vmatpush.msra.mxu0 %v2140
    %v2142 = vand.u32 %v1139, 4294901760
    %v2143 = vsub.f32 %v1139, %v2142
    %v2144 = vand.u32 %v2143, 4294901760
    %2145 = vmatpush.msra.mxu0 %v2144
    %v2146 = vand.u32 %v1135, 4294901760
    %v2147 = vsub.f32 %v1135, %v2146
    %v2148 = vand.u32 %v2147, 4294901760
    %2149 = vmatpush.msra.mxu0 %v2148
    %v2150 = vand.u32 %v1131, 4294901760
    %v2151 = vsub.f32 %v1131, %v2150
    %v2152 = vand.u32 %v2151, 4294901760
    %2153 = vmatpush.msra.mxu0 %v2152
    %v2154 = vand.u32 %v1127, 4294901760
    %v2155 = vsub.f32 %v1127, %v2154
    %v2156 = vand.u32 %v2155, 4294901760
    %2157 = vmatpush.msra.mxu0 %v2156
    %v2158 = vand.u32 %v1123, 4294901760
    %v2159 = vsub.f32 %v1123, %v2158
    %v2160 = vand.u32 %v2159, 4294901760
    %2161 = vmatpush.msra.mxu0 %v2160
    %v2162 = vand.u32 %v1119, 4294901760
    %v2163 = vsub.f32 %v1119, %v2162
    %v2164 = vand.u32 %v2163, 4294901760
    %2165 = vmatpush.msra.mxu0 %v2164
    %v2166 = vand.u32 %v1115, 4294901760
    %v2167 = vsub.f32 %v1115, %v2166
    %v2168 = vand.u32 %v2167, 4294901760
    %2169 = vmatpush.msra.mxu0 %v2168
    %v2170 = vand.u32 %v1111, 4294901760
    %v2171 = vsub.f32 %v1111, %v2170
    %v2172 = vand.u32 %v2171, 4294901760
    %2173 = vmatpush.msra.mxu0 %v2172
    %v2174 = vand.u32 %v1107, 4294901760
    %v2175 = vsub.f32 %v1107, %v2174
    %v2176 = vand.u32 %v2175, 4294901760
    %2177 = vmatpush.msra.mxu0 %v2176
    %v2178 = vand.u32 %v1103, 4294901760
    %v2179 = vsub.f32 %v1103, %v2178
    %v2180 = vand.u32 %v2179, 4294901760
    %2181 = vmatpush.msra.mxu0 %v2180
    %v2182 = vand.u32 %v1099, 4294901760
    %v2183 = vsub.f32 %v1099, %v2182
    %v2184 = vand.u32 %v2183, 4294901760
    %2185 = vmatpush.msra.mxu0 %v2184
    %v2186 = vand.u32 %v1095, 4294901760
    %v2187 = vsub.f32 %v1095, %v2186
    %v2188 = vand.u32 %v2187, 4294901760
    %2189 = vmatpush.msra.mxu0 %v2188
    %v2190 = vand.u32 %v1091, 4294901760
    %v2191 = vsub.f32 %v1091, %v2190
    %v2192 = vand.u32 %v2191, 4294901760
    %2193 = vmatpush.msra.mxu0 %v2192
    %v2194 = vand.u32 %v1087, 4294901760
    %v2195 = vsub.f32 %v1087, %v2194
    %v2196 = vand.u32 %v2195, 4294901760
    %2197 = vmatpush.msra.mxu0 %v2196
    %v2198 = vand.u32 %v1083, 4294901760
    %v2199 = vsub.f32 %v1083, %v2198
    %v2200 = vand.u32 %v2199, 4294901760
    %2201 = vmatpush.msra.mxu0 %v2200
    %v2202 = vand.u32 %v953, 4294901760
    %2203 = vmatmul.f32.gmra.mxu0 %v2202
    %v2204 = vpop.f32.mrf.mxu0
    %v2205 = vadd.f32 %v2136, %v2204
    %2206 = vdwg.mxu0
    %v2207 = vand.u32 %v1143, 4294901760
    %2208 = vmatpush.msra.mxu0 %v2207
    %v2209 = vand.u32 %v1139, 4294901760
    %2210 = vmatpush.msra.mxu0 %v2209
    %v2211 = vand.u32 %v1135, 4294901760
    %2212 = vmatpush.msra.mxu0 %v2211
    %v2213 = vand.u32 %v1131, 4294901760
    %2214 = vmatpush.msra.mxu0 %v2213
    %v2215 = vand.u32 %v1127, 4294901760
    %2216 = vmatpush.msra.mxu0 %v2215
    %v2217 = vand.u32 %v1123, 4294901760
    %2218 = vmatpush.msra.mxu0 %v2217
    %v2219 = vand.u32 %v1119, 4294901760
    %2220 = vmatpush.msra.mxu0 %v2219
    %v2221 = vand.u32 %v1115, 4294901760
    %2222 = vmatpush.msra.mxu0 %v2221
    %v2223 = vand.u32 %v1111, 4294901760
    %2224 = vmatpush.msra.mxu0 %v2223
    %v2225 = vand.u32 %v1107, 4294901760
    %2226 = vmatpush.msra.mxu0 %v2225
    %v2227 = vand.u32 %v1103, 4294901760
    %2228 = vmatpush.msra.mxu0 %v2227
    %v2229 = vand.u32 %v1099, 4294901760
    %2230 = vmatpush.msra.mxu0 %v2229
    %v2231 = vand.u32 %v1095, 4294901760
    %2232 = vmatpush.msra.mxu0 %v2231
    %v2233 = vand.u32 %v1091, 4294901760
    %2234 = vmatpush.msra.mxu0 %v2233
    %v2235 = vand.u32 %v1087, 4294901760
    %2236 = vmatpush.msra.mxu0 %v2235
    %v2237 = vand.u32 %v1083, 4294901760
    %2238 = vmatpush.msra.mxu0 %v2237
    %v2239 = vand.u32 %v953, 4294901760
    %2240 = vmatmul.f32.gmra.mxu0 %v2239
    %v2241 = vpop.f32.mrf.mxu0
    %v2242 = vadd.f32 %v2205, %v2241
    %2243 = vdwg.mxu0
    %v2244 = vand.u32 %v1207, 4294901760
    %2245 = vmatpush.msra.mxu0 %v2244
    %v2246 = vand.u32 %v1203, 4294901760
    %2247 = vmatpush.msra.mxu0 %v2246
    %v2248 = vand.u32 %v1199, 4294901760
    %2249 = vmatpush.msra.mxu0 %v2248
    %v2250 = vand.u32 %v1195, 4294901760
    %2251 = vmatpush.msra.mxu0 %v2250
    %v2252 = vand.u32 %v1191, 4294901760
    %2253 = vmatpush.msra.mxu0 %v2252
    %v2254 = vand.u32 %v1187, 4294901760
    %2255 = vmatpush.msra.mxu0 %v2254
    %v2256 = vand.u32 %v1183, 4294901760
    %2257 = vmatpush.msra.mxu0 %v2256
    %v2258 = vand.u32 %v1179, 4294901760
    %2259 = vmatpush.msra.mxu0 %v2258
    %v2260 = vand.u32 %v1175, 4294901760
    %2261 = vmatpush.msra.mxu0 %v2260
    %v2262 = vand.u32 %v1171, 4294901760
    %2263 = vmatpush.msra.mxu0 %v2262
    %v2264 = vand.u32 %v1167, 4294901760
    %2265 = vmatpush.msra.mxu0 %v2264
    %v2266 = vand.u32 %v1163, 4294901760
    %2267 = vmatpush.msra.mxu0 %v2266
    %v2268 = vand.u32 %v1159, 4294901760
    %2269 = vmatpush.msra.mxu0 %v2268
    %v2270 = vand.u32 %v1155, 4294901760
    %2271 = vmatpush.msra.mxu0 %v2270
    %v2272 = vand.u32 %v1151, 4294901760
    %2273 = vmatpush.msra.mxu0 %v2272
    %v2274 = vand.u32 %v1147, 4294901760
    %2275 = vmatpush.msra.mxu0 %v2274
    %v2276 = vand.u32 %v954, 4294901760
    %v2277 = vsub.f32 %v954, %v2276
    %v2278 = vand.u32 %v2277, 4294901760
    %v2279 = vsub.f32 %v2277, %v2278
    %v2280 = vand.u32 %v2279, 4294901760
    %2281 = vmatmul.f32.gmra.mxu0 %v2280
    %v2282 = vpop.f32.mrf.mxu0
    %v2283 = vadd.f32 %v2242, %v2282
    %2284 = vdwg.mxu0
    %v2285 = vand.u32 %v1207, 4294901760
    %v2286 = vsub.f32 %v1207, %v2285
    %v2287 = vand.u32 %v2286, 4294901760
    %v2288 = vsub.f32 %v2286, %v2287
    %v2289 = vand.u32 %v2288, 4294901760
    %2290 = vmatpush.msra.mxu0 %v2289
    %v2291 = vand.u32 %v1203, 4294901760
    %v2292 = vsub.f32 %v1203, %v2291
    %v2293 = vand.u32 %v2292, 4294901760
    %v2294 = vsub.f32 %v2292, %v2293
    %v2295 = vand.u32 %v2294, 4294901760
    %2296 = vmatpush.msra.mxu0 %v2295
    %v2297 = vand.u32 %v1199, 4294901760
    %v2298 = vsub.f32 %v1199, %v2297
    %v2299 = vand.u32 %v2298, 4294901760
    %v2300 = vsub.f32 %v2298, %v2299
    %v2301 = vand.u32 %v2300, 4294901760
    %2302 = vmatpush.msra.mxu0 %v2301
    %v2303 = vand.u32 %v1195, 4294901760
    %v2304 = vsub.f32 %v1195, %v2303
    %v2305 = vand.u32 %v2304, 4294901760
    %v2306 = vsub.f32 %v2304, %v2305
    %v2307 = vand.u32 %v2306, 4294901760
    %2308 = vmatpush.msra.mxu0 %v2307
    %v2309 = vand.u32 %v1191, 4294901760
    %v2310 = vsub.f32 %v1191, %v2309
    %v2311 = vand.u32 %v2310, 4294901760
    %v2312 = vsub.f32 %v2310, %v2311
    %v2313 = vand.u32 %v2312, 4294901760
    %2314 = vmatpush.msra.mxu0 %v2313
    %v2315 = vand.u32 %v1187, 4294901760
    %v2316 = vsub.f32 %v1187, %v2315
    %v2317 = vand.u32 %v2316, 4294901760
    %v2318 = vsub.f32 %v2316, %v2317
    %v2319 = vand.u32 %v2318, 4294901760
    %2320 = vmatpush.msra.mxu0 %v2319
    %v2321 = vand.u32 %v1183, 4294901760
    %v2322 = vsub.f32 %v1183, %v2321
    %v2323 = vand.u32 %v2322, 4294901760
    %v2324 = vsub.f32 %v2322, %v2323
    %v2325 = vand.u32 %v2324, 4294901760
    %2326 = vmatpush.msra.mxu0 %v2325
    %v2327 = vand.u32 %v1179, 4294901760
    %v2328 = vsub.f32 %v1179, %v2327
    %v2329 = vand.u32 %v2328, 4294901760
    %v2330 = vsub.f32 %v2328, %v2329
    %v2331 = vand.u32 %v2330, 4294901760
    %2332 = vmatpush.msra.mxu0 %v2331
    %v2333 = vand.u32 %v1175, 4294901760
    %v2334 = vsub.f32 %v1175, %v2333
    %v2335 = vand.u32 %v2334, 4294901760
    %v2336 = vsub.f32 %v2334, %v2335
    %v2337 = vand.u32 %v2336, 4294901760
    %2338 = vmatpush.msra.mxu0 %v2337
    %v2339 = vand.u32 %v1171, 4294901760
    %v2340 = vsub.f32 %v1171, %v2339
    %v2341 = vand.u32 %v2340, 4294901760
    %v2342 = vsub.f32 %v2340, %v2341
    %v2343 = vand.u32 %v2342, 4294901760
    %2344 = vmatpush.msra.mxu0 %v2343
    %v2345 = vand.u32 %v1167, 4294901760
    %v2346 = vsub.f32 %v1167, %v2345
    %v2347 = vand.u32 %v2346, 4294901760
    %v2348 = vsub.f32 %v2346, %v2347
    %v2349 = vand.u32 %v2348, 4294901760
    %2350 = vmatpush.msra.mxu0 %v2349
    %v2351 = vand.u32 %v1163, 4294901760
    %v2352 = vsub.f32 %v1163, %v2351
    %v2353 = vand.u32 %v2352, 4294901760
    %v2354 = vsub.f32 %v2352, %v2353
    %v2355 = vand.u32 %v2354, 4294901760
    %2356 = vmatpush.msra.mxu0 %v2355
    %v2357 = vand.u32 %v1159, 4294901760
    %v2358 = vsub.f32 %v1159, %v2357
    %v2359 = vand.u32 %v2358, 4294901760
    %v2360 = vsub.f32 %v2358, %v2359
    %v2361 = vand.u32 %v2360, 4294901760
    %2362 = vmatpush.msra.mxu0 %v2361
    %v2363 = vand.u32 %v1155, 4294901760
    %v2364 = vsub.f32 %v1155, %v2363
    %v2365 = vand.u32 %v2364, 4294901760
    %v2366 = vsub.f32 %v2364, %v2365
    %v2367 = vand.u32 %v2366, 4294901760
    %2368 = vmatpush.msra.mxu0 %v2367
    %v2369 = vand.u32 %v1151, 4294901760
    %v2370 = vsub.f32 %v1151, %v2369
    %v2371 = vand.u32 %v2370, 4294901760
    %v2372 = vsub.f32 %v2370, %v2371
    %v2373 = vand.u32 %v2372, 4294901760
    %2374 = vmatpush.msra.mxu0 %v2373
    %v2375 = vand.u32 %v1147, 4294901760
    %v2376 = vsub.f32 %v1147, %v2375
    %v2377 = vand.u32 %v2376, 4294901760
    %v2378 = vsub.f32 %v2376, %v2377
    %v2379 = vand.u32 %v2378, 4294901760
    %2380 = vmatpush.msra.mxu0 %v2379
    %v2381 = vand.u32 %v954, 4294901760
    %2382 = vmatmul.f32.gmra.mxu0 %v2381
    %v2383 = vpop.f32.mrf.mxu0
    %v2384 = vadd.f32 %v2283, %v2383
    %2385 = vdwg.mxu0
    %v2386 = vand.u32 %v1207, 4294901760
    %v2387 = vsub.f32 %v1207, %v2386
    %2388 = vmatpush.msra.mxu0 %v2387
    %v2389 = vand.u32 %v1203, 4294901760
    %v2390 = vsub.f32 %v1203, %v2389
    %2391 = vmatpush.msra.mxu0 %v2390
    %v2392 = vand.u32 %v1199, 4294901760
    %v2393 = vsub.f32 %v1199, %v2392
    %2394 = vmatpush.msra.mxu0 %v2393
    %v2395 = vand.u32 %v1195, 4294901760
    %v2396 = vsub.f32 %v1195, %v2395
    %2397 = vmatpush.msra.mxu0 %v2396
    %v2398 = vand.u32 %v1191, 4294901760
    %v2399 = vsub.f32 %v1191, %v2398
    %2400 = vmatpush.msra.mxu0 %v2399
    %v2401 = vand.u32 %v1187, 4294901760
    %v2402 = vsub.f32 %v1187, %v2401
    %2403 = vmatpush.msra.mxu0 %v2402
    %v2404 = vand.u32 %v1183, 4294901760
    %v2405 = vsub.f32 %v1183, %v2404
    %2406 = vmatpush.msra.mxu0 %v2405
    %v2407 = vand.u32 %v1179, 4294901760
    %v2408 = vsub.f32 %v1179, %v2407
    %2409 = vmatpush.msra.mxu0 %v2408
    %v2410 = vand.u32 %v1175, 4294901760
    %v2411 = vsub.f32 %v1175, %v2410
    %2412 = vmatpush.msra.mxu0 %v2411
    %v2413 = vand.u32 %v1171, 4294901760
    %v2414 = vsub.f32 %v1171, %v2413
    %2415 = vmatpush.msra.mxu0 %v2414
    %v2416 = vand.u32 %v1167, 4294901760
    %v2417 = vsub.f32 %v1167, %v2416
    %2418 = vmatpush.msra.mxu0 %v2417
    %v2419 = vand.u32 %v1163, 4294901760
    %v2420 = vsub.f32 %v1163, %v2419
    %2421 = vmatpush.msra.mxu0 %v2420
    %v2422 = vand.u32 %v1159, 4294901760
    %v2423 = vsub.f32 %v1159, %v2422
    %2424 = vmatpush.msra.mxu0 %v2423
    %v2425 = vand.u32 %v1155, 4294901760
    %v2426 = vsub.f32 %v1155, %v2425
    %2427 = vmatpush.msra.mxu0 %v2426
    %v2428 = vand.u32 %v1151, 4294901760
    %v2429 = vsub.f32 %v1151, %v2428
    %2430 = vmatpush.msra.mxu0 %v2429
    %v2431 = vand.u32 %v1147, 4294901760
    %v2432 = vsub.f32 %v1147, %v2431
    %2433 = vmatpush.msra.mxu0 %v2432
    %v2434 = vand.u32 %v954, 4294901760
    %v2435 = vsub.f32 %v954, %v2434
    %2436 = vmatmul.f32.gmra.mxu0 %v2435
    %v2437 = vpop.f32.mrf.mxu0
    %v2438 = vadd.f32 %v2384, %v2437
    %2439 = vdwg.mxu0
    %v2440 = vand.u32 %v1207, 4294901760
    %2441 = vmatpush.msra.mxu0 %v2440
    %v2442 = vand.u32 %v1203, 4294901760
    %2443 = vmatpush.msra.mxu0 %v2442
    %v2444 = vand.u32 %v1199, 4294901760
    %2445 = vmatpush.msra.mxu0 %v2444
    %v2446 = vand.u32 %v1195, 4294901760
    %2447 = vmatpush.msra.mxu0 %v2446
    %v2448 = vand.u32 %v1191, 4294901760
    %2449 = vmatpush.msra.mxu0 %v2448
    %v2450 = vand.u32 %v1187, 4294901760
    %2451 = vmatpush.msra.mxu0 %v2450
    %v2452 = vand.u32 %v1183, 4294901760
    %2453 = vmatpush.msra.mxu0 %v2452
    %v2454 = vand.u32 %v1179, 4294901760
    %2455 = vmatpush.msra.mxu0 %v2454
    %v2456 = vand.u32 %v1175, 4294901760
    %2457 = vmatpush.msra.mxu0 %v2456
    %v2458 = vand.u32 %v1171, 4294901760
    %2459 = vmatpush.msra.mxu0 %v2458
    %v2460 = vand.u32 %v1167, 4294901760
    %2461 = vmatpush.msra.mxu0 %v2460
    %v2462 = vand.u32 %v1163, 4294901760
    %2463 = vmatpush.msra.mxu0 %v2462
    %v2464 = vand.u32 %v1159, 4294901760
    %2465 = vmatpush.msra.mxu0 %v2464
    %v2466 = vand.u32 %v1155, 4294901760
    %2467 = vmatpush.msra.mxu0 %v2466
    %v2468 = vand.u32 %v1151, 4294901760
    %2469 = vmatpush.msra.mxu0 %v2468
    %v2470 = vand.u32 %v1147, 4294901760
    %2471 = vmatpush.msra.mxu0 %v2470
    %v2472 = vand.u32 %v954, 4294901760
    %v2473 = vsub.f32 %v954, %v2472
    %v2474 = vand.u32 %v2473, 4294901760
    %2475 = vmatmul.f32.gmra.mxu0 %v2474
    %v2476 = vpop.f32.mrf.mxu0
    %v2477 = vadd.f32 %v2438, %v2476
    %2478 = vdwg.mxu0
    %v2479 = vand.u32 %v1207, 4294901760
    %v2480 = vsub.f32 %v1207, %v2479
    %v2481 = vand.u32 %v2480, 4294901760
    %2482 = vmatpush.msra.mxu0 %v2481
    %v2483 = vand.u32 %v1203, 4294901760
    %v2484 = vsub.f32 %v1203, %v2483
    %v2485 = vand.u32 %v2484, 4294901760
    %2486 = vmatpush.msra.mxu0 %v2485
    %v2487 = vand.u32 %v1199, 4294901760
    %v2488 = vsub.f32 %v1199, %v2487
    %v2489 = vand.u32 %v2488, 4294901760
    %2490 = vmatpush.msra.mxu0 %v2489
    %v2491 = vand.u32 %v1195, 4294901760
    %v2492 = vsub.f32 %v1195, %v2491
    %v2493 = vand.u32 %v2492, 4294901760
    %2494 = vmatpush.msra.mxu0 %v2493
    %v2495 = vand.u32 %v1191, 4294901760
    %v2496 = vsub.f32 %v1191, %v2495
    %v2497 = vand.u32 %v2496, 4294901760
    %2498 = vmatpush.msra.mxu0 %v2497
    %v2499 = vand.u32 %v1187, 4294901760
    %v2500 = vsub.f32 %v1187, %v2499
    %v2501 = vand.u32 %v2500, 4294901760
    %2502 = vmatpush.msra.mxu0 %v2501
    %v2503 = vand.u32 %v1183, 4294901760
    %v2504 = vsub.f32 %v1183, %v2503
    %v2505 = vand.u32 %v2504, 4294901760
    %2506 = vmatpush.msra.mxu0 %v2505
    %v2507 = vand.u32 %v1179, 4294901760
    %v2508 = vsub.f32 %v1179, %v2507
    %v2509 = vand.u32 %v2508, 4294901760
    %2510 = vmatpush.msra.mxu0 %v2509
    %v2511 = vand.u32 %v1175, 4294901760
    %v2512 = vsub.f32 %v1175, %v2511
    %v2513 = vand.u32 %v2512, 4294901760
    %2514 = vmatpush.msra.mxu0 %v2513
    %v2515 = vand.u32 %v1171, 4294901760
    %v2516 = vsub.f32 %v1171, %v2515
    %v2517 = vand.u32 %v2516, 4294901760
    %2518 = vmatpush.msra.mxu0 %v2517
    %v2519 = vand.u32 %v1167, 4294901760
    %v2520 = vsub.f32 %v1167, %v2519
    %v2521 = vand.u32 %v2520, 4294901760
    %2522 = vmatpush.msra.mxu0 %v2521
    %v2523 = vand.u32 %v1163, 4294901760
    %v2524 = vsub.f32 %v1163, %v2523
    %v2525 = vand.u32 %v2524, 4294901760
    %2526 = vmatpush.msra.mxu0 %v2525
    %v2527 = vand.u32 %v1159, 4294901760
    %v2528 = vsub.f32 %v1159, %v2527
    %v2529 = vand.u32 %v2528, 4294901760
    %2530 = vmatpush.msra.mxu0 %v2529
    %v2531 = vand.u32 %v1155, 4294901760
    %v2532 = vsub.f32 %v1155, %v2531
    %v2533 = vand.u32 %v2532, 4294901760
    %2534 = vmatpush.msra.mxu0 %v2533
    %v2535 = vand.u32 %v1151, 4294901760
    %v2536 = vsub.f32 %v1151, %v2535
    %v2537 = vand.u32 %v2536, 4294901760
    %2538 = vmatpush.msra.mxu0 %v2537
    %v2539 = vand.u32 %v1147, 4294901760
    %v2540 = vsub.f32 %v1147, %v2539
    %v2541 = vand.u32 %v2540, 4294901760
    %2542 = vmatpush.msra.mxu0 %v2541
    %v2543 = vand.u32 %v954, 4294901760
    %2544 = vmatmul.f32.gmra.mxu0 %v2543
    %v2545 = vpop.f32.mrf.mxu0
    %v2546 = vadd.f32 %v2477, %v2545
    %2547 = vdwg.mxu0
    %v2548 = vand.u32 %v1207, 4294901760
    %2549 = vmatpush.msra.mxu0 %v2548
    %v2550 = vand.u32 %v1203, 4294901760
    %2551 = vmatpush.msra.mxu0 %v2550
    %v2552 = vand.u32 %v1199, 4294901760
    %2553 = vmatpush.msra.mxu0 %v2552
    %v2554 = vand.u32 %v1195, 4294901760
    %2555 = vmatpush.msra.mxu0 %v2554
    %v2556 = vand.u32 %v1191, 4294901760
    %2557 = vmatpush.msra.mxu0 %v2556
    %v2558 = vand.u32 %v1187, 4294901760
    %2559 = vmatpush.msra.mxu0 %v2558
    %v2560 = vand.u32 %v1183, 4294901760
    %2561 = vmatpush.msra.mxu0 %v2560
    %v2562 = vand.u32 %v1179, 4294901760
    %2563 = vmatpush.msra.mxu0 %v2562
    %v2564 = vand.u32 %v1175, 4294901760
    %2565 = vmatpush.msra.mxu0 %v2564
    %v2566 = vand.u32 %v1171, 4294901760
    %2567 = vmatpush.msra.mxu0 %v2566
    %v2568 = vand.u32 %v1167, 4294901760
    %2569 = vmatpush.msra.mxu0 %v2568
    %v2570 = vand.u32 %v1163, 4294901760
    %2571 = vmatpush.msra.mxu0 %v2570
    %v2572 = vand.u32 %v1159, 4294901760
    %2573 = vmatpush.msra.mxu0 %v2572
    %v2574 = vand.u32 %v1155, 4294901760
    %2575 = vmatpush.msra.mxu0 %v2574
    %v2576 = vand.u32 %v1151, 4294901760
    %2577 = vmatpush.msra.mxu0 %v2576
    %v2578 = vand.u32 %v1147, 4294901760
    %2579 = vmatpush.msra.mxu0 %v2578
    %v2580 = vand.u32 %v954, 4294901760
    %2581 = vmatmul.f32.gmra.mxu0 %v2580
    %v2582 = vpop.f32.mrf.mxu0
    %v2583 = vadd.f32 %v2546, %v2582
    %2584 = vdwg.mxu0
    %v2585 = vand.u32 %v1016, 4294901760
    %2586 = vmatpush.msra.mxu0 %v2585
    %v2587 = vand.u32 %v1012, 4294901760
    %2588 = vmatpush.msra.mxu0 %v2587
    %v2589 = vand.u32 %v1008, 4294901760
    %2590 = vmatpush.msra.mxu0 %v2589
    %v2591 = vand.u32 %v1004, 4294901760
    %2592 = vmatpush.msra.mxu0 %v2591
    %v2593 = vand.u32 %v1000, 4294901760
    %2594 = vmatpush.msra.mxu0 %v2593
    %v2595 = vand.u32 %v996, 4294901760
    %2596 = vmatpush.msra.mxu0 %v2595
    %v2597 = vand.u32 %v992, 4294901760
    %2598 = vmatpush.msra.mxu0 %v2597
    %v2599 = vand.u32 %v988, 4294901760
    %2600 = vmatpush.msra.mxu0 %v2599
    %v2601 = vand.u32 %v984, 4294901760
    %2602 = vmatpush.msra.mxu0 %v2601
    %v2603 = vand.u32 %v980, 4294901760
    %2604 = vmatpush.msra.mxu0 %v2603
    %v2605 = vand.u32 %v976, 4294901760
    %2606 = vmatpush.msra.mxu0 %v2605
    %v2607 = vand.u32 %v972, 4294901760
    %2608 = vmatpush.msra.mxu0 %v2607
    %v2609 = vand.u32 %v968, 4294901760
    %2610 = vmatpush.msra.mxu0 %v2609
    %v2611 = vand.u32 %v964, 4294901760
    %2612 = vmatpush.msra.mxu0 %v2611
    %v2613 = vand.u32 %v960, 4294901760
    %2614 = vmatpush.msra.mxu0 %v2613
    %v2615 = vand.u32 %v956, 4294901760
    %2616 = vmatpush.msra.mxu0 %v2615
    %v2617 = vand.u32 %v951, 4294901760
    %v2618 = vsub.f32 %v951, %v2617
    %v2619 = vand.u32 %v2618, 4294901760
    %v2620 = vsub.f32 %v2618, %v2619
    %v2621 = vand.u32 %v2620, 4294901760
    %2622 = vmatmul.f32.gmra.mxu0 %v2621
    %v2623 = vpop.f32.mrf.mxu0
    %v2624 = vadd.f32 %v1214, %v2623
    %2625 = vdwg.mxu0
    %v2626 = vand.u32 %v1016, 4294901760
    %v2627 = vsub.f32 %v1016, %v2626
    %v2628 = vand.u32 %v2627, 4294901760
    %v2629 = vsub.f32 %v2627, %v2628
    %v2630 = vand.u32 %v2629, 4294901760
    %2631 = vmatpush.msra.mxu0 %v2630
    %v2632 = vand.u32 %v1012, 4294901760
    %v2633 = vsub.f32 %v1012, %v2632
    %v2634 = vand.u32 %v2633, 4294901760
    %v2635 = vsub.f32 %v2633, %v2634
    %v2636 = vand.u32 %v2635, 4294901760
    %2637 = vmatpush.msra.mxu0 %v2636
    %v2638 = vand.u32 %v1008, 4294901760
    %v2639 = vsub.f32 %v1008, %v2638
    %v2640 = vand.u32 %v2639, 4294901760
    %v2641 = vsub.f32 %v2639, %v2640
    %v2642 = vand.u32 %v2641, 4294901760
    %2643 = vmatpush.msra.mxu0 %v2642
    %v2644 = vand.u32 %v1004, 4294901760
    %v2645 = vsub.f32 %v1004, %v2644
    %v2646 = vand.u32 %v2645, 4294901760
    %v2647 = vsub.f32 %v2645, %v2646
    %v2648 = vand.u32 %v2647, 4294901760
    %2649 = vmatpush.msra.mxu0 %v2648
    %v2650 = vand.u32 %v1000, 4294901760
    %v2651 = vsub.f32 %v1000, %v2650
    %v2652 = vand.u32 %v2651, 4294901760
    %v2653 = vsub.f32 %v2651, %v2652
    %v2654 = vand.u32 %v2653, 4294901760
    %2655 = vmatpush.msra.mxu0 %v2654
    %v2656 = vand.u32 %v996, 4294901760
    %v2657 = vsub.f32 %v996, %v2656
    %v2658 = vand.u32 %v2657, 4294901760
    %v2659 = vsub.f32 %v2657, %v2658
    %v2660 = vand.u32 %v2659, 4294901760
    %2661 = vmatpush.msra.mxu0 %v2660
    %v2662 = vand.u32 %v992, 4294901760
    %v2663 = vsub.f32 %v992, %v2662
    %v2664 = vand.u32 %v2663, 4294901760
    %v2665 = vsub.f32 %v2663, %v2664
    %v2666 = vand.u32 %v2665, 4294901760
    %2667 = vmatpush.msra.mxu0 %v2666
    %v2668 = vand.u32 %v988, 4294901760
    %v2669 = vsub.f32 %v988, %v2668
    %v2670 = vand.u32 %v2669, 4294901760
    %v2671 = vsub.f32 %v2669, %v2670
    %v2672 = vand.u32 %v2671, 4294901760
    %2673 = vmatpush.msra.mxu0 %v2672
    %v2674 = vand.u32 %v984, 4294901760
    %v2675 = vsub.f32 %v984, %v2674
    %v2676 = vand.u32 %v2675, 4294901760
    %v2677 = vsub.f32 %v2675, %v2676
    %v2678 = vand.u32 %v2677, 4294901760
    %2679 = vmatpush.msra.mxu0 %v2678
    %v2680 = vand.u32 %v980, 4294901760
    %v2681 = vsub.f32 %v980, %v2680
    %v2682 = vand.u32 %v2681, 4294901760
    %v2683 = vsub.f32 %v2681, %v2682
    %v2684 = vand.u32 %v2683, 4294901760
    %2685 = vmatpush.msra.mxu0 %v2684
    %v2686 = vand.u32 %v976, 4294901760
    %v2687 = vsub.f32 %v976, %v2686
    %v2688 = vand.u32 %v2687, 4294901760
    %v2689 = vsub.f32 %v2687, %v2688
    %v2690 = vand.u32 %v2689, 4294901760
    %2691 = vmatpush.msra.mxu0 %v2690
    %v2692 = vand.u32 %v972, 4294901760
    %v2693 = vsub.f32 %v972, %v2692
    %v2694 = vand.u32 %v2693, 4294901760
    %v2695 = vsub.f32 %v2693, %v2694
    %v2696 = vand.u32 %v2695, 4294901760
    %2697 = vmatpush.msra.mxu0 %v2696
    %v2698 = vand.u32 %v968, 4294901760
    %v2699 = vsub.f32 %v968, %v2698
    %v2700 = vand.u32 %v2699, 4294901760
    %v2701 = vsub.f32 %v2699, %v2700
    %v2702 = vand.u32 %v2701, 4294901760
    %2703 = vmatpush.msra.mxu0 %v2702
    %v2704 = vand.u32 %v964, 4294901760
    %v2705 = vsub.f32 %v964, %v2704
    %v2706 = vand.u32 %v2705, 4294901760
    %v2707 = vsub.f32 %v2705, %v2706
    %v2708 = vand.u32 %v2707, 4294901760
    %2709 = vmatpush.msra.mxu0 %v2708
    %v2710 = vand.u32 %v960, 4294901760
    %v2711 = vsub.f32 %v960, %v2710
    %v2712 = vand.u32 %v2711, 4294901760
    %v2713 = vsub.f32 %v2711, %v2712
    %v2714 = vand.u32 %v2713, 4294901760
    %2715 = vmatpush.msra.mxu0 %v2714
    %v2716 = vand.u32 %v956, 4294901760
    %v2717 = vsub.f32 %v956, %v2716
    %v2718 = vand.u32 %v2717, 4294901760
    %v2719 = vsub.f32 %v2717, %v2718
    %v2720 = vand.u32 %v2719, 4294901760
    %2721 = vmatpush.msra.mxu0 %v2720
    %v2722 = vand.u32 %v951, 4294901760
    %2723 = vmatmul.f32.gmra.mxu0 %v2722
    %v2724 = vpop.f32.mrf.mxu0
    %v2725 = vadd.f32 %v2624, %v2724
    %2726 = vdwg.mxu0
    %v2727 = vand.u32 %v1016, 4294901760
    %v2728 = vsub.f32 %v1016, %v2727
    %2729 = vmatpush.msra.mxu0 %v2728
    %v2730 = vand.u32 %v1012, 4294901760
    %v2731 = vsub.f32 %v1012, %v2730
    %2732 = vmatpush.msra.mxu0 %v2731
    %v2733 = vand.u32 %v1008, 4294901760
    %v2734 = vsub.f32 %v1008, %v2733
    %2735 = vmatpush.msra.mxu0 %v2734
    %v2736 = vand.u32 %v1004, 4294901760
    %v2737 = vsub.f32 %v1004, %v2736
    %2738 = vmatpush.msra.mxu0 %v2737
    %v2739 = vand.u32 %v1000, 4294901760
    %v2740 = vsub.f32 %v1000, %v2739
    %2741 = vmatpush.msra.mxu0 %v2740
    %v2742 = vand.u32 %v996, 4294901760
    %v2743 = vsub.f32 %v996, %v2742
    %2744 = vmatpush.msra.mxu0 %v2743
    %v2745 = vand.u32 %v992, 4294901760
    %v2746 = vsub.f32 %v992, %v2745
    %2747 = vmatpush.msra.mxu0 %v2746
    %v2748 = vand.u32 %v988, 4294901760
    %v2749 = vsub.f32 %v988, %v2748
    %2750 = vmatpush.msra.mxu0 %v2749
    %v2751 = vand.u32 %v984, 4294901760
    %v2752 = vsub.f32 %v984, %v2751
    %2753 = vmatpush.msra.mxu0 %v2752
    %v2754 = vand.u32 %v980, 4294901760
    %v2755 = vsub.f32 %v980, %v2754
    %2756 = vmatpush.msra.mxu0 %v2755
    %v2757 = vand.u32 %v976, 4294901760
    %v2758 = vsub.f32 %v976, %v2757
    %2759 = vmatpush.msra.mxu0 %v2758
    %v2760 = vand.u32 %v972, 4294901760
    %v2761 = vsub.f32 %v972, %v2760
    %2762 = vmatpush.msra.mxu0 %v2761
    %v2763 = vand.u32 %v968, 4294901760
    %v2764 = vsub.f32 %v968, %v2763
    %2765 = vmatpush.msra.mxu0 %v2764
    %v2766 = vand.u32 %v964, 4294901760
    %v2767 = vsub.f32 %v964, %v2766
    %2768 = vmatpush.msra.mxu0 %v2767
    %v2769 = vand.u32 %v960, 4294901760
    %v2770 = vsub.f32 %v960, %v2769
    %2771 = vmatpush.msra.mxu0 %v2770
    %v2772 = vand.u32 %v956, 4294901760
    %v2773 = vsub.f32 %v956, %v2772
    %2774 = vmatpush.msra.mxu0 %v2773
    %v2775 = vand.u32 %v951, 4294901760
    %v2776 = vsub.f32 %v951, %v2775
    %2777 = vmatmul.f32.gmra.mxu0 %v2776
    %v2778 = vpop.f32.mrf.mxu0
    %v2779 = vadd.f32 %v2725, %v2778
    %2780 = vdwg.mxu0
    %v2781 = vand.u32 %v1016, 4294901760
    %2782 = vmatpush.msra.mxu0 %v2781
    %v2783 = vand.u32 %v1012, 4294901760
    %2784 = vmatpush.msra.mxu0 %v2783
    %v2785 = vand.u32 %v1008, 4294901760
    %2786 = vmatpush.msra.mxu0 %v2785
    %v2787 = vand.u32 %v1004, 4294901760
    %2788 = vmatpush.msra.mxu0 %v2787
    %v2789 = vand.u32 %v1000, 4294901760
    %2790 = vmatpush.msra.mxu0 %v2789
    %v2791 = vand.u32 %v996, 4294901760
    %2792 = vmatpush.msra.mxu0 %v2791
    %v2793 = vand.u32 %v992, 4294901760
    %2794 = vmatpush.msra.mxu0 %v2793
    %v2795 = vand.u32 %v988, 4294901760
    %2796 = vmatpush.msra.mxu0 %v2795
    %v2797 = vand.u32 %v984, 4294901760
    %2798 = vmatpush.msra.mxu0 %v2797
    %v2799 = vand.u32 %v980, 4294901760
    %2800 = vmatpush.msra.mxu0 %v2799
    %v2801 = vand.u32 %v976, 4294901760
    %2802 = vmatpush.msra.mxu0 %v2801
    %v2803 = vand.u32 %v972, 4294901760
    %2804 = vmatpush.msra.mxu0 %v2803
    %v2805 = vand.u32 %v968, 4294901760
    %2806 = vmatpush.msra.mxu0 %v2805
    %v2807 = vand.u32 %v964, 4294901760
    %2808 = vmatpush.msra.mxu0 %v2807
    %v2809 = vand.u32 %v960, 4294901760
    %2810 = vmatpush.msra.mxu0 %v2809
    %v2811 = vand.u32 %v956, 4294901760
    %2812 = vmatpush.msra.mxu0 %v2811
    %v2813 = vand.u32 %v951, 4294901760
    %v2814 = vsub.f32 %v951, %v2813
    %v2815 = vand.u32 %v2814, 4294901760
    %2816 = vmatmul.f32.gmra.mxu0 %v2815
    %v2817 = vpop.f32.mrf.mxu0
    %v2818 = vadd.f32 %v2779, %v2817
    %2819 = vdwg.mxu0
    %v2820 = vand.u32 %v1016, 4294901760
    %v2821 = vsub.f32 %v1016, %v2820
    %v2822 = vand.u32 %v2821, 4294901760
    %2823 = vmatpush.msra.mxu0 %v2822
    %v2824 = vand.u32 %v1012, 4294901760
    %v2825 = vsub.f32 %v1012, %v2824
    %v2826 = vand.u32 %v2825, 4294901760
    %2827 = vmatpush.msra.mxu0 %v2826
    %v2828 = vand.u32 %v1008, 4294901760
    %v2829 = vsub.f32 %v1008, %v2828
    %v2830 = vand.u32 %v2829, 4294901760
    %2831 = vmatpush.msra.mxu0 %v2830
    %v2832 = vand.u32 %v1004, 4294901760
    %v2833 = vsub.f32 %v1004, %v2832
    %v2834 = vand.u32 %v2833, 4294901760
    %2835 = vmatpush.msra.mxu0 %v2834
    %v2836 = vand.u32 %v1000, 4294901760
    %v2837 = vsub.f32 %v1000, %v2836
    %v2838 = vand.u32 %v2837, 4294901760
    %2839 = vmatpush.msra.mxu0 %v2838
    %v2840 = vand.u32 %v996, 4294901760
    %v2841 = vsub.f32 %v996, %v2840
    %v2842 = vand.u32 %v2841, 4294901760
    %2843 = vmatpush.msra.mxu0 %v2842
    %v2844 = vand.u32 %v992, 4294901760
    %v2845 = vsub.f32 %v992, %v2844
    %v2846 = vand.u32 %v2845, 4294901760
    %2847 = vmatpush.msra.mxu0 %v2846
    %v2848 = vand.u32 %v988, 4294901760
    %v2849 = vsub.f32 %v988, %v2848
    %v2850 = vand.u32 %v2849, 4294901760
    %2851 = vmatpush.msra.mxu0 %v2850
    %v2852 = vand.u32 %v984, 4294901760
    %v2853 = vsub.f32 %v984, %v2852
    %v2854 = vand.u32 %v2853, 4294901760
    %2855 = vmatpush.msra.mxu0 %v2854
    %v2856 = vand.u32 %v980, 4294901760
    %v2857 = vsub.f32 %v980, %v2856
    %v2858 = vand.u32 %v2857, 4294901760
    %2859 = vmatpush.msra.mxu0 %v2858
    %v2860 = vand.u32 %v976, 4294901760
    %v2861 = vsub.f32 %v976, %v2860
    %v2862 = vand.u32 %v2861, 4294901760
    %2863 = vmatpush.msra.mxu0 %v2862
    %v2864 = vand.u32 %v972, 4294901760
    %v2865 = vsub.f32 %v972, %v2864
    %v2866 = vand.u32 %v2865, 4294901760
    %2867 = vmatpush.msra.mxu0 %v2866
    %v2868 = vand.u32 %v968, 4294901760
    %v2869 = vsub.f32 %v968, %v2868
    %v2870 = vand.u32 %v2869, 4294901760
    %2871 = vmatpush.msra.mxu0 %v2870
    %v2872 = vand.u32 %v964, 4294901760
    %v2873 = vsub.f32 %v964, %v2872
    %v2874 = vand.u32 %v2873, 4294901760
    %2875 = vmatpush.msra.mxu0 %v2874
    %v2876 = vand.u32 %v960, 4294901760
    %v2877 = vsub.f32 %v960, %v2876
    %v2878 = vand.u32 %v2877, 4294901760
    %2879 = vmatpush.msra.mxu0 %v2878
    %v2880 = vand.u32 %v956, 4294901760
    %v2881 = vsub.f32 %v956, %v2880
    %v2882 = vand.u32 %v2881, 4294901760
    %2883 = vmatpush.msra.mxu0 %v2882
    %v2884 = vand.u32 %v951, 4294901760
    %2885 = vmatmul.f32.gmra.mxu0 %v2884
    %v2886 = vpop.f32.mrf.mxu0
    %v2887 = vadd.f32 %v2818, %v2886
    %2888 = vdwg.mxu0
    %v2889 = vand.u32 %v1016, 4294901760
    %2890 = vmatpush.msra.mxu0 %v2889
    %v2891 = vand.u32 %v1012, 4294901760
    %2892 = vmatpush.msra.mxu0 %v2891
    %v2893 = vand.u32 %v1008, 4294901760
    %2894 = vmatpush.msra.mxu0 %v2893
    %v2895 = vand.u32 %v1004, 4294901760
    %2896 = vmatpush.msra.mxu0 %v2895
    %v2897 = vand.u32 %v1000, 4294901760
    %2898 = vmatpush.msra.mxu0 %v2897
    %v2899 = vand.u32 %v996, 4294901760
    %2900 = vmatpush.msra.mxu0 %v2899
    %v2901 = vand.u32 %v992, 4294901760
    %2902 = vmatpush.msra.mxu0 %v2901
    %v2903 = vand.u32 %v988, 4294901760
    %2904 = vmatpush.msra.mxu0 %v2903
    %v2905 = vand.u32 %v984, 4294901760
    %2906 = vmatpush.msra.mxu0 %v2905
    %v2907 = vand.u32 %v980, 4294901760
    %2908 = vmatpush.msra.mxu0 %v2907
    %v2909 = vand.u32 %v976, 4294901760
    %2910 = vmatpush.msra.mxu0 %v2909
    %v2911 = vand.u32 %v972, 4294901760
    %2912 = vmatpush.msra.mxu0 %v2911
    %v2913 = vand.u32 %v968, 4294901760
    %2914 = vmatpush.msra.mxu0 %v2913
    %v2915 = vand.u32 %v964, 4294901760
    %2916 = vmatpush.msra.mxu0 %v2915
    %v2917 = vand.u32 %v960, 4294901760
    %2918 = vmatpush.msra.mxu0 %v2917
    %v2919 = vand.u32 %v956, 4294901760
    %2920 = vmatpush.msra.mxu0 %v2919
    %v2921 = vand.u32 %v951, 4294901760
    %2922 = vmatmul.f32.gmra.mxu0 %v2921
    %v2923 = vpop.f32.mrf.mxu0
    %v2924 = vadd.f32 %v2887, %v2923
    %2925 = vdwg.mxu0
    %v2926 = vand.u32 %v1080, 4294901760
    %2927 = vmatpush.msra.mxu0 %v2926
    %v2928 = vand.u32 %v1076, 4294901760
    %2929 = vmatpush.msra.mxu0 %v2928
    %v2930 = vand.u32 %v1072, 4294901760
    %2931 = vmatpush.msra.mxu0 %v2930
    %v2932 = vand.u32 %v1068, 4294901760
    %2933 = vmatpush.msra.mxu0 %v2932
    %v2934 = vand.u32 %v1064, 4294901760
    %2935 = vmatpush.msra.mxu0 %v2934
    %v2936 = vand.u32 %v1060, 4294901760
    %2937 = vmatpush.msra.mxu0 %v2936
    %v2938 = vand.u32 %v1056, 4294901760
    %2939 = vmatpush.msra.mxu0 %v2938
    %v2940 = vand.u32 %v1052, 4294901760
    %2941 = vmatpush.msra.mxu0 %v2940
    %v2942 = vand.u32 %v1048, 4294901760
    %2943 = vmatpush.msra.mxu0 %v2942
    %v2944 = vand.u32 %v1044, 4294901760
    %2945 = vmatpush.msra.mxu0 %v2944
    %v2946 = vand.u32 %v1040, 4294901760
    %2947 = vmatpush.msra.mxu0 %v2946
    %v2948 = vand.u32 %v1036, 4294901760
    %2949 = vmatpush.msra.mxu0 %v2948
    %v2950 = vand.u32 %v1032, 4294901760
    %2951 = vmatpush.msra.mxu0 %v2950
    %v2952 = vand.u32 %v1028, 4294901760
    %2953 = vmatpush.msra.mxu0 %v2952
    %v2954 = vand.u32 %v1024, 4294901760
    %2955 = vmatpush.msra.mxu0 %v2954
    %v2956 = vand.u32 %v1020, 4294901760
    %2957 = vmatpush.msra.mxu0 %v2956
    %v2958 = vand.u32 %v952, 4294901760
    %v2959 = vsub.f32 %v952, %v2958
    %v2960 = vand.u32 %v2959, 4294901760
    %v2961 = vsub.f32 %v2959, %v2960
    %v2962 = vand.u32 %v2961, 4294901760
    %2963 = vmatmul.f32.gmra.mxu0 %v2962
    %v2964 = vpop.f32.mrf.mxu0
    %v2965 = vadd.f32 %v2924, %v2964
    %2966 = vdwg.mxu0
    %v2967 = vand.u32 %v1080, 4294901760
    %v2968 = vsub.f32 %v1080, %v2967
    %v2969 = vand.u32 %v2968, 4294901760
    %v2970 = vsub.f32 %v2968, %v2969
    %v2971 = vand.u32 %v2970, 4294901760
    %2972 = vmatpush.msra.mxu0 %v2971
    %v2973 = vand.u32 %v1076, 4294901760
    %v2974 = vsub.f32 %v1076, %v2973
    %v2975 = vand.u32 %v2974, 4294901760
    %v2976 = vsub.f32 %v2974, %v2975
    %v2977 = vand.u32 %v2976, 4294901760
    %2978 = vmatpush.msra.mxu0 %v2977
    %v2979 = vand.u32 %v1072, 4294901760
    %v2980 = vsub.f32 %v1072, %v2979
    %v2981 = vand.u32 %v2980, 4294901760
    %v2982 = vsub.f32 %v2980, %v2981
    %v2983 = vand.u32 %v2982, 4294901760
    %2984 = vmatpush.msra.mxu0 %v2983
    %v2985 = vand.u32 %v1068, 4294901760
    %v2986 = vsub.f32 %v1068, %v2985
    %v2987 = vand.u32 %v2986, 4294901760
    %v2988 = vsub.f32 %v2986, %v2987
    %v2989 = vand.u32 %v2988, 4294901760
    %2990 = vmatpush.msra.mxu0 %v2989
    %v2991 = vand.u32 %v1064, 4294901760
    %v2992 = vsub.f32 %v1064, %v2991
    %v2993 = vand.u32 %v2992, 4294901760
    %v2994 = vsub.f32 %v2992, %v2993
    %v2995 = vand.u32 %v2994, 4294901760
    %2996 = vmatpush.msra.mxu0 %v2995
    %v2997 = vand.u32 %v1060, 4294901760
    %v2998 = vsub.f32 %v1060, %v2997
    %v2999 = vand.u32 %v2998, 4294901760
    %v3000 = vsub.f32 %v2998, %v2999
    %v3001 = vand.u32 %v3000, 4294901760
    %3002 = vmatpush.msra.mxu0 %v3001
    %v3003 = vand.u32 %v1056, 4294901760
    %v3004 = vsub.f32 %v1056, %v3003
    %v3005 = vand.u32 %v3004, 4294901760
    %v3006 = vsub.f32 %v3004, %v3005
    %v3007 = vand.u32 %v3006, 4294901760
    %3008 = vmatpush.msra.mxu0 %v3007
    %v3009 = vand.u32 %v1052, 4294901760
    %v3010 = vsub.f32 %v1052, %v3009
    %v3011 = vand.u32 %v3010, 4294901760
    %v3012 = vsub.f32 %v3010, %v3011
    %v3013 = vand.u32 %v3012, 4294901760
    %3014 = vmatpush.msra.mxu0 %v3013
    %v3015 = vand.u32 %v1048, 4294901760
    %v3016 = vsub.f32 %v1048, %v3015
    %v3017 = vand.u32 %v3016, 4294901760
    %v3018 = vsub.f32 %v3016, %v3017
    %v3019 = vand.u32 %v3018, 4294901760
    %3020 = vmatpush.msra.mxu0 %v3019
    %v3021 = vand.u32 %v1044, 4294901760
    %v3022 = vsub.f32 %v1044, %v3021
    %v3023 = vand.u32 %v3022, 4294901760
    %v3024 = vsub.f32 %v3022, %v3023
    %v3025 = vand.u32 %v3024, 4294901760
    %3026 = vmatpush.msra.mxu0 %v3025
    %v3027 = vand.u32 %v1040, 4294901760
    %v3028 = vsub.f32 %v1040, %v3027
    %v3029 = vand.u32 %v3028, 4294901760
    %v3030 = vsub.f32 %v3028, %v3029
    %v3031 = vand.u32 %v3030, 4294901760
    %3032 = vmatpush.msra.mxu0 %v3031
    %v3033 = vand.u32 %v1036, 4294901760
    %v3034 = vsub.f32 %v1036, %v3033
    %v3035 = vand.u32 %v3034, 4294901760
    %v3036 = vsub.f32 %v3034, %v3035
    %v3037 = vand.u32 %v3036, 4294901760
    %3038 = vmatpush.msra.mxu0 %v3037
    %v3039 = vand.u32 %v1032, 4294901760
    %v3040 = vsub.f32 %v1032, %v3039
    %v3041 = vand.u32 %v3040, 4294901760
    %v3042 = vsub.f32 %v3040, %v3041
    %v3043 = vand.u32 %v3042, 4294901760
    %3044 = vmatpush.msra.mxu0 %v3043
    %v3045 = vand.u32 %v1028, 4294901760
    %v3046 = vsub.f32 %v1028, %v3045
    %v3047 = vand.u32 %v3046, 4294901760
    %v3048 = vsub.f32 %v3046, %v3047
    %v3049 = vand.u32 %v3048, 4294901760
    %3050 = vmatpush.msra.mxu0 %v3049
    %v3051 = vand.u32 %v1024, 4294901760
    %v3052 = vsub.f32 %v1024, %v3051
    %v3053 = vand.u32 %v3052, 4294901760
    %v3054 = vsub.f32 %v3052, %v3053
    %v3055 = vand.u32 %v3054, 4294901760
    %3056 = vmatpush.msra.mxu0 %v3055
    %v3057 = vand.u32 %v1020, 4294901760
    %v3058 = vsub.f32 %v1020, %v3057
    %v3059 = vand.u32 %v3058, 4294901760
    %v3060 = vsub.f32 %v3058, %v3059
    %v3061 = vand.u32 %v3060, 4294901760
    %3062 = vmatpush.msra.mxu0 %v3061
    %v3063 = vand.u32 %v952, 4294901760
    %3064 = vmatmul.f32.gmra.mxu0 %v3063
    %v3065 = vpop.f32.mrf.mxu0
    %v3066 = vadd.f32 %v2965, %v3065
    %3067 = vdwg.mxu0
    %v3068 = vand.u32 %v1080, 4294901760
    %v3069 = vsub.f32 %v1080, %v3068
    %3070 = vmatpush.msra.mxu0 %v3069
    %v3071 = vand.u32 %v1076, 4294901760
    %v3072 = vsub.f32 %v1076, %v3071
    %3073 = vmatpush.msra.mxu0 %v3072
    %v3074 = vand.u32 %v1072, 4294901760
    %v3075 = vsub.f32 %v1072, %v3074
    %3076 = vmatpush.msra.mxu0 %v3075
    %v3077 = vand.u32 %v1068, 4294901760
    %v3078 = vsub.f32 %v1068, %v3077
    %3079 = vmatpush.msra.mxu0 %v3078
    %v3080 = vand.u32 %v1064, 4294901760
    %v3081 = vsub.f32 %v1064, %v3080
    %3082 = vmatpush.msra.mxu0 %v3081
    %v3083 = vand.u32 %v1060, 4294901760
    %v3084 = vsub.f32 %v1060, %v3083
    %3085 = vmatpush.msra.mxu0 %v3084
    %v3086 = vand.u32 %v1056, 4294901760
    %v3087 = vsub.f32 %v1056, %v3086
    %3088 = vmatpush.msra.mxu0 %v3087
    %v3089 = vand.u32 %v1052, 4294901760
    %v3090 = vsub.f32 %v1052, %v3089
    %3091 = vmatpush.msra.mxu0 %v3090
    %v3092 = vand.u32 %v1048, 4294901760
    %v3093 = vsub.f32 %v1048, %v3092
    %3094 = vmatpush.msra.mxu0 %v3093
    %v3095 = vand.u32 %v1044, 4294901760
    %v3096 = vsub.f32 %v1044, %v3095
    %3097 = vmatpush.msra.mxu0 %v3096
    %v3098 = vand.u32 %v1040, 4294901760
    %v3099 = vsub.f32 %v1040, %v3098
    %3100 = vmatpush.msra.mxu0 %v3099
    %v3101 = vand.u32 %v1036, 4294901760
    %v3102 = vsub.f32 %v1036, %v3101
    %3103 = vmatpush.msra.mxu0 %v3102
    %v3104 = vand.u32 %v1032, 4294901760
    %v3105 = vsub.f32 %v1032, %v3104
    %3106 = vmatpush.msra.mxu0 %v3105
    %v3107 = vand.u32 %v1028, 4294901760
    %v3108 = vsub.f32 %v1028, %v3107
    %3109 = vmatpush.msra.mxu0 %v3108
    %v3110 = vand.u32 %v1024, 4294901760
    %v3111 = vsub.f32 %v1024, %v3110
    %3112 = vmatpush.msra.mxu0 %v3111
    %v3113 = vand.u32 %v1020, 4294901760
    %v3114 = vsub.f32 %v1020, %v3113
    %3115 = vmatpush.msra.mxu0 %v3114
    %v3116 = vand.u32 %v952, 4294901760
    %v3117 = vsub.f32 %v952, %v3116
    %3118 = vmatmul.f32.gmra.mxu0 %v3117
    %v3119 = vpop.f32.mrf.mxu0
    %v3120 = vadd.f32 %v3066, %v3119
    %3121 = vdwg.mxu0
    %v3122 = vand.u32 %v1080, 4294901760
    %3123 = vmatpush.msra.mxu0 %v3122
    %v3124 = vand.u32 %v1076, 4294901760
    %3125 = vmatpush.msra.mxu0 %v3124
    %v3126 = vand.u32 %v1072, 4294901760
    %3127 = vmatpush.msra.mxu0 %v3126
    %v3128 = vand.u32 %v1068, 4294901760
    %3129 = vmatpush.msra.mxu0 %v3128
    %v3130 = vand.u32 %v1064, 4294901760
    %3131 = vmatpush.msra.mxu0 %v3130
    %v3132 = vand.u32 %v1060, 4294901760
    %3133 = vmatpush.msra.mxu0 %v3132
    %v3134 = vand.u32 %v1056, 4294901760
    %3135 = vmatpush.msra.mxu0 %v3134
    %v3136 = vand.u32 %v1052, 4294901760
    %3137 = vmatpush.msra.mxu0 %v3136
    %v3138 = vand.u32 %v1048, 4294901760
    %3139 = vmatpush.msra.mxu0 %v3138
    %v3140 = vand.u32 %v1044, 4294901760
    %3141 = vmatpush.msra.mxu0 %v3140
    %v3142 = vand.u32 %v1040, 4294901760
    %3143 = vmatpush.msra.mxu0 %v3142
    %v3144 = vand.u32 %v1036, 4294901760
    %3145 = vmatpush.msra.mxu0 %v3144
    %v3146 = vand.u32 %v1032, 4294901760
    %3147 = vmatpush.msra.mxu0 %v3146
    %v3148 = vand.u32 %v1028, 4294901760
    %3149 = vmatpush.msra.mxu0 %v3148
    %v3150 = vand.u32 %v1024, 4294901760
    %3151 = vmatpush.msra.mxu0 %v3150
    %v3152 = vand.u32 %v1020, 4294901760
    %3153 = vmatpush.msra.mxu0 %v3152
    %v3154 = vand.u32 %v952, 4294901760
    %v3155 = vsub.f32 %v952, %v3154
    %v3156 = vand.u32 %v3155, 4294901760
    %3157 = vmatmul.f32.gmra.mxu0 %v3156
    %v3158 = vpop.f32.mrf.mxu0
    %v3159 = vadd.f32 %v3120, %v3158
    %3160 = vdwg.mxu0
    %v3161 = vand.u32 %v1080, 4294901760
    %v3162 = vsub.f32 %v1080, %v3161
    %v3163 = vand.u32 %v3162, 4294901760
    %3164 = vmatpush.msra.mxu0 %v3163
    %v3165 = vand.u32 %v1076, 4294901760
    %v3166 = vsub.f32 %v1076, %v3165
    %v3167 = vand.u32 %v3166, 4294901760
    %3168 = vmatpush.msra.mxu0 %v3167
    %v3169 = vand.u32 %v1072, 4294901760
    %v3170 = vsub.f32 %v1072, %v3169
    %v3171 = vand.u32 %v3170, 4294901760
    %3172 = vmatpush.msra.mxu0 %v3171
    %v3173 = vand.u32 %v1068, 4294901760
    %v3174 = vsub.f32 %v1068, %v3173
    %v3175 = vand.u32 %v3174, 4294901760
    %3176 = vmatpush.msra.mxu0 %v3175
    %v3177 = vand.u32 %v1064, 4294901760
    %v3178 = vsub.f32 %v1064, %v3177
    %v3179 = vand.u32 %v3178, 4294901760
    %3180 = vmatpush.msra.mxu0 %v3179
    %v3181 = vand.u32 %v1060, 4294901760
    %v3182 = vsub.f32 %v1060, %v3181
    %v3183 = vand.u32 %v3182, 4294901760
    %3184 = vmatpush.msra.mxu0 %v3183
    %v3185 = vand.u32 %v1056, 4294901760
    %v3186 = vsub.f32 %v1056, %v3185
    %v3187 = vand.u32 %v3186, 4294901760
    %3188 = vmatpush.msra.mxu0 %v3187
    %v3189 = vand.u32 %v1052, 4294901760
    %v3190 = vsub.f32 %v1052, %v3189
    %v3191 = vand.u32 %v3190, 4294901760
    %3192 = vmatpush.msra.mxu0 %v3191
    %v3193 = vand.u32 %v1048, 4294901760
    %v3194 = vsub.f32 %v1048, %v3193
    %v3195 = vand.u32 %v3194, 4294901760
    %3196 = vmatpush.msra.mxu0 %v3195
    %v3197 = vand.u32 %v1044, 4294901760
    %v3198 = vsub.f32 %v1044, %v3197
    %v3199 = vand.u32 %v3198, 4294901760
    %3200 = vmatpush.msra.mxu0 %v3199
    %v3201 = vand.u32 %v1040, 4294901760
    %v3202 = vsub.f32 %v1040, %v3201
    %v3203 = vand.u32 %v3202, 4294901760
    %3204 = vmatpush.msra.mxu0 %v3203
    %v3205 = vand.u32 %v1036, 4294901760
    %v3206 = vsub.f32 %v1036, %v3205
    %v3207 = vand.u32 %v3206, 4294901760
    %3208 = vmatpush.msra.mxu0 %v3207
    %v3209 = vand.u32 %v1032, 4294901760
    %v3210 = vsub.f32 %v1032, %v3209
    %v3211 = vand.u32 %v3210, 4294901760
    %3212 = vmatpush.msra.mxu0 %v3211
    %v3213 = vand.u32 %v1028, 4294901760
    %v3214 = vsub.f32 %v1028, %v3213
    %v3215 = vand.u32 %v3214, 4294901760
    %3216 = vmatpush.msra.mxu0 %v3215
    %v3217 = vand.u32 %v1024, 4294901760
    %v3218 = vsub.f32 %v1024, %v3217
    %v3219 = vand.u32 %v3218, 4294901760
    %3220 = vmatpush.msra.mxu0 %v3219
    %v3221 = vand.u32 %v1020, 4294901760
    %v3222 = vsub.f32 %v1020, %v3221
    %v3223 = vand.u32 %v3222, 4294901760
    %3224 = vmatpush.msra.mxu0 %v3223
    %v3225 = vand.u32 %v952, 4294901760
    %3226 = vmatmul.f32.gmra.mxu0 %v3225
    %v3227 = vpop.f32.mrf.mxu0
    %v3228 = vadd.f32 %v3159, %v3227
    %3229 = vdwg.mxu0
    %v3230 = vand.u32 %v1080, 4294901760
    %3231 = vmatpush.msra.mxu0 %v3230
    %v3232 = vand.u32 %v1076, 4294901760
    %3233 = vmatpush.msra.mxu0 %v3232
    %v3234 = vand.u32 %v1072, 4294901760
    %3235 = vmatpush.msra.mxu0 %v3234
    %v3236 = vand.u32 %v1068, 4294901760
    %3237 = vmatpush.msra.mxu0 %v3236
    %v3238 = vand.u32 %v1064, 4294901760
    %3239 = vmatpush.msra.mxu0 %v3238
    %v3240 = vand.u32 %v1060, 4294901760
    %3241 = vmatpush.msra.mxu0 %v3240
    %v3242 = vand.u32 %v1056, 4294901760
    %3243 = vmatpush.msra.mxu0 %v3242
    %v3244 = vand.u32 %v1052, 4294901760
    %3245 = vmatpush.msra.mxu0 %v3244
    %v3246 = vand.u32 %v1048, 4294901760
    %3247 = vmatpush.msra.mxu0 %v3246
    %v3248 = vand.u32 %v1044, 4294901760
    %3249 = vmatpush.msra.mxu0 %v3248
    %v3250 = vand.u32 %v1040, 4294901760
    %3251 = vmatpush.msra.mxu0 %v3250
    %v3252 = vand.u32 %v1036, 4294901760
    %3253 = vmatpush.msra.mxu0 %v3252
    %v3254 = vand.u32 %v1032, 4294901760
    %3255 = vmatpush.msra.mxu0 %v3254
    %v3256 = vand.u32 %v1028, 4294901760
    %3257 = vmatpush.msra.mxu0 %v3256
    %v3258 = vand.u32 %v1024, 4294901760
    %3259 = vmatpush.msra.mxu0 %v3258
    %v3260 = vand.u32 %v1020, 4294901760
    %3261 = vmatpush.msra.mxu0 %v3260
    %v3262 = vand.u32 %v952, 4294901760
    %3263 = vmatmul.f32.gmra.mxu0 %v3262
    %v3264 = vpop.f32.mrf.mxu0
    %v3265 = vadd.f32 %v3228, %v3264
    %3266 = vdwg.mxu0
    %v3267 = vand.u32 %v1144, 4294901760
    %3268 = vmatpush.msra.mxu0 %v3267
    %v3269 = vand.u32 %v1140, 4294901760
    %3270 = vmatpush.msra.mxu0 %v3269
    %v3271 = vand.u32 %v1136, 4294901760
    %3272 = vmatpush.msra.mxu0 %v3271
    %v3273 = vand.u32 %v1132, 4294901760
    %3274 = vmatpush.msra.mxu0 %v3273
    %v3275 = vand.u32 %v1128, 4294901760
    %3276 = vmatpush.msra.mxu0 %v3275
    %v3277 = vand.u32 %v1124, 4294901760
    %3278 = vmatpush.msra.mxu0 %v3277
    %v3279 = vand.u32 %v1120, 4294901760
    %3280 = vmatpush.msra.mxu0 %v3279
    %v3281 = vand.u32 %v1116, 4294901760
    %3282 = vmatpush.msra.mxu0 %v3281
    %v3283 = vand.u32 %v1112, 4294901760
    %3284 = vmatpush.msra.mxu0 %v3283
    %v3285 = vand.u32 %v1108, 4294901760
    %3286 = vmatpush.msra.mxu0 %v3285
    %v3287 = vand.u32 %v1104, 4294901760
    %3288 = vmatpush.msra.mxu0 %v3287
    %v3289 = vand.u32 %v1100, 4294901760
    %3290 = vmatpush.msra.mxu0 %v3289
    %v3291 = vand.u32 %v1096, 4294901760
    %3292 = vmatpush.msra.mxu0 %v3291
    %v3293 = vand.u32 %v1092, 4294901760
    %3294 = vmatpush.msra.mxu0 %v3293
    %v3295 = vand.u32 %v1088, 4294901760
    %3296 = vmatpush.msra.mxu0 %v3295
    %v3297 = vand.u32 %v1084, 4294901760
    %3298 = vmatpush.msra.mxu0 %v3297
    %v3299 = vand.u32 %v953, 4294901760
    %v3300 = vsub.f32 %v953, %v3299
    %v3301 = vand.u32 %v3300, 4294901760
    %v3302 = vsub.f32 %v3300, %v3301
    %v3303 = vand.u32 %v3302, 4294901760
    %3304 = vmatmul.f32.gmra.mxu0 %v3303
    %v3305 = vpop.f32.mrf.mxu0
    %v3306 = vadd.f32 %v3265, %v3305
    %3307 = vdwg.mxu0
    %v3308 = vand.u32 %v1144, 4294901760
    %v3309 = vsub.f32 %v1144, %v3308
    %v3310 = vand.u32 %v3309, 4294901760
    %v3311 = vsub.f32 %v3309, %v3310
    %v3312 = vand.u32 %v3311, 4294901760
    %3313 = vmatpush.msra.mxu0 %v3312
    %v3314 = vand.u32 %v1140, 4294901760
    %v3315 = vsub.f32 %v1140, %v3314
    %v3316 = vand.u32 %v3315, 4294901760
    %v3317 = vsub.f32 %v3315, %v3316
    %v3318 = vand.u32 %v3317, 4294901760
    %3319 = vmatpush.msra.mxu0 %v3318
    %v3320 = vand.u32 %v1136, 4294901760
    %v3321 = vsub.f32 %v1136, %v3320
    %v3322 = vand.u32 %v3321, 4294901760
    %v3323 = vsub.f32 %v3321, %v3322
    %v3324 = vand.u32 %v3323, 4294901760
    %3325 = vmatpush.msra.mxu0 %v3324
    %v3326 = vand.u32 %v1132, 4294901760
    %v3327 = vsub.f32 %v1132, %v3326
    %v3328 = vand.u32 %v3327, 4294901760
    %v3329 = vsub.f32 %v3327, %v3328
    %v3330 = vand.u32 %v3329, 4294901760
    %3331 = vmatpush.msra.mxu0 %v3330
    %v3332 = vand.u32 %v1128, 4294901760
    %v3333 = vsub.f32 %v1128, %v3332
    %v3334 = vand.u32 %v3333, 4294901760
    %v3335 = vsub.f32 %v3333, %v3334
    %v3336 = vand.u32 %v3335, 4294901760
    %3337 = vmatpush.msra.mxu0 %v3336
    %v3338 = vand.u32 %v1124, 4294901760
    %v3339 = vsub.f32 %v1124, %v3338
    %v3340 = vand.u32 %v3339, 4294901760
    %v3341 = vsub.f32 %v3339, %v3340
    %v3342 = vand.u32 %v3341, 4294901760
    %3343 = vmatpush.msra.mxu0 %v3342
    %v3344 = vand.u32 %v1120, 4294901760
    %v3345 = vsub.f32 %v1120, %v3344
    %v3346 = vand.u32 %v3345, 4294901760
    %v3347 = vsub.f32 %v3345, %v3346
    %v3348 = vand.u32 %v3347, 4294901760
    %3349 = vmatpush.msra.mxu0 %v3348
    %v3350 = vand.u32 %v1116, 4294901760
    %v3351 = vsub.f32 %v1116, %v3350
    %v3352 = vand.u32 %v3351, 4294901760
    %v3353 = vsub.f32 %v3351, %v3352
    %v3354 = vand.u32 %v3353, 4294901760
    %3355 = vmatpush.msra.mxu0 %v3354
    %v3356 = vand.u32 %v1112, 4294901760
    %v3357 = vsub.f32 %v1112, %v3356
    %v3358 = vand.u32 %v3357, 4294901760
    %v3359 = vsub.f32 %v3357, %v3358
    %v3360 = vand.u32 %v3359, 4294901760
    %3361 = vmatpush.msra.mxu0 %v3360
    %v3362 = vand.u32 %v1108, 4294901760
    %v3363 = vsub.f32 %v1108, %v3362
    %v3364 = vand.u32 %v3363, 4294901760
    %v3365 = vsub.f32 %v3363, %v3364
    %v3366 = vand.u32 %v3365, 4294901760
    %3367 = vmatpush.msra.mxu0 %v3366
    %v3368 = vand.u32 %v1104, 4294901760
    %v3369 = vsub.f32 %v1104, %v3368
    %v3370 = vand.u32 %v3369, 4294901760
    %v3371 = vsub.f32 %v3369, %v3370
    %v3372 = vand.u32 %v3371, 4294901760
    %3373 = vmatpush.msra.mxu0 %v3372
    %v3374 = vand.u32 %v1100, 4294901760
    %v3375 = vsub.f32 %v1100, %v3374
    %v3376 = vand.u32 %v3375, 4294901760
    %v3377 = vsub.f32 %v3375, %v3376
    %v3378 = vand.u32 %v3377, 4294901760
    %3379 = vmatpush.msra.mxu0 %v3378
    %v3380 = vand.u32 %v1096, 4294901760
    %v3381 = vsub.f32 %v1096, %v3380
    %v3382 = vand.u32 %v3381, 4294901760
    %v3383 = vsub.f32 %v3381, %v3382
    %v3384 = vand.u32 %v3383, 4294901760
    %3385 = vmatpush.msra.mxu0 %v3384
    %v3386 = vand.u32 %v1092, 4294901760
    %v3387 = vsub.f32 %v1092, %v3386
    %v3388 = vand.u32 %v3387, 4294901760
    %v3389 = vsub.f32 %v3387, %v3388
    %v3390 = vand.u32 %v3389, 4294901760
    %3391 = vmatpush.msra.mxu0 %v3390
    %v3392 = vand.u32 %v1088, 4294901760
    %v3393 = vsub.f32 %v1088, %v3392
    %v3394 = vand.u32 %v3393, 4294901760
    %v3395 = vsub.f32 %v3393, %v3394
    %v3396 = vand.u32 %v3395, 4294901760
    %3397 = vmatpush.msra.mxu0 %v3396
    %v3398 = vand.u32 %v1084, 4294901760
    %v3399 = vsub.f32 %v1084, %v3398
    %v3400 = vand.u32 %v3399, 4294901760
    %v3401 = vsub.f32 %v3399, %v3400
    %v3402 = vand.u32 %v3401, 4294901760
    %3403 = vmatpush.msra.mxu0 %v3402
    %v3404 = vand.u32 %v953, 4294901760
    %3405 = vmatmul.f32.gmra.mxu0 %v3404
    %v3406 = vpop.f32.mrf.mxu0
    %v3407 = vadd.f32 %v3306, %v3406
    %3408 = vdwg.mxu0
    %v3409 = vand.u32 %v1144, 4294901760
    %v3410 = vsub.f32 %v1144, %v3409
    %3411 = vmatpush.msra.mxu0 %v3410
    %v3412 = vand.u32 %v1140, 4294901760
    %v3413 = vsub.f32 %v1140, %v3412
    %3414 = vmatpush.msra.mxu0 %v3413
    %v3415 = vand.u32 %v1136, 4294901760
    %v3416 = vsub.f32 %v1136, %v3415
    %3417 = vmatpush.msra.mxu0 %v3416
    %v3418 = vand.u32 %v1132, 4294901760
    %v3419 = vsub.f32 %v1132, %v3418
    %3420 = vmatpush.msra.mxu0 %v3419
    %v3421 = vand.u32 %v1128, 4294901760
    %v3422 = vsub.f32 %v1128, %v3421
    %3423 = vmatpush.msra.mxu0 %v3422
    %v3424 = vand.u32 %v1124, 4294901760
    %v3425 = vsub.f32 %v1124, %v3424
    %3426 = vmatpush.msra.mxu0 %v3425
    %v3427 = vand.u32 %v1120, 4294901760
    %v3428 = vsub.f32 %v1120, %v3427
    %3429 = vmatpush.msra.mxu0 %v3428
    %v3430 = vand.u32 %v1116, 4294901760
    %v3431 = vsub.f32 %v1116, %v3430
    %3432 = vmatpush.msra.mxu0 %v3431
    %v3433 = vand.u32 %v1112, 4294901760
    %v3434 = vsub.f32 %v1112, %v3433
    %3435 = vmatpush.msra.mxu0 %v3434
    %v3436 = vand.u32 %v1108, 4294901760
    %v3437 = vsub.f32 %v1108, %v3436
    %3438 = vmatpush.msra.mxu0 %v3437
    %v3439 = vand.u32 %v1104, 4294901760
    %v3440 = vsub.f32 %v1104, %v3439
    %3441 = vmatpush.msra.mxu0 %v3440
    %v3442 = vand.u32 %v1100, 4294901760
    %v3443 = vsub.f32 %v1100, %v3442
    %3444 = vmatpush.msra.mxu0 %v3443
    %v3445 = vand.u32 %v1096, 4294901760
    %v3446 = vsub.f32 %v1096, %v3445
    %3447 = vmatpush.msra.mxu0 %v3446
    %v3448 = vand.u32 %v1092, 4294901760
    %v3449 = vsub.f32 %v1092, %v3448
    %3450 = vmatpush.msra.mxu0 %v3449
    %v3451 = vand.u32 %v1088, 4294901760
    %v3452 = vsub.f32 %v1088, %v3451
    %3453 = vmatpush.msra.mxu0 %v3452
    %v3454 = vand.u32 %v1084, 4294901760
    %v3455 = vsub.f32 %v1084, %v3454
    %3456 = vmatpush.msra.mxu0 %v3455
    %v3457 = vand.u32 %v953, 4294901760
    %v3458 = vsub.f32 %v953, %v3457
    %3459 = vmatmul.f32.gmra.mxu0 %v3458
    %v3460 = vpop.f32.mrf.mxu0
    %v3461 = vadd.f32 %v3407, %v3460
    %3462 = vdwg.mxu0
    %v3463 = vand.u32 %v1144, 4294901760
    %3464 = vmatpush.msra.mxu0 %v3463
    %v3465 = vand.u32 %v1140, 4294901760
    %3466 = vmatpush.msra.mxu0 %v3465
    %v3467 = vand.u32 %v1136, 4294901760
    %3468 = vmatpush.msra.mxu0 %v3467
    %v3469 = vand.u32 %v1132, 4294901760
    %3470 = vmatpush.msra.mxu0 %v3469
    %v3471 = vand.u32 %v1128, 4294901760
    %3472 = vmatpush.msra.mxu0 %v3471
    %v3473 = vand.u32 %v1124, 4294901760
    %3474 = vmatpush.msra.mxu0 %v3473
    %v3475 = vand.u32 %v1120, 4294901760
    %3476 = vmatpush.msra.mxu0 %v3475
    %v3477 = vand.u32 %v1116, 4294901760
    %3478 = vmatpush.msra.mxu0 %v3477
    %v3479 = vand.u32 %v1112, 4294901760
    %3480 = vmatpush.msra.mxu0 %v3479
    %v3481 = vand.u32 %v1108, 4294901760
    %3482 = vmatpush.msra.mxu0 %v3481
    %v3483 = vand.u32 %v1104, 4294901760
    %3484 = vmatpush.msra.mxu0 %v3483
    %v3485 = vand.u32 %v1100, 4294901760
    %3486 = vmatpush.msra.mxu0 %v3485
    %v3487 = vand.u32 %v1096, 4294901760
    %3488 = vmatpush.msra.mxu0 %v3487
    %v3489 = vand.u32 %v1092, 4294901760
    %3490 = vmatpush.msra.mxu0 %v3489
    %v3491 = vand.u32 %v1088, 4294901760
    %3492 = vmatpush.msra.mxu0 %v3491
    %v3493 = vand.u32 %v1084, 4294901760
    %3494 = vmatpush.msra.mxu0 %v3493
    %v3495 = vand.u32 %v953, 4294901760
    %v3496 = vsub.f32 %v953, %v3495
    %v3497 = vand.u32 %v3496, 4294901760
    %3498 = vmatmul.f32.gmra.mxu0 %v3497
    %v3499 = vpop.f32.mrf.mxu0
    %v3500 = vadd.f32 %v3461, %v3499
    %3501 = vdwg.mxu0
    %v3502 = vand.u32 %v1144, 4294901760
    %v3503 = vsub.f32 %v1144, %v3502
    %v3504 = vand.u32 %v3503, 4294901760
    %3505 = vmatpush.msra.mxu0 %v3504
    %v3506 = vand.u32 %v1140, 4294901760
    %v3507 = vsub.f32 %v1140, %v3506
    %v3508 = vand.u32 %v3507, 4294901760
    %3509 = vmatpush.msra.mxu0 %v3508
    %v3510 = vand.u32 %v1136, 4294901760
    %v3511 = vsub.f32 %v1136, %v3510
    %v3512 = vand.u32 %v3511, 4294901760
    %3513 = vmatpush.msra.mxu0 %v3512
    %v3514 = vand.u32 %v1132, 4294901760
    %v3515 = vsub.f32 %v1132, %v3514
    %v3516 = vand.u32 %v3515, 4294901760
    %3517 = vmatpush.msra.mxu0 %v3516
    %v3518 = vand.u32 %v1128, 4294901760
    %v3519 = vsub.f32 %v1128, %v3518
    %v3520 = vand.u32 %v3519, 4294901760
    %3521 = vmatpush.msra.mxu0 %v3520
    %v3522 = vand.u32 %v1124, 4294901760
    %v3523 = vsub.f32 %v1124, %v3522
    %v3524 = vand.u32 %v3523, 4294901760
    %3525 = vmatpush.msra.mxu0 %v3524
    %v3526 = vand.u32 %v1120, 4294901760
    %v3527 = vsub.f32 %v1120, %v3526
    %v3528 = vand.u32 %v3527, 4294901760
    %3529 = vmatpush.msra.mxu0 %v3528
    %v3530 = vand.u32 %v1116, 4294901760
    %v3531 = vsub.f32 %v1116, %v3530
    %v3532 = vand.u32 %v3531, 4294901760
    %3533 = vmatpush.msra.mxu0 %v3532
    %v3534 = vand.u32 %v1112, 4294901760
    %v3535 = vsub.f32 %v1112, %v3534
    %v3536 = vand.u32 %v3535, 4294901760
    %3537 = vmatpush.msra.mxu0 %v3536
    %v3538 = vand.u32 %v1108, 4294901760
    %v3539 = vsub.f32 %v1108, %v3538
    %v3540 = vand.u32 %v3539, 4294901760
    %3541 = vmatpush.msra.mxu0 %v3540
    %v3542 = vand.u32 %v1104, 4294901760
    %v3543 = vsub.f32 %v1104, %v3542
    %v3544 = vand.u32 %v3543, 4294901760
    %3545 = vmatpush.msra.mxu0 %v3544
    %v3546 = vand.u32 %v1100, 4294901760
    %v3547 = vsub.f32 %v1100, %v3546
    %v3548 = vand.u32 %v3547, 4294901760
    %3549 = vmatpush.msra.mxu0 %v3548
    %v3550 = vand.u32 %v1096, 4294901760
    %v3551 = vsub.f32 %v1096, %v3550
    %v3552 = vand.u32 %v3551, 4294901760
    %3553 = vmatpush.msra.mxu0 %v3552
    %v3554 = vand.u32 %v1092, 4294901760
    %v3555 = vsub.f32 %v1092, %v3554
    %v3556 = vand.u32 %v3555, 4294901760
    %3557 = vmatpush.msra.mxu0 %v3556
    %v3558 = vand.u32 %v1088, 4294901760
    %v3559 = vsub.f32 %v1088, %v3558
    %v3560 = vand.u32 %v3559, 4294901760
    %3561 = vmatpush.msra.mxu0 %v3560
    %v3562 = vand.u32 %v1084, 4294901760
    %v3563 = vsub.f32 %v1084, %v3562
    %v3564 = vand.u32 %v3563, 4294901760
    %3565 = vmatpush.msra.mxu0 %v3564
    %v3566 = vand.u32 %v953, 4294901760
    %3567 = vmatmul.f32.gmra.mxu0 %v3566
    %v3568 = vpop.f32.mrf.mxu0
    %v3569 = vadd.f32 %v3500, %v3568
    %3570 = vdwg.mxu0
    %v3571 = vand.u32 %v1144, 4294901760
    %3572 = vmatpush.msra.mxu0 %v3571
    %v3573 = vand.u32 %v1140, 4294901760
    %3574 = vmatpush.msra.mxu0 %v3573
    %v3575 = vand.u32 %v1136, 4294901760
    %3576 = vmatpush.msra.mxu0 %v3575
    %v3577 = vand.u32 %v1132, 4294901760
    %3578 = vmatpush.msra.mxu0 %v3577
    %v3579 = vand.u32 %v1128, 4294901760
    %3580 = vmatpush.msra.mxu0 %v3579
    %v3581 = vand.u32 %v1124, 4294901760
    %3582 = vmatpush.msra.mxu0 %v3581
    %v3583 = vand.u32 %v1120, 4294901760
    %3584 = vmatpush.msra.mxu0 %v3583
    %v3585 = vand.u32 %v1116, 4294901760
    %3586 = vmatpush.msra.mxu0 %v3585
    %v3587 = vand.u32 %v1112, 4294901760
    %3588 = vmatpush.msra.mxu0 %v3587
    %v3589 = vand.u32 %v1108, 4294901760
    %3590 = vmatpush.msra.mxu0 %v3589
    %v3591 = vand.u32 %v1104, 4294901760
    %3592 = vmatpush.msra.mxu0 %v3591
    %v3593 = vand.u32 %v1100, 4294901760
    %3594 = vmatpush.msra.mxu0 %v3593
    %v3595 = vand.u32 %v1096, 4294901760
    %3596 = vmatpush.msra.mxu0 %v3595
    %v3597 = vand.u32 %v1092, 4294901760
    %3598 = vmatpush.msra.mxu0 %v3597
    %v3599 = vand.u32 %v1088, 4294901760
    %3600 = vmatpush.msra.mxu0 %v3599
    %v3601 = vand.u32 %v1084, 4294901760
    %3602 = vmatpush.msra.mxu0 %v3601
    %v3603 = vand.u32 %v953, 4294901760
    %3604 = vmatmul.f32.gmra.mxu0 %v3603
    %v3605 = vpop.f32.mrf.mxu0
    %v3606 = vadd.f32 %v3569, %v3605
    %3607 = vdwg.mxu0
    %v3608 = vand.u32 %v1208, 4294901760
    %3609 = vmatpush.msra.mxu0 %v3608
    %v3610 = vand.u32 %v1204, 4294901760
    %3611 = vmatpush.msra.mxu0 %v3610
    %v3612 = vand.u32 %v1200, 4294901760
    %3613 = vmatpush.msra.mxu0 %v3612
    %v3614 = vand.u32 %v1196, 4294901760
    %3615 = vmatpush.msra.mxu0 %v3614
    %v3616 = vand.u32 %v1192, 4294901760
    %3617 = vmatpush.msra.mxu0 %v3616
    %v3618 = vand.u32 %v1188, 4294901760
    %3619 = vmatpush.msra.mxu0 %v3618
    %v3620 = vand.u32 %v1184, 4294901760
    %3621 = vmatpush.msra.mxu0 %v3620
    %v3622 = vand.u32 %v1180, 4294901760
    %3623 = vmatpush.msra.mxu0 %v3622
    %v3624 = vand.u32 %v1176, 4294901760
    %3625 = vmatpush.msra.mxu0 %v3624
    %v3626 = vand.u32 %v1172, 4294901760
    %3627 = vmatpush.msra.mxu0 %v3626
    %v3628 = vand.u32 %v1168, 4294901760
    %3629 = vmatpush.msra.mxu0 %v3628
    %v3630 = vand.u32 %v1164, 4294901760
    %3631 = vmatpush.msra.mxu0 %v3630
    %v3632 = vand.u32 %v1160, 4294901760
    %3633 = vmatpush.msra.mxu0 %v3632
    %v3634 = vand.u32 %v1156, 4294901760
    %3635 = vmatpush.msra.mxu0 %v3634
    %v3636 = vand.u32 %v1152, 4294901760
    %3637 = vmatpush.msra.mxu0 %v3636
    %v3638 = vand.u32 %v1148, 4294901760
    %3639 = vmatpush.msra.mxu0 %v3638
    %v3640 = vand.u32 %v954, 4294901760
    %v3641 = vsub.f32 %v954, %v3640
    %v3642 = vand.u32 %v3641, 4294901760
    %v3643 = vsub.f32 %v3641, %v3642
    %v3644 = vand.u32 %v3643, 4294901760
    %3645 = vmatmul.f32.gmra.mxu0 %v3644
    %v3646 = vpop.f32.mrf.mxu0
    %v3647 = vadd.f32 %v3606, %v3646
    %3648 = vdwg.mxu0
    %v3649 = vand.u32 %v1208, 4294901760
    %v3650 = vsub.f32 %v1208, %v3649
    %v3651 = vand.u32 %v3650, 4294901760
    %v3652 = vsub.f32 %v3650, %v3651
    %v3653 = vand.u32 %v3652, 4294901760
    %3654 = vmatpush.msra.mxu0 %v3653
    %v3655 = vand.u32 %v1204, 4294901760
    %v3656 = vsub.f32 %v1204, %v3655
    %v3657 = vand.u32 %v3656, 4294901760
    %v3658 = vsub.f32 %v3656, %v3657
    %v3659 = vand.u32 %v3658, 4294901760
    %3660 = vmatpush.msra.mxu0 %v3659
    %v3661 = vand.u32 %v1200, 4294901760
    %v3662 = vsub.f32 %v1200, %v3661
    %v3663 = vand.u32 %v3662, 4294901760
    %v3664 = vsub.f32 %v3662, %v3663
    %v3665 = vand.u32 %v3664, 4294901760
    %3666 = vmatpush.msra.mxu0 %v3665
    %v3667 = vand.u32 %v1196, 4294901760
    %v3668 = vsub.f32 %v1196, %v3667
    %v3669 = vand.u32 %v3668, 4294901760
    %v3670 = vsub.f32 %v3668, %v3669
    %v3671 = vand.u32 %v3670, 4294901760
    %3672 = vmatpush.msra.mxu0 %v3671
    %v3673 = vand.u32 %v1192, 4294901760
    %v3674 = vsub.f32 %v1192, %v3673
    %v3675 = vand.u32 %v3674, 4294901760
    %v3676 = vsub.f32 %v3674, %v3675
    %v3677 = vand.u32 %v3676, 4294901760
    %3678 = vmatpush.msra.mxu0 %v3677
    %v3679 = vand.u32 %v1188, 4294901760
    %v3680 = vsub.f32 %v1188, %v3679
    %v3681 = vand.u32 %v3680, 4294901760
    %v3682 = vsub.f32 %v3680, %v3681
    %v3683 = vand.u32 %v3682, 4294901760
    %3684 = vmatpush.msra.mxu0 %v3683
    %v3685 = vand.u32 %v1184, 4294901760
    %v3686 = vsub.f32 %v1184, %v3685
    %v3687 = vand.u32 %v3686, 4294901760
    %v3688 = vsub.f32 %v3686, %v3687
    %v3689 = vand.u32 %v3688, 4294901760
    %3690 = vmatpush.msra.mxu0 %v3689
    %v3691 = vand.u32 %v1180, 4294901760
    %v3692 = vsub.f32 %v1180, %v3691
    %v3693 = vand.u32 %v3692, 4294901760
    %v3694 = vsub.f32 %v3692, %v3693
    %v3695 = vand.u32 %v3694, 4294901760
    %3696 = vmatpush.msra.mxu0 %v3695
    %v3697 = vand.u32 %v1176, 4294901760
    %v3698 = vsub.f32 %v1176, %v3697
    %v3699 = vand.u32 %v3698, 4294901760
    %v3700 = vsub.f32 %v3698, %v3699
    %v3701 = vand.u32 %v3700, 4294901760
    %3702 = vmatpush.msra.mxu0 %v3701
    %v3703 = vand.u32 %v1172, 4294901760
    %v3704 = vsub.f32 %v1172, %v3703
    %v3705 = vand.u32 %v3704, 4294901760
    %v3706 = vsub.f32 %v3704, %v3705
    %v3707 = vand.u32 %v3706, 4294901760
    %3708 = vmatpush.msra.mxu0 %v3707
    %v3709 = vand.u32 %v1168, 4294901760
    %v3710 = vsub.f32 %v1168, %v3709
    %v3711 = vand.u32 %v3710, 4294901760
    %v3712 = vsub.f32 %v3710, %v3711
    %v3713 = vand.u32 %v3712, 4294901760
    %3714 = vmatpush.msra.mxu0 %v3713
    %v3715 = vand.u32 %v1164, 4294901760
    %v3716 = vsub.f32 %v1164, %v3715
    %v3717 = vand.u32 %v3716, 4294901760
    %v3718 = vsub.f32 %v3716, %v3717
    %v3719 = vand.u32 %v3718, 4294901760
    %3720 = vmatpush.msra.mxu0 %v3719
    %v3721 = vand.u32 %v1160, 4294901760
    %v3722 = vsub.f32 %v1160, %v3721
    %v3723 = vand.u32 %v3722, 4294901760
    %v3724 = vsub.f32 %v3722, %v3723
    %v3725 = vand.u32 %v3724, 4294901760
    %3726 = vmatpush.msra.mxu0 %v3725
    %v3727 = vand.u32 %v1156, 4294901760
    %v3728 = vsub.f32 %v1156, %v3727
    %v3729 = vand.u32 %v3728, 4294901760
    %v3730 = vsub.f32 %v3728, %v3729
    %v3731 = vand.u32 %v3730, 4294901760
    %3732 = vmatpush.msra.mxu0 %v3731
    %v3733 = vand.u32 %v1152, 4294901760
    %v3734 = vsub.f32 %v1152, %v3733
    %v3735 = vand.u32 %v3734, 4294901760
    %v3736 = vsub.f32 %v3734, %v3735
    %v3737 = vand.u32 %v3736, 4294901760
    %3738 = vmatpush.msra.mxu0 %v3737
    %v3739 = vand.u32 %v1148, 4294901760
    %v3740 = vsub.f32 %v1148, %v3739
    %v3741 = vand.u32 %v3740, 4294901760
    %v3742 = vsub.f32 %v3740, %v3741
    %v3743 = vand.u32 %v3742, 4294901760
    %3744 = vmatpush.msra.mxu0 %v3743
    %v3745 = vand.u32 %v954, 4294901760
    %3746 = vmatmul.f32.gmra.mxu0 %v3745
    %v3747 = vpop.f32.mrf.mxu0
    %v3748 = vadd.f32 %v3647, %v3747
    %3749 = vdwg.mxu0
    %v3750 = vand.u32 %v1208, 4294901760
    %v3751 = vsub.f32 %v1208, %v3750
    %3752 = vmatpush.msra.mxu0 %v3751
    %v3753 = vand.u32 %v1204, 4294901760
    %v3754 = vsub.f32 %v1204, %v3753
    %3755 = vmatpush.msra.mxu0 %v3754
    %v3756 = vand.u32 %v1200, 4294901760
    %v3757 = vsub.f32 %v1200, %v3756
    %3758 = vmatpush.msra.mxu0 %v3757
    %v3759 = vand.u32 %v1196, 4294901760
    %v3760 = vsub.f32 %v1196, %v3759
    %3761 = vmatpush.msra.mxu0 %v3760
    %v3762 = vand.u32 %v1192, 4294901760
    %v3763 = vsub.f32 %v1192, %v3762
    %3764 = vmatpush.msra.mxu0 %v3763
    %v3765 = vand.u32 %v1188, 4294901760
    %v3766 = vsub.f32 %v1188, %v3765
    %3767 = vmatpush.msra.mxu0 %v3766
    %v3768 = vand.u32 %v1184, 4294901760
    %v3769 = vsub.f32 %v1184, %v3768
    %3770 = vmatpush.msra.mxu0 %v3769
    %v3771 = vand.u32 %v1180, 4294901760
    %v3772 = vsub.f32 %v1180, %v3771
    %3773 = vmatpush.msra.mxu0 %v3772
    %v3774 = vand.u32 %v1176, 4294901760
    %v3775 = vsub.f32 %v1176, %v3774
    %3776 = vmatpush.msra.mxu0 %v3775
    %v3777 = vand.u32 %v1172, 4294901760
    %v3778 = vsub.f32 %v1172, %v3777
    %3779 = vmatpush.msra.mxu0 %v3778
    %v3780 = vand.u32 %v1168, 4294901760
    %v3781 = vsub.f32 %v1168, %v3780
    %3782 = vmatpush.msra.mxu0 %v3781
    %v3783 = vand.u32 %v1164, 4294901760
    %v3784 = vsub.f32 %v1164, %v3783
    %3785 = vmatpush.msra.mxu0 %v3784
    %v3786 = vand.u32 %v1160, 4294901760
    %v3787 = vsub.f32 %v1160, %v3786
    %3788 = vmatpush.msra.mxu0 %v3787
    %v3789 = vand.u32 %v1156, 4294901760
    %v3790 = vsub.f32 %v1156, %v3789
    %3791 = vmatpush.msra.mxu0 %v3790
    %v3792 = vand.u32 %v1152, 4294901760
    %v3793 = vsub.f32 %v1152, %v3792
    %3794 = vmatpush.msra.mxu0 %v3793
    %v3795 = vand.u32 %v1148, 4294901760
    %v3796 = vsub.f32 %v1148, %v3795
    %3797 = vmatpush.msra.mxu0 %v3796
    %v3798 = vand.u32 %v954, 4294901760
    %v3799 = vsub.f32 %v954, %v3798
    %3800 = vmatmul.f32.gmra.mxu0 %v3799
    %v3801 = vpop.f32.mrf.mxu0
    %v3802 = vadd.f32 %v3748, %v3801
    %3803 = vdwg.mxu0
    %v3804 = vand.u32 %v1208, 4294901760
    %3805 = vmatpush.msra.mxu0 %v3804
    %v3806 = vand.u32 %v1204, 4294901760
    %3807 = vmatpush.msra.mxu0 %v3806
    %v3808 = vand.u32 %v1200, 4294901760
    %3809 = vmatpush.msra.mxu0 %v3808
    %v3810 = vand.u32 %v1196, 4294901760
    %3811 = vmatpush.msra.mxu0 %v3810
    %v3812 = vand.u32 %v1192, 4294901760
    %3813 = vmatpush.msra.mxu0 %v3812
    %v3814 = vand.u32 %v1188, 4294901760
    %3815 = vmatpush.msra.mxu0 %v3814
    %v3816 = vand.u32 %v1184, 4294901760
    %3817 = vmatpush.msra.mxu0 %v3816
    %v3818 = vand.u32 %v1180, 4294901760
    %3819 = vmatpush.msra.mxu0 %v3818
    %v3820 = vand.u32 %v1176, 4294901760
    %3821 = vmatpush.msra.mxu0 %v3820
    %v3822 = vand.u32 %v1172, 4294901760
    %3823 = vmatpush.msra.mxu0 %v3822
    %v3824 = vand.u32 %v1168, 4294901760
    %3825 = vmatpush.msra.mxu0 %v3824
    %v3826 = vand.u32 %v1164, 4294901760
    %3827 = vmatpush.msra.mxu0 %v3826
    %v3828 = vand.u32 %v1160, 4294901760
    %3829 = vmatpush.msra.mxu0 %v3828
    %v3830 = vand.u32 %v1156, 4294901760
    %3831 = vmatpush.msra.mxu0 %v3830
    %v3832 = vand.u32 %v1152, 4294901760
    %3833 = vmatpush.msra.mxu0 %v3832
    %v3834 = vand.u32 %v1148, 4294901760
    %3835 = vmatpush.msra.mxu0 %v3834
    %v3836 = vand.u32 %v954, 4294901760
    %v3837 = vsub.f32 %v954, %v3836
    %v3838 = vand.u32 %v3837, 4294901760
    %3839 = vmatmul.f32.gmra.mxu0 %v3838
    %v3840 = vpop.f32.mrf.mxu0
    %v3841 = vadd.f32 %v3802, %v3840
    %3842 = vdwg.mxu0
    %v3843 = vand.u32 %v1208, 4294901760
    %v3844 = vsub.f32 %v1208, %v3843
    %v3845 = vand.u32 %v3844, 4294901760
    %3846 = vmatpush.msra.mxu0 %v3845
    %v3847 = vand.u32 %v1204, 4294901760
    %v3848 = vsub.f32 %v1204, %v3847
    %v3849 = vand.u32 %v3848, 4294901760
    %3850 = vmatpush.msra.mxu0 %v3849
    %v3851 = vand.u32 %v1200, 4294901760
    %v3852 = vsub.f32 %v1200, %v3851
    %v3853 = vand.u32 %v3852, 4294901760
    %3854 = vmatpush.msra.mxu0 %v3853
    %v3855 = vand.u32 %v1196, 4294901760
    %v3856 = vsub.f32 %v1196, %v3855
    %v3857 = vand.u32 %v3856, 4294901760
    %3858 = vmatpush.msra.mxu0 %v3857
    %v3859 = vand.u32 %v1192, 4294901760
    %v3860 = vsub.f32 %v1192, %v3859
    %v3861 = vand.u32 %v3860, 4294901760
    %3862 = vmatpush.msra.mxu0 %v3861
    %v3863 = vand.u32 %v1188, 4294901760
    %v3864 = vsub.f32 %v1188, %v3863
    %v3865 = vand.u32 %v3864, 4294901760
    %3866 = vmatpush.msra.mxu0 %v3865
    %v3867 = vand.u32 %v1184, 4294901760
    %v3868 = vsub.f32 %v1184, %v3867
    %v3869 = vand.u32 %v3868, 4294901760
    %3870 = vmatpush.msra.mxu0 %v3869
    %v3871 = vand.u32 %v1180, 4294901760
    %v3872 = vsub.f32 %v1180, %v3871
    %v3873 = vand.u32 %v3872, 4294901760
    %3874 = vmatpush.msra.mxu0 %v3873
    %v3875 = vand.u32 %v1176, 4294901760
    %v3876 = vsub.f32 %v1176, %v3875
    %v3877 = vand.u32 %v3876, 4294901760
    %3878 = vmatpush.msra.mxu0 %v3877
    %v3879 = vand.u32 %v1172, 4294901760
    %v3880 = vsub.f32 %v1172, %v3879
    %v3881 = vand.u32 %v3880, 4294901760
    %3882 = vmatpush.msra.mxu0 %v3881
    %v3883 = vand.u32 %v1168, 4294901760
    %v3884 = vsub.f32 %v1168, %v3883
    %v3885 = vand.u32 %v3884, 4294901760
    %3886 = vmatpush.msra.mxu0 %v3885
    %v3887 = vand.u32 %v1164, 4294901760
    %v3888 = vsub.f32 %v1164, %v3887
    %v3889 = vand.u32 %v3888, 4294901760
    %3890 = vmatpush.msra.mxu0 %v3889
    %v3891 = vand.u32 %v1160, 4294901760
    %v3892 = vsub.f32 %v1160, %v3891
    %v3893 = vand.u32 %v3892, 4294901760
    %3894 = vmatpush.msra.mxu0 %v3893
    %v3895 = vand.u32 %v1156, 4294901760
    %v3896 = vsub.f32 %v1156, %v3895
    %v3897 = vand.u32 %v3896, 4294901760
    %3898 = vmatpush.msra.mxu0 %v3897
    %v3899 = vand.u32 %v1152, 4294901760
    %v3900 = vsub.f32 %v1152, %v3899
    %v3901 = vand.u32 %v3900, 4294901760
    %3902 = vmatpush.msra.mxu0 %v3901
    %v3903 = vand.u32 %v1148, 4294901760
    %v3904 = vsub.f32 %v1148, %v3903
    %v3905 = vand.u32 %v3904, 4294901760
    %3906 = vmatpush.msra.mxu0 %v3905
    %v3907 = vand.u32 %v954, 4294901760
    %3908 = vmatmul.f32.gmra.mxu0 %v3907
    %v3909 = vpop.f32.mrf.mxu0
    %v3910 = vadd.f32 %v3841, %v3909
    %3911 = vdwg.mxu0
    %v3912 = vand.u32 %v1208, 4294901760
    %3913 = vmatpush.msra.mxu0 %v3912
    %v3914 = vand.u32 %v1204, 4294901760
    %3915 = vmatpush.msra.mxu0 %v3914
    %v3916 = vand.u32 %v1200, 4294901760
    %3917 = vmatpush.msra.mxu0 %v3916
    %v3918 = vand.u32 %v1196, 4294901760
    %3919 = vmatpush.msra.mxu0 %v3918
    %v3920 = vand.u32 %v1192, 4294901760
    %3921 = vmatpush.msra.mxu0 %v3920
    %v3922 = vand.u32 %v1188, 4294901760
    %3923 = vmatpush.msra.mxu0 %v3922
    %v3924 = vand.u32 %v1184, 4294901760
    %3925 = vmatpush.msra.mxu0 %v3924
    %v3926 = vand.u32 %v1180, 4294901760
    %3927 = vmatpush.msra.mxu0 %v3926
    %v3928 = vand.u32 %v1176, 4294901760
    %3929 = vmatpush.msra.mxu0 %v3928
    %v3930 = vand.u32 %v1172, 4294901760
    %3931 = vmatpush.msra.mxu0 %v3930
    %v3932 = vand.u32 %v1168, 4294901760
    %3933 = vmatpush.msra.mxu0 %v3932
    %v3934 = vand.u32 %v1164, 4294901760
    %3935 = vmatpush.msra.mxu0 %v3934
    %v3936 = vand.u32 %v1160, 4294901760
    %3937 = vmatpush.msra.mxu0 %v3936
    %v3938 = vand.u32 %v1156, 4294901760
    %3939 = vmatpush.msra.mxu0 %v3938
    %v3940 = vand.u32 %v1152, 4294901760
    %3941 = vmatpush.msra.mxu0 %v3940
    %v3942 = vand.u32 %v1148, 4294901760
    %3943 = vmatpush.msra.mxu0 %v3942
    %v3944 = vand.u32 %v954, 4294901760
    %3945 = vmatmul.f32.gmra.mxu0 %v3944
    %v3946 = vpop.f32.mrf.mxu0
    %v3947 = vadd.f32 %v3910, %v3946
    %3948 = vdwg.mxu0
    %v3949 = vand.u32 %v1017, 4294901760
    %3950 = vmatpush.msra.mxu0 %v3949
    %v3951 = vand.u32 %v1013, 4294901760
    %3952 = vmatpush.msra.mxu0 %v3951
    %v3953 = vand.u32 %v1009, 4294901760
    %3954 = vmatpush.msra.mxu0 %v3953
    %v3955 = vand.u32 %v1005, 4294901760
    %3956 = vmatpush.msra.mxu0 %v3955
    %v3957 = vand.u32 %v1001, 4294901760
    %3958 = vmatpush.msra.mxu0 %v3957
    %v3959 = vand.u32 %v997, 4294901760
    %3960 = vmatpush.msra.mxu0 %v3959
    %v3961 = vand.u32 %v993, 4294901760
    %3962 = vmatpush.msra.mxu0 %v3961
    %v3963 = vand.u32 %v989, 4294901760
    %3964 = vmatpush.msra.mxu0 %v3963
    %v3965 = vand.u32 %v985, 4294901760
    %3966 = vmatpush.msra.mxu0 %v3965
    %v3967 = vand.u32 %v981, 4294901760
    %3968 = vmatpush.msra.mxu0 %v3967
    %v3969 = vand.u32 %v977, 4294901760
    %3970 = vmatpush.msra.mxu0 %v3969
    %v3971 = vand.u32 %v973, 4294901760
    %3972 = vmatpush.msra.mxu0 %v3971
    %v3973 = vand.u32 %v969, 4294901760
    %3974 = vmatpush.msra.mxu0 %v3973
    %v3975 = vand.u32 %v965, 4294901760
    %3976 = vmatpush.msra.mxu0 %v3975
    %v3977 = vand.u32 %v961, 4294901760
    %3978 = vmatpush.msra.mxu0 %v3977
    %v3979 = vand.u32 %v957, 4294901760
    %3980 = vmatpush.msra.mxu0 %v3979
    %v3981 = vand.u32 %v951, 4294901760
    %v3982 = vsub.f32 %v951, %v3981
    %v3983 = vand.u32 %v3982, 4294901760
    %v3984 = vsub.f32 %v3982, %v3983
    %v3985 = vand.u32 %v3984, 4294901760
    %3986 = vmatmul.f32.gmra.mxu0 %v3985
    %v3987 = vpop.f32.mrf.mxu0
    %v3988 = vadd.f32 %v1215, %v3987
    %3989 = vdwg.mxu0
    %v3990 = vand.u32 %v1017, 4294901760
    %v3991 = vsub.f32 %v1017, %v3990
    %v3992 = vand.u32 %v3991, 4294901760
    %v3993 = vsub.f32 %v3991, %v3992
    %v3994 = vand.u32 %v3993, 4294901760
    %3995 = vmatpush.msra.mxu0 %v3994
    %v3996 = vand.u32 %v1013, 4294901760
    %v3997 = vsub.f32 %v1013, %v3996
    %v3998 = vand.u32 %v3997, 4294901760
    %v3999 = vsub.f32 %v3997, %v3998
    %v4000 = vand.u32 %v3999, 4294901760
    %4001 = vmatpush.msra.mxu0 %v4000
    %v4002 = vand.u32 %v1009, 4294901760
    %v4003 = vsub.f32 %v1009, %v4002
    %v4004 = vand.u32 %v4003, 4294901760
    %v4005 = vsub.f32 %v4003, %v4004
    %v4006 = vand.u32 %v4005, 4294901760
    %4007 = vmatpush.msra.mxu0 %v4006
    %v4008 = vand.u32 %v1005, 4294901760
    %v4009 = vsub.f32 %v1005, %v4008
    %v4010 = vand.u32 %v4009, 4294901760
    %v4011 = vsub.f32 %v4009, %v4010
    %v4012 = vand.u32 %v4011, 4294901760
    %4013 = vmatpush.msra.mxu0 %v4012
    %v4014 = vand.u32 %v1001, 4294901760
    %v4015 = vsub.f32 %v1001, %v4014
    %v4016 = vand.u32 %v4015, 4294901760
    %v4017 = vsub.f32 %v4015, %v4016
    %v4018 = vand.u32 %v4017, 4294901760
    %4019 = vmatpush.msra.mxu0 %v4018
    %v4020 = vand.u32 %v997, 4294901760
    %v4021 = vsub.f32 %v997, %v4020
    %v4022 = vand.u32 %v4021, 4294901760
    %v4023 = vsub.f32 %v4021, %v4022
    %v4024 = vand.u32 %v4023, 4294901760
    %4025 = vmatpush.msra.mxu0 %v4024
    %v4026 = vand.u32 %v993, 4294901760
    %v4027 = vsub.f32 %v993, %v4026
    %v4028 = vand.u32 %v4027, 4294901760
    %v4029 = vsub.f32 %v4027, %v4028
    %v4030 = vand.u32 %v4029, 4294901760
    %4031 = vmatpush.msra.mxu0 %v4030
    %v4032 = vand.u32 %v989, 4294901760
    %v4033 = vsub.f32 %v989, %v4032
    %v4034 = vand.u32 %v4033, 4294901760
    %v4035 = vsub.f32 %v4033, %v4034
    %v4036 = vand.u32 %v4035, 4294901760
    %4037 = vmatpush.msra.mxu0 %v4036
    %v4038 = vand.u32 %v985, 4294901760
    %v4039 = vsub.f32 %v985, %v4038
    %v4040 = vand.u32 %v4039, 4294901760
    %v4041 = vsub.f32 %v4039, %v4040
    %v4042 = vand.u32 %v4041, 4294901760
    %4043 = vmatpush.msra.mxu0 %v4042
    %v4044 = vand.u32 %v981, 4294901760
    %v4045 = vsub.f32 %v981, %v4044
    %v4046 = vand.u32 %v4045, 4294901760
    %v4047 = vsub.f32 %v4045, %v4046
    %v4048 = vand.u32 %v4047, 4294901760
    %4049 = vmatpush.msra.mxu0 %v4048
    %v4050 = vand.u32 %v977, 4294901760
    %v4051 = vsub.f32 %v977, %v4050
    %v4052 = vand.u32 %v4051, 4294901760
    %v4053 = vsub.f32 %v4051, %v4052
    %v4054 = vand.u32 %v4053, 4294901760
    %4055 = vmatpush.msra.mxu0 %v4054
    %v4056 = vand.u32 %v973, 4294901760
    %v4057 = vsub.f32 %v973, %v4056
    %v4058 = vand.u32 %v4057, 4294901760
    %v4059 = vsub.f32 %v4057, %v4058
    %v4060 = vand.u32 %v4059, 4294901760
    %4061 = vmatpush.msra.mxu0 %v4060
    %v4062 = vand.u32 %v969, 4294901760
    %v4063 = vsub.f32 %v969, %v4062
    %v4064 = vand.u32 %v4063, 4294901760
    %v4065 = vsub.f32 %v4063, %v4064
    %v4066 = vand.u32 %v4065, 4294901760
    %4067 = vmatpush.msra.mxu0 %v4066
    %v4068 = vand.u32 %v965, 4294901760
    %v4069 = vsub.f32 %v965, %v4068
    %v4070 = vand.u32 %v4069, 4294901760
    %v4071 = vsub.f32 %v4069, %v4070
    %v4072 = vand.u32 %v4071, 4294901760
    %4073 = vmatpush.msra.mxu0 %v4072
    %v4074 = vand.u32 %v961, 4294901760
    %v4075 = vsub.f32 %v961, %v4074
    %v4076 = vand.u32 %v4075, 4294901760
    %v4077 = vsub.f32 %v4075, %v4076
    %v4078 = vand.u32 %v4077, 4294901760
    %4079 = vmatpush.msra.mxu0 %v4078
    %v4080 = vand.u32 %v957, 4294901760
    %v4081 = vsub.f32 %v957, %v4080
    %v4082 = vand.u32 %v4081, 4294901760
    %v4083 = vsub.f32 %v4081, %v4082
    %v4084 = vand.u32 %v4083, 4294901760
    %4085 = vmatpush.msra.mxu0 %v4084
    %v4086 = vand.u32 %v951, 4294901760
    %4087 = vmatmul.f32.gmra.mxu0 %v4086
    %v4088 = vpop.f32.mrf.mxu0
    %v4089 = vadd.f32 %v3988, %v4088
    %4090 = vdwg.mxu0
    %v4091 = vand.u32 %v1017, 4294901760
    %v4092 = vsub.f32 %v1017, %v4091
    %4093 = vmatpush.msra.mxu0 %v4092
    %v4094 = vand.u32 %v1013, 4294901760
    %v4095 = vsub.f32 %v1013, %v4094
    %4096 = vmatpush.msra.mxu0 %v4095
    %v4097 = vand.u32 %v1009, 4294901760
    %v4098 = vsub.f32 %v1009, %v4097
    %4099 = vmatpush.msra.mxu0 %v4098
    %v4100 = vand.u32 %v1005, 4294901760
    %v4101 = vsub.f32 %v1005, %v4100
    %4102 = vmatpush.msra.mxu0 %v4101
    %v4103 = vand.u32 %v1001, 4294901760
    %v4104 = vsub.f32 %v1001, %v4103
    %4105 = vmatpush.msra.mxu0 %v4104
    %v4106 = vand.u32 %v997, 4294901760
    %v4107 = vsub.f32 %v997, %v4106
    %4108 = vmatpush.msra.mxu0 %v4107
    %v4109 = vand.u32 %v993, 4294901760
    %v4110 = vsub.f32 %v993, %v4109
    %4111 = vmatpush.msra.mxu0 %v4110
    %v4112 = vand.u32 %v989, 4294901760
    %v4113 = vsub.f32 %v989, %v4112
    %4114 = vmatpush.msra.mxu0 %v4113
    %v4115 = vand.u32 %v985, 4294901760
    %v4116 = vsub.f32 %v985, %v4115
    %4117 = vmatpush.msra.mxu0 %v4116
    %v4118 = vand.u32 %v981, 4294901760
    %v4119 = vsub.f32 %v981, %v4118
    %4120 = vmatpush.msra.mxu0 %v4119
    %v4121 = vand.u32 %v977, 4294901760
    %v4122 = vsub.f32 %v977, %v4121
    %4123 = vmatpush.msra.mxu0 %v4122
    %v4124 = vand.u32 %v973, 4294901760
    %v4125 = vsub.f32 %v973, %v4124
    %4126 = vmatpush.msra.mxu0 %v4125
    %v4127 = vand.u32 %v969, 4294901760
    %v4128 = vsub.f32 %v969, %v4127
    %4129 = vmatpush.msra.mxu0 %v4128
    %v4130 = vand.u32 %v965, 4294901760
    %v4131 = vsub.f32 %v965, %v4130
    %4132 = vmatpush.msra.mxu0 %v4131
    %v4133 = vand.u32 %v961, 4294901760
    %v4134 = vsub.f32 %v961, %v4133
    %4135 = vmatpush.msra.mxu0 %v4134
    %v4136 = vand.u32 %v957, 4294901760
    %v4137 = vsub.f32 %v957, %v4136
    %4138 = vmatpush.msra.mxu0 %v4137
    %v4139 = vand.u32 %v951, 4294901760
    %v4140 = vsub.f32 %v951, %v4139
    %4141 = vmatmul.f32.gmra.mxu0 %v4140
    %v4142 = vpop.f32.mrf.mxu0
    %v4143 = vadd.f32 %v4089, %v4142
    %4144 = vdwg.mxu0
    %v4145 = vand.u32 %v1017, 4294901760
    %4146 = vmatpush.msra.mxu0 %v4145
    %v4147 = vand.u32 %v1013, 4294901760
    %4148 = vmatpush.msra.mxu0 %v4147
    %v4149 = vand.u32 %v1009, 4294901760
    %4150 = vmatpush.msra.mxu0 %v4149
    %v4151 = vand.u32 %v1005, 4294901760
    %4152 = vmatpush.msra.mxu0 %v4151
    %v4153 = vand.u32 %v1001, 4294901760
    %4154 = vmatpush.msra.mxu0 %v4153
    %v4155 = vand.u32 %v997, 4294901760
    %4156 = vmatpush.msra.mxu0 %v4155
    %v4157 = vand.u32 %v993, 4294901760
    %4158 = vmatpush.msra.mxu0 %v4157
    %v4159 = vand.u32 %v989, 4294901760
    %4160 = vmatpush.msra.mxu0 %v4159
    %v4161 = vand.u32 %v985, 4294901760
    %4162 = vmatpush.msra.mxu0 %v4161
    %v4163 = vand.u32 %v981, 4294901760
    %4164 = vmatpush.msra.mxu0 %v4163
    %v4165 = vand.u32 %v977, 4294901760
    %4166 = vmatpush.msra.mxu0 %v4165
    %v4167 = vand.u32 %v973, 4294901760
    %4168 = vmatpush.msra.mxu0 %v4167
    %v4169 = vand.u32 %v969, 4294901760
    %4170 = vmatpush.msra.mxu0 %v4169
    %v4171 = vand.u32 %v965, 4294901760
    %4172 = vmatpush.msra.mxu0 %v4171
    %v4173 = vand.u32 %v961, 4294901760
    %4174 = vmatpush.msra.mxu0 %v4173
    %v4175 = vand.u32 %v957, 4294901760
    %4176 = vmatpush.msra.mxu0 %v4175
    %v4177 = vand.u32 %v951, 4294901760
    %v4178 = vsub.f32 %v951, %v4177
    %v4179 = vand.u32 %v4178, 4294901760
    %4180 = vmatmul.f32.gmra.mxu0 %v4179
    %v4181 = vpop.f32.mrf.mxu0
    %v4182 = vadd.f32 %v4143, %v4181
    %4183 = vdwg.mxu0
    %v4184 = vand.u32 %v1017, 4294901760
    %v4185 = vsub.f32 %v1017, %v4184
    %v4186 = vand.u32 %v4185, 4294901760
    %4187 = vmatpush.msra.mxu0 %v4186
    %v4188 = vand.u32 %v1013, 4294901760
    %v4189 = vsub.f32 %v1013, %v4188
    %v4190 = vand.u32 %v4189, 4294901760
    %4191 = vmatpush.msra.mxu0 %v4190
    %v4192 = vand.u32 %v1009, 4294901760
    %v4193 = vsub.f32 %v1009, %v4192
    %v4194 = vand.u32 %v4193, 4294901760
    %4195 = vmatpush.msra.mxu0 %v4194
    %v4196 = vand.u32 %v1005, 4294901760
    %v4197 = vsub.f32 %v1005, %v4196
    %v4198 = vand.u32 %v4197, 4294901760
    %4199 = vmatpush.msra.mxu0 %v4198
    %v4200 = vand.u32 %v1001, 4294901760
    %v4201 = vsub.f32 %v1001, %v4200
    %v4202 = vand.u32 %v4201, 4294901760
    %4203 = vmatpush.msra.mxu0 %v4202
    %v4204 = vand.u32 %v997, 4294901760
    %v4205 = vsub.f32 %v997, %v4204
    %v4206 = vand.u32 %v4205, 4294901760
    %4207 = vmatpush.msra.mxu0 %v4206
    %v4208 = vand.u32 %v993, 4294901760
    %v4209 = vsub.f32 %v993, %v4208
    %v4210 = vand.u32 %v4209, 4294901760
    %4211 = vmatpush.msra.mxu0 %v4210
    %v4212 = vand.u32 %v989, 4294901760
    %v4213 = vsub.f32 %v989, %v4212
    %v4214 = vand.u32 %v4213, 4294901760
    %4215 = vmatpush.msra.mxu0 %v4214
    %v4216 = vand.u32 %v985, 4294901760
    %v4217 = vsub.f32 %v985, %v4216
    %v4218 = vand.u32 %v4217, 4294901760
    %4219 = vmatpush.msra.mxu0 %v4218
    %v4220 = vand.u32 %v981, 4294901760
    %v4221 = vsub.f32 %v981, %v4220
    %v4222 = vand.u32 %v4221, 4294901760
    %4223 = vmatpush.msra.mxu0 %v4222
    %v4224 = vand.u32 %v977, 4294901760
    %v4225 = vsub.f32 %v977, %v4224
    %v4226 = vand.u32 %v4225, 4294901760
    %4227 = vmatpush.msra.mxu0 %v4226
    %v4228 = vand.u32 %v973, 4294901760
    %v4229 = vsub.f32 %v973, %v4228
    %v4230 = vand.u32 %v4229, 4294901760
    %4231 = vmatpush.msra.mxu0 %v4230
    %v4232 = vand.u32 %v969, 4294901760
    %v4233 = vsub.f32 %v969, %v4232
    %v4234 = vand.u32 %v4233, 4294901760
    %4235 = vmatpush.msra.mxu0 %v4234
    %v4236 = vand.u32 %v965, 4294901760
    %v4237 = vsub.f32 %v965, %v4236
    %v4238 = vand.u32 %v4237, 4294901760
    %4239 = vmatpush.msra.mxu0 %v4238
    %v4240 = vand.u32 %v961, 4294901760
    %v4241 = vsub.f32 %v961, %v4240
    %v4242 = vand.u32 %v4241, 4294901760
    %4243 = vmatpush.msra.mxu0 %v4242
    %v4244 = vand.u32 %v957, 4294901760
    %v4245 = vsub.f32 %v957, %v4244
    %v4246 = vand.u32 %v4245, 4294901760
    %4247 = vmatpush.msra.mxu0 %v4246
    %v4248 = vand.u32 %v951, 4294901760
    %4249 = vmatmul.f32.gmra.mxu0 %v4248
    %v4250 = vpop.f32.mrf.mxu0
    %v4251 = vadd.f32 %v4182, %v4250
    %4252 = vdwg.mxu0
    %v4253 = vand.u32 %v1017, 4294901760
    %4254 = vmatpush.msra.mxu0 %v4253
    %v4255 = vand.u32 %v1013, 4294901760
    %4256 = vmatpush.msra.mxu0 %v4255
    %v4257 = vand.u32 %v1009, 4294901760
    %4258 = vmatpush.msra.mxu0 %v4257
    %v4259 = vand.u32 %v1005, 4294901760
    %4260 = vmatpush.msra.mxu0 %v4259
    %v4261 = vand.u32 %v1001, 4294901760
    %4262 = vmatpush.msra.mxu0 %v4261
    %v4263 = vand.u32 %v997, 4294901760
    %4264 = vmatpush.msra.mxu0 %v4263
    %v4265 = vand.u32 %v993, 4294901760
    %4266 = vmatpush.msra.mxu0 %v4265
    %v4267 = vand.u32 %v989, 4294901760
    %4268 = vmatpush.msra.mxu0 %v4267
    %v4269 = vand.u32 %v985, 4294901760
    %4270 = vmatpush.msra.mxu0 %v4269
    %v4271 = vand.u32 %v981, 4294901760
    %4272 = vmatpush.msra.mxu0 %v4271
    %v4273 = vand.u32 %v977, 4294901760
    %4274 = vmatpush.msra.mxu0 %v4273
    %v4275 = vand.u32 %v973, 4294901760
    %4276 = vmatpush.msra.mxu0 %v4275
    %v4277 = vand.u32 %v969, 4294901760
    %4278 = vmatpush.msra.mxu0 %v4277
    %v4279 = vand.u32 %v965, 4294901760
    %4280 = vmatpush.msra.mxu0 %v4279
    %v4281 = vand.u32 %v961, 4294901760
    %4282 = vmatpush.msra.mxu0 %v4281
    %v4283 = vand.u32 %v957, 4294901760
    %4284 = vmatpush.msra.mxu0 %v4283
    %v4285 = vand.u32 %v951, 4294901760
    %4286 = vmatmul.f32.gmra.mxu0 %v4285
    %v4287 = vpop.f32.mrf.mxu0
    %v4288 = vadd.f32 %v4251, %v4287
    %4289 = vdwg.mxu0
    %v4290 = vand.u32 %v1081, 4294901760
    %4291 = vmatpush.msra.mxu0 %v4290
    %v4292 = vand.u32 %v1077, 4294901760
    %4293 = vmatpush.msra.mxu0 %v4292
    %v4294 = vand.u32 %v1073, 4294901760
    %4295 = vmatpush.msra.mxu0 %v4294
    %v4296 = vand.u32 %v1069, 4294901760
    %4297 = vmatpush.msra.mxu0 %v4296
    %v4298 = vand.u32 %v1065, 4294901760
    %4299 = vmatpush.msra.mxu0 %v4298
    %v4300 = vand.u32 %v1061, 4294901760
    %4301 = vmatpush.msra.mxu0 %v4300
    %v4302 = vand.u32 %v1057, 4294901760
    %4303 = vmatpush.msra.mxu0 %v4302
    %v4304 = vand.u32 %v1053, 4294901760
    %4305 = vmatpush.msra.mxu0 %v4304
    %v4306 = vand.u32 %v1049, 4294901760
    %4307 = vmatpush.msra.mxu0 %v4306
    %v4308 = vand.u32 %v1045, 4294901760
    %4309 = vmatpush.msra.mxu0 %v4308
    %v4310 = vand.u32 %v1041, 4294901760
    %4311 = vmatpush.msra.mxu0 %v4310
    %v4312 = vand.u32 %v1037, 4294901760
    %4313 = vmatpush.msra.mxu0 %v4312
    %v4314 = vand.u32 %v1033, 4294901760
    %4315 = vmatpush.msra.mxu0 %v4314
    %v4316 = vand.u32 %v1029, 4294901760
    %4317 = vmatpush.msra.mxu0 %v4316
    %v4318 = vand.u32 %v1025, 4294901760
    %4319 = vmatpush.msra.mxu0 %v4318
    %v4320 = vand.u32 %v1021, 4294901760
    %4321 = vmatpush.msra.mxu0 %v4320
    %v4322 = vand.u32 %v952, 4294901760
    %v4323 = vsub.f32 %v952, %v4322
    %v4324 = vand.u32 %v4323, 4294901760
    %v4325 = vsub.f32 %v4323, %v4324
    %v4326 = vand.u32 %v4325, 4294901760
    %4327 = vmatmul.f32.gmra.mxu0 %v4326
    %v4328 = vpop.f32.mrf.mxu0
    %v4329 = vadd.f32 %v4288, %v4328
    %4330 = vdwg.mxu0
    %v4331 = vand.u32 %v1081, 4294901760
    %v4332 = vsub.f32 %v1081, %v4331
    %v4333 = vand.u32 %v4332, 4294901760
    %v4334 = vsub.f32 %v4332, %v4333
    %v4335 = vand.u32 %v4334, 4294901760
    %4336 = vmatpush.msra.mxu0 %v4335
    %v4337 = vand.u32 %v1077, 4294901760
    %v4338 = vsub.f32 %v1077, %v4337
    %v4339 = vand.u32 %v4338, 4294901760
    %v4340 = vsub.f32 %v4338, %v4339
    %v4341 = vand.u32 %v4340, 4294901760
    %4342 = vmatpush.msra.mxu0 %v4341
    %v4343 = vand.u32 %v1073, 4294901760
    %v4344 = vsub.f32 %v1073, %v4343
    %v4345 = vand.u32 %v4344, 4294901760
    %v4346 = vsub.f32 %v4344, %v4345
    %v4347 = vand.u32 %v4346, 4294901760
    %4348 = vmatpush.msra.mxu0 %v4347
    %v4349 = vand.u32 %v1069, 4294901760
    %v4350 = vsub.f32 %v1069, %v4349
    %v4351 = vand.u32 %v4350, 4294901760
    %v4352 = vsub.f32 %v4350, %v4351
    %v4353 = vand.u32 %v4352, 4294901760
    %4354 = vmatpush.msra.mxu0 %v4353
    %v4355 = vand.u32 %v1065, 4294901760
    %v4356 = vsub.f32 %v1065, %v4355
    %v4357 = vand.u32 %v4356, 4294901760
    %v4358 = vsub.f32 %v4356, %v4357
    %v4359 = vand.u32 %v4358, 4294901760
    %4360 = vmatpush.msra.mxu0 %v4359
    %v4361 = vand.u32 %v1061, 4294901760
    %v4362 = vsub.f32 %v1061, %v4361
    %v4363 = vand.u32 %v4362, 4294901760
    %v4364 = vsub.f32 %v4362, %v4363
    %v4365 = vand.u32 %v4364, 4294901760
    %4366 = vmatpush.msra.mxu0 %v4365
    %v4367 = vand.u32 %v1057, 4294901760
    %v4368 = vsub.f32 %v1057, %v4367
    %v4369 = vand.u32 %v4368, 4294901760
    %v4370 = vsub.f32 %v4368, %v4369
    %v4371 = vand.u32 %v4370, 4294901760
    %4372 = vmatpush.msra.mxu0 %v4371
    %v4373 = vand.u32 %v1053, 4294901760
    %v4374 = vsub.f32 %v1053, %v4373
    %v4375 = vand.u32 %v4374, 4294901760
    %v4376 = vsub.f32 %v4374, %v4375
    %v4377 = vand.u32 %v4376, 4294901760
    %4378 = vmatpush.msra.mxu0 %v4377
    %v4379 = vand.u32 %v1049, 4294901760
    %v4380 = vsub.f32 %v1049, %v4379
    %v4381 = vand.u32 %v4380, 4294901760
    %v4382 = vsub.f32 %v4380, %v4381
    %v4383 = vand.u32 %v4382, 4294901760
    %4384 = vmatpush.msra.mxu0 %v4383
    %v4385 = vand.u32 %v1045, 4294901760
    %v4386 = vsub.f32 %v1045, %v4385
    %v4387 = vand.u32 %v4386, 4294901760
    %v4388 = vsub.f32 %v4386, %v4387
    %v4389 = vand.u32 %v4388, 4294901760
    %4390 = vmatpush.msra.mxu0 %v4389
    %v4391 = vand.u32 %v1041, 4294901760
    %v4392 = vsub.f32 %v1041, %v4391
    %v4393 = vand.u32 %v4392, 4294901760
    %v4394 = vsub.f32 %v4392, %v4393
    %v4395 = vand.u32 %v4394, 4294901760
    %4396 = vmatpush.msra.mxu0 %v4395
    %v4397 = vand.u32 %v1037, 4294901760
    %v4398 = vsub.f32 %v1037, %v4397
    %v4399 = vand.u32 %v4398, 4294901760
    %v4400 = vsub.f32 %v4398, %v4399
    %v4401 = vand.u32 %v4400, 4294901760
    %4402 = vmatpush.msra.mxu0 %v4401
    %v4403 = vand.u32 %v1033, 4294901760
    %v4404 = vsub.f32 %v1033, %v4403
    %v4405 = vand.u32 %v4404, 4294901760
    %v4406 = vsub.f32 %v4404, %v4405
    %v4407 = vand.u32 %v4406, 4294901760
    %4408 = vmatpush.msra.mxu0 %v4407
    %v4409 = vand.u32 %v1029, 4294901760
    %v4410 = vsub.f32 %v1029, %v4409
    %v4411 = vand.u32 %v4410, 4294901760
    %v4412 = vsub.f32 %v4410, %v4411
    %v4413 = vand.u32 %v4412, 4294901760
    %4414 = vmatpush.msra.mxu0 %v4413
    %v4415 = vand.u32 %v1025, 4294901760
    %v4416 = vsub.f32 %v1025, %v4415
    %v4417 = vand.u32 %v4416, 4294901760
    %v4418 = vsub.f32 %v4416, %v4417
    %v4419 = vand.u32 %v4418, 4294901760
    %4420 = vmatpush.msra.mxu0 %v4419
    %v4421 = vand.u32 %v1021, 4294901760
    %v4422 = vsub.f32 %v1021, %v4421
    %v4423 = vand.u32 %v4422, 4294901760
    %v4424 = vsub.f32 %v4422, %v4423
    %v4425 = vand.u32 %v4424, 4294901760
    %4426 = vmatpush.msra.mxu0 %v4425
    %v4427 = vand.u32 %v952, 4294901760
    %4428 = vmatmul.f32.gmra.mxu0 %v4427
    %v4429 = vpop.f32.mrf.mxu0
    %v4430 = vadd.f32 %v4329, %v4429
    %4431 = vdwg.mxu0
    %v4432 = vand.u32 %v1081, 4294901760
    %v4433 = vsub.f32 %v1081, %v4432
    %4434 = vmatpush.msra.mxu0 %v4433
    %v4435 = vand.u32 %v1077, 4294901760
    %v4436 = vsub.f32 %v1077, %v4435
    %4437 = vmatpush.msra.mxu0 %v4436
    %v4438 = vand.u32 %v1073, 4294901760
    %v4439 = vsub.f32 %v1073, %v4438
    %4440 = vmatpush.msra.mxu0 %v4439
    %v4441 = vand.u32 %v1069, 4294901760
    %v4442 = vsub.f32 %v1069, %v4441
    %4443 = vmatpush.msra.mxu0 %v4442
    %v4444 = vand.u32 %v1065, 4294901760
    %v4445 = vsub.f32 %v1065, %v4444
    %4446 = vmatpush.msra.mxu0 %v4445
    %v4447 = vand.u32 %v1061, 4294901760
    %v4448 = vsub.f32 %v1061, %v4447
    %4449 = vmatpush.msra.mxu0 %v4448
    %v4450 = vand.u32 %v1057, 4294901760
    %v4451 = vsub.f32 %v1057, %v4450
    %4452 = vmatpush.msra.mxu0 %v4451
    %v4453 = vand.u32 %v1053, 4294901760
    %v4454 = vsub.f32 %v1053, %v4453
    %4455 = vmatpush.msra.mxu0 %v4454
    %v4456 = vand.u32 %v1049, 4294901760
    %v4457 = vsub.f32 %v1049, %v4456
    %4458 = vmatpush.msra.mxu0 %v4457
    %v4459 = vand.u32 %v1045, 4294901760
    %v4460 = vsub.f32 %v1045, %v4459
    %4461 = vmatpush.msra.mxu0 %v4460
    %v4462 = vand.u32 %v1041, 4294901760
    %v4463 = vsub.f32 %v1041, %v4462
    %4464 = vmatpush.msra.mxu0 %v4463
    %v4465 = vand.u32 %v1037, 4294901760
    %v4466 = vsub.f32 %v1037, %v4465
    %4467 = vmatpush.msra.mxu0 %v4466
    %v4468 = vand.u32 %v1033, 4294901760
    %v4469 = vsub.f32 %v1033, %v4468
    %4470 = vmatpush.msra.mxu0 %v4469
    %v4471 = vand.u32 %v1029, 4294901760
    %v4472 = vsub.f32 %v1029, %v4471
    %4473 = vmatpush.msra.mxu0 %v4472
    %v4474 = vand.u32 %v1025, 4294901760
    %v4475 = vsub.f32 %v1025, %v4474
    %4476 = vmatpush.msra.mxu0 %v4475
    %v4477 = vand.u32 %v1021, 4294901760
    %v4478 = vsub.f32 %v1021, %v4477
    %4479 = vmatpush.msra.mxu0 %v4478
    %v4480 = vand.u32 %v952, 4294901760
    %v4481 = vsub.f32 %v952, %v4480
    %4482 = vmatmul.f32.gmra.mxu0 %v4481
    %v4483 = vpop.f32.mrf.mxu0
    %v4484 = vadd.f32 %v4430, %v4483
    %4485 = vdwg.mxu0
    %v4486 = vand.u32 %v1081, 4294901760
    %4487 = vmatpush.msra.mxu0 %v4486
    %v4488 = vand.u32 %v1077, 4294901760
    %4489 = vmatpush.msra.mxu0 %v4488
    %v4490 = vand.u32 %v1073, 4294901760
    %4491 = vmatpush.msra.mxu0 %v4490
    %v4492 = vand.u32 %v1069, 4294901760
    %4493 = vmatpush.msra.mxu0 %v4492
    %v4494 = vand.u32 %v1065, 4294901760
    %4495 = vmatpush.msra.mxu0 %v4494
    %v4496 = vand.u32 %v1061, 4294901760
    %4497 = vmatpush.msra.mxu0 %v4496
    %v4498 = vand.u32 %v1057, 4294901760
    %4499 = vmatpush.msra.mxu0 %v4498
    %v4500 = vand.u32 %v1053, 4294901760
    %4501 = vmatpush.msra.mxu0 %v4500
    %v4502 = vand.u32 %v1049, 4294901760
    %4503 = vmatpush.msra.mxu0 %v4502
    %v4504 = vand.u32 %v1045, 4294901760
    %4505 = vmatpush.msra.mxu0 %v4504
    %v4506 = vand.u32 %v1041, 4294901760
    %4507 = vmatpush.msra.mxu0 %v4506
    %v4508 = vand.u32 %v1037, 4294901760
    %4509 = vmatpush.msra.mxu0 %v4508
    %v4510 = vand.u32 %v1033, 4294901760
    %4511 = vmatpush.msra.mxu0 %v4510
    %v4512 = vand.u32 %v1029, 4294901760
    %4513 = vmatpush.msra.mxu0 %v4512
    %v4514 = vand.u32 %v1025, 4294901760
    %4515 = vmatpush.msra.mxu0 %v4514
    %v4516 = vand.u32 %v1021, 4294901760
    %4517 = vmatpush.msra.mxu0 %v4516
    %v4518 = vand.u32 %v952, 4294901760
    %v4519 = vsub.f32 %v952, %v4518
    %v4520 = vand.u32 %v4519, 4294901760
    %4521 = vmatmul.f32.gmra.mxu0 %v4520
    %v4522 = vpop.f32.mrf.mxu0
    %v4523 = vadd.f32 %v4484, %v4522
    %4524 = vdwg.mxu0
    %v4525 = vand.u32 %v1081, 4294901760
    %v4526 = vsub.f32 %v1081, %v4525
    %v4527 = vand.u32 %v4526, 4294901760
    %4528 = vmatpush.msra.mxu0 %v4527
    %v4529 = vand.u32 %v1077, 4294901760
    %v4530 = vsub.f32 %v1077, %v4529
    %v4531 = vand.u32 %v4530, 4294901760
    %4532 = vmatpush.msra.mxu0 %v4531
    %v4533 = vand.u32 %v1073, 4294901760
    %v4534 = vsub.f32 %v1073, %v4533
    %v4535 = vand.u32 %v4534, 4294901760
    %4536 = vmatpush.msra.mxu0 %v4535
    %v4537 = vand.u32 %v1069, 4294901760
    %v4538 = vsub.f32 %v1069, %v4537
    %v4539 = vand.u32 %v4538, 4294901760
    %4540 = vmatpush.msra.mxu0 %v4539
    %v4541 = vand.u32 %v1065, 4294901760
    %v4542 = vsub.f32 %v1065, %v4541
    %v4543 = vand.u32 %v4542, 4294901760
    %4544 = vmatpush.msra.mxu0 %v4543
    %v4545 = vand.u32 %v1061, 4294901760
    %v4546 = vsub.f32 %v1061, %v4545
    %v4547 = vand.u32 %v4546, 4294901760
    %4548 = vmatpush.msra.mxu0 %v4547
    %v4549 = vand.u32 %v1057, 4294901760
    %v4550 = vsub.f32 %v1057, %v4549
    %v4551 = vand.u32 %v4550, 4294901760
    %4552 = vmatpush.msra.mxu0 %v4551
    %v4553 = vand.u32 %v1053, 4294901760
    %v4554 = vsub.f32 %v1053, %v4553
    %v4555 = vand.u32 %v4554, 4294901760
    %4556 = vmatpush.msra.mxu0 %v4555
    %v4557 = vand.u32 %v1049, 4294901760
    %v4558 = vsub.f32 %v1049, %v4557
    %v4559 = vand.u32 %v4558, 4294901760
    %4560 = vmatpush.msra.mxu0 %v4559
    %v4561 = vand.u32 %v1045, 4294901760
    %v4562 = vsub.f32 %v1045, %v4561
    %v4563 = vand.u32 %v4562, 4294901760
    %4564 = vmatpush.msra.mxu0 %v4563
    %v4565 = vand.u32 %v1041, 4294901760
    %v4566 = vsub.f32 %v1041, %v4565
    %v4567 = vand.u32 %v4566, 4294901760
    %4568 = vmatpush.msra.mxu0 %v4567
    %v4569 = vand.u32 %v1037, 4294901760
    %v4570 = vsub.f32 %v1037, %v4569
    %v4571 = vand.u32 %v4570, 4294901760
    %4572 = vmatpush.msra.mxu0 %v4571
    %v4573 = vand.u32 %v1033, 4294901760
    %v4574 = vsub.f32 %v1033, %v4573
    %v4575 = vand.u32 %v4574, 4294901760
    %4576 = vmatpush.msra.mxu0 %v4575
    %v4577 = vand.u32 %v1029, 4294901760
    %v4578 = vsub.f32 %v1029, %v4577
    %v4579 = vand.u32 %v4578, 4294901760
    %4580 = vmatpush.msra.mxu0 %v4579
    %v4581 = vand.u32 %v1025, 4294901760
    %v4582 = vsub.f32 %v1025, %v4581
    %v4583 = vand.u32 %v4582, 4294901760
    %4584 = vmatpush.msra.mxu0 %v4583
    %v4585 = vand.u32 %v1021, 4294901760
    %v4586 = vsub.f32 %v1021, %v4585
    %v4587 = vand.u32 %v4586, 4294901760
    %4588 = vmatpush.msra.mxu0 %v4587
    %v4589 = vand.u32 %v952, 4294901760
    %4590 = vmatmul.f32.gmra.mxu0 %v4589
    %v4591 = vpop.f32.mrf.mxu0
    %v4592 = vadd.f32 %v4523, %v4591
    %4593 = vdwg.mxu0
    %v4594 = vand.u32 %v1081, 4294901760
    %4595 = vmatpush.msra.mxu0 %v4594
    %v4596 = vand.u32 %v1077, 4294901760
    %4597 = vmatpush.msra.mxu0 %v4596
    %v4598 = vand.u32 %v1073, 4294901760
    %4599 = vmatpush.msra.mxu0 %v4598
    %v4600 = vand.u32 %v1069, 4294901760
    %4601 = vmatpush.msra.mxu0 %v4600
    %v4602 = vand.u32 %v1065, 4294901760
    %4603 = vmatpush.msra.mxu0 %v4602
    %v4604 = vand.u32 %v1061, 4294901760
    %4605 = vmatpush.msra.mxu0 %v4604
    %v4606 = vand.u32 %v1057, 4294901760
    %4607 = vmatpush.msra.mxu0 %v4606
    %v4608 = vand.u32 %v1053, 4294901760
    %4609 = vmatpush.msra.mxu0 %v4608
    %v4610 = vand.u32 %v1049, 4294901760
    %4611 = vmatpush.msra.mxu0 %v4610
    %v4612 = vand.u32 %v1045, 4294901760
    %4613 = vmatpush.msra.mxu0 %v4612
    %v4614 = vand.u32 %v1041, 4294901760
    %4615 = vmatpush.msra.mxu0 %v4614
    %v4616 = vand.u32 %v1037, 4294901760
    %4617 = vmatpush.msra.mxu0 %v4616
    %v4618 = vand.u32 %v1033, 4294901760
    %4619 = vmatpush.msra.mxu0 %v4618
    %v4620 = vand.u32 %v1029, 4294901760
    %4621 = vmatpush.msra.mxu0 %v4620
    %v4622 = vand.u32 %v1025, 4294901760
    %4623 = vmatpush.msra.mxu0 %v4622
    %v4624 = vand.u32 %v1021, 4294901760
    %4625 = vmatpush.msra.mxu0 %v4624
    %v4626 = vand.u32 %v952, 4294901760
    %4627 = vmatmul.f32.gmra.mxu0 %v4626
    %v4628 = vpop.f32.mrf.mxu0
    %v4629 = vadd.f32 %v4592, %v4628
    %4630 = vdwg.mxu0
    %v4631 = vand.u32 %v1145, 4294901760
    %4632 = vmatpush.msra.mxu0 %v4631
    %v4633 = vand.u32 %v1141, 4294901760
    %4634 = vmatpush.msra.mxu0 %v4633
    %v4635 = vand.u32 %v1137, 4294901760
    %4636 = vmatpush.msra.mxu0 %v4635
    %v4637 = vand.u32 %v1133, 4294901760
    %4638 = vmatpush.msra.mxu0 %v4637
    %v4639 = vand.u32 %v1129, 4294901760
    %4640 = vmatpush.msra.mxu0 %v4639
    %v4641 = vand.u32 %v1125, 4294901760
    %4642 = vmatpush.msra.mxu0 %v4641
    %v4643 = vand.u32 %v1121, 4294901760
    %4644 = vmatpush.msra.mxu0 %v4643
    %v4645 = vand.u32 %v1117, 4294901760
    %4646 = vmatpush.msra.mxu0 %v4645
    %v4647 = vand.u32 %v1113, 4294901760
    %4648 = vmatpush.msra.mxu0 %v4647
    %v4649 = vand.u32 %v1109, 4294901760
    %4650 = vmatpush.msra.mxu0 %v4649
    %v4651 = vand.u32 %v1105, 4294901760
    %4652 = vmatpush.msra.mxu0 %v4651
    %v4653 = vand.u32 %v1101, 4294901760
    %4654 = vmatpush.msra.mxu0 %v4653
    %v4655 = vand.u32 %v1097, 4294901760
    %4656 = vmatpush.msra.mxu0 %v4655
    %v4657 = vand.u32 %v1093, 4294901760
    %4658 = vmatpush.msra.mxu0 %v4657
    %v4659 = vand.u32 %v1089, 4294901760
    %4660 = vmatpush.msra.mxu0 %v4659
    %v4661 = vand.u32 %v1085, 4294901760
    %4662 = vmatpush.msra.mxu0 %v4661
    %v4663 = vand.u32 %v953, 4294901760
    %v4664 = vsub.f32 %v953, %v4663
    %v4665 = vand.u32 %v4664, 4294901760
    %v4666 = vsub.f32 %v4664, %v4665
    %v4667 = vand.u32 %v4666, 4294901760
    %4668 = vmatmul.f32.gmra.mxu0 %v4667
    %v4669 = vpop.f32.mrf.mxu0
    %v4670 = vadd.f32 %v4629, %v4669
    %4671 = vdwg.mxu0
    %v4672 = vand.u32 %v1145, 4294901760
    %v4673 = vsub.f32 %v1145, %v4672
    %v4674 = vand.u32 %v4673, 4294901760
    %v4675 = vsub.f32 %v4673, %v4674
    %v4676 = vand.u32 %v4675, 4294901760
    %4677 = vmatpush.msra.mxu0 %v4676
    %v4678 = vand.u32 %v1141, 4294901760
    %v4679 = vsub.f32 %v1141, %v4678
    %v4680 = vand.u32 %v4679, 4294901760
    %v4681 = vsub.f32 %v4679, %v4680
    %v4682 = vand.u32 %v4681, 4294901760
    %4683 = vmatpush.msra.mxu0 %v4682
    %v4684 = vand.u32 %v1137, 4294901760
    %v4685 = vsub.f32 %v1137, %v4684
    %v4686 = vand.u32 %v4685, 4294901760
    %v4687 = vsub.f32 %v4685, %v4686
    %v4688 = vand.u32 %v4687, 4294901760
    %4689 = vmatpush.msra.mxu0 %v4688
    %v4690 = vand.u32 %v1133, 4294901760
    %v4691 = vsub.f32 %v1133, %v4690
    %v4692 = vand.u32 %v4691, 4294901760
    %v4693 = vsub.f32 %v4691, %v4692
    %v4694 = vand.u32 %v4693, 4294901760
    %4695 = vmatpush.msra.mxu0 %v4694
    %v4696 = vand.u32 %v1129, 4294901760
    %v4697 = vsub.f32 %v1129, %v4696
    %v4698 = vand.u32 %v4697, 4294901760
    %v4699 = vsub.f32 %v4697, %v4698
    %v4700 = vand.u32 %v4699, 4294901760
    %4701 = vmatpush.msra.mxu0 %v4700
    %v4702 = vand.u32 %v1125, 4294901760
    %v4703 = vsub.f32 %v1125, %v4702
    %v4704 = vand.u32 %v4703, 4294901760
    %v4705 = vsub.f32 %v4703, %v4704
    %v4706 = vand.u32 %v4705, 4294901760
    %4707 = vmatpush.msra.mxu0 %v4706
    %v4708 = vand.u32 %v1121, 4294901760
    %v4709 = vsub.f32 %v1121, %v4708
    %v4710 = vand.u32 %v4709, 4294901760
    %v4711 = vsub.f32 %v4709, %v4710
    %v4712 = vand.u32 %v4711, 4294901760
    %4713 = vmatpush.msra.mxu0 %v4712
    %v4714 = vand.u32 %v1117, 4294901760
    %v4715 = vsub.f32 %v1117, %v4714
    %v4716 = vand.u32 %v4715, 4294901760
    %v4717 = vsub.f32 %v4715, %v4716
    %v4718 = vand.u32 %v4717, 4294901760
    %4719 = vmatpush.msra.mxu0 %v4718
    %v4720 = vand.u32 %v1113, 4294901760
    %v4721 = vsub.f32 %v1113, %v4720
    %v4722 = vand.u32 %v4721, 4294901760
    %v4723 = vsub.f32 %v4721, %v4722
    %v4724 = vand.u32 %v4723, 4294901760
    %4725 = vmatpush.msra.mxu0 %v4724
    %v4726 = vand.u32 %v1109, 4294901760
    %v4727 = vsub.f32 %v1109, %v4726
    %v4728 = vand.u32 %v4727, 4294901760
    %v4729 = vsub.f32 %v4727, %v4728
    %v4730 = vand.u32 %v4729, 4294901760
    %4731 = vmatpush.msra.mxu0 %v4730
    %v4732 = vand.u32 %v1105, 4294901760
    %v4733 = vsub.f32 %v1105, %v4732
    %v4734 = vand.u32 %v4733, 4294901760
    %v4735 = vsub.f32 %v4733, %v4734
    %v4736 = vand.u32 %v4735, 4294901760
    %4737 = vmatpush.msra.mxu0 %v4736
    %v4738 = vand.u32 %v1101, 4294901760
    %v4739 = vsub.f32 %v1101, %v4738
    %v4740 = vand.u32 %v4739, 4294901760
    %v4741 = vsub.f32 %v4739, %v4740
    %v4742 = vand.u32 %v4741, 4294901760
    %4743 = vmatpush.msra.mxu0 %v4742
    %v4744 = vand.u32 %v1097, 4294901760
    %v4745 = vsub.f32 %v1097, %v4744
    %v4746 = vand.u32 %v4745, 4294901760
    %v4747 = vsub.f32 %v4745, %v4746
    %v4748 = vand.u32 %v4747, 4294901760
    %4749 = vmatpush.msra.mxu0 %v4748
    %v4750 = vand.u32 %v1093, 4294901760
    %v4751 = vsub.f32 %v1093, %v4750
    %v4752 = vand.u32 %v4751, 4294901760
    %v4753 = vsub.f32 %v4751, %v4752
    %v4754 = vand.u32 %v4753, 4294901760
    %4755 = vmatpush.msra.mxu0 %v4754
    %v4756 = vand.u32 %v1089, 4294901760
    %v4757 = vsub.f32 %v1089, %v4756
    %v4758 = vand.u32 %v4757, 4294901760
    %v4759 = vsub.f32 %v4757, %v4758
    %v4760 = vand.u32 %v4759, 4294901760
    %4761 = vmatpush.msra.mxu0 %v4760
    %v4762 = vand.u32 %v1085, 4294901760
    %v4763 = vsub.f32 %v1085, %v4762
    %v4764 = vand.u32 %v4763, 4294901760
    %v4765 = vsub.f32 %v4763, %v4764
    %v4766 = vand.u32 %v4765, 4294901760
    %4767 = vmatpush.msra.mxu0 %v4766
    %v4768 = vand.u32 %v953, 4294901760
    %4769 = vmatmul.f32.gmra.mxu0 %v4768
    %v4770 = vpop.f32.mrf.mxu0
    %v4771 = vadd.f32 %v4670, %v4770
    %4772 = vdwg.mxu0
    %v4773 = vand.u32 %v1145, 4294901760
    %v4774 = vsub.f32 %v1145, %v4773
    %4775 = vmatpush.msra.mxu0 %v4774
    %v4776 = vand.u32 %v1141, 4294901760
    %v4777 = vsub.f32 %v1141, %v4776
    %4778 = vmatpush.msra.mxu0 %v4777
    %v4779 = vand.u32 %v1137, 4294901760
    %v4780 = vsub.f32 %v1137, %v4779
    %4781 = vmatpush.msra.mxu0 %v4780
    %v4782 = vand.u32 %v1133, 4294901760
    %v4783 = vsub.f32 %v1133, %v4782
    %4784 = vmatpush.msra.mxu0 %v4783
    %v4785 = vand.u32 %v1129, 4294901760
    %v4786 = vsub.f32 %v1129, %v4785
    %4787 = vmatpush.msra.mxu0 %v4786
    %v4788 = vand.u32 %v1125, 4294901760
    %v4789 = vsub.f32 %v1125, %v4788
    %4790 = vmatpush.msra.mxu0 %v4789
    %v4791 = vand.u32 %v1121, 4294901760
    %v4792 = vsub.f32 %v1121, %v4791
    %4793 = vmatpush.msra.mxu0 %v4792
    %v4794 = vand.u32 %v1117, 4294901760
    %v4795 = vsub.f32 %v1117, %v4794
    %4796 = vmatpush.msra.mxu0 %v4795
    %v4797 = vand.u32 %v1113, 4294901760
    %v4798 = vsub.f32 %v1113, %v4797
    %4799 = vmatpush.msra.mxu0 %v4798
    %v4800 = vand.u32 %v1109, 4294901760
    %v4801 = vsub.f32 %v1109, %v4800
    %4802 = vmatpush.msra.mxu0 %v4801
    %v4803 = vand.u32 %v1105, 4294901760
    %v4804 = vsub.f32 %v1105, %v4803
    %4805 = vmatpush.msra.mxu0 %v4804
    %v4806 = vand.u32 %v1101, 4294901760
    %v4807 = vsub.f32 %v1101, %v4806
    %4808 = vmatpush.msra.mxu0 %v4807
    %v4809 = vand.u32 %v1097, 4294901760
    %v4810 = vsub.f32 %v1097, %v4809
    %4811 = vmatpush.msra.mxu0 %v4810
    %v4812 = vand.u32 %v1093, 4294901760
    %v4813 = vsub.f32 %v1093, %v4812
    %4814 = vmatpush.msra.mxu0 %v4813
    %v4815 = vand.u32 %v1089, 4294901760
    %v4816 = vsub.f32 %v1089, %v4815
    %4817 = vmatpush.msra.mxu0 %v4816
    %v4818 = vand.u32 %v1085, 4294901760
    %v4819 = vsub.f32 %v1085, %v4818
    %4820 = vmatpush.msra.mxu0 %v4819
    %v4821 = vand.u32 %v953, 4294901760
    %v4822 = vsub.f32 %v953, %v4821
    %4823 = vmatmul.f32.gmra.mxu0 %v4822
    %v4824 = vpop.f32.mrf.mxu0
    %v4825 = vadd.f32 %v4771, %v4824
    %4826 = vdwg.mxu0
    %v4827 = vand.u32 %v1145, 4294901760
    %4828 = vmatpush.msra.mxu0 %v4827
    %v4829 = vand.u32 %v1141, 4294901760
    %4830 = vmatpush.msra.mxu0 %v4829
    %v4831 = vand.u32 %v1137, 4294901760
    %4832 = vmatpush.msra.mxu0 %v4831
    %v4833 = vand.u32 %v1133, 4294901760
    %4834 = vmatpush.msra.mxu0 %v4833
    %v4835 = vand.u32 %v1129, 4294901760
    %4836 = vmatpush.msra.mxu0 %v4835
    %v4837 = vand.u32 %v1125, 4294901760
    %4838 = vmatpush.msra.mxu0 %v4837
    %v4839 = vand.u32 %v1121, 4294901760
    %4840 = vmatpush.msra.mxu0 %v4839
    %v4841 = vand.u32 %v1117, 4294901760
    %4842 = vmatpush.msra.mxu0 %v4841
    %v4843 = vand.u32 %v1113, 4294901760
    %4844 = vmatpush.msra.mxu0 %v4843
    %v4845 = vand.u32 %v1109, 4294901760
    %4846 = vmatpush.msra.mxu0 %v4845
    %v4847 = vand.u32 %v1105, 4294901760
    %4848 = vmatpush.msra.mxu0 %v4847
    %v4849 = vand.u32 %v1101, 4294901760
    %4850 = vmatpush.msra.mxu0 %v4849
    %v4851 = vand.u32 %v1097, 4294901760
    %4852 = vmatpush.msra.mxu0 %v4851
    %v4853 = vand.u32 %v1093, 4294901760
    %4854 = vmatpush.msra.mxu0 %v4853
    %v4855 = vand.u32 %v1089, 4294901760
    %4856 = vmatpush.msra.mxu0 %v4855
    %v4857 = vand.u32 %v1085, 4294901760
    %4858 = vmatpush.msra.mxu0 %v4857
    %v4859 = vand.u32 %v953, 4294901760
    %v4860 = vsub.f32 %v953, %v4859
    %v4861 = vand.u32 %v4860, 4294901760
    %4862 = vmatmul.f32.gmra.mxu0 %v4861
    %v4863 = vpop.f32.mrf.mxu0
    %v4864 = vadd.f32 %v4825, %v4863
    %4865 = vdwg.mxu0
    %v4866 = vand.u32 %v1145, 4294901760
    %v4867 = vsub.f32 %v1145, %v4866
    %v4868 = vand.u32 %v4867, 4294901760
    %4869 = vmatpush.msra.mxu0 %v4868
    %v4870 = vand.u32 %v1141, 4294901760
    %v4871 = vsub.f32 %v1141, %v4870
    %v4872 = vand.u32 %v4871, 4294901760
    %4873 = vmatpush.msra.mxu0 %v4872
    %v4874 = vand.u32 %v1137, 4294901760
    %v4875 = vsub.f32 %v1137, %v4874
    %v4876 = vand.u32 %v4875, 4294901760
    %4877 = vmatpush.msra.mxu0 %v4876
    %v4878 = vand.u32 %v1133, 4294901760
    %v4879 = vsub.f32 %v1133, %v4878
    %v4880 = vand.u32 %v4879, 4294901760
    %4881 = vmatpush.msra.mxu0 %v4880
    %v4882 = vand.u32 %v1129, 4294901760
    %v4883 = vsub.f32 %v1129, %v4882
    %v4884 = vand.u32 %v4883, 4294901760
    %4885 = vmatpush.msra.mxu0 %v4884
    %v4886 = vand.u32 %v1125, 4294901760
    %v4887 = vsub.f32 %v1125, %v4886
    %v4888 = vand.u32 %v4887, 4294901760
    %4889 = vmatpush.msra.mxu0 %v4888
    %v4890 = vand.u32 %v1121, 4294901760
    %v4891 = vsub.f32 %v1121, %v4890
    %v4892 = vand.u32 %v4891, 4294901760
    %4893 = vmatpush.msra.mxu0 %v4892
    %v4894 = vand.u32 %v1117, 4294901760
    %v4895 = vsub.f32 %v1117, %v4894
    %v4896 = vand.u32 %v4895, 4294901760
    %4897 = vmatpush.msra.mxu0 %v4896
    %v4898 = vand.u32 %v1113, 4294901760
    %v4899 = vsub.f32 %v1113, %v4898
    %v4900 = vand.u32 %v4899, 4294901760
    %4901 = vmatpush.msra.mxu0 %v4900
    %v4902 = vand.u32 %v1109, 4294901760
    %v4903 = vsub.f32 %v1109, %v4902
    %v4904 = vand.u32 %v4903, 4294901760
    %4905 = vmatpush.msra.mxu0 %v4904
    %v4906 = vand.u32 %v1105, 4294901760
    %v4907 = vsub.f32 %v1105, %v4906
    %v4908 = vand.u32 %v4907, 4294901760
    %4909 = vmatpush.msra.mxu0 %v4908
    %v4910 = vand.u32 %v1101, 4294901760
    %v4911 = vsub.f32 %v1101, %v4910
    %v4912 = vand.u32 %v4911, 4294901760
    %4913 = vmatpush.msra.mxu0 %v4912
    %v4914 = vand.u32 %v1097, 4294901760
    %v4915 = vsub.f32 %v1097, %v4914
    %v4916 = vand.u32 %v4915, 4294901760
    %4917 = vmatpush.msra.mxu0 %v4916
    %v4918 = vand.u32 %v1093, 4294901760
    %v4919 = vsub.f32 %v1093, %v4918
    %v4920 = vand.u32 %v4919, 4294901760
    %4921 = vmatpush.msra.mxu0 %v4920
    %v4922 = vand.u32 %v1089, 4294901760
    %v4923 = vsub.f32 %v1089, %v4922
    %v4924 = vand.u32 %v4923, 4294901760
    %4925 = vmatpush.msra.mxu0 %v4924
    %v4926 = vand.u32 %v1085, 4294901760
    %v4927 = vsub.f32 %v1085, %v4926
    %v4928 = vand.u32 %v4927, 4294901760
    %4929 = vmatpush.msra.mxu0 %v4928
    %v4930 = vand.u32 %v953, 4294901760
    %4931 = vmatmul.f32.gmra.mxu0 %v4930
    %v4932 = vpop.f32.mrf.mxu0
    %v4933 = vadd.f32 %v4864, %v4932
    %4934 = vdwg.mxu0
    %v4935 = vand.u32 %v1145, 4294901760
    %4936 = vmatpush.msra.mxu0 %v4935
    %v4937 = vand.u32 %v1141, 4294901760
    %4938 = vmatpush.msra.mxu0 %v4937
    %v4939 = vand.u32 %v1137, 4294901760
    %4940 = vmatpush.msra.mxu0 %v4939
    %v4941 = vand.u32 %v1133, 4294901760
    %4942 = vmatpush.msra.mxu0 %v4941
    %v4943 = vand.u32 %v1129, 4294901760
    %4944 = vmatpush.msra.mxu0 %v4943
    %v4945 = vand.u32 %v1125, 4294901760
    %4946 = vmatpush.msra.mxu0 %v4945
    %v4947 = vand.u32 %v1121, 4294901760
    %4948 = vmatpush.msra.mxu0 %v4947
    %v4949 = vand.u32 %v1117, 4294901760
    %4950 = vmatpush.msra.mxu0 %v4949
    %v4951 = vand.u32 %v1113, 4294901760
    %4952 = vmatpush.msra.mxu0 %v4951
    %v4953 = vand.u32 %v1109, 4294901760
    %4954 = vmatpush.msra.mxu0 %v4953
    %v4955 = vand.u32 %v1105, 4294901760
    %4956 = vmatpush.msra.mxu0 %v4955
    %v4957 = vand.u32 %v1101, 4294901760
    %4958 = vmatpush.msra.mxu0 %v4957
    %v4959 = vand.u32 %v1097, 4294901760
    %4960 = vmatpush.msra.mxu0 %v4959
    %v4961 = vand.u32 %v1093, 4294901760
    %4962 = vmatpush.msra.mxu0 %v4961
    %v4963 = vand.u32 %v1089, 4294901760
    %4964 = vmatpush.msra.mxu0 %v4963
    %v4965 = vand.u32 %v1085, 4294901760
    %4966 = vmatpush.msra.mxu0 %v4965
    %v4967 = vand.u32 %v953, 4294901760
    %4968 = vmatmul.f32.gmra.mxu0 %v4967
    %v4969 = vpop.f32.mrf.mxu0
    %v4970 = vadd.f32 %v4933, %v4969
    %4971 = vdwg.mxu0
    %v4972 = vand.u32 %v1209, 4294901760
    %4973 = vmatpush.msra.mxu0 %v4972
    %v4974 = vand.u32 %v1205, 4294901760
    %4975 = vmatpush.msra.mxu0 %v4974
    %v4976 = vand.u32 %v1201, 4294901760
    %4977 = vmatpush.msra.mxu0 %v4976
    %v4978 = vand.u32 %v1197, 4294901760
    %4979 = vmatpush.msra.mxu0 %v4978
    %v4980 = vand.u32 %v1193, 4294901760
    %4981 = vmatpush.msra.mxu0 %v4980
    %v4982 = vand.u32 %v1189, 4294901760
    %4983 = vmatpush.msra.mxu0 %v4982
    %v4984 = vand.u32 %v1185, 4294901760
    %4985 = vmatpush.msra.mxu0 %v4984
    %v4986 = vand.u32 %v1181, 4294901760
    %4987 = vmatpush.msra.mxu0 %v4986
    %v4988 = vand.u32 %v1177, 4294901760
    %4989 = vmatpush.msra.mxu0 %v4988
    %v4990 = vand.u32 %v1173, 4294901760
    %4991 = vmatpush.msra.mxu0 %v4990
    %v4992 = vand.u32 %v1169, 4294901760
    %4993 = vmatpush.msra.mxu0 %v4992
    %v4994 = vand.u32 %v1165, 4294901760
    %4995 = vmatpush.msra.mxu0 %v4994
    %v4996 = vand.u32 %v1161, 4294901760
    %4997 = vmatpush.msra.mxu0 %v4996
    %v4998 = vand.u32 %v1157, 4294901760
    %4999 = vmatpush.msra.mxu0 %v4998
    %v5000 = vand.u32 %v1153, 4294901760
    %5001 = vmatpush.msra.mxu0 %v5000
    %v5002 = vand.u32 %v1149, 4294901760
    %5003 = vmatpush.msra.mxu0 %v5002
    %v5004 = vand.u32 %v954, 4294901760
    %v5005 = vsub.f32 %v954, %v5004
    %v5006 = vand.u32 %v5005, 4294901760
    %v5007 = vsub.f32 %v5005, %v5006
    %v5008 = vand.u32 %v5007, 4294901760
    %5009 = vmatmul.f32.gmra.mxu0 %v5008
    %v5010 = vpop.f32.mrf.mxu0
    %v5011 = vadd.f32 %v4970, %v5010
    %5012 = vdwg.mxu0
    %v5013 = vand.u32 %v1209, 4294901760
    %v5014 = vsub.f32 %v1209, %v5013
    %v5015 = vand.u32 %v5014, 4294901760
    %v5016 = vsub.f32 %v5014, %v5015
    %v5017 = vand.u32 %v5016, 4294901760
    %5018 = vmatpush.msra.mxu0 %v5017
    %v5019 = vand.u32 %v1205, 4294901760
    %v5020 = vsub.f32 %v1205, %v5019
    %v5021 = vand.u32 %v5020, 4294901760
    %v5022 = vsub.f32 %v5020, %v5021
    %v5023 = vand.u32 %v5022, 4294901760
    %5024 = vmatpush.msra.mxu0 %v5023
    %v5025 = vand.u32 %v1201, 4294901760
    %v5026 = vsub.f32 %v1201, %v5025
    %v5027 = vand.u32 %v5026, 4294901760
    %v5028 = vsub.f32 %v5026, %v5027
    %v5029 = vand.u32 %v5028, 4294901760
    %5030 = vmatpush.msra.mxu0 %v5029
    %v5031 = vand.u32 %v1197, 4294901760
    %v5032 = vsub.f32 %v1197, %v5031
    %v5033 = vand.u32 %v5032, 4294901760
    %v5034 = vsub.f32 %v5032, %v5033
    %v5035 = vand.u32 %v5034, 4294901760
    %5036 = vmatpush.msra.mxu0 %v5035
    %v5037 = vand.u32 %v1193, 4294901760
    %v5038 = vsub.f32 %v1193, %v5037
    %v5039 = vand.u32 %v5038, 4294901760
    %v5040 = vsub.f32 %v5038, %v5039
    %v5041 = vand.u32 %v5040, 4294901760
    %5042 = vmatpush.msra.mxu0 %v5041
    %v5043 = vand.u32 %v1189, 4294901760
    %v5044 = vsub.f32 %v1189, %v5043
    %v5045 = vand.u32 %v5044, 4294901760
    %v5046 = vsub.f32 %v5044, %v5045
    %v5047 = vand.u32 %v5046, 4294901760
    %5048 = vmatpush.msra.mxu0 %v5047
    %v5049 = vand.u32 %v1185, 4294901760
    %v5050 = vsub.f32 %v1185, %v5049
    %v5051 = vand.u32 %v5050, 4294901760
    %v5052 = vsub.f32 %v5050, %v5051
    %v5053 = vand.u32 %v5052, 4294901760
    %5054 = vmatpush.msra.mxu0 %v5053
    %v5055 = vand.u32 %v1181, 4294901760
    %v5056 = vsub.f32 %v1181, %v5055
    %v5057 = vand.u32 %v5056, 4294901760
    %v5058 = vsub.f32 %v5056, %v5057
    %v5059 = vand.u32 %v5058, 4294901760
    %5060 = vmatpush.msra.mxu0 %v5059
    %v5061 = vand.u32 %v1177, 4294901760
    %v5062 = vsub.f32 %v1177, %v5061
    %v5063 = vand.u32 %v5062, 4294901760
    %v5064 = vsub.f32 %v5062, %v5063
    %v5065 = vand.u32 %v5064, 4294901760
    %5066 = vmatpush.msra.mxu0 %v5065
    %v5067 = vand.u32 %v1173, 4294901760
    %v5068 = vsub.f32 %v1173, %v5067
    %v5069 = vand.u32 %v5068, 4294901760
    %v5070 = vsub.f32 %v5068, %v5069
    %v5071 = vand.u32 %v5070, 4294901760
    %5072 = vmatpush.msra.mxu0 %v5071
    %v5073 = vand.u32 %v1169, 4294901760
    %v5074 = vsub.f32 %v1169, %v5073
    %v5075 = vand.u32 %v5074, 4294901760
    %v5076 = vsub.f32 %v5074, %v5075
    %v5077 = vand.u32 %v5076, 4294901760
    %5078 = vmatpush.msra.mxu0 %v5077
    %v5079 = vand.u32 %v1165, 4294901760
    %v5080 = vsub.f32 %v1165, %v5079
    %v5081 = vand.u32 %v5080, 4294901760
    %v5082 = vsub.f32 %v5080, %v5081
    %v5083 = vand.u32 %v5082, 4294901760
    %5084 = vmatpush.msra.mxu0 %v5083
    %v5085 = vand.u32 %v1161, 4294901760
    %v5086 = vsub.f32 %v1161, %v5085
    %v5087 = vand.u32 %v5086, 4294901760
    %v5088 = vsub.f32 %v5086, %v5087
    %v5089 = vand.u32 %v5088, 4294901760
    %5090 = vmatpush.msra.mxu0 %v5089
    %v5091 = vand.u32 %v1157, 4294901760
    %v5092 = vsub.f32 %v1157, %v5091
    %v5093 = vand.u32 %v5092, 4294901760
    %v5094 = vsub.f32 %v5092, %v5093
    %v5095 = vand.u32 %v5094, 4294901760
    %5096 = vmatpush.msra.mxu0 %v5095
    %v5097 = vand.u32 %v1153, 4294901760
    %v5098 = vsub.f32 %v1153, %v5097
    %v5099 = vand.u32 %v5098, 4294901760
    %v5100 = vsub.f32 %v5098, %v5099
    %v5101 = vand.u32 %v5100, 4294901760
    %5102 = vmatpush.msra.mxu0 %v5101
    %v5103 = vand.u32 %v1149, 4294901760
    %v5104 = vsub.f32 %v1149, %v5103
    %v5105 = vand.u32 %v5104, 4294901760
    %v5106 = vsub.f32 %v5104, %v5105
    %v5107 = vand.u32 %v5106, 4294901760
    %5108 = vmatpush.msra.mxu0 %v5107
    %v5109 = vand.u32 %v954, 4294901760
    %5110 = vmatmul.f32.gmra.mxu0 %v5109
    %v5111 = vpop.f32.mrf.mxu0
    %v5112 = vadd.f32 %v5011, %v5111
    %5113 = vdwg.mxu0
    %v5114 = vand.u32 %v1209, 4294901760
    %v5115 = vsub.f32 %v1209, %v5114
    %5116 = vmatpush.msra.mxu0 %v5115
    %v5117 = vand.u32 %v1205, 4294901760
    %v5118 = vsub.f32 %v1205, %v5117
    %5119 = vmatpush.msra.mxu0 %v5118
    %v5120 = vand.u32 %v1201, 4294901760
    %v5121 = vsub.f32 %v1201, %v5120
    %5122 = vmatpush.msra.mxu0 %v5121
    %v5123 = vand.u32 %v1197, 4294901760
    %v5124 = vsub.f32 %v1197, %v5123
    %5125 = vmatpush.msra.mxu0 %v5124
    %v5126 = vand.u32 %v1193, 4294901760
    %v5127 = vsub.f32 %v1193, %v5126
    %5128 = vmatpush.msra.mxu0 %v5127
    %v5129 = vand.u32 %v1189, 4294901760
    %v5130 = vsub.f32 %v1189, %v5129
    %5131 = vmatpush.msra.mxu0 %v5130
    %v5132 = vand.u32 %v1185, 4294901760
    %v5133 = vsub.f32 %v1185, %v5132
    %5134 = vmatpush.msra.mxu0 %v5133
    %v5135 = vand.u32 %v1181, 4294901760
    %v5136 = vsub.f32 %v1181, %v5135
    %5137 = vmatpush.msra.mxu0 %v5136
    %v5138 = vand.u32 %v1177, 4294901760
    %v5139 = vsub.f32 %v1177, %v5138
    %5140 = vmatpush.msra.mxu0 %v5139
    %v5141 = vand.u32 %v1173, 4294901760
    %v5142 = vsub.f32 %v1173, %v5141
    %5143 = vmatpush.msra.mxu0 %v5142
    %v5144 = vand.u32 %v1169, 4294901760
    %v5145 = vsub.f32 %v1169, %v5144
    %5146 = vmatpush.msra.mxu0 %v5145
    %v5147 = vand.u32 %v1165, 4294901760
    %v5148 = vsub.f32 %v1165, %v5147
    %5149 = vmatpush.msra.mxu0 %v5148
    %v5150 = vand.u32 %v1161, 4294901760
    %v5151 = vsub.f32 %v1161, %v5150
    %5152 = vmatpush.msra.mxu0 %v5151
    %v5153 = vand.u32 %v1157, 4294901760
    %v5154 = vsub.f32 %v1157, %v5153
    %5155 = vmatpush.msra.mxu0 %v5154
    %v5156 = vand.u32 %v1153, 4294901760
    %v5157 = vsub.f32 %v1153, %v5156
    %5158 = vmatpush.msra.mxu0 %v5157
    %v5159 = vand.u32 %v1149, 4294901760
    %v5160 = vsub.f32 %v1149, %v5159
    %5161 = vmatpush.msra.mxu0 %v5160
    %v5162 = vand.u32 %v954, 4294901760
    %v5163 = vsub.f32 %v954, %v5162
    %5164 = vmatmul.f32.gmra.mxu0 %v5163
    %v5165 = vpop.f32.mrf.mxu0
    %v5166 = vadd.f32 %v5112, %v5165
    %5167 = vdwg.mxu0
    %v5168 = vand.u32 %v1209, 4294901760
    %5169 = vmatpush.msra.mxu0 %v5168
    %v5170 = vand.u32 %v1205, 4294901760
    %5171 = vmatpush.msra.mxu0 %v5170
    %v5172 = vand.u32 %v1201, 4294901760
    %5173 = vmatpush.msra.mxu0 %v5172
    %v5174 = vand.u32 %v1197, 4294901760
    %5175 = vmatpush.msra.mxu0 %v5174
    %v5176 = vand.u32 %v1193, 4294901760
    %5177 = vmatpush.msra.mxu0 %v5176
    %v5178 = vand.u32 %v1189, 4294901760
    %5179 = vmatpush.msra.mxu0 %v5178
    %v5180 = vand.u32 %v1185, 4294901760
    %5181 = vmatpush.msra.mxu0 %v5180
    %v5182 = vand.u32 %v1181, 4294901760
    %5183 = vmatpush.msra.mxu0 %v5182
    %v5184 = vand.u32 %v1177, 4294901760
    %5185 = vmatpush.msra.mxu0 %v5184
    %v5186 = vand.u32 %v1173, 4294901760
    %5187 = vmatpush.msra.mxu0 %v5186
    %v5188 = vand.u32 %v1169, 4294901760
    %5189 = vmatpush.msra.mxu0 %v5188
    %v5190 = vand.u32 %v1165, 4294901760
    %5191 = vmatpush.msra.mxu0 %v5190
    %v5192 = vand.u32 %v1161, 4294901760
    %5193 = vmatpush.msra.mxu0 %v5192
    %v5194 = vand.u32 %v1157, 4294901760
    %5195 = vmatpush.msra.mxu0 %v5194
    %v5196 = vand.u32 %v1153, 4294901760
    %5197 = vmatpush.msra.mxu0 %v5196
    %v5198 = vand.u32 %v1149, 4294901760
    %5199 = vmatpush.msra.mxu0 %v5198
    %v5200 = vand.u32 %v954, 4294901760
    %v5201 = vsub.f32 %v954, %v5200
    %v5202 = vand.u32 %v5201, 4294901760
    %5203 = vmatmul.f32.gmra.mxu0 %v5202
    %v5204 = vpop.f32.mrf.mxu0
    %v5205 = vadd.f32 %v5166, %v5204
    %5206 = vdwg.mxu0
    %v5207 = vand.u32 %v1209, 4294901760
    %v5208 = vsub.f32 %v1209, %v5207
    %v5209 = vand.u32 %v5208, 4294901760
    %5210 = vmatpush.msra.mxu0 %v5209
    %v5211 = vand.u32 %v1205, 4294901760
    %v5212 = vsub.f32 %v1205, %v5211
    %v5213 = vand.u32 %v5212, 4294901760
    %5214 = vmatpush.msra.mxu0 %v5213
    %v5215 = vand.u32 %v1201, 4294901760
    %v5216 = vsub.f32 %v1201, %v5215
    %v5217 = vand.u32 %v5216, 4294901760
    %5218 = vmatpush.msra.mxu0 %v5217
    %v5219 = vand.u32 %v1197, 4294901760
    %v5220 = vsub.f32 %v1197, %v5219
    %v5221 = vand.u32 %v5220, 4294901760
    %5222 = vmatpush.msra.mxu0 %v5221
    %v5223 = vand.u32 %v1193, 4294901760
    %v5224 = vsub.f32 %v1193, %v5223
    %v5225 = vand.u32 %v5224, 4294901760
    %5226 = vmatpush.msra.mxu0 %v5225
    %v5227 = vand.u32 %v1189, 4294901760
    %v5228 = vsub.f32 %v1189, %v5227
    %v5229 = vand.u32 %v5228, 4294901760
    %5230 = vmatpush.msra.mxu0 %v5229
    %v5231 = vand.u32 %v1185, 4294901760
    %v5232 = vsub.f32 %v1185, %v5231
    %v5233 = vand.u32 %v5232, 4294901760
    %5234 = vmatpush.msra.mxu0 %v5233
    %v5235 = vand.u32 %v1181, 4294901760
    %v5236 = vsub.f32 %v1181, %v5235
    %v5237 = vand.u32 %v5236, 4294901760
    %5238 = vmatpush.msra.mxu0 %v5237
    %v5239 = vand.u32 %v1177, 4294901760
    %v5240 = vsub.f32 %v1177, %v5239
    %v5241 = vand.u32 %v5240, 4294901760
    %5242 = vmatpush.msra.mxu0 %v5241
    %v5243 = vand.u32 %v1173, 4294901760
    %v5244 = vsub.f32 %v1173, %v5243
    %v5245 = vand.u32 %v5244, 4294901760
    %5246 = vmatpush.msra.mxu0 %v5245
    %v5247 = vand.u32 %v1169, 4294901760
    %v5248 = vsub.f32 %v1169, %v5247
    %v5249 = vand.u32 %v5248, 4294901760
    %5250 = vmatpush.msra.mxu0 %v5249
    %v5251 = vand.u32 %v1165, 4294901760
    %v5252 = vsub.f32 %v1165, %v5251
    %v5253 = vand.u32 %v5252, 4294901760
    %5254 = vmatpush.msra.mxu0 %v5253
    %v5255 = vand.u32 %v1161, 4294901760
    %v5256 = vsub.f32 %v1161, %v5255
    %v5257 = vand.u32 %v5256, 4294901760
    %5258 = vmatpush.msra.mxu0 %v5257
    %v5259 = vand.u32 %v1157, 4294901760
    %v5260 = vsub.f32 %v1157, %v5259
    %v5261 = vand.u32 %v5260, 4294901760
    %5262 = vmatpush.msra.mxu0 %v5261
    %v5263 = vand.u32 %v1153, 4294901760
    %v5264 = vsub.f32 %v1153, %v5263
    %v5265 = vand.u32 %v5264, 4294901760
    %5266 = vmatpush.msra.mxu0 %v5265
    %v5267 = vand.u32 %v1149, 4294901760
    %v5268 = vsub.f32 %v1149, %v5267
    %v5269 = vand.u32 %v5268, 4294901760
    %5270 = vmatpush.msra.mxu0 %v5269
    %v5271 = vand.u32 %v954, 4294901760
    %5272 = vmatmul.f32.gmra.mxu0 %v5271
    %v5273 = vpop.f32.mrf.mxu0
    %v5274 = vadd.f32 %v5205, %v5273
    %5275 = vdwg.mxu0
    %v5276 = vand.u32 %v1209, 4294901760
    %5277 = vmatpush.msra.mxu0 %v5276
    %v5278 = vand.u32 %v1205, 4294901760
    %5279 = vmatpush.msra.mxu0 %v5278
    %v5280 = vand.u32 %v1201, 4294901760
    %5281 = vmatpush.msra.mxu0 %v5280
    %v5282 = vand.u32 %v1197, 4294901760
    %5283 = vmatpush.msra.mxu0 %v5282
    %v5284 = vand.u32 %v1193, 4294901760
    %5285 = vmatpush.msra.mxu0 %v5284
    %v5286 = vand.u32 %v1189, 4294901760
    %5287 = vmatpush.msra.mxu0 %v5286
    %v5288 = vand.u32 %v1185, 4294901760
    %5289 = vmatpush.msra.mxu0 %v5288
    %v5290 = vand.u32 %v1181, 4294901760
    %5291 = vmatpush.msra.mxu0 %v5290
    %v5292 = vand.u32 %v1177, 4294901760
    %5293 = vmatpush.msra.mxu0 %v5292
    %v5294 = vand.u32 %v1173, 4294901760
    %5295 = vmatpush.msra.mxu0 %v5294
    %v5296 = vand.u32 %v1169, 4294901760
    %5297 = vmatpush.msra.mxu0 %v5296
    %v5298 = vand.u32 %v1165, 4294901760
    %5299 = vmatpush.msra.mxu0 %v5298
    %v5300 = vand.u32 %v1161, 4294901760
    %5301 = vmatpush.msra.mxu0 %v5300
    %v5302 = vand.u32 %v1157, 4294901760
    %5303 = vmatpush.msra.mxu0 %v5302
    %v5304 = vand.u32 %v1153, 4294901760
    %5305 = vmatpush.msra.mxu0 %v5304
    %v5306 = vand.u32 %v1149, 4294901760
    %5307 = vmatpush.msra.mxu0 %v5306
    %v5308 = vand.u32 %v954, 4294901760
    %5309 = vmatmul.f32.gmra.mxu0 %v5308
    %v5310 = vpop.f32.mrf.mxu0
    %v5311 = vadd.f32 %v5274, %v5310
    %5312 = vdwg.mxu0
    %v5313 = vand.u32 %v1018, 4294901760
    %5314 = vmatpush.msra.mxu0 %v5313
    %v5315 = vand.u32 %v1014, 4294901760
    %5316 = vmatpush.msra.mxu0 %v5315
    %v5317 = vand.u32 %v1010, 4294901760
    %5318 = vmatpush.msra.mxu0 %v5317
    %v5319 = vand.u32 %v1006, 4294901760
    %5320 = vmatpush.msra.mxu0 %v5319
    %v5321 = vand.u32 %v1002, 4294901760
    %5322 = vmatpush.msra.mxu0 %v5321
    %v5323 = vand.u32 %v998, 4294901760
    %5324 = vmatpush.msra.mxu0 %v5323
    %v5325 = vand.u32 %v994, 4294901760
    %5326 = vmatpush.msra.mxu0 %v5325
    %v5327 = vand.u32 %v990, 4294901760
    %5328 = vmatpush.msra.mxu0 %v5327
    %v5329 = vand.u32 %v986, 4294901760
    %5330 = vmatpush.msra.mxu0 %v5329
    %v5331 = vand.u32 %v982, 4294901760
    %5332 = vmatpush.msra.mxu0 %v5331
    %v5333 = vand.u32 %v978, 4294901760
    %5334 = vmatpush.msra.mxu0 %v5333
    %v5335 = vand.u32 %v974, 4294901760
    %5336 = vmatpush.msra.mxu0 %v5335
    %v5337 = vand.u32 %v970, 4294901760
    %5338 = vmatpush.msra.mxu0 %v5337
    %v5339 = vand.u32 %v966, 4294901760
    %5340 = vmatpush.msra.mxu0 %v5339
    %v5341 = vand.u32 %v962, 4294901760
    %5342 = vmatpush.msra.mxu0 %v5341
    %v5343 = vand.u32 %v958, 4294901760
    %5344 = vmatpush.msra.mxu0 %v5343
    %v5345 = vand.u32 %v951, 4294901760
    %v5346 = vsub.f32 %v951, %v5345
    %v5347 = vand.u32 %v5346, 4294901760
    %v5348 = vsub.f32 %v5346, %v5347
    %v5349 = vand.u32 %v5348, 4294901760
    %5350 = vmatmul.f32.gmra.mxu0 %v5349
    %v5351 = vpop.f32.mrf.mxu0
    %v5352 = vadd.f32 %v1216, %v5351
    %5353 = vdwg.mxu0
    %v5354 = vand.u32 %v1018, 4294901760
    %v5355 = vsub.f32 %v1018, %v5354
    %v5356 = vand.u32 %v5355, 4294901760
    %v5357 = vsub.f32 %v5355, %v5356
    %v5358 = vand.u32 %v5357, 4294901760
    %5359 = vmatpush.msra.mxu0 %v5358
    %v5360 = vand.u32 %v1014, 4294901760
    %v5361 = vsub.f32 %v1014, %v5360
    %v5362 = vand.u32 %v5361, 4294901760
    %v5363 = vsub.f32 %v5361, %v5362
    %v5364 = vand.u32 %v5363, 4294901760
    %5365 = vmatpush.msra.mxu0 %v5364
    %v5366 = vand.u32 %v1010, 4294901760
    %v5367 = vsub.f32 %v1010, %v5366
    %v5368 = vand.u32 %v5367, 4294901760
    %v5369 = vsub.f32 %v5367, %v5368
    %v5370 = vand.u32 %v5369, 4294901760
    %5371 = vmatpush.msra.mxu0 %v5370
    %v5372 = vand.u32 %v1006, 4294901760
    %v5373 = vsub.f32 %v1006, %v5372
    %v5374 = vand.u32 %v5373, 4294901760
    %v5375 = vsub.f32 %v5373, %v5374
    %v5376 = vand.u32 %v5375, 4294901760
    %5377 = vmatpush.msra.mxu0 %v5376
    %v5378 = vand.u32 %v1002, 4294901760
    %v5379 = vsub.f32 %v1002, %v5378
    %v5380 = vand.u32 %v5379, 4294901760
    %v5381 = vsub.f32 %v5379, %v5380
    %v5382 = vand.u32 %v5381, 4294901760
    %5383 = vmatpush.msra.mxu0 %v5382
    %v5384 = vand.u32 %v998, 4294901760
    %v5385 = vsub.f32 %v998, %v5384
    %v5386 = vand.u32 %v5385, 4294901760
    %v5387 = vsub.f32 %v5385, %v5386
    %v5388 = vand.u32 %v5387, 4294901760
    %5389 = vmatpush.msra.mxu0 %v5388
    %v5390 = vand.u32 %v994, 4294901760
    %v5391 = vsub.f32 %v994, %v5390
    %v5392 = vand.u32 %v5391, 4294901760
    %v5393 = vsub.f32 %v5391, %v5392
    %v5394 = vand.u32 %v5393, 4294901760
    %5395 = vmatpush.msra.mxu0 %v5394
    %v5396 = vand.u32 %v990, 4294901760
    %v5397 = vsub.f32 %v990, %v5396
    %v5398 = vand.u32 %v5397, 4294901760
    %v5399 = vsub.f32 %v5397, %v5398
    %v5400 = vand.u32 %v5399, 4294901760
    %5401 = vmatpush.msra.mxu0 %v5400
    %v5402 = vand.u32 %v986, 4294901760
    %v5403 = vsub.f32 %v986, %v5402
    %v5404 = vand.u32 %v5403, 4294901760
    %v5405 = vsub.f32 %v5403, %v5404
    %v5406 = vand.u32 %v5405, 4294901760
    %5407 = vmatpush.msra.mxu0 %v5406
    %v5408 = vand.u32 %v982, 4294901760
    %v5409 = vsub.f32 %v982, %v5408
    %v5410 = vand.u32 %v5409, 4294901760
    %v5411 = vsub.f32 %v5409, %v5410
    %v5412 = vand.u32 %v5411, 4294901760
    %5413 = vmatpush.msra.mxu0 %v5412
    %v5414 = vand.u32 %v978, 4294901760
    %v5415 = vsub.f32 %v978, %v5414
    %v5416 = vand.u32 %v5415, 4294901760
    %v5417 = vsub.f32 %v5415, %v5416
    %v5418 = vand.u32 %v5417, 4294901760
    %5419 = vmatpush.msra.mxu0 %v5418
    %v5420 = vand.u32 %v974, 4294901760
    %v5421 = vsub.f32 %v974, %v5420
    %v5422 = vand.u32 %v5421, 4294901760
    %v5423 = vsub.f32 %v5421, %v5422
    %v5424 = vand.u32 %v5423, 4294901760
    %5425 = vmatpush.msra.mxu0 %v5424
    %v5426 = vand.u32 %v970, 4294901760
    %v5427 = vsub.f32 %v970, %v5426
    %v5428 = vand.u32 %v5427, 4294901760
    %v5429 = vsub.f32 %v5427, %v5428
    %v5430 = vand.u32 %v5429, 4294901760
    %5431 = vmatpush.msra.mxu0 %v5430
    %v5432 = vand.u32 %v966, 4294901760
    %v5433 = vsub.f32 %v966, %v5432
    %v5434 = vand.u32 %v5433, 4294901760
    %v5435 = vsub.f32 %v5433, %v5434
    %v5436 = vand.u32 %v5435, 4294901760
    %5437 = vmatpush.msra.mxu0 %v5436
    %v5438 = vand.u32 %v962, 4294901760
    %v5439 = vsub.f32 %v962, %v5438
    %v5440 = vand.u32 %v5439, 4294901760
    %v5441 = vsub.f32 %v5439, %v5440
    %v5442 = vand.u32 %v5441, 4294901760
    %5443 = vmatpush.msra.mxu0 %v5442
    %v5444 = vand.u32 %v958, 4294901760
    %v5445 = vsub.f32 %v958, %v5444
    %v5446 = vand.u32 %v5445, 4294901760
    %v5447 = vsub.f32 %v5445, %v5446
    %v5448 = vand.u32 %v5447, 4294901760
    %5449 = vmatpush.msra.mxu0 %v5448
    %v5450 = vand.u32 %v951, 4294901760
    %5451 = vmatmul.f32.gmra.mxu0 %v5450
    %v5452 = vpop.f32.mrf.mxu0
    %v5453 = vadd.f32 %v5352, %v5452
    %5454 = vdwg.mxu0
    %v5455 = vand.u32 %v1018, 4294901760
    %v5456 = vsub.f32 %v1018, %v5455
    %5457 = vmatpush.msra.mxu0 %v5456
    %v5458 = vand.u32 %v1014, 4294901760
    %v5459 = vsub.f32 %v1014, %v5458
    %5460 = vmatpush.msra.mxu0 %v5459
    %v5461 = vand.u32 %v1010, 4294901760
    %v5462 = vsub.f32 %v1010, %v5461
    %5463 = vmatpush.msra.mxu0 %v5462
    %v5464 = vand.u32 %v1006, 4294901760
    %v5465 = vsub.f32 %v1006, %v5464
    %5466 = vmatpush.msra.mxu0 %v5465
    %v5467 = vand.u32 %v1002, 4294901760
    %v5468 = vsub.f32 %v1002, %v5467
    %5469 = vmatpush.msra.mxu0 %v5468
    %v5470 = vand.u32 %v998, 4294901760
    %v5471 = vsub.f32 %v998, %v5470
    %5472 = vmatpush.msra.mxu0 %v5471
    %v5473 = vand.u32 %v994, 4294901760
    %v5474 = vsub.f32 %v994, %v5473
    %5475 = vmatpush.msra.mxu0 %v5474
    %v5476 = vand.u32 %v990, 4294901760
    %v5477 = vsub.f32 %v990, %v5476
    %5478 = vmatpush.msra.mxu0 %v5477
    %v5479 = vand.u32 %v986, 4294901760
    %v5480 = vsub.f32 %v986, %v5479
    %5481 = vmatpush.msra.mxu0 %v5480
    %v5482 = vand.u32 %v982, 4294901760
    %v5483 = vsub.f32 %v982, %v5482
    %5484 = vmatpush.msra.mxu0 %v5483
    %v5485 = vand.u32 %v978, 4294901760
    %v5486 = vsub.f32 %v978, %v5485
    %5487 = vmatpush.msra.mxu0 %v5486
    %v5488 = vand.u32 %v974, 4294901760
    %v5489 = vsub.f32 %v974, %v5488
    %5490 = vmatpush.msra.mxu0 %v5489
    %v5491 = vand.u32 %v970, 4294901760
    %v5492 = vsub.f32 %v970, %v5491
    %5493 = vmatpush.msra.mxu0 %v5492
    %v5494 = vand.u32 %v966, 4294901760
    %v5495 = vsub.f32 %v966, %v5494
    %5496 = vmatpush.msra.mxu0 %v5495
    %v5497 = vand.u32 %v962, 4294901760
    %v5498 = vsub.f32 %v962, %v5497
    %5499 = vmatpush.msra.mxu0 %v5498
    %v5500 = vand.u32 %v958, 4294901760
    %v5501 = vsub.f32 %v958, %v5500
    %5502 = vmatpush.msra.mxu0 %v5501
    %v5503 = vand.u32 %v951, 4294901760
    %v5504 = vsub.f32 %v951, %v5503
    %5505 = vmatmul.f32.gmra.mxu0 %v5504
    %v5506 = vpop.f32.mrf.mxu0
    %v5507 = vadd.f32 %v5453, %v5506
    %5508 = vdwg.mxu0
    %v5509 = vand.u32 %v1018, 4294901760
    %5510 = vmatpush.msra.mxu0 %v5509
    %v5511 = vand.u32 %v1014, 4294901760
    %5512 = vmatpush.msra.mxu0 %v5511
    %v5513 = vand.u32 %v1010, 4294901760
    %5514 = vmatpush.msra.mxu0 %v5513
    %v5515 = vand.u32 %v1006, 4294901760
    %5516 = vmatpush.msra.mxu0 %v5515
    %v5517 = vand.u32 %v1002, 4294901760
    %5518 = vmatpush.msra.mxu0 %v5517
    %v5519 = vand.u32 %v998, 4294901760
    %5520 = vmatpush.msra.mxu0 %v5519
    %v5521 = vand.u32 %v994, 4294901760
    %5522 = vmatpush.msra.mxu0 %v5521
    %v5523 = vand.u32 %v990, 4294901760
    %5524 = vmatpush.msra.mxu0 %v5523
    %v5525 = vand.u32 %v986, 4294901760
    %5526 = vmatpush.msra.mxu0 %v5525
    %v5527 = vand.u32 %v982, 4294901760
    %5528 = vmatpush.msra.mxu0 %v5527
    %v5529 = vand.u32 %v978, 4294901760
    %5530 = vmatpush.msra.mxu0 %v5529
    %v5531 = vand.u32 %v974, 4294901760
    %5532 = vmatpush.msra.mxu0 %v5531
    %v5533 = vand.u32 %v970, 4294901760
    %5534 = vmatpush.msra.mxu0 %v5533
    %v5535 = vand.u32 %v966, 4294901760
    %5536 = vmatpush.msra.mxu0 %v5535
    %v5537 = vand.u32 %v962, 4294901760
    %5538 = vmatpush.msra.mxu0 %v5537
    %v5539 = vand.u32 %v958, 4294901760
    %5540 = vmatpush.msra.mxu0 %v5539
    %v5541 = vand.u32 %v951, 4294901760
    %v5542 = vsub.f32 %v951, %v5541
    %v5543 = vand.u32 %v5542, 4294901760
    %5544 = vmatmul.f32.gmra.mxu0 %v5543
    %v5545 = vpop.f32.mrf.mxu0
    %v5546 = vadd.f32 %v5507, %v5545
    %5547 = vdwg.mxu0
    %v5548 = vand.u32 %v1018, 4294901760
    %v5549 = vsub.f32 %v1018, %v5548
    %v5550 = vand.u32 %v5549, 4294901760
    %5551 = vmatpush.msra.mxu0 %v5550
    %v5552 = vand.u32 %v1014, 4294901760
    %v5553 = vsub.f32 %v1014, %v5552
    %v5554 = vand.u32 %v5553, 4294901760
    %5555 = vmatpush.msra.mxu0 %v5554
    %v5556 = vand.u32 %v1010, 4294901760
    %v5557 = vsub.f32 %v1010, %v5556
    %v5558 = vand.u32 %v5557, 4294901760
    %5559 = vmatpush.msra.mxu0 %v5558
    %v5560 = vand.u32 %v1006, 4294901760
    %v5561 = vsub.f32 %v1006, %v5560
    %v5562 = vand.u32 %v5561, 4294901760
    %5563 = vmatpush.msra.mxu0 %v5562
    %v5564 = vand.u32 %v1002, 4294901760
    %v5565 = vsub.f32 %v1002, %v5564
    %v5566 = vand.u32 %v5565, 4294901760
    %5567 = vmatpush.msra.mxu0 %v5566
    %v5568 = vand.u32 %v998, 4294901760
    %v5569 = vsub.f32 %v998, %v5568
    %v5570 = vand.u32 %v5569, 4294901760
    %5571 = vmatpush.msra.mxu0 %v5570
    %v5572 = vand.u32 %v994, 4294901760
    %v5573 = vsub.f32 %v994, %v5572
    %v5574 = vand.u32 %v5573, 4294901760
    %5575 = vmatpush.msra.mxu0 %v5574
    %v5576 = vand.u32 %v990, 4294901760
    %v5577 = vsub.f32 %v990, %v5576
    %v5578 = vand.u32 %v5577, 4294901760
    %5579 = vmatpush.msra.mxu0 %v5578
    %v5580 = vand.u32 %v986, 4294901760
    %v5581 = vsub.f32 %v986, %v5580
    %v5582 = vand.u32 %v5581, 4294901760
    %5583 = vmatpush.msra.mxu0 %v5582
    %v5584 = vand.u32 %v982, 4294901760
    %v5585 = vsub.f32 %v982, %v5584
    %v5586 = vand.u32 %v5585, 4294901760
    %5587 = vmatpush.msra.mxu0 %v5586
    %v5588 = vand.u32 %v978, 4294901760
    %v5589 = vsub.f32 %v978, %v5588
    %v5590 = vand.u32 %v5589, 4294901760
    %5591 = vmatpush.msra.mxu0 %v5590
    %v5592 = vand.u32 %v974, 4294901760
    %v5593 = vsub.f32 %v974, %v5592
    %v5594 = vand.u32 %v5593, 4294901760
    %5595 = vmatpush.msra.mxu0 %v5594
    %v5596 = vand.u32 %v970, 4294901760
    %v5597 = vsub.f32 %v970, %v5596
    %v5598 = vand.u32 %v5597, 4294901760
    %5599 = vmatpush.msra.mxu0 %v5598
    %v5600 = vand.u32 %v966, 4294901760
    %v5601 = vsub.f32 %v966, %v5600
    %v5602 = vand.u32 %v5601, 4294901760
    %5603 = vmatpush.msra.mxu0 %v5602
    %v5604 = vand.u32 %v962, 4294901760
    %v5605 = vsub.f32 %v962, %v5604
    %v5606 = vand.u32 %v5605, 4294901760
    %5607 = vmatpush.msra.mxu0 %v5606
    %v5608 = vand.u32 %v958, 4294901760
    %v5609 = vsub.f32 %v958, %v5608
    %v5610 = vand.u32 %v5609, 4294901760
    %5611 = vmatpush.msra.mxu0 %v5610
    %v5612 = vand.u32 %v951, 4294901760
    %5613 = vmatmul.f32.gmra.mxu0 %v5612
    %v5614 = vpop.f32.mrf.mxu0
    %v5615 = vadd.f32 %v5546, %v5614
    %5616 = vdwg.mxu0
    %v5617 = vand.u32 %v1018, 4294901760
    %5618 = vmatpush.msra.mxu0 %v5617
    %v5619 = vand.u32 %v1014, 4294901760
    %5620 = vmatpush.msra.mxu0 %v5619
    %v5621 = vand.u32 %v1010, 4294901760
    %5622 = vmatpush.msra.mxu0 %v5621
    %v5623 = vand.u32 %v1006, 4294901760
    %5624 = vmatpush.msra.mxu0 %v5623
    %v5625 = vand.u32 %v1002, 4294901760
    %5626 = vmatpush.msra.mxu0 %v5625
    %v5627 = vand.u32 %v998, 4294901760
    %5628 = vmatpush.msra.mxu0 %v5627
    %v5629 = vand.u32 %v994, 4294901760
    %5630 = vmatpush.msra.mxu0 %v5629
    %v5631 = vand.u32 %v990, 4294901760
    %5632 = vmatpush.msra.mxu0 %v5631
    %v5633 = vand.u32 %v986, 4294901760
    %5634 = vmatpush.msra.mxu0 %v5633
    %v5635 = vand.u32 %v982, 4294901760
    %5636 = vmatpush.msra.mxu0 %v5635
    %v5637 = vand.u32 %v978, 4294901760
    %5638 = vmatpush.msra.mxu0 %v5637
    %v5639 = vand.u32 %v974, 4294901760
    %5640 = vmatpush.msra.mxu0 %v5639
    %v5641 = vand.u32 %v970, 4294901760
    %5642 = vmatpush.msra.mxu0 %v5641
    %v5643 = vand.u32 %v966, 4294901760
    %5644 = vmatpush.msra.mxu0 %v5643
    %v5645 = vand.u32 %v962, 4294901760
    %5646 = vmatpush.msra.mxu0 %v5645
    %v5647 = vand.u32 %v958, 4294901760
    %5648 = vmatpush.msra.mxu0 %v5647
    %v5649 = vand.u32 %v951, 4294901760
    %5650 = vmatmul.f32.gmra.mxu0 %v5649
    %v5651 = vpop.f32.mrf.mxu0
    %v5652 = vadd.f32 %v5615, %v5651
    %5653 = vdwg.mxu0
    %v5654 = vand.u32 %v1082, 4294901760
    %5655 = vmatpush.msra.mxu0 %v5654
    %v5656 = vand.u32 %v1078, 4294901760
    %5657 = vmatpush.msra.mxu0 %v5656
    %v5658 = vand.u32 %v1074, 4294901760
    %5659 = vmatpush.msra.mxu0 %v5658
    %v5660 = vand.u32 %v1070, 4294901760
    %5661 = vmatpush.msra.mxu0 %v5660
    %v5662 = vand.u32 %v1066, 4294901760
    %5663 = vmatpush.msra.mxu0 %v5662
    %v5664 = vand.u32 %v1062, 4294901760
    %5665 = vmatpush.msra.mxu0 %v5664
    %v5666 = vand.u32 %v1058, 4294901760
    %5667 = vmatpush.msra.mxu0 %v5666
    %v5668 = vand.u32 %v1054, 4294901760
    %5669 = vmatpush.msra.mxu0 %v5668
    %v5670 = vand.u32 %v1050, 4294901760
    %5671 = vmatpush.msra.mxu0 %v5670
    %v5672 = vand.u32 %v1046, 4294901760
    %5673 = vmatpush.msra.mxu0 %v5672
    %v5674 = vand.u32 %v1042, 4294901760
    %5675 = vmatpush.msra.mxu0 %v5674
    %v5676 = vand.u32 %v1038, 4294901760
    %5677 = vmatpush.msra.mxu0 %v5676
    %v5678 = vand.u32 %v1034, 4294901760
    %5679 = vmatpush.msra.mxu0 %v5678
    %v5680 = vand.u32 %v1030, 4294901760
    %5681 = vmatpush.msra.mxu0 %v5680
    %v5682 = vand.u32 %v1026, 4294901760
    %5683 = vmatpush.msra.mxu0 %v5682
    %v5684 = vand.u32 %v1022, 4294901760
    %5685 = vmatpush.msra.mxu0 %v5684
    %v5686 = vand.u32 %v952, 4294901760
    %v5687 = vsub.f32 %v952, %v5686
    %v5688 = vand.u32 %v5687, 4294901760
    %v5689 = vsub.f32 %v5687, %v5688
    %v5690 = vand.u32 %v5689, 4294901760
    %5691 = vmatmul.f32.gmra.mxu0 %v5690
    %v5692 = vpop.f32.mrf.mxu0
    %v5693 = vadd.f32 %v5652, %v5692
    %5694 = vdwg.mxu0
    %v5695 = vand.u32 %v1082, 4294901760
    %v5696 = vsub.f32 %v1082, %v5695
    %v5697 = vand.u32 %v5696, 4294901760
    %v5698 = vsub.f32 %v5696, %v5697
    %v5699 = vand.u32 %v5698, 4294901760
    %5700 = vmatpush.msra.mxu0 %v5699
    %v5701 = vand.u32 %v1078, 4294901760
    %v5702 = vsub.f32 %v1078, %v5701
    %v5703 = vand.u32 %v5702, 4294901760
    %v5704 = vsub.f32 %v5702, %v5703
    %v5705 = vand.u32 %v5704, 4294901760
    %5706 = vmatpush.msra.mxu0 %v5705
    %v5707 = vand.u32 %v1074, 4294901760
    %v5708 = vsub.f32 %v1074, %v5707
    %v5709 = vand.u32 %v5708, 4294901760
    %v5710 = vsub.f32 %v5708, %v5709
    %v5711 = vand.u32 %v5710, 4294901760
    %5712 = vmatpush.msra.mxu0 %v5711
    %v5713 = vand.u32 %v1070, 4294901760
    %v5714 = vsub.f32 %v1070, %v5713
    %v5715 = vand.u32 %v5714, 4294901760
    %v5716 = vsub.f32 %v5714, %v5715
    %v5717 = vand.u32 %v5716, 4294901760
    %5718 = vmatpush.msra.mxu0 %v5717
    %v5719 = vand.u32 %v1066, 4294901760
    %v5720 = vsub.f32 %v1066, %v5719
    %v5721 = vand.u32 %v5720, 4294901760
    %v5722 = vsub.f32 %v5720, %v5721
    %v5723 = vand.u32 %v5722, 4294901760
    %5724 = vmatpush.msra.mxu0 %v5723
    %v5725 = vand.u32 %v1062, 4294901760
    %v5726 = vsub.f32 %v1062, %v5725
    %v5727 = vand.u32 %v5726, 4294901760
    %v5728 = vsub.f32 %v5726, %v5727
    %v5729 = vand.u32 %v5728, 4294901760
    %5730 = vmatpush.msra.mxu0 %v5729
    %v5731 = vand.u32 %v1058, 4294901760
    %v5732 = vsub.f32 %v1058, %v5731
    %v5733 = vand.u32 %v5732, 4294901760
    %v5734 = vsub.f32 %v5732, %v5733
    %v5735 = vand.u32 %v5734, 4294901760
    %5736 = vmatpush.msra.mxu0 %v5735
    %v5737 = vand.u32 %v1054, 4294901760
    %v5738 = vsub.f32 %v1054, %v5737
    %v5739 = vand.u32 %v5738, 4294901760
    %v5740 = vsub.f32 %v5738, %v5739
    %v5741 = vand.u32 %v5740, 4294901760
    %5742 = vmatpush.msra.mxu0 %v5741
    %v5743 = vand.u32 %v1050, 4294901760
    %v5744 = vsub.f32 %v1050, %v5743
    %v5745 = vand.u32 %v5744, 4294901760
    %v5746 = vsub.f32 %v5744, %v5745
    %v5747 = vand.u32 %v5746, 4294901760
    %5748 = vmatpush.msra.mxu0 %v5747
    %v5749 = vand.u32 %v1046, 4294901760
    %v5750 = vsub.f32 %v1046, %v5749
    %v5751 = vand.u32 %v5750, 4294901760
    %v5752 = vsub.f32 %v5750, %v5751
    %v5753 = vand.u32 %v5752, 4294901760
    %5754 = vmatpush.msra.mxu0 %v5753
    %v5755 = vand.u32 %v1042, 4294901760
    %v5756 = vsub.f32 %v1042, %v5755
    %v5757 = vand.u32 %v5756, 4294901760
    %v5758 = vsub.f32 %v5756, %v5757
    %v5759 = vand.u32 %v5758, 4294901760
    %5760 = vmatpush.msra.mxu0 %v5759
    %v5761 = vand.u32 %v1038, 4294901760
    %v5762 = vsub.f32 %v1038, %v5761
    %v5763 = vand.u32 %v5762, 4294901760
    %v5764 = vsub.f32 %v5762, %v5763
    %v5765 = vand.u32 %v5764, 4294901760
    %5766 = vmatpush.msra.mxu0 %v5765
    %v5767 = vand.u32 %v1034, 4294901760
    %v5768 = vsub.f32 %v1034, %v5767
    %v5769 = vand.u32 %v5768, 4294901760
    %v5770 = vsub.f32 %v5768, %v5769
    %v5771 = vand.u32 %v5770, 4294901760
    %5772 = vmatpush.msra.mxu0 %v5771
    %v5773 = vand.u32 %v1030, 4294901760
    %v5774 = vsub.f32 %v1030, %v5773
    %v5775 = vand.u32 %v5774, 4294901760
    %v5776 = vsub.f32 %v5774, %v5775
    %v5777 = vand.u32 %v5776, 4294901760
    %5778 = vmatpush.msra.mxu0 %v5777
    %v5779 = vand.u32 %v1026, 4294901760
    %v5780 = vsub.f32 %v1026, %v5779
    %v5781 = vand.u32 %v5780, 4294901760
    %v5782 = vsub.f32 %v5780, %v5781
    %v5783 = vand.u32 %v5782, 4294901760
    %5784 = vmatpush.msra.mxu0 %v5783
    %v5785 = vand.u32 %v1022, 4294901760
    %v5786 = vsub.f32 %v1022, %v5785
    %v5787 = vand.u32 %v5786, 4294901760
    %v5788 = vsub.f32 %v5786, %v5787
    %v5789 = vand.u32 %v5788, 4294901760
    %5790 = vmatpush.msra.mxu0 %v5789
    %v5791 = vand.u32 %v952, 4294901760
    %5792 = vmatmul.f32.gmra.mxu0 %v5791
    %v5793 = vpop.f32.mrf.mxu0
    %v5794 = vadd.f32 %v5693, %v5793
    %5795 = vdwg.mxu0
    %v5796 = vand.u32 %v1082, 4294901760
    %v5797 = vsub.f32 %v1082, %v5796
    %5798 = vmatpush.msra.mxu0 %v5797
    %v5799 = vand.u32 %v1078, 4294901760
    %v5800 = vsub.f32 %v1078, %v5799
    %5801 = vmatpush.msra.mxu0 %v5800
    %v5802 = vand.u32 %v1074, 4294901760
    %v5803 = vsub.f32 %v1074, %v5802
    %5804 = vmatpush.msra.mxu0 %v5803
    %v5805 = vand.u32 %v1070, 4294901760
    %v5806 = vsub.f32 %v1070, %v5805
    %5807 = vmatpush.msra.mxu0 %v5806
    %v5808 = vand.u32 %v1066, 4294901760
    %v5809 = vsub.f32 %v1066, %v5808
    %5810 = vmatpush.msra.mxu0 %v5809
    %v5811 = vand.u32 %v1062, 4294901760
    %v5812 = vsub.f32 %v1062, %v5811
    %5813 = vmatpush.msra.mxu0 %v5812
    %v5814 = vand.u32 %v1058, 4294901760
    %v5815 = vsub.f32 %v1058, %v5814
    %5816 = vmatpush.msra.mxu0 %v5815
    %v5817 = vand.u32 %v1054, 4294901760
    %v5818 = vsub.f32 %v1054, %v5817
    %5819 = vmatpush.msra.mxu0 %v5818
    %v5820 = vand.u32 %v1050, 4294901760
    %v5821 = vsub.f32 %v1050, %v5820
    %5822 = vmatpush.msra.mxu0 %v5821
    %v5823 = vand.u32 %v1046, 4294901760
    %v5824 = vsub.f32 %v1046, %v5823
    %5825 = vmatpush.msra.mxu0 %v5824
    %v5826 = vand.u32 %v1042, 4294901760
    %v5827 = vsub.f32 %v1042, %v5826
    %5828 = vmatpush.msra.mxu0 %v5827
    %v5829 = vand.u32 %v1038, 4294901760
    %v5830 = vsub.f32 %v1038, %v5829
    %5831 = vmatpush.msra.mxu0 %v5830
    %v5832 = vand.u32 %v1034, 4294901760
    %v5833 = vsub.f32 %v1034, %v5832
    %5834 = vmatpush.msra.mxu0 %v5833
    %v5835 = vand.u32 %v1030, 4294901760
    %v5836 = vsub.f32 %v1030, %v5835
    %5837 = vmatpush.msra.mxu0 %v5836
    %v5838 = vand.u32 %v1026, 4294901760
    %v5839 = vsub.f32 %v1026, %v5838
    %5840 = vmatpush.msra.mxu0 %v5839
    %v5841 = vand.u32 %v1022, 4294901760
    %v5842 = vsub.f32 %v1022, %v5841
    %5843 = vmatpush.msra.mxu0 %v5842
    %v5844 = vand.u32 %v952, 4294901760
    %v5845 = vsub.f32 %v952, %v5844
    %5846 = vmatmul.f32.gmra.mxu0 %v5845
    %v5847 = vpop.f32.mrf.mxu0
    %v5848 = vadd.f32 %v5794, %v5847
    %5849 = vdwg.mxu0
    %v5850 = vand.u32 %v1082, 4294901760
    %5851 = vmatpush.msra.mxu0 %v5850
    %v5852 = vand.u32 %v1078, 4294901760
    %5853 = vmatpush.msra.mxu0 %v5852
    %v5854 = vand.u32 %v1074, 4294901760
    %5855 = vmatpush.msra.mxu0 %v5854
    %v5856 = vand.u32 %v1070, 4294901760
    %5857 = vmatpush.msra.mxu0 %v5856
    %v5858 = vand.u32 %v1066, 4294901760
    %5859 = vmatpush.msra.mxu0 %v5858
    %v5860 = vand.u32 %v1062, 4294901760
    %5861 = vmatpush.msra.mxu0 %v5860
    %v5862 = vand.u32 %v1058, 4294901760
    %5863 = vmatpush.msra.mxu0 %v5862
    %v5864 = vand.u32 %v1054, 4294901760
    %5865 = vmatpush.msra.mxu0 %v5864
    %v5866 = vand.u32 %v1050, 4294901760
    %5867 = vmatpush.msra.mxu0 %v5866
    %v5868 = vand.u32 %v1046, 4294901760
    %5869 = vmatpush.msra.mxu0 %v5868
    %v5870 = vand.u32 %v1042, 4294901760
    %5871 = vmatpush.msra.mxu0 %v5870
    %v5872 = vand.u32 %v1038, 4294901760
    %5873 = vmatpush.msra.mxu0 %v5872
    %v5874 = vand.u32 %v1034, 4294901760
    %5875 = vmatpush.msra.mxu0 %v5874
    %v5876 = vand.u32 %v1030, 4294901760
    %5877 = vmatpush.msra.mxu0 %v5876
    %v5878 = vand.u32 %v1026, 4294901760
    %5879 = vmatpush.msra.mxu0 %v5878
    %v5880 = vand.u32 %v1022, 4294901760
    %5881 = vmatpush.msra.mxu0 %v5880
    %v5882 = vand.u32 %v952, 4294901760
    %v5883 = vsub.f32 %v952, %v5882
    %v5884 = vand.u32 %v5883, 4294901760
    %5885 = vmatmul.f32.gmra.mxu0 %v5884
    %v5886 = vpop.f32.mrf.mxu0
    %v5887 = vadd.f32 %v5848, %v5886
    %5888 = vdwg.mxu0
    %v5889 = vand.u32 %v1082, 4294901760
    %v5890 = vsub.f32 %v1082, %v5889
    %v5891 = vand.u32 %v5890, 4294901760
    %5892 = vmatpush.msra.mxu0 %v5891
    %v5893 = vand.u32 %v1078, 4294901760
    %v5894 = vsub.f32 %v1078, %v5893
    %v5895 = vand.u32 %v5894, 4294901760
    %5896 = vmatpush.msra.mxu0 %v5895
    %v5897 = vand.u32 %v1074, 4294901760
    %v5898 = vsub.f32 %v1074, %v5897
    %v5899 = vand.u32 %v5898, 4294901760
    %5900 = vmatpush.msra.mxu0 %v5899
    %v5901 = vand.u32 %v1070, 4294901760
    %v5902 = vsub.f32 %v1070, %v5901
    %v5903 = vand.u32 %v5902, 4294901760
    %5904 = vmatpush.msra.mxu0 %v5903
    %v5905 = vand.u32 %v1066, 4294901760
    %v5906 = vsub.f32 %v1066, %v5905
    %v5907 = vand.u32 %v5906, 4294901760
    %5908 = vmatpush.msra.mxu0 %v5907
    %v5909 = vand.u32 %v1062, 4294901760
    %v5910 = vsub.f32 %v1062, %v5909
    %v5911 = vand.u32 %v5910, 4294901760
    %5912 = vmatpush.msra.mxu0 %v5911
    %v5913 = vand.u32 %v1058, 4294901760
    %v5914 = vsub.f32 %v1058, %v5913
    %v5915 = vand.u32 %v5914, 4294901760
    %5916 = vmatpush.msra.mxu0 %v5915
    %v5917 = vand.u32 %v1054, 4294901760
    %v5918 = vsub.f32 %v1054, %v5917
    %v5919 = vand.u32 %v5918, 4294901760
    %5920 = vmatpush.msra.mxu0 %v5919
    %v5921 = vand.u32 %v1050, 4294901760
    %v5922 = vsub.f32 %v1050, %v5921
    %v5923 = vand.u32 %v5922, 4294901760
    %5924 = vmatpush.msra.mxu0 %v5923
    %v5925 = vand.u32 %v1046, 4294901760
    %v5926 = vsub.f32 %v1046, %v5925
    %v5927 = vand.u32 %v5926, 4294901760
    %5928 = vmatpush.msra.mxu0 %v5927
    %v5929 = vand.u32 %v1042, 4294901760
    %v5930 = vsub.f32 %v1042, %v5929
    %v5931 = vand.u32 %v5930, 4294901760
    %5932 = vmatpush.msra.mxu0 %v5931
    %v5933 = vand.u32 %v1038, 4294901760
    %v5934 = vsub.f32 %v1038, %v5933
    %v5935 = vand.u32 %v5934, 4294901760
    %5936 = vmatpush.msra.mxu0 %v5935
    %v5937 = vand.u32 %v1034, 4294901760
    %v5938 = vsub.f32 %v1034, %v5937
    %v5939 = vand.u32 %v5938, 4294901760
    %5940 = vmatpush.msra.mxu0 %v5939
    %v5941 = vand.u32 %v1030, 4294901760
    %v5942 = vsub.f32 %v1030, %v5941
    %v5943 = vand.u32 %v5942, 4294901760
    %5944 = vmatpush.msra.mxu0 %v5943
    %v5945 = vand.u32 %v1026, 4294901760
    %v5946 = vsub.f32 %v1026, %v5945
    %v5947 = vand.u32 %v5946, 4294901760
    %5948 = vmatpush.msra.mxu0 %v5947
    %v5949 = vand.u32 %v1022, 4294901760
    %v5950 = vsub.f32 %v1022, %v5949
    %v5951 = vand.u32 %v5950, 4294901760
    %5952 = vmatpush.msra.mxu0 %v5951
    %v5953 = vand.u32 %v952, 4294901760
    %5954 = vmatmul.f32.gmra.mxu0 %v5953
    %v5955 = vpop.f32.mrf.mxu0
    %v5956 = vadd.f32 %v5887, %v5955
    %5957 = vdwg.mxu0
    %v5958 = vand.u32 %v1082, 4294901760
    %5959 = vmatpush.msra.mxu0 %v5958
    %v5960 = vand.u32 %v1078, 4294901760
    %5961 = vmatpush.msra.mxu0 %v5960
    %v5962 = vand.u32 %v1074, 4294901760
    %5963 = vmatpush.msra.mxu0 %v5962
    %v5964 = vand.u32 %v1070, 4294901760
    %5965 = vmatpush.msra.mxu0 %v5964
    %v5966 = vand.u32 %v1066, 4294901760
    %5967 = vmatpush.msra.mxu0 %v5966
    %v5968 = vand.u32 %v1062, 4294901760
    %5969 = vmatpush.msra.mxu0 %v5968
    %v5970 = vand.u32 %v1058, 4294901760
    %5971 = vmatpush.msra.mxu0 %v5970
    %v5972 = vand.u32 %v1054, 4294901760
    %5973 = vmatpush.msra.mxu0 %v5972
    %v5974 = vand.u32 %v1050, 4294901760
    %5975 = vmatpush.msra.mxu0 %v5974
    %v5976 = vand.u32 %v1046, 4294901760
    %5977 = vmatpush.msra.mxu0 %v5976
    %v5978 = vand.u32 %v1042, 4294901760
    %5979 = vmatpush.msra.mxu0 %v5978
    %v5980 = vand.u32 %v1038, 4294901760
    %5981 = vmatpush.msra.mxu0 %v5980
    %v5982 = vand.u32 %v1034, 4294901760
    %5983 = vmatpush.msra.mxu0 %v5982
    %v5984 = vand.u32 %v1030, 4294901760
    %5985 = vmatpush.msra.mxu0 %v5984
    %v5986 = vand.u32 %v1026, 4294901760
    %5987 = vmatpush.msra.mxu0 %v5986
    %v5988 = vand.u32 %v1022, 4294901760
    %5989 = vmatpush.msra.mxu0 %v5988
    %v5990 = vand.u32 %v952, 4294901760
    %5991 = vmatmul.f32.gmra.mxu0 %v5990
    %v5992 = vpop.f32.mrf.mxu0
    %v5993 = vadd.f32 %v5956, %v5992
    %5994 = vdwg.mxu0
    %v5995 = vand.u32 %v1146, 4294901760
    %5996 = vmatpush.msra.mxu0 %v5995
    %v5997 = vand.u32 %v1142, 4294901760
    %5998 = vmatpush.msra.mxu0 %v5997
    %v5999 = vand.u32 %v1138, 4294901760
    %6000 = vmatpush.msra.mxu0 %v5999
    %v6001 = vand.u32 %v1134, 4294901760
    %6002 = vmatpush.msra.mxu0 %v6001
    %v6003 = vand.u32 %v1130, 4294901760
    %6004 = vmatpush.msra.mxu0 %v6003
    %v6005 = vand.u32 %v1126, 4294901760
    %6006 = vmatpush.msra.mxu0 %v6005
    %v6007 = vand.u32 %v1122, 4294901760
    %6008 = vmatpush.msra.mxu0 %v6007
    %v6009 = vand.u32 %v1118, 4294901760
    %6010 = vmatpush.msra.mxu0 %v6009
    %v6011 = vand.u32 %v1114, 4294901760
    %6012 = vmatpush.msra.mxu0 %v6011
    %v6013 = vand.u32 %v1110, 4294901760
    %6014 = vmatpush.msra.mxu0 %v6013
    %v6015 = vand.u32 %v1106, 4294901760
    %6016 = vmatpush.msra.mxu0 %v6015
    %v6017 = vand.u32 %v1102, 4294901760
    %6018 = vmatpush.msra.mxu0 %v6017
    %v6019 = vand.u32 %v1098, 4294901760
    %6020 = vmatpush.msra.mxu0 %v6019
    %v6021 = vand.u32 %v1094, 4294901760
    %6022 = vmatpush.msra.mxu0 %v6021
    %v6023 = vand.u32 %v1090, 4294901760
    %6024 = vmatpush.msra.mxu0 %v6023
    %v6025 = vand.u32 %v1086, 4294901760
    %6026 = vmatpush.msra.mxu0 %v6025
    %v6027 = vand.u32 %v953, 4294901760
    %v6028 = vsub.f32 %v953, %v6027
    %v6029 = vand.u32 %v6028, 4294901760
    %v6030 = vsub.f32 %v6028, %v6029
    %v6031 = vand.u32 %v6030, 4294901760
    %6032 = vmatmul.f32.gmra.mxu0 %v6031
    %v6033 = vpop.f32.mrf.mxu0
    %v6034 = vadd.f32 %v5993, %v6033
    %6035 = vdwg.mxu0
    %v6036 = vand.u32 %v1146, 4294901760
    %v6037 = vsub.f32 %v1146, %v6036
    %v6038 = vand.u32 %v6037, 4294901760
    %v6039 = vsub.f32 %v6037, %v6038
    %v6040 = vand.u32 %v6039, 4294901760
    %6041 = vmatpush.msra.mxu0 %v6040
    %v6042 = vand.u32 %v1142, 4294901760
    %v6043 = vsub.f32 %v1142, %v6042
    %v6044 = vand.u32 %v6043, 4294901760
    %v6045 = vsub.f32 %v6043, %v6044
    %v6046 = vand.u32 %v6045, 4294901760
    %6047 = vmatpush.msra.mxu0 %v6046
    %v6048 = vand.u32 %v1138, 4294901760
    %v6049 = vsub.f32 %v1138, %v6048
    %v6050 = vand.u32 %v6049, 4294901760
    %v6051 = vsub.f32 %v6049, %v6050
    %v6052 = vand.u32 %v6051, 4294901760
    %6053 = vmatpush.msra.mxu0 %v6052
    %v6054 = vand.u32 %v1134, 4294901760
    %v6055 = vsub.f32 %v1134, %v6054
    %v6056 = vand.u32 %v6055, 4294901760
    %v6057 = vsub.f32 %v6055, %v6056
    %v6058 = vand.u32 %v6057, 4294901760
    %6059 = vmatpush.msra.mxu0 %v6058
    %v6060 = vand.u32 %v1130, 4294901760
    %v6061 = vsub.f32 %v1130, %v6060
    %v6062 = vand.u32 %v6061, 4294901760
    %v6063 = vsub.f32 %v6061, %v6062
    %v6064 = vand.u32 %v6063, 4294901760
    %6065 = vmatpush.msra.mxu0 %v6064
    %v6066 = vand.u32 %v1126, 4294901760
    %v6067 = vsub.f32 %v1126, %v6066
    %v6068 = vand.u32 %v6067, 4294901760
    %v6069 = vsub.f32 %v6067, %v6068
    %v6070 = vand.u32 %v6069, 4294901760
    %6071 = vmatpush.msra.mxu0 %v6070
    %v6072 = vand.u32 %v1122, 4294901760
    %v6073 = vsub.f32 %v1122, %v6072
    %v6074 = vand.u32 %v6073, 4294901760
    %v6075 = vsub.f32 %v6073, %v6074
    %v6076 = vand.u32 %v6075, 4294901760
    %6077 = vmatpush.msra.mxu0 %v6076
    %v6078 = vand.u32 %v1118, 4294901760
    %v6079 = vsub.f32 %v1118, %v6078
    %v6080 = vand.u32 %v6079, 4294901760
    %v6081 = vsub.f32 %v6079, %v6080
    %v6082 = vand.u32 %v6081, 4294901760
    %6083 = vmatpush.msra.mxu0 %v6082
    %v6084 = vand.u32 %v1114, 4294901760
    %v6085 = vsub.f32 %v1114, %v6084
    %v6086 = vand.u32 %v6085, 4294901760
    %v6087 = vsub.f32 %v6085, %v6086
    %v6088 = vand.u32 %v6087, 4294901760
    %6089 = vmatpush.msra.mxu0 %v6088
    %v6090 = vand.u32 %v1110, 4294901760
    %v6091 = vsub.f32 %v1110, %v6090
    %v6092 = vand.u32 %v6091, 4294901760
    %v6093 = vsub.f32 %v6091, %v6092
    %v6094 = vand.u32 %v6093, 4294901760
    %6095 = vmatpush.msra.mxu0 %v6094
    %v6096 = vand.u32 %v1106, 4294901760
    %v6097 = vsub.f32 %v1106, %v6096
    %v6098 = vand.u32 %v6097, 4294901760
    %v6099 = vsub.f32 %v6097, %v6098
    %v6100 = vand.u32 %v6099, 4294901760
    %6101 = vmatpush.msra.mxu0 %v6100
    %v6102 = vand.u32 %v1102, 4294901760
    %v6103 = vsub.f32 %v1102, %v6102
    %v6104 = vand.u32 %v6103, 4294901760
    %v6105 = vsub.f32 %v6103, %v6104
    %v6106 = vand.u32 %v6105, 4294901760
    %6107 = vmatpush.msra.mxu0 %v6106
    %v6108 = vand.u32 %v1098, 4294901760
    %v6109 = vsub.f32 %v1098, %v6108
    %v6110 = vand.u32 %v6109, 4294901760
    %v6111 = vsub.f32 %v6109, %v6110
    %v6112 = vand.u32 %v6111, 4294901760
    %6113 = vmatpush.msra.mxu0 %v6112
    %v6114 = vand.u32 %v1094, 4294901760
    %v6115 = vsub.f32 %v1094, %v6114
    %v6116 = vand.u32 %v6115, 4294901760
    %v6117 = vsub.f32 %v6115, %v6116
    %v6118 = vand.u32 %v6117, 4294901760
    %6119 = vmatpush.msra.mxu0 %v6118
    %v6120 = vand.u32 %v1090, 4294901760
    %v6121 = vsub.f32 %v1090, %v6120
    %v6122 = vand.u32 %v6121, 4294901760
    %v6123 = vsub.f32 %v6121, %v6122
    %v6124 = vand.u32 %v6123, 4294901760
    %6125 = vmatpush.msra.mxu0 %v6124
    %v6126 = vand.u32 %v1086, 4294901760
    %v6127 = vsub.f32 %v1086, %v6126
    %v6128 = vand.u32 %v6127, 4294901760
    %v6129 = vsub.f32 %v6127, %v6128
    %v6130 = vand.u32 %v6129, 4294901760
    %6131 = vmatpush.msra.mxu0 %v6130
    %v6132 = vand.u32 %v953, 4294901760
    %6133 = vmatmul.f32.gmra.mxu0 %v6132
    %v6134 = vpop.f32.mrf.mxu0
    %v6135 = vadd.f32 %v6034, %v6134
    %6136 = vdwg.mxu0
    %v6137 = vand.u32 %v1146, 4294901760
    %v6138 = vsub.f32 %v1146, %v6137
    %6139 = vmatpush.msra.mxu0 %v6138
    %v6140 = vand.u32 %v1142, 4294901760
    %v6141 = vsub.f32 %v1142, %v6140
    %6142 = vmatpush.msra.mxu0 %v6141
    %v6143 = vand.u32 %v1138, 4294901760
    %v6144 = vsub.f32 %v1138, %v6143
    %6145 = vmatpush.msra.mxu0 %v6144
    %v6146 = vand.u32 %v1134, 4294901760
    %v6147 = vsub.f32 %v1134, %v6146
    %6148 = vmatpush.msra.mxu0 %v6147
    %v6149 = vand.u32 %v1130, 4294901760
    %v6150 = vsub.f32 %v1130, %v6149
    %6151 = vmatpush.msra.mxu0 %v6150
    %v6152 = vand.u32 %v1126, 4294901760
    %v6153 = vsub.f32 %v1126, %v6152
    %6154 = vmatpush.msra.mxu0 %v6153
    %v6155 = vand.u32 %v1122, 4294901760
    %v6156 = vsub.f32 %v1122, %v6155
    %6157 = vmatpush.msra.mxu0 %v6156
    %v6158 = vand.u32 %v1118, 4294901760
    %v6159 = vsub.f32 %v1118, %v6158
    %6160 = vmatpush.msra.mxu0 %v6159
    %v6161 = vand.u32 %v1114, 4294901760
    %v6162 = vsub.f32 %v1114, %v6161
    %6163 = vmatpush.msra.mxu0 %v6162
    %v6164 = vand.u32 %v1110, 4294901760
    %v6165 = vsub.f32 %v1110, %v6164
    %6166 = vmatpush.msra.mxu0 %v6165
    %v6167 = vand.u32 %v1106, 4294901760
    %v6168 = vsub.f32 %v1106, %v6167
    %6169 = vmatpush.msra.mxu0 %v6168
    %v6170 = vand.u32 %v1102, 4294901760
    %v6171 = vsub.f32 %v1102, %v6170
    %6172 = vmatpush.msra.mxu0 %v6171
    %v6173 = vand.u32 %v1098, 4294901760
    %v6174 = vsub.f32 %v1098, %v6173
    %6175 = vmatpush.msra.mxu0 %v6174
    %v6176 = vand.u32 %v1094, 4294901760
    %v6177 = vsub.f32 %v1094, %v6176
    %6178 = vmatpush.msra.mxu0 %v6177
    %v6179 = vand.u32 %v1090, 4294901760
    %v6180 = vsub.f32 %v1090, %v6179
    %6181 = vmatpush.msra.mxu0 %v6180
    %v6182 = vand.u32 %v1086, 4294901760
    %v6183 = vsub.f32 %v1086, %v6182
    %6184 = vmatpush.msra.mxu0 %v6183
    %v6185 = vand.u32 %v953, 4294901760
    %v6186 = vsub.f32 %v953, %v6185
    %6187 = vmatmul.f32.gmra.mxu0 %v6186
    %v6188 = vpop.f32.mrf.mxu0
    %v6189 = vadd.f32 %v6135, %v6188
    %6190 = vdwg.mxu0
    %v6191 = vand.u32 %v1146, 4294901760
    %6192 = vmatpush.msra.mxu0 %v6191
    %v6193 = vand.u32 %v1142, 4294901760
    %6194 = vmatpush.msra.mxu0 %v6193
    %v6195 = vand.u32 %v1138, 4294901760
    %6196 = vmatpush.msra.mxu0 %v6195
    %v6197 = vand.u32 %v1134, 4294901760
    %6198 = vmatpush.msra.mxu0 %v6197
    %v6199 = vand.u32 %v1130, 4294901760
    %6200 = vmatpush.msra.mxu0 %v6199
    %v6201 = vand.u32 %v1126, 4294901760
    %6202 = vmatpush.msra.mxu0 %v6201
    %v6203 = vand.u32 %v1122, 4294901760
    %6204 = vmatpush.msra.mxu0 %v6203
    %v6205 = vand.u32 %v1118, 4294901760
    %6206 = vmatpush.msra.mxu0 %v6205
    %v6207 = vand.u32 %v1114, 4294901760
    %6208 = vmatpush.msra.mxu0 %v6207
    %v6209 = vand.u32 %v1110, 4294901760
    %6210 = vmatpush.msra.mxu0 %v6209
    %v6211 = vand.u32 %v1106, 4294901760
    %6212 = vmatpush.msra.mxu0 %v6211
    %v6213 = vand.u32 %v1102, 4294901760
    %6214 = vmatpush.msra.mxu0 %v6213
    %v6215 = vand.u32 %v1098, 4294901760
    %6216 = vmatpush.msra.mxu0 %v6215
    %v6217 = vand.u32 %v1094, 4294901760
    %6218 = vmatpush.msra.mxu0 %v6217
    %v6219 = vand.u32 %v1090, 4294901760
    %6220 = vmatpush.msra.mxu0 %v6219
    %v6221 = vand.u32 %v1086, 4294901760
    %6222 = vmatpush.msra.mxu0 %v6221
    %v6223 = vand.u32 %v953, 4294901760
    %v6224 = vsub.f32 %v953, %v6223
    %v6225 = vand.u32 %v6224, 4294901760
    %6226 = vmatmul.f32.gmra.mxu0 %v6225
    %v6227 = vpop.f32.mrf.mxu0
    %v6228 = vadd.f32 %v6189, %v6227
    %6229 = vdwg.mxu0
    %v6230 = vand.u32 %v1146, 4294901760
    %v6231 = vsub.f32 %v1146, %v6230
    %v6232 = vand.u32 %v6231, 4294901760
    %6233 = vmatpush.msra.mxu0 %v6232
    %v6234 = vand.u32 %v1142, 4294901760
    %v6235 = vsub.f32 %v1142, %v6234
    %v6236 = vand.u32 %v6235, 4294901760
    %6237 = vmatpush.msra.mxu0 %v6236
    %v6238 = vand.u32 %v1138, 4294901760
    %v6239 = vsub.f32 %v1138, %v6238
    %v6240 = vand.u32 %v6239, 4294901760
    %6241 = vmatpush.msra.mxu0 %v6240
    %v6242 = vand.u32 %v1134, 4294901760
    %v6243 = vsub.f32 %v1134, %v6242
    %v6244 = vand.u32 %v6243, 4294901760
    %6245 = vmatpush.msra.mxu0 %v6244
    %v6246 = vand.u32 %v1130, 4294901760
    %v6247 = vsub.f32 %v1130, %v6246
    %v6248 = vand.u32 %v6247, 4294901760
    %6249 = vmatpush.msra.mxu0 %v6248
    %v6250 = vand.u32 %v1126, 4294901760
    %v6251 = vsub.f32 %v1126, %v6250
    %v6252 = vand.u32 %v6251, 4294901760
    %6253 = vmatpush.msra.mxu0 %v6252
    %v6254 = vand.u32 %v1122, 4294901760
    %v6255 = vsub.f32 %v1122, %v6254
    %v6256 = vand.u32 %v6255, 4294901760
    %6257 = vmatpush.msra.mxu0 %v6256
    %v6258 = vand.u32 %v1118, 4294901760
    %v6259 = vsub.f32 %v1118, %v6258
    %v6260 = vand.u32 %v6259, 4294901760
    %6261 = vmatpush.msra.mxu0 %v6260
    %v6262 = vand.u32 %v1114, 4294901760
    %v6263 = vsub.f32 %v1114, %v6262
    %v6264 = vand.u32 %v6263, 4294901760
    %6265 = vmatpush.msra.mxu0 %v6264
    %v6266 = vand.u32 %v1110, 4294901760
    %v6267 = vsub.f32 %v1110, %v6266
    %v6268 = vand.u32 %v6267, 4294901760
    %6269 = vmatpush.msra.mxu0 %v6268
    %v6270 = vand.u32 %v1106, 4294901760
    %v6271 = vsub.f32 %v1106, %v6270
    %v6272 = vand.u32 %v6271, 4294901760
    %6273 = vmatpush.msra.mxu0 %v6272
    %v6274 = vand.u32 %v1102, 4294901760
    %v6275 = vsub.f32 %v1102, %v6274
    %v6276 = vand.u32 %v6275, 4294901760
    %6277 = vmatpush.msra.mxu0 %v6276
    %v6278 = vand.u32 %v1098, 4294901760
    %v6279 = vsub.f32 %v1098, %v6278
    %v6280 = vand.u32 %v6279, 4294901760
    %6281 = vmatpush.msra.mxu0 %v6280
    %v6282 = vand.u32 %v1094, 4294901760
    %v6283 = vsub.f32 %v1094, %v6282
    %v6284 = vand.u32 %v6283, 4294901760
    %6285 = vmatpush.msra.mxu0 %v6284
    %v6286 = vand.u32 %v1090, 4294901760
    %v6287 = vsub.f32 %v1090, %v6286
    %v6288 = vand.u32 %v6287, 4294901760
    %6289 = vmatpush.msra.mxu0 %v6288
    %v6290 = vand.u32 %v1086, 4294901760
    %v6291 = vsub.f32 %v1086, %v6290
    %v6292 = vand.u32 %v6291, 4294901760
    %6293 = vmatpush.msra.mxu0 %v6292
    %v6294 = vand.u32 %v953, 4294901760
    %6295 = vmatmul.f32.gmra.mxu0 %v6294
    %v6296 = vpop.f32.mrf.mxu0
    %v6297 = vadd.f32 %v6228, %v6296
    %6298 = vdwg.mxu0
    %v6299 = vand.u32 %v1146, 4294901760
    %6300 = vmatpush.msra.mxu0 %v6299
    %v6301 = vand.u32 %v1142, 4294901760
    %6302 = vmatpush.msra.mxu0 %v6301
    %v6303 = vand.u32 %v1138, 4294901760
    %6304 = vmatpush.msra.mxu0 %v6303
    %v6305 = vand.u32 %v1134, 4294901760
    %6306 = vmatpush.msra.mxu0 %v6305
    %v6307 = vand.u32 %v1130, 4294901760
    %6308 = vmatpush.msra.mxu0 %v6307
    %v6309 = vand.u32 %v1126, 4294901760
    %6310 = vmatpush.msra.mxu0 %v6309
    %v6311 = vand.u32 %v1122, 4294901760
    %6312 = vmatpush.msra.mxu0 %v6311
    %v6313 = vand.u32 %v1118, 4294901760
    %6314 = vmatpush.msra.mxu0 %v6313
    %v6315 = vand.u32 %v1114, 4294901760
    %6316 = vmatpush.msra.mxu0 %v6315
    %v6317 = vand.u32 %v1110, 4294901760
    %6318 = vmatpush.msra.mxu0 %v6317
    %v6319 = vand.u32 %v1106, 4294901760
    %6320 = vmatpush.msra.mxu0 %v6319
    %v6321 = vand.u32 %v1102, 4294901760
    %6322 = vmatpush.msra.mxu0 %v6321
    %v6323 = vand.u32 %v1098, 4294901760
    %6324 = vmatpush.msra.mxu0 %v6323
    %v6325 = vand.u32 %v1094, 4294901760
    %6326 = vmatpush.msra.mxu0 %v6325
    %v6327 = vand.u32 %v1090, 4294901760
    %6328 = vmatpush.msra.mxu0 %v6327
    %v6329 = vand.u32 %v1086, 4294901760
    %6330 = vmatpush.msra.mxu0 %v6329
    %v6331 = vand.u32 %v953, 4294901760
    %6332 = vmatmul.f32.gmra.mxu0 %v6331
    %v6333 = vpop.f32.mrf.mxu0
    %v6334 = vadd.f32 %v6297, %v6333
    %6335 = vdwg.mxu0
    %v6336 = vand.u32 %v1210, 4294901760
    %6337 = vmatpush.msra.mxu0 %v6336
    %v6338 = vand.u32 %v1206, 4294901760
    %6339 = vmatpush.msra.mxu0 %v6338
    %v6340 = vand.u32 %v1202, 4294901760
    %6341 = vmatpush.msra.mxu0 %v6340
    %v6342 = vand.u32 %v1198, 4294901760
    %6343 = vmatpush.msra.mxu0 %v6342
    %v6344 = vand.u32 %v1194, 4294901760
    %6345 = vmatpush.msra.mxu0 %v6344
    %v6346 = vand.u32 %v1190, 4294901760
    %6347 = vmatpush.msra.mxu0 %v6346
    %v6348 = vand.u32 %v1186, 4294901760
    %6349 = vmatpush.msra.mxu0 %v6348
    %v6350 = vand.u32 %v1182, 4294901760
    %6351 = vmatpush.msra.mxu0 %v6350
    %v6352 = vand.u32 %v1178, 4294901760
    %6353 = vmatpush.msra.mxu0 %v6352
    %v6354 = vand.u32 %v1174, 4294901760
    %6355 = vmatpush.msra.mxu0 %v6354
    %v6356 = vand.u32 %v1170, 4294901760
    %6357 = vmatpush.msra.mxu0 %v6356
    %v6358 = vand.u32 %v1166, 4294901760
    %6359 = vmatpush.msra.mxu0 %v6358
    %v6360 = vand.u32 %v1162, 4294901760
    %6361 = vmatpush.msra.mxu0 %v6360
    %v6362 = vand.u32 %v1158, 4294901760
    %6363 = vmatpush.msra.mxu0 %v6362
    %v6364 = vand.u32 %v1154, 4294901760
    %6365 = vmatpush.msra.mxu0 %v6364
    %v6366 = vand.u32 %v1150, 4294901760
    %6367 = vmatpush.msra.mxu0 %v6366
    %v6368 = vand.u32 %v954, 4294901760
    %v6369 = vsub.f32 %v954, %v6368
    %v6370 = vand.u32 %v6369, 4294901760
    %v6371 = vsub.f32 %v6369, %v6370
    %v6372 = vand.u32 %v6371, 4294901760
    %6373 = vmatmul.f32.gmra.mxu0 %v6372
    %v6374 = vpop.f32.mrf.mxu0
    %v6375 = vadd.f32 %v6334, %v6374
    %6376 = vdwg.mxu0
    %v6377 = vand.u32 %v1210, 4294901760
    %v6378 = vsub.f32 %v1210, %v6377
    %v6379 = vand.u32 %v6378, 4294901760
    %v6380 = vsub.f32 %v6378, %v6379
    %v6381 = vand.u32 %v6380, 4294901760
    %6382 = vmatpush.msra.mxu0 %v6381
    %v6383 = vand.u32 %v1206, 4294901760
    %v6384 = vsub.f32 %v1206, %v6383
    %v6385 = vand.u32 %v6384, 4294901760
    %v6386 = vsub.f32 %v6384, %v6385
    %v6387 = vand.u32 %v6386, 4294901760
    %6388 = vmatpush.msra.mxu0 %v6387
    %v6389 = vand.u32 %v1202, 4294901760
    %v6390 = vsub.f32 %v1202, %v6389
    %v6391 = vand.u32 %v6390, 4294901760
    %v6392 = vsub.f32 %v6390, %v6391
    %v6393 = vand.u32 %v6392, 4294901760
    %6394 = vmatpush.msra.mxu0 %v6393
    %v6395 = vand.u32 %v1198, 4294901760
    %v6396 = vsub.f32 %v1198, %v6395
    %v6397 = vand.u32 %v6396, 4294901760
    %v6398 = vsub.f32 %v6396, %v6397
    %v6399 = vand.u32 %v6398, 4294901760
    %6400 = vmatpush.msra.mxu0 %v6399
    %v6401 = vand.u32 %v1194, 4294901760
    %v6402 = vsub.f32 %v1194, %v6401
    %v6403 = vand.u32 %v6402, 4294901760
    %v6404 = vsub.f32 %v6402, %v6403
    %v6405 = vand.u32 %v6404, 4294901760
    %6406 = vmatpush.msra.mxu0 %v6405
    %v6407 = vand.u32 %v1190, 4294901760
    %v6408 = vsub.f32 %v1190, %v6407
    %v6409 = vand.u32 %v6408, 4294901760
    %v6410 = vsub.f32 %v6408, %v6409
    %v6411 = vand.u32 %v6410, 4294901760
    %6412 = vmatpush.msra.mxu0 %v6411
    %v6413 = vand.u32 %v1186, 4294901760
    %v6414 = vsub.f32 %v1186, %v6413
    %v6415 = vand.u32 %v6414, 4294901760
    %v6416 = vsub.f32 %v6414, %v6415
    %v6417 = vand.u32 %v6416, 4294901760
    %6418 = vmatpush.msra.mxu0 %v6417
    %v6419 = vand.u32 %v1182, 4294901760
    %v6420 = vsub.f32 %v1182, %v6419
    %v6421 = vand.u32 %v6420, 4294901760
    %v6422 = vsub.f32 %v6420, %v6421
    %v6423 = vand.u32 %v6422, 4294901760
    %6424 = vmatpush.msra.mxu0 %v6423
    %v6425 = vand.u32 %v1178, 4294901760
    %v6426 = vsub.f32 %v1178, %v6425
    %v6427 = vand.u32 %v6426, 4294901760
    %v6428 = vsub.f32 %v6426, %v6427
    %v6429 = vand.u32 %v6428, 4294901760
    %6430 = vmatpush.msra.mxu0 %v6429
    %v6431 = vand.u32 %v1174, 4294901760
    %v6432 = vsub.f32 %v1174, %v6431
    %v6433 = vand.u32 %v6432, 4294901760
    %v6434 = vsub.f32 %v6432, %v6433
    %v6435 = vand.u32 %v6434, 4294901760
    %6436 = vmatpush.msra.mxu0 %v6435
    %v6437 = vand.u32 %v1170, 4294901760
    %v6438 = vsub.f32 %v1170, %v6437
    %v6439 = vand.u32 %v6438, 4294901760
    %v6440 = vsub.f32 %v6438, %v6439
    %v6441 = vand.u32 %v6440, 4294901760
    %6442 = vmatpush.msra.mxu0 %v6441
    %v6443 = vand.u32 %v1166, 4294901760
    %v6444 = vsub.f32 %v1166, %v6443
    %v6445 = vand.u32 %v6444, 4294901760
    %v6446 = vsub.f32 %v6444, %v6445
    %v6447 = vand.u32 %v6446, 4294901760
    %6448 = vmatpush.msra.mxu0 %v6447
    %v6449 = vand.u32 %v1162, 4294901760
    %v6450 = vsub.f32 %v1162, %v6449
    %v6451 = vand.u32 %v6450, 4294901760
    %v6452 = vsub.f32 %v6450, %v6451
    %v6453 = vand.u32 %v6452, 4294901760
    %6454 = vmatpush.msra.mxu0 %v6453
    %v6455 = vand.u32 %v1158, 4294901760
    %v6456 = vsub.f32 %v1158, %v6455
    %v6457 = vand.u32 %v6456, 4294901760
    %v6458 = vsub.f32 %v6456, %v6457
    %v6459 = vand.u32 %v6458, 4294901760
    %6460 = vmatpush.msra.mxu0 %v6459
    %v6461 = vand.u32 %v1154, 4294901760
    %v6462 = vsub.f32 %v1154, %v6461
    %v6463 = vand.u32 %v6462, 4294901760
    %v6464 = vsub.f32 %v6462, %v6463
    %v6465 = vand.u32 %v6464, 4294901760
    %6466 = vmatpush.msra.mxu0 %v6465
    %v6467 = vand.u32 %v1150, 4294901760
    %v6468 = vsub.f32 %v1150, %v6467
    %v6469 = vand.u32 %v6468, 4294901760
    %v6470 = vsub.f32 %v6468, %v6469
    %v6471 = vand.u32 %v6470, 4294901760
    %6472 = vmatpush.msra.mxu0 %v6471
    %v6473 = vand.u32 %v954, 4294901760
    %6474 = vmatmul.f32.gmra.mxu0 %v6473
    %v6475 = vpop.f32.mrf.mxu0
    %v6476 = vadd.f32 %v6375, %v6475
    %6477 = vdwg.mxu0
    %v6478 = vand.u32 %v1210, 4294901760
    %v6479 = vsub.f32 %v1210, %v6478
    %6480 = vmatpush.msra.mxu0 %v6479
    %v6481 = vand.u32 %v1206, 4294901760
    %v6482 = vsub.f32 %v1206, %v6481
    %6483 = vmatpush.msra.mxu0 %v6482
    %v6484 = vand.u32 %v1202, 4294901760
    %v6485 = vsub.f32 %v1202, %v6484
    %6486 = vmatpush.msra.mxu0 %v6485
    %v6487 = vand.u32 %v1198, 4294901760
    %v6488 = vsub.f32 %v1198, %v6487
    %6489 = vmatpush.msra.mxu0 %v6488
    %v6490 = vand.u32 %v1194, 4294901760
    %v6491 = vsub.f32 %v1194, %v6490
    %6492 = vmatpush.msra.mxu0 %v6491
    %v6493 = vand.u32 %v1190, 4294901760
    %v6494 = vsub.f32 %v1190, %v6493
    %6495 = vmatpush.msra.mxu0 %v6494
    %v6496 = vand.u32 %v1186, 4294901760
    %v6497 = vsub.f32 %v1186, %v6496
    %6498 = vmatpush.msra.mxu0 %v6497
    %v6499 = vand.u32 %v1182, 4294901760
    %v6500 = vsub.f32 %v1182, %v6499
    %6501 = vmatpush.msra.mxu0 %v6500
    %v6502 = vand.u32 %v1178, 4294901760
    %v6503 = vsub.f32 %v1178, %v6502
    %6504 = vmatpush.msra.mxu0 %v6503
    %v6505 = vand.u32 %v1174, 4294901760
    %v6506 = vsub.f32 %v1174, %v6505
    %6507 = vmatpush.msra.mxu0 %v6506
    %v6508 = vand.u32 %v1170, 4294901760
    %v6509 = vsub.f32 %v1170, %v6508
    %6510 = vmatpush.msra.mxu0 %v6509
    %v6511 = vand.u32 %v1166, 4294901760
    %v6512 = vsub.f32 %v1166, %v6511
    %6513 = vmatpush.msra.mxu0 %v6512
    %v6514 = vand.u32 %v1162, 4294901760
    %v6515 = vsub.f32 %v1162, %v6514
    %6516 = vmatpush.msra.mxu0 %v6515
    %v6517 = vand.u32 %v1158, 4294901760
    %v6518 = vsub.f32 %v1158, %v6517
    %6519 = vmatpush.msra.mxu0 %v6518
    %v6520 = vand.u32 %v1154, 4294901760
    %v6521 = vsub.f32 %v1154, %v6520
    %6522 = vmatpush.msra.mxu0 %v6521
    %v6523 = vand.u32 %v1150, 4294901760
    %v6524 = vsub.f32 %v1150, %v6523
    %6525 = vmatpush.msra.mxu0 %v6524
    %v6526 = vand.u32 %v954, 4294901760
    %v6527 = vsub.f32 %v954, %v6526
    %6528 = vmatmul.f32.gmra.mxu0 %v6527
    %v6529 = vpop.f32.mrf.mxu0
    %v6530 = vadd.f32 %v6476, %v6529
    %6531 = vdwg.mxu0
    %v6532 = vand.u32 %v1210, 4294901760
    %6533 = vmatpush.msra.mxu0 %v6532
    %v6534 = vand.u32 %v1206, 4294901760
    %6535 = vmatpush.msra.mxu0 %v6534
    %v6536 = vand.u32 %v1202, 4294901760
    %6537 = vmatpush.msra.mxu0 %v6536
    %v6538 = vand.u32 %v1198, 4294901760
    %6539 = vmatpush.msra.mxu0 %v6538
    %v6540 = vand.u32 %v1194, 4294901760
    %6541 = vmatpush.msra.mxu0 %v6540
    %v6542 = vand.u32 %v1190, 4294901760
    %6543 = vmatpush.msra.mxu0 %v6542
    %v6544 = vand.u32 %v1186, 4294901760
    %6545 = vmatpush.msra.mxu0 %v6544
    %v6546 = vand.u32 %v1182, 4294901760
    %6547 = vmatpush.msra.mxu0 %v6546
    %v6548 = vand.u32 %v1178, 4294901760
    %6549 = vmatpush.msra.mxu0 %v6548
    %v6550 = vand.u32 %v1174, 4294901760
    %6551 = vmatpush.msra.mxu0 %v6550
    %v6552 = vand.u32 %v1170, 4294901760
    %6553 = vmatpush.msra.mxu0 %v6552
    %v6554 = vand.u32 %v1166, 4294901760
    %6555 = vmatpush.msra.mxu0 %v6554
    %v6556 = vand.u32 %v1162, 4294901760
    %6557 = vmatpush.msra.mxu0 %v6556
    %v6558 = vand.u32 %v1158, 4294901760
    %6559 = vmatpush.msra.mxu0 %v6558
    %v6560 = vand.u32 %v1154, 4294901760
    %6561 = vmatpush.msra.mxu0 %v6560
    %v6562 = vand.u32 %v1150, 4294901760
    %6563 = vmatpush.msra.mxu0 %v6562
    %v6564 = vand.u32 %v954, 4294901760
    %v6565 = vsub.f32 %v954, %v6564
    %v6566 = vand.u32 %v6565, 4294901760
    %6567 = vmatmul.f32.gmra.mxu0 %v6566
    %v6568 = vpop.f32.mrf.mxu0
    %v6569 = vadd.f32 %v6530, %v6568
    %6570 = vdwg.mxu0
    %v6571 = vand.u32 %v1210, 4294901760
    %v6572 = vsub.f32 %v1210, %v6571
    %v6573 = vand.u32 %v6572, 4294901760
    %6574 = vmatpush.msra.mxu0 %v6573
    %v6575 = vand.u32 %v1206, 4294901760
    %v6576 = vsub.f32 %v1206, %v6575
    %v6577 = vand.u32 %v6576, 4294901760
    %6578 = vmatpush.msra.mxu0 %v6577
    %v6579 = vand.u32 %v1202, 4294901760
    %v6580 = vsub.f32 %v1202, %v6579
    %v6581 = vand.u32 %v6580, 4294901760
    %6582 = vmatpush.msra.mxu0 %v6581
    %v6583 = vand.u32 %v1198, 4294901760
    %v6584 = vsub.f32 %v1198, %v6583
    %v6585 = vand.u32 %v6584, 4294901760
    %6586 = vmatpush.msra.mxu0 %v6585
    %v6587 = vand.u32 %v1194, 4294901760
    %v6588 = vsub.f32 %v1194, %v6587
    %v6589 = vand.u32 %v6588, 4294901760
    %6590 = vmatpush.msra.mxu0 %v6589
    %v6591 = vand.u32 %v1190, 4294901760
    %v6592 = vsub.f32 %v1190, %v6591
    %v6593 = vand.u32 %v6592, 4294901760
    %6594 = vmatpush.msra.mxu0 %v6593
    %v6595 = vand.u32 %v1186, 4294901760
    %v6596 = vsub.f32 %v1186, %v6595
    %v6597 = vand.u32 %v6596, 4294901760
    %6598 = vmatpush.msra.mxu0 %v6597
    %v6599 = vand.u32 %v1182, 4294901760
    %v6600 = vsub.f32 %v1182, %v6599
    %v6601 = vand.u32 %v6600, 4294901760
    %6602 = vmatpush.msra.mxu0 %v6601
    %v6603 = vand.u32 %v1178, 4294901760
    %v6604 = vsub.f32 %v1178, %v6603
    %v6605 = vand.u32 %v6604, 4294901760
    %6606 = vmatpush.msra.mxu0 %v6605
    %v6607 = vand.u32 %v1174, 4294901760
    %v6608 = vsub.f32 %v1174, %v6607
    %v6609 = vand.u32 %v6608, 4294901760
    %6610 = vmatpush.msra.mxu0 %v6609
    %v6611 = vand.u32 %v1170, 4294901760
    %v6612 = vsub.f32 %v1170, %v6611
    %v6613 = vand.u32 %v6612, 4294901760
    %6614 = vmatpush.msra.mxu0 %v6613
    %v6615 = vand.u32 %v1166, 4294901760
    %v6616 = vsub.f32 %v1166, %v6615
    %v6617 = vand.u32 %v6616, 4294901760
    %6618 = vmatpush.msra.mxu0 %v6617
    %v6619 = vand.u32 %v1162, 4294901760
    %v6620 = vsub.f32 %v1162, %v6619
    %v6621 = vand.u32 %v6620, 4294901760
    %6622 = vmatpush.msra.mxu0 %v6621
    %v6623 = vand.u32 %v1158, 4294901760
    %v6624 = vsub.f32 %v1158, %v6623
    %v6625 = vand.u32 %v6624, 4294901760
    %6626 = vmatpush.msra.mxu0 %v6625
    %v6627 = vand.u32 %v1154, 4294901760
    %v6628 = vsub.f32 %v1154, %v6627
    %v6629 = vand.u32 %v6628, 4294901760
    %6630 = vmatpush.msra.mxu0 %v6629
    %v6631 = vand.u32 %v1150, 4294901760
    %v6632 = vsub.f32 %v1150, %v6631
    %v6633 = vand.u32 %v6632, 4294901760
    %6634 = vmatpush.msra.mxu0 %v6633
    %v6635 = vand.u32 %v954, 4294901760
    %6636 = vmatmul.f32.gmra.mxu0 %v6635
    %v6637 = vpop.f32.mrf.mxu0
    %v6638 = vadd.f32 %v6569, %v6637
    %6639 = vdwg.mxu0
    %v6640 = vand.u32 %v1210, 4294901760
    %6641 = vmatpush.msra.mxu0 %v6640
    %v6642 = vand.u32 %v1206, 4294901760
    %6643 = vmatpush.msra.mxu0 %v6642
    %v6644 = vand.u32 %v1202, 4294901760
    %6645 = vmatpush.msra.mxu0 %v6644
    %v6646 = vand.u32 %v1198, 4294901760
    %6647 = vmatpush.msra.mxu0 %v6646
    %v6648 = vand.u32 %v1194, 4294901760
    %6649 = vmatpush.msra.mxu0 %v6648
    %v6650 = vand.u32 %v1190, 4294901760
    %6651 = vmatpush.msra.mxu0 %v6650
    %v6652 = vand.u32 %v1186, 4294901760
    %6653 = vmatpush.msra.mxu0 %v6652
    %v6654 = vand.u32 %v1182, 4294901760
    %6655 = vmatpush.msra.mxu0 %v6654
    %v6656 = vand.u32 %v1178, 4294901760
    %6657 = vmatpush.msra.mxu0 %v6656
    %v6658 = vand.u32 %v1174, 4294901760
    %6659 = vmatpush.msra.mxu0 %v6658
    %v6660 = vand.u32 %v1170, 4294901760
    %6661 = vmatpush.msra.mxu0 %v6660
    %v6662 = vand.u32 %v1166, 4294901760
    %6663 = vmatpush.msra.mxu0 %v6662
    %v6664 = vand.u32 %v1162, 4294901760
    %6665 = vmatpush.msra.mxu0 %v6664
    %v6666 = vand.u32 %v1158, 4294901760
    %6667 = vmatpush.msra.mxu0 %v6666
    %v6668 = vand.u32 %v1154, 4294901760
    %6669 = vmatpush.msra.mxu0 %v6668
    %v6670 = vand.u32 %v1150, 4294901760
    %6671 = vmatpush.msra.mxu0 %v6670
    %v6672 = vand.u32 %v954, 4294901760
    %6673 = vmatmul.f32.gmra.mxu0 %v6672
    %v6674 = vpop.f32.mrf.mxu0
    %v6675 = vadd.f32 %v6638, %v6674
    %6676 = vdwg.mxu0
    %vm6677 = vcmp.ge.f32.partialorder %v2583, 0.0
    %vm6678 = vcmp.ge.f32.partialorder %v3947, 0.0
    %vm6679 = vcmp.ge.f32.partialorder %v5311, 0.0
    %vm6680 = vcmp.ge.f32.partialorder %v6675, 0.0
    %v6681 = vmul.f32 %v2583, 0.01
    %v6682 = vmul.f32 %v3947, 0.01
    %v6683 = vmul.f32 %v5311, 0.01
    %v6684 = vmul.f32 %v6675, 0.01
    %v6685 = vsel %vm6677, %v2583, %v6681
    %v6686 = vsel %vm6678, %v3947, %v6682
    %v6687 = vsel %vm6679, %v5311, %v6683
    %v6688 = vsel %vm6680, %v6675, %v6684
    %v6689 = vmul.f32 %v6685, 100.0
    %v6690 = vmul.f32 %v6686, 100.0
    %v6691 = vmul.f32 %v6687, 100.0
    %v6692 = vmul.f32 %v6688, 100.0
    %v6693 = vand.u32 2147483647, %v6689
    %vm6694 = vcmp.le.f32.partialorder %v6693, 0.7853982
    %vm6695 = vcmp.lt.s32.totalorder %v6689, 0
    %v6696 = vand.u32 %v6689, 2139095040
    %v6697 = vshrl.u32 %v6696, 23
    %v6698 = vsub.s32 %v6697, 127
    %v6699 = vand.u32 2147483647, %v6689
    %v6700 = vand.u32 %v6699, 8388607
    %v6701 = vor.u32 %v6700, 8388608
    %v6702 = vsub.s32 0, %v6701
    %v6703 = vadd.s32 %v6698, 1
    %vm6704 = vcmp.gt.s32.totalorder %v6703, 0
    %v6705 = vsel %vm6704, %v6703, 0
    %v6706 = vshrl.u32 %v6705, 5
    %v6707 = vand.u32 %v6705, 31
    %v6708 = vsub.s32 32, %v6707
    %v6709 = vshrl.u32 683565275, %v6708
    %v6710 = vshll.u32 683565275, %v6707
    %v6711 = vshrl.u32 2475754826, %v6708
    %v6712 = vor.u32 %v6710, %v6711
    %v6713 = vshll.u32 2475754826, %v6707
    %v6714 = vshrl.u32 2131351028, %v6708
    %v6715 = vor.u32 %v6713, %v6714
    %v6716 = vshll.u32 2131351028, %v6707
    %v6717 = vshrl.u32 2102212464, %v6708
    %v6718 = vor.u32 %v6716, %v6717
    %v6719 = vshll.u32 2102212464, %v6707
    %v6720 = vshrl.u32 920167782, %v6708
    %v6721 = vor.u32 %v6719, %v6720
    %v6722 = vshll.u32 920167782, %v6707
    %v6723 = vshrl.u32 1326507024, %v6708
    %v6724 = vor.u32 %v6722, %v6723
    %vm6725 = vcmp.lt.s32.totalorder %v6706, 1
    %vm6726 = vcmp.lt.s32.totalorder %v6706, 2
    %vm6727 = vcmp.lt.s32.totalorder %v6706, 3
    %vm6728 = vcmp.lt.s32.totalorder %v6706, 4
    %v6729 = vsel %vm6725, %v6709, %v6712
    %v6730 = vsel %vm6728, %v6718, 2102212464
    %v6731 = vsel %vm6727, %v6715, %v6730
    %v6732 = vsel %vm6726, %v6729, %v6731
    %v6733 = vsel %vm6725, %v6712, %v6715
    %v6734 = vsel %vm6728, %v6721, 920167782
    %v6735 = vsel %vm6727, %v6718, %v6734
    %v6736 = vsel %vm6726, %v6733, %v6735
    %v6737 = vsel %vm6725, %v6715, %v6718
    %v6738 = vsel %vm6728, %v6724, 1326507024
    %v6739 = vsel %vm6727, %v6721, %v6738
    %v6740 = vsel %vm6726, %v6737, %v6739
    %v6741 = vshll.u32 %v6701, 8
    %v6742 = vand.u32 %v6741, 65535
    %v6743 = vshrl.u32 %v6741, 16
    %v6744 = vand.u32 %v6740, 65535
    %v6745 = vshrl.u32 %v6740, 16
    %v6746 = vmul.u32 %v6742, %v6744
    %v6747 = vmul.u32 %v6742, %v6745
    %v6748 = vmul.u32 %v6743, %v6744
    %v6749 = vmul.u32 %v6743, %v6745
    %v6750 = vshll.u32 %v6747, 16
    %v6751 = vshrl.u32 %v6747, 16
    %v6752 = vshll.u32 %v6748, 16
    %v6753 = vshrl.u32 %v6748, 16
    %vm6754 = vc.u32 %v6746, %v6750
    %v6755 = vsel %vm6754, 1, 0
    %v6756 = vadd.s32 %v6746, %v6750
    %v6757 = vadd.s32 %v6749, %v6755
    %vm6758 = vc.u32 %v6756, %v6752
    %v6759 = vsel %vm6758, 1, 0
    %v6760 = vadd.s32 %v6756, %v6752
    %v6761 = vadd.s32 %v6757, %v6759
    %v6762 = vadd.s32 %v6761, %v6751
    %v6763 = vadd.s32 %v6762, %v6753
    %v6764 = vand.u32 %v6741, 65535
    %v6765 = vshrl.u32 %v6741, 16
    %v6766 = vand.u32 %v6736, 65535
    %v6767 = vshrl.u32 %v6736, 16
    %v6768 = vmul.u32 %v6764, %v6766
    %v6769 = vmul.u32 %v6764, %v6767
    %v6770 = vmul.u32 %v6765, %v6766
    %v6771 = vmul.u32 %v6765, %v6767
    %v6772 = vshll.u32 %v6769, 16
    %v6773 = vshrl.u32 %v6769, 16
    %v6774 = vshll.u32 %v6770, 16
    %v6775 = vshrl.u32 %v6770, 16
    %vm6776 = vc.u32 %v6768, %v6772
    %v6777 = vsel %vm6776, 1, 0
    %v6778 = vadd.s32 %v6768, %v6772
    %v6779 = vadd.s32 %v6771, %v6777
    %vm6780 = vc.u32 %v6778, %v6774
    %v6781 = vsel %vm6780, 1, 0
    %v6782 = vadd.s32 %v6778, %v6774
    %v6783 = vadd.s32 %v6779, %v6781
    %v6784 = vadd.s32 %v6783, %v6773
    %v6785 = vadd.s32 %v6784, %v6775
    %v6786 = vmul.u32 %v6741, %v6732
    %v6787 = vadd.s32 %v6763, %v6782
    %vm6788 = vc.u32 %v6763, %v6782
    %v6789 = vadd.s32 %v6785, 1
    %v6790 = vsel %vm6788, %v6789, %v6785
    %v6791 = vadd.s32 %v6786, %v6790
    %v6792 = vadd.s32 %v6791, 536870912
    %v6793 = vshrl.u32 %v6792, 30
    %v6794 = vshll.u32 %v6793, 30
    %v6795 = vsub.s32 %v6791, %v6794
    %vm6796 = vcmp.lt.s32.totalorder %v6795, 0
    %v6797 = vsub.s32 0, %v6795
    %v6798 = vsel %vm6796, %v6797, %v6795
    %v6799 = vclz %v6798
    %v6800 = vsub.s32 %v6799, 2
    %vm6801 = vcmp.gt.s32.totalorder 0, %v6800
    %v6802 = vsel %vm6801, 0, %v6800
    %v6803 = vsub.s32 32, %v6802
    %v6804 = vshll.u32 %v6795, %v6802
    %v6805 = vshrl.u32 %v6787, %v6803
    %v6806 = vor.u32 %v6804, %v6805
    %v6807 = vsub.s32 4294967266, %v6802
    %v6808 = vadd.s32 %v6807, 127
    %v6809 = vshll.u32 %v6808, 23
    %v6810 = vor.u32 4788187, %v6809
    %v6811 = vand.u32 2147483647, %v6810
    %v6813 = vcvt.s32.f32 %v6806
    %v6814 = vmul.f32 %v6813, %v6811
    %v6815 = vxor.u32 %v6814, 2147483648
    %v6816 = vsel %vm6695, %v6815, %v6814
    %v6817 = vsub.s32 4, %v6793
    %v6818 = vsel %vm6695, %v6817, %v6793
    %v6819 = vsel %vm6694, %v6689, %v6816
    %v6820 = vsel %vm6694, 0, %v6818
    %v6821 = vmul.f32 %v6819, %v6819
    %v6822 = vmul.f32 %v6821, -0.001358992
    %v6823 = vadd.f32 %v6822, 0.041655596
    %v6824 = vmul.f32 %v6821, %v6823
    %v6825 = vadd.f32 %v6824, -0.4999988
    %v6826 = vmul.f32 %v6821, %v6825
    %v6827 = vadd.f32 1.0, %v6826
    %v6828 = vmul.f32 %v6819, %v6819
    %v6829 = vmul.f32 %v6828, -0.00019511016
    %v6830 = vadd.f32 %v6829, 0.008332121
    %v6831 = vmul.f32 %v6828, %v6830
    %v6832 = vadd.f32 %v6831, -0.16666654
    %v6833 = vmul.f32 %v6828, %v6832
    %v6834 = vadd.f32 %v6833, 1.0
    %v6835 = vmul.f32 %v6834, %v6819
    %vm6836 = vweird.f32 %v6689
    %v6837 = vand.u32 %v6820, 3
    %vm6838 = vcmp.lt.s32.totalorder %v6837, 2
    %vm6839 = vcmp.eq.s32.totalorder %v6837, 0
    %v6840 = vxor.u32 %v6835, 2147483648
    %v6841 = vsel %vm6839, %v6827, %v6840
    %vm6842 = vcmp.eq.s32.totalorder %v6837, 2
    %v6843 = vxor.u32 %v6827, 2147483648
    %v6844 = vsel %vm6842, %v6843, %v6835
    %v6845 = vsel %vm6838, %v6841, %v6844
    %v6846 = vsel %vm6836, nan, %v6845
    %v6847 = vand.u32 2147483647, %v6690
    %vm6848 = vcmp.le.f32.partialorder %v6847, 0.7853982
    %vm6849 = vcmp.lt.s32.totalorder %v6690, 0
    %v6850 = vand.u32 %v6690, 2139095040
    %v6851 = vshrl.u32 %v6850, 23
    %v6852 = vsub.s32 %v6851, 127
    %v6853 = vand.u32 2147483647, %v6690
    %v6854 = vand.u32 %v6853, 8388607
    %v6855 = vor.u32 %v6854, 8388608
    %v6856 = vsub.s32 0, %v6855
    %v6857 = vadd.s32 %v6852, 1
    %vm6858 = vcmp.gt.s32.totalorder %v6857, 0
    %v6859 = vsel %vm6858, %v6857, 0
    %v6860 = vshrl.u32 %v6859, 5
    %v6861 = vand.u32 %v6859, 31
    %v6862 = vsub.s32 32, %v6861
    %v6863 = vshrl.u32 683565275, %v6862
    %v6864 = vshll.u32 683565275, %v6861
    %v6865 = vshrl.u32 2475754826, %v6862
    %v6866 = vor.u32 %v6864, %v6865
    %v6867 = vshll.u32 2475754826, %v6861
    %v6868 = vshrl.u32 2131351028, %v6862
    %v6869 = vor.u32 %v6867, %v6868
    %v6870 = vshll.u32 2131351028, %v6861
    %v6871 = vshrl.u32 2102212464, %v6862
    %v6872 = vor.u32 %v6870, %v6871
    %v6873 = vshll.u32 2102212464, %v6861
    %v6874 = vshrl.u32 920167782, %v6862
    %v6875 = vor.u32 %v6873, %v6874
    %v6876 = vshll.u32 920167782, %v6861
    %v6877 = vshrl.u32 1326507024, %v6862
    %v6878 = vor.u32 %v6876, %v6877
    %vm6879 = vcmp.lt.s32.totalorder %v6860, 1
    %vm6880 = vcmp.lt.s32.totalorder %v6860, 2
    %vm6881 = vcmp.lt.s32.totalorder %v6860, 3
    %vm6882 = vcmp.lt.s32.totalorder %v6860, 4
    %v6883 = vsel %vm6879, %v6863, %v6866
    %v6884 = vsel %vm6882, %v6872, 2102212464
    %v6885 = vsel %vm6881, %v6869, %v6884
    %v6886 = vsel %vm6880, %v6883, %v6885
    %v6887 = vsel %vm6879, %v6866, %v6869
    %v6888 = vsel %vm6882, %v6875, 920167782
    %v6889 = vsel %vm6881, %v6872, %v6888
    %v6890 = vsel %vm6880, %v6887, %v6889
    %v6891 = vsel %vm6879, %v6869, %v6872
    %v6892 = vsel %vm6882, %v6878, 1326507024
    %v6893 = vsel %vm6881, %v6875, %v6892
    %v6894 = vsel %vm6880, %v6891, %v6893
    %v6895 = vshll.u32 %v6855, 8
    %v6896 = vand.u32 %v6895, 65535
    %v6897 = vshrl.u32 %v6895, 16
    %v6898 = vand.u32 %v6894, 65535
    %v6899 = vshrl.u32 %v6894, 16
    %v6900 = vmul.u32 %v6896, %v6898
    %v6901 = vmul.u32 %v6896, %v6899
    %v6902 = vmul.u32 %v6897, %v6898
    %v6903 = vmul.u32 %v6897, %v6899
    %v6904 = vshll.u32 %v6901, 16
    %v6905 = vshrl.u32 %v6901, 16
    %v6906 = vshll.u32 %v6902, 16
    %v6907 = vshrl.u32 %v6902, 16
    %vm6908 = vc.u32 %v6900, %v6904
    %v6909 = vsel %vm6908, 1, 0
    %v6910 = vadd.s32 %v6900, %v6904
    %v6911 = vadd.s32 %v6903, %v6909
    %vm6912 = vc.u32 %v6910, %v6906
    %v6913 = vsel %vm6912, 1, 0
    %v6914 = vadd.s32 %v6910, %v6906
    %v6915 = vadd.s32 %v6911, %v6913
    %v6916 = vadd.s32 %v6915, %v6905
    %v6917 = vadd.s32 %v6916, %v6907
    %v6918 = vand.u32 %v6895, 65535
    %v6919 = vshrl.u32 %v6895, 16
    %v6920 = vand.u32 %v6890, 65535
    %v6921 = vshrl.u32 %v6890, 16
    %v6922 = vmul.u32 %v6918, %v6920
    %v6923 = vmul.u32 %v6918, %v6921
    %v6924 = vmul.u32 %v6919, %v6920
    %v6925 = vmul.u32 %v6919, %v6921
    %v6926 = vshll.u32 %v6923, 16
    %v6927 = vshrl.u32 %v6923, 16
    %v6928 = vshll.u32 %v6924, 16
    %v6929 = vshrl.u32 %v6924, 16
    %vm6930 = vc.u32 %v6922, %v6926
    %v6931 = vsel %vm6930, 1, 0
    %v6932 = vadd.s32 %v6922, %v6926
    %v6933 = vadd.s32 %v6925, %v6931
    %vm6934 = vc.u32 %v6932, %v6928
    %v6935 = vsel %vm6934, 1, 0
    %v6936 = vadd.s32 %v6932, %v6928
    %v6937 = vadd.s32 %v6933, %v6935
    %v6938 = vadd.s32 %v6937, %v6927
    %v6939 = vadd.s32 %v6938, %v6929
    %v6940 = vmul.u32 %v6895, %v6886
    %v6941 = vadd.s32 %v6917, %v6936
    %vm6942 = vc.u32 %v6917, %v6936
    %v6943 = vadd.s32 %v6939, 1
    %v6944 = vsel %vm6942, %v6943, %v6939
    %v6945 = vadd.s32 %v6940, %v6944
    %v6946 = vadd.s32 %v6945, 536870912
    %v6947 = vshrl.u32 %v6946, 30
    %v6948 = vshll.u32 %v6947, 30
    %v6949 = vsub.s32 %v6945, %v6948
    %vm6950 = vcmp.lt.s32.totalorder %v6949, 0
    %v6951 = vsub.s32 0, %v6949
    %v6952 = vsel %vm6950, %v6951, %v6949
    %v6953 = vclz %v6952
    %v6954 = vsub.s32 %v6953, 2
    %vm6955 = vcmp.gt.s32.totalorder 0, %v6954
    %v6956 = vsel %vm6955, 0, %v6954
    %v6957 = vsub.s32 32, %v6956
    %v6958 = vshll.u32 %v6949, %v6956
    %v6959 = vshrl.u32 %v6941, %v6957
    %v6960 = vor.u32 %v6958, %v6959
    %v6961 = vsub.s32 4294967266, %v6956
    %v6962 = vadd.s32 %v6961, 127
    %v6963 = vshll.u32 %v6962, 23
    %v6964 = vor.u32 4788187, %v6963
    %v6965 = vand.u32 2147483647, %v6964
    %v6967 = vcvt.s32.f32 %v6960
    %v6968 = vmul.f32 %v6967, %v6965
    %v6969 = vxor.u32 %v6968, 2147483648
    %v6970 = vsel %vm6849, %v6969, %v6968
    %v6971 = vsub.s32 4, %v6947
    %v6972 = vsel %vm6849, %v6971, %v6947
    %v6973 = vsel %vm6848, %v6690, %v6970
    %v6974 = vsel %vm6848, 0, %v6972
    %v6975 = vmul.f32 %v6973, %v6973
    %v6976 = vmul.f32 %v6975, -0.001358992
    %v6977 = vadd.f32 %v6976, 0.041655596
    %v6978 = vmul.f32 %v6975, %v6977
    %v6979 = vadd.f32 %v6978, -0.4999988
    %v6980 = vmul.f32 %v6975, %v6979
    %v6981 = vadd.f32 1.0, %v6980
    %v6982 = vmul.f32 %v6973, %v6973
    %v6983 = vmul.f32 %v6982, -0.00019511016
    %v6984 = vadd.f32 %v6983, 0.008332121
    %v6985 = vmul.f32 %v6982, %v6984
    %v6986 = vadd.f32 %v6985, -0.16666654
    %v6987 = vmul.f32 %v6982, %v6986
    %v6988 = vadd.f32 %v6987, 1.0
    %v6989 = vmul.f32 %v6988, %v6973
    %vm6990 = vweird.f32 %v6690
    %v6991 = vand.u32 %v6974, 3
    %vm6992 = vcmp.lt.s32.totalorder %v6991, 2
    %vm6993 = vcmp.eq.s32.totalorder %v6991, 0
    %v6994 = vxor.u32 %v6989, 2147483648
    %v6995 = vsel %vm6993, %v6981, %v6994
    %vm6996 = vcmp.eq.s32.totalorder %v6991, 2
    %v6997 = vxor.u32 %v6981, 2147483648
    %v6998 = vsel %vm6996, %v6997, %v6989
    %v6999 = vsel %vm6992, %v6995, %v6998
    %v7000 = vsel %vm6990, nan, %v6999
    %v7001 = vand.u32 2147483647, %v6691
    %vm7002 = vcmp.le.f32.partialorder %v7001, 0.7853982
    %vm7003 = vcmp.lt.s32.totalorder %v6691, 0
    %v7004 = vand.u32 %v6691, 2139095040
    %v7005 = vshrl.u32 %v7004, 23
    %v7006 = vsub.s32 %v7005, 127
    %v7007 = vand.u32 2147483647, %v6691
    %v7008 = vand.u32 %v7007, 8388607
    %v7009 = vor.u32 %v7008, 8388608
    %v7010 = vsub.s32 0, %v7009
    %v7011 = vadd.s32 %v7006, 1
    %vm7012 = vcmp.gt.s32.totalorder %v7011, 0
    %v7013 = vsel %vm7012, %v7011, 0
    %v7014 = vshrl.u32 %v7013, 5
    %v7015 = vand.u32 %v7013, 31
    %v7016 = vsub.s32 32, %v7015
    %v7017 = vshrl.u32 683565275, %v7016
    %v7018 = vshll.u32 683565275, %v7015
    %v7019 = vshrl.u32 2475754826, %v7016
    %v7020 = vor.u32 %v7018, %v7019
    %v7021 = vshll.u32 2475754826, %v7015
    %v7022 = vshrl.u32 2131351028, %v7016
    %v7023 = vor.u32 %v7021, %v7022
    %v7024 = vshll.u32 2131351028, %v7015
    %v7025 = vshrl.u32 2102212464, %v7016
    %v7026 = vor.u32 %v7024, %v7025
    %v7027 = vshll.u32 2102212464, %v7015
    %v7028 = vshrl.u32 920167782, %v7016
    %v7029 = vor.u32 %v7027, %v7028
    %v7030 = vshll.u32 920167782, %v7015
    %v7031 = vshrl.u32 1326507024, %v7016
    %v7032 = vor.u32 %v7030, %v7031
    %vm7033 = vcmp.lt.s32.totalorder %v7014, 1
    %vm7034 = vcmp.lt.s32.totalorder %v7014, 2
    %vm7035 = vcmp.lt.s32.totalorder %v7014, 3
    %vm7036 = vcmp.lt.s32.totalorder %v7014, 4
    %v7037 = vsel %vm7033, %v7017, %v7020
    %v7038 = vsel %vm7036, %v7026, 2102212464
    %v7039 = vsel %vm7035, %v7023, %v7038
    %v7040 = vsel %vm7034, %v7037, %v7039
    %v7041 = vsel %vm7033, %v7020, %v7023
    %v7042 = vsel %vm7036, %v7029, 920167782
    %v7043 = vsel %vm7035, %v7026, %v7042
    %v7044 = vsel %vm7034, %v7041, %v7043
    %v7045 = vsel %vm7033, %v7023, %v7026
    %v7046 = vsel %vm7036, %v7032, 1326507024
    %v7047 = vsel %vm7035, %v7029, %v7046
    %v7048 = vsel %vm7034, %v7045, %v7047
    %v7049 = vshll.u32 %v7009, 8
    %v7050 = vand.u32 %v7049, 65535
    %v7051 = vshrl.u32 %v7049, 16
    %v7052 = vand.u32 %v7048, 65535
    %v7053 = vshrl.u32 %v7048, 16
    %v7054 = vmul.u32 %v7050, %v7052
    %v7055 = vmul.u32 %v7050, %v7053
    %v7056 = vmul.u32 %v7051, %v7052
    %v7057 = vmul.u32 %v7051, %v7053
    %v7058 = vshll.u32 %v7055, 16
    %v7059 = vshrl.u32 %v7055, 16
    %v7060 = vshll.u32 %v7056, 16
    %v7061 = vshrl.u32 %v7056, 16
    %vm7062 = vc.u32 %v7054, %v7058
    %v7063 = vsel %vm7062, 1, 0
    %v7064 = vadd.s32 %v7054, %v7058
    %v7065 = vadd.s32 %v7057, %v7063
    %vm7066 = vc.u32 %v7064, %v7060
    %v7067 = vsel %vm7066, 1, 0
    %v7068 = vadd.s32 %v7064, %v7060
    %v7069 = vadd.s32 %v7065, %v7067
    %v7070 = vadd.s32 %v7069, %v7059
    %v7071 = vadd.s32 %v7070, %v7061
    %v7072 = vand.u32 %v7049, 65535
    %v7073 = vshrl.u32 %v7049, 16
    %v7074 = vand.u32 %v7044, 65535
    %v7075 = vshrl.u32 %v7044, 16
    %v7076 = vmul.u32 %v7072, %v7074
    %v7077 = vmul.u32 %v7072, %v7075
    %v7078 = vmul.u32 %v7073, %v7074
    %v7079 = vmul.u32 %v7073, %v7075
    %v7080 = vshll.u32 %v7077, 16
    %v7081 = vshrl.u32 %v7077, 16
    %v7082 = vshll.u32 %v7078, 16
    %v7083 = vshrl.u32 %v7078, 16
    %vm7084 = vc.u32 %v7076, %v7080
    %v7085 = vsel %vm7084, 1, 0
    %v7086 = vadd.s32 %v7076, %v7080
    %v7087 = vadd.s32 %v7079, %v7085
    %vm7088 = vc.u32 %v7086, %v7082
    %v7089 = vsel %vm7088, 1, 0
    %v7090 = vadd.s32 %v7086, %v7082
    %v7091 = vadd.s32 %v7087, %v7089
    %v7092 = vadd.s32 %v7091, %v7081
    %v7093 = vadd.s32 %v7092, %v7083
    %v7094 = vmul.u32 %v7049, %v7040
    %v7095 = vadd.s32 %v7071, %v7090
    %vm7096 = vc.u32 %v7071, %v7090
    %v7097 = vadd.s32 %v7093, 1
    %v7098 = vsel %vm7096, %v7097, %v7093
    %v7099 = vadd.s32 %v7094, %v7098
    %v7100 = vadd.s32 %v7099, 536870912
    %v7101 = vshrl.u32 %v7100, 30
    %v7102 = vshll.u32 %v7101, 30
    %v7103 = vsub.s32 %v7099, %v7102
    %vm7104 = vcmp.lt.s32.totalorder %v7103, 0
    %v7105 = vsub.s32 0, %v7103
    %v7106 = vsel %vm7104, %v7105, %v7103
    %v7107 = vclz %v7106
    %v7108 = vsub.s32 %v7107, 2
    %vm7109 = vcmp.gt.s32.totalorder 0, %v7108
    %v7110 = vsel %vm7109, 0, %v7108
    %v7111 = vsub.s32 32, %v7110
    %v7112 = vshll.u32 %v7103, %v7110
    %v7113 = vshrl.u32 %v7095, %v7111
    %v7114 = vor.u32 %v7112, %v7113
    %v7115 = vsub.s32 4294967266, %v7110
    %v7116 = vadd.s32 %v7115, 127
    %v7117 = vshll.u32 %v7116, 23
    %v7118 = vor.u32 4788187, %v7117
    %v7119 = vand.u32 2147483647, %v7118
    %v7121 = vcvt.s32.f32 %v7114
    %v7122 = vmul.f32 %v7121, %v7119
    %v7123 = vxor.u32 %v7122, 2147483648
    %v7124 = vsel %vm7003, %v7123, %v7122
    %v7125 = vsub.s32 4, %v7101
    %v7126 = vsel %vm7003, %v7125, %v7101
    %v7127 = vsel %vm7002, %v6691, %v7124
    %v7128 = vsel %vm7002, 0, %v7126
    %v7129 = vmul.f32 %v7127, %v7127
    %v7130 = vmul.f32 %v7129, -0.001358992
    %v7131 = vadd.f32 %v7130, 0.041655596
    %v7132 = vmul.f32 %v7129, %v7131
    %v7133 = vadd.f32 %v7132, -0.4999988
    %v7134 = vmul.f32 %v7129, %v7133
    %v7135 = vadd.f32 1.0, %v7134
    %v7136 = vmul.f32 %v7127, %v7127
    %v7137 = vmul.f32 %v7136, -0.00019511016
    %v7138 = vadd.f32 %v7137, 0.008332121
    %v7139 = vmul.f32 %v7136, %v7138
    %v7140 = vadd.f32 %v7139, -0.16666654
    %v7141 = vmul.f32 %v7136, %v7140
    %v7142 = vadd.f32 %v7141, 1.0
    %v7143 = vmul.f32 %v7142, %v7127
    %vm7144 = vweird.f32 %v6691
    %v7145 = vand.u32 %v7128, 3
    %vm7146 = vcmp.lt.s32.totalorder %v7145, 2
    %vm7147 = vcmp.eq.s32.totalorder %v7145, 0
    %v7148 = vxor.u32 %v7143, 2147483648
    %v7149 = vsel %vm7147, %v7135, %v7148
    %vm7150 = vcmp.eq.s32.totalorder %v7145, 2
    %v7151 = vxor.u32 %v7135, 2147483648
    %v7152 = vsel %vm7150, %v7151, %v7143
    %v7153 = vsel %vm7146, %v7149, %v7152
    %v7154 = vsel %vm7144, nan, %v7153
    %v7155 = vand.u32 2147483647, %v6692
    %vm7156 = vcmp.le.f32.partialorder %v7155, 0.7853982
    %vm7157 = vcmp.lt.s32.totalorder %v6692, 0
    %v7158 = vand.u32 %v6692, 2139095040
    %v7159 = vshrl.u32 %v7158, 23
    %v7160 = vsub.s32 %v7159, 127
    %v7161 = vand.u32 2147483647, %v6692
    %v7162 = vand.u32 %v7161, 8388607
    %v7163 = vor.u32 %v7162, 8388608
    %v7164 = vsub.s32 0, %v7163
    %v7165 = vadd.s32 %v7160, 1
    %vm7166 = vcmp.gt.s32.totalorder %v7165, 0
    %v7167 = vsel %vm7166, %v7165, 0
    %v7168 = vshrl.u32 %v7167, 5
    %v7169 = vand.u32 %v7167, 31
    %v7170 = vsub.s32 32, %v7169
    %v7171 = vshrl.u32 683565275, %v7170
    %v7172 = vshll.u32 683565275, %v7169
    %v7173 = vshrl.u32 2475754826, %v7170
    %v7174 = vor.u32 %v7172, %v7173
    %v7175 = vshll.u32 2475754826, %v7169
    %v7176 = vshrl.u32 2131351028, %v7170
    %v7177 = vor.u32 %v7175, %v7176
    %v7178 = vshll.u32 2131351028, %v7169
    %v7179 = vshrl.u32 2102212464, %v7170
    %v7180 = vor.u32 %v7178, %v7179
    %v7181 = vshll.u32 2102212464, %v7169
    %v7182 = vshrl.u32 920167782, %v7170
    %v7183 = vor.u32 %v7181, %v7182
    %v7184 = vshll.u32 920167782, %v7169
    %v7185 = vshrl.u32 1326507024, %v7170
    %v7186 = vor.u32 %v7184, %v7185
    %vm7187 = vcmp.lt.s32.totalorder %v7168, 1
    %vm7188 = vcmp.lt.s32.totalorder %v7168, 2
    %vm7189 = vcmp.lt.s32.totalorder %v7168, 3
    %vm7190 = vcmp.lt.s32.totalorder %v7168, 4
    %v7191 = vsel %vm7187, %v7171, %v7174
    %v7192 = vsel %vm7190, %v7180, 2102212464
    %v7193 = vsel %vm7189, %v7177, %v7192
    %v7194 = vsel %vm7188, %v7191, %v7193
    %v7195 = vsel %vm7187, %v7174, %v7177
    %v7196 = vsel %vm7190, %v7183, 920167782
    %v7197 = vsel %vm7189, %v7180, %v7196
    %v7198 = vsel %vm7188, %v7195, %v7197
    %v7199 = vsel %vm7187, %v7177, %v7180
    %v7200 = vsel %vm7190, %v7186, 1326507024
    %v7201 = vsel %vm7189, %v7183, %v7200
    %v7202 = vsel %vm7188, %v7199, %v7201
    %v7203 = vshll.u32 %v7163, 8
    %v7204 = vand.u32 %v7203, 65535
    %v7205 = vshrl.u32 %v7203, 16
    %v7206 = vand.u32 %v7202, 65535
    %v7207 = vshrl.u32 %v7202, 16
    %v7208 = vmul.u32 %v7204, %v7206
    %v7209 = vmul.u32 %v7204, %v7207
    %v7210 = vmul.u32 %v7205, %v7206
    %v7211 = vmul.u32 %v7205, %v7207
    %v7212 = vshll.u32 %v7209, 16
    %v7213 = vshrl.u32 %v7209, 16
    %v7214 = vshll.u32 %v7210, 16
    %v7215 = vshrl.u32 %v7210, 16
    %vm7216 = vc.u32 %v7208, %v7212
    %v7217 = vsel %vm7216, 1, 0
    %v7218 = vadd.s32 %v7208, %v7212
    %v7219 = vadd.s32 %v7211, %v7217
    %vm7220 = vc.u32 %v7218, %v7214
    %v7221 = vsel %vm7220, 1, 0
    %v7222 = vadd.s32 %v7218, %v7214
    %v7223 = vadd.s32 %v7219, %v7221
    %v7224 = vadd.s32 %v7223, %v7213
    %v7225 = vadd.s32 %v7224, %v7215
    %v7226 = vand.u32 %v7203, 65535
    %v7227 = vshrl.u32 %v7203, 16
    %v7228 = vand.u32 %v7198, 65535
    %v7229 = vshrl.u32 %v7198, 16
    %v7230 = vmul.u32 %v7226, %v7228
    %v7231 = vmul.u32 %v7226, %v7229
    %v7232 = vmul.u32 %v7227, %v7228
    %v7233 = vmul.u32 %v7227, %v7229
    %v7234 = vshll.u32 %v7231, 16
    %v7235 = vshrl.u32 %v7231, 16
    %v7236 = vshll.u32 %v7232, 16
    %v7237 = vshrl.u32 %v7232, 16
    %vm7238 = vc.u32 %v7230, %v7234
    %v7239 = vsel %vm7238, 1, 0
    %v7240 = vadd.s32 %v7230, %v7234
    %v7241 = vadd.s32 %v7233, %v7239
    %vm7242 = vc.u32 %v7240, %v7236
    %v7243 = vsel %vm7242, 1, 0
    %v7244 = vadd.s32 %v7240, %v7236
    %v7245 = vadd.s32 %v7241, %v7243
    %v7246 = vadd.s32 %v7245, %v7235
    %v7247 = vadd.s32 %v7246, %v7237
    %v7248 = vmul.u32 %v7203, %v7194
    %v7249 = vadd.s32 %v7225, %v7244
    %vm7250 = vc.u32 %v7225, %v7244
    %v7251 = vadd.s32 %v7247, 1
    %v7252 = vsel %vm7250, %v7251, %v7247
    %v7253 = vadd.s32 %v7248, %v7252
    %v7254 = vadd.s32 %v7253, 536870912
    %v7255 = vshrl.u32 %v7254, 30
    %v7256 = vshll.u32 %v7255, 30
    %v7257 = vsub.s32 %v7253, %v7256
    %vm7258 = vcmp.lt.s32.totalorder %v7257, 0
    %v7259 = vsub.s32 0, %v7257
    %v7260 = vsel %vm7258, %v7259, %v7257
    %v7261 = vclz %v7260
    %v7262 = vsub.s32 %v7261, 2
    %vm7263 = vcmp.gt.s32.totalorder 0, %v7262
    %v7264 = vsel %vm7263, 0, %v7262
    %v7265 = vsub.s32 32, %v7264
    %v7266 = vshll.u32 %v7257, %v7264
    %v7267 = vshrl.u32 %v7249, %v7265
    %v7268 = vor.u32 %v7266, %v7267
    %v7269 = vsub.s32 4294967266, %v7264
    %v7270 = vadd.s32 %v7269, 127
    %v7271 = vshll.u32 %v7270, 23
    %v7272 = vor.u32 4788187, %v7271
    %v7273 = vand.u32 2147483647, %v7272
    %v7275 = vcvt.s32.f32 %v7268
    %v7276 = vmul.f32 %v7275, %v7273
    %v7277 = vxor.u32 %v7276, 2147483648
    %v7278 = vsel %vm7157, %v7277, %v7276
    %v7279 = vsub.s32 4, %v7255
    %v7280 = vsel %vm7157, %v7279, %v7255
    %v7281 = vsel %vm7156, %v6692, %v7278
    %v7282 = vsel %vm7156, 0, %v7280
    %v7283 = vmul.f32 %v7281, %v7281
    %v7284 = vmul.f32 %v7283, -0.001358992
    %v7285 = vadd.f32 %v7284, 0.041655596
    %v7286 = vmul.f32 %v7283, %v7285
    %v7287 = vadd.f32 %v7286, -0.4999988
    %v7288 = vmul.f32 %v7283, %v7287
    %v7289 = vadd.f32 1.0, %v7288
    %v7290 = vmul.f32 %v7281, %v7281
    %v7291 = vmul.f32 %v7290, -0.00019511016
    %v7292 = vadd.f32 %v7291, 0.008332121
    %v7293 = vmul.f32 %v7290, %v7292
    %v7294 = vadd.f32 %v7293, -0.16666654
    %v7295 = vmul.f32 %v7290, %v7294
    %v7296 = vadd.f32 %v7295, 1.0
    %v7297 = vmul.f32 %v7296, %v7281
    %vm7298 = vweird.f32 %v6692
    %v7299 = vand.u32 %v7282, 3
    %vm7300 = vcmp.lt.s32.totalorder %v7299, 2
    %vm7301 = vcmp.eq.s32.totalorder %v7299, 0
    %v7302 = vxor.u32 %v7297, 2147483648
    %v7303 = vsel %vm7301, %v7289, %v7302
    %vm7304 = vcmp.eq.s32.totalorder %v7299, 2
    %v7305 = vxor.u32 %v7289, 2147483648
    %v7306 = vsel %vm7304, %v7305, %v7297
    %v7307 = vsel %vm7300, %v7303, %v7306
    %v7308 = vsel %vm7298, nan, %v7307
    %v7309 = vpack.c.bf16 %v172, %v172
    %v7310 = vld [vmem:[#allocation11] sm:$0xff]
    %v7311 = vld [vmem:[#allocation11 + $0x8] sm:$0xff]
    %v7312 = vld [vmem:[#allocation11 + $0x10] sm:$0xff]
    %v7313 = vld [vmem:[#allocation11 + $0x18] sm:$0xff]
    %v7314 = vld [vmem:[#allocation11 + $0x20] sm:$0xff]
    %v7315 = vld [vmem:[#allocation11 + $0x28] sm:$0xff]
    %v7316 = vld [vmem:[#allocation11 + $0x30] sm:$0xff]
    %v7317 = vld [vmem:[#allocation11 + $0x38] sm:$0xff]
    %v7318 = vld [vmem:[%s6] sm:$0xf]
    %v7320 = vperm.slane %v7318, 0
    %v7321 = vperm.slane %v7318, 1
    %v7322 = vperm.slane %v7318, 2
    %v7323 = vperm.slane %v7318, 3
    %v7336 = vunpack.c.l.b16 %v7310
    %v7337 = vunpack.c.h.b16 %v7310
    %v7338 = vunpack.c.l.b16 %v7311
    %v7339 = vunpack.c.h.b16 %v7311
    %v7340 = vunpack.c.l.b16 %v7312
    %v7341 = vunpack.c.h.b16 %v7312
    %v7342 = vunpack.c.l.b16 %v7313
    %v7343 = vunpack.c.h.b16 %v7313
    %v7344 = vunpack.c.l.b16 %v7314
    %v7345 = vunpack.c.h.b16 %v7314
    %v7346 = vunpack.c.l.b16 %v7315
    %v7347 = vunpack.c.h.b16 %v7315
    %v7348 = vunpack.c.l.b16 %v7316
    %v7349 = vunpack.c.h.b16 %v7316
    %v7350 = vunpack.c.l.b16 %v7317
    %v7351 = vunpack.c.h.b16 %v7317
    %v7352 = vpack.c.b16 %v7340, %v7336
    %v7353 = vpack.c.b16 %v7341, %v7337
    %v7354 = vpack.c.b16 %v7342, %v7338
    %v7355 = vpack.c.b16 %v7343, %v7339
    %v7356 = vpack.c.b16 %v7348, %v7344
    %v7357 = vpack.c.b16 %v7349, %v7345
    %v7358 = vpack.c.b16 %v7350, %v7346
    %v7359 = vpack.c.b16 %v7351, %v7347
    %v7369 = vsel %vm199, %v7309, 0
    %7371 = vmatpush.bf16.msra.mxu0 0
    %7372 = vmatpush.bf16.msra.mxu0 0
    %7373 = vmatpush.bf16.msra.mxu0 0
    %7374 = vmatpush.bf16.msra.mxu0 0
    %7375 = vmatpush.bf16.msra.mxu0 0
    %7376 = vmatpush.bf16.msra.mxu0 0
    %7377 = vmatpush.bf16.msra.mxu0 %v7356
    %7378 = vmatpush.bf16.msra.mxu0 %v7352
    %7379 = vmatmul.bf16.gmra.mxu0 %v7369
    %v7380 = vpop.f32.mrf.mxu0
    %v7381 = vadd.f32 %v7320, %v7380
    %v7382 = vpop.f32.mrf.mxu0
    %7383 = vdwg.mxu0
    %7384 = vmatpush.bf16.msra.mxu0 0
    %7385 = vmatpush.bf16.msra.mxu0 0
    %7386 = vmatpush.bf16.msra.mxu0 0
    %7387 = vmatpush.bf16.msra.mxu0 0
    %7388 = vmatpush.bf16.msra.mxu0 0
    %7389 = vmatpush.bf16.msra.mxu0 0
    %7390 = vmatpush.bf16.msra.mxu0 %v7357
    %7391 = vmatpush.bf16.msra.mxu0 %v7353
    %7392 = vmatmul.bf16.gmra.mxu0 %v7369
    %v7393 = vpop.f32.mrf.mxu0
    %v7394 = vadd.f32 %v7321, %v7393
    %v7395 = vpop.f32.mrf.mxu0
    %7396 = vdwg.mxu0
    %7397 = vmatpush.bf16.msra.mxu0 0
    %7398 = vmatpush.bf16.msra.mxu0 0
    %7399 = vmatpush.bf16.msra.mxu0 0
    %7400 = vmatpush.bf16.msra.mxu0 0
    %7401 = vmatpush.bf16.msra.mxu0 0
    %7402 = vmatpush.bf16.msra.mxu0 0
    %7403 = vmatpush.bf16.msra.mxu0 %v7358
    %7404 = vmatpush.bf16.msra.mxu0 %v7354
    %7405 = vmatmul.bf16.gmra.mxu0 %v7369
    %v7406 = vpop.f32.mrf.mxu0
    %v7407 = vadd.f32 %v7322, %v7406
    %v7408 = vpop.f32.mrf.mxu0
    %7409 = vdwg.mxu0
    %7410 = vmatpush.bf16.msra.mxu0 0
    %7411 = vmatpush.bf16.msra.mxu0 0
    %7412 = vmatpush.bf16.msra.mxu0 0
    %7413 = vmatpush.bf16.msra.mxu0 0
    %7414 = vmatpush.bf16.msra.mxu0 0
    %7415 = vmatpush.bf16.msra.mxu0 0
    %7416 = vmatpush.bf16.msra.mxu0 %v7359
    %7417 = vmatpush.bf16.msra.mxu0 %v7355
    %7418 = vmatmul.bf16.gmra.mxu0 %v7369
    %v7419 = vpop.f32.mrf.mxu0
    %v7420 = vadd.f32 %v7323, %v7419
    %v7421 = vpop.f32.mrf.mxu0
    %7422 = vdwg.mxu0
    %vm7423 = vcmp.ge.f32.partialorder %v7381, 0.0
    %vm7424 = vcmp.ge.f32.partialorder %v7394, 0.0
    %vm7425 = vcmp.ge.f32.partialorder %v7407, 0.0
    %vm7426 = vcmp.ge.f32.partialorder %v7420, 0.0
    %v7427 = vmul.f32 %v7381, 0.01
    %v7428 = vmul.f32 %v7394, 0.01
    %v7429 = vmul.f32 %v7407, 0.01
    %v7430 = vmul.f32 %v7420, 0.01
    %v7431 = vsel %vm7423, %v7381, %v7427
    %v7432 = vsel %vm7424, %v7394, %v7428
    %v7433 = vsel %vm7425, %v7407, %v7429
    %v7434 = vsel %vm7426, %v7420, %v7430
    %v7435 = vpack.c.bf16 %v7431, %v7431
    %v7436 = vpack.c.bf16 %v7432, %v7432
    %v7437 = vpack.c.bf16 %v7433, %v7433
    %v7438 = vpack.c.bf16 %v7434, %v7434
    %v7439 = vld [vmem:[#allocation13] sm:$0xff]
    %v7440 = vld [vmem:[#allocation13 + $0x8] sm:$0xff]
    %v7441 = vld [vmem:[#allocation13 + $0x20] sm:$0xff]
    %v7442 = vld [vmem:[#allocation13 + $0x28] sm:$0xff]
    %v7443 = vld [vmem:[#allocation13 + $0x40] sm:$0xff]
    %v7444 = vld [vmem:[#allocation13 + $0x48] sm:$0xff]
    %v7445 = vld [vmem:[#allocation13 + $0x60] sm:$0xff]
    %v7446 = vld [vmem:[#allocation13 + $0x68] sm:$0xff]
    %v7447 = vld [vmem:[#allocation13 + $0x80] sm:$0xff]
    %v7448 = vld [vmem:[#allocation13 + $0x88] sm:$0xff]
    %v7449 = vld [vmem:[#allocation13 + $0xa0] sm:$0xff]
    %v7450 = vld [vmem:[#allocation13 + $0xa8] sm:$0xff]
    %v7451 = vld [vmem:[#allocation13 + $0xc0] sm:$0xff]
    %v7452 = vld [vmem:[#allocation13 + $0xc8] sm:$0xff]
    %v7453 = vld [vmem:[#allocation13 + $0xe0] sm:$0xff]
    %v7454 = vld [vmem:[#allocation13 + $0xe8] sm:$0xff]
    %v7455 = vld [vmem:[#allocation13 + $0x100] sm:$0xff]
    %v7456 = vld [vmem:[#allocation13 + $0x108] sm:$0xff]
    %v7457 = vld [vmem:[#allocation13 + $0x120] sm:$0xff]
    %v7458 = vld [vmem:[#allocation13 + $0x128] sm:$0xff]
    %v7459 = vld [vmem:[#allocation13 + $0x140] sm:$0xff]
    %v7460 = vld [vmem:[#allocation13 + $0x148] sm:$0xff]
    %v7461 = vld [vmem:[#allocation13 + $0x160] sm:$0xff]
    %v7462 = vld [vmem:[#allocation13 + $0x168] sm:$0xff]
    %v7463 = vld [vmem:[#allocation13 + $0x180] sm:$0xff]
    %v7464 = vld [vmem:[#allocation13 + $0x188] sm:$0xff]
    %v7465 = vld [vmem:[#allocation13 + $0x1a0] sm:$0xff]
    %v7466 = vld [vmem:[#allocation13 + $0x1a8] sm:$0xff]
    %v7467 = vld [vmem:[#allocation13 + $0x1c0] sm:$0xff]
    %v7468 = vld [vmem:[#allocation13 + $0x1c8] sm:$0xff]
    %v7469 = vld [vmem:[#allocation13 + $0x1e0] sm:$0xff]
    %v7470 = vld [vmem:[#allocation13 + $0x1e8] sm:$0xff]
    %v7471 = vld [vmem:[#allocation13 + $0x200] sm:$0xff]
    %v7472 = vld [vmem:[#allocation13 + $0x208] sm:$0xff]
    %v7473 = vld [vmem:[#allocation13 + $0x220] sm:$0xff]
    %v7474 = vld [vmem:[#allocation13 + $0x228] sm:$0xff]
    %v7475 = vld [vmem:[#allocation13 + $0x240] sm:$0xff]
    %v7476 = vld [vmem:[#allocation13 + $0x248] sm:$0xff]
    %v7477 = vld [vmem:[#allocation13 + $0x260] sm:$0xff]
    %v7478 = vld [vmem:[#allocation13 + $0x268] sm:$0xff]
    %v7479 = vld [vmem:[#allocation13 + $0x280] sm:$0xff]
    %v7480 = vld [vmem:[#allocation13 + $0x288] sm:$0xff]
    %v7481 = vld [vmem:[#allocation13 + $0x2a0] sm:$0xff]
    %v7482 = vld [vmem:[#allocation13 + $0x2a8] sm:$0xff]
    %v7483 = vld [vmem:[#allocation13 + $0x2c0] sm:$0xff]
    %v7484 = vld [vmem:[#allocation13 + $0x2c8] sm:$0xff]
    %v7485 = vld [vmem:[#allocation13 + $0x2e0] sm:$0xff]
    %v7486 = vld [vmem:[#allocation13 + $0x2e8] sm:$0xff]
    %v7487 = vld [vmem:[#allocation13 + $0x300] sm:$0xff]
    %v7488 = vld [vmem:[#allocation13 + $0x308] sm:$0xff]
    %v7489 = vld [vmem:[#allocation13 + $0x320] sm:$0xff]
    %v7490 = vld [vmem:[#allocation13 + $0x328] sm:$0xff]
    %v7491 = vld [vmem:[#allocation13 + $0x340] sm:$0xff]
    %v7492 = vld [vmem:[#allocation13 + $0x348] sm:$0xff]
    %v7493 = vld [vmem:[#allocation13 + $0x360] sm:$0xff]
    %v7494 = vld [vmem:[#allocation13 + $0x368] sm:$0xff]
    %v7495 = vld [vmem:[#allocation13 + $0x380] sm:$0xff]
    %v7496 = vld [vmem:[#allocation13 + $0x388] sm:$0xff]
    %v7497 = vld [vmem:[#allocation13 + $0x3a0] sm:$0xff]
    %v7498 = vld [vmem:[#allocation13 + $0x3a8] sm:$0xff]
    %v7499 = vld [vmem:[#allocation13 + $0x3c0] sm:$0xff]
    %v7500 = vld [vmem:[#allocation13 + $0x3c8] sm:$0xff]
    %v7501 = vld [vmem:[#allocation13 + $0x3e0] sm:$0xff]
    %v7502 = vld [vmem:[#allocation13 + $0x3e8] sm:$0xff]
    %v7503 = vld [vmem:[#allocation13 + $0x400] sm:$0xff]
    %v7504 = vld [vmem:[#allocation13 + $0x408] sm:$0xff]
    %v7505 = vld [vmem:[#allocation13 + $0x420] sm:$0xff]
    %v7506 = vld [vmem:[#allocation13 + $0x428] sm:$0xff]
    %v7507 = vld [vmem:[#allocation13 + $0x440] sm:$0xff]
    %v7508 = vld [vmem:[#allocation13 + $0x448] sm:$0xff]
    %v7509 = vld [vmem:[#allocation13 + $0x460] sm:$0xff]
    %v7510 = vld [vmem:[#allocation13 + $0x468] sm:$0xff]
    %v7511 = vld [vmem:[#allocation13 + $0x480] sm:$0xff]
    %v7512 = vld [vmem:[#allocation13 + $0x488] sm:$0xff]
    %v7513 = vld [vmem:[#allocation13 + $0x4a0] sm:$0xff]
    %v7514 = vld [vmem:[#allocation13 + $0x4a8] sm:$0xff]
    %v7515 = vld [vmem:[#allocation13 + $0x4c0] sm:$0xff]
    %v7516 = vld [vmem:[#allocation13 + $0x4c8] sm:$0xff]
    %v7517 = vld [vmem:[#allocation13 + $0x4e0] sm:$0xff]
    %v7518 = vld [vmem:[#allocation13 + $0x4e8] sm:$0xff]
    %v7519 = vld [vmem:[#allocation13 + $0x500] sm:$0xff]
    %v7520 = vld [vmem:[#allocation13 + $0x508] sm:$0xff]
    %v7521 = vld [vmem:[#allocation13 + $0x520] sm:$0xff]
    %v7522 = vld [vmem:[#allocation13 + $0x528] sm:$0xff]
    %v7523 = vld [vmem:[#allocation13 + $0x540] sm:$0xff]
    %v7524 = vld [vmem:[#allocation13 + $0x548] sm:$0xff]
    %v7525 = vld [vmem:[#allocation13 + $0x560] sm:$0xff]
    %v7526 = vld [vmem:[#allocation13 + $0x568] sm:$0xff]
    %v7527 = vld [vmem:[#allocation13 + $0x580] sm:$0xff]
    %v7528 = vld [vmem:[#allocation13 + $0x588] sm:$0xff]
    %v7529 = vld [vmem:[#allocation13 + $0x5a0] sm:$0xff]
    %v7530 = vld [vmem:[#allocation13 + $0x5a8] sm:$0xff]
    %v7531 = vld [vmem:[#allocation13 + $0x5c0] sm:$0xff]
    %v7532 = vld [vmem:[#allocation13 + $0x5c8] sm:$0xff]
    %v7533 = vld [vmem:[#allocation13 + $0x5e0] sm:$0xff]
    %v7534 = vld [vmem:[#allocation13 + $0x5e8] sm:$0xff]
    %v7535 = vld [vmem:[#allocation13 + $0x600] sm:$0xff]
    %v7536 = vld [vmem:[#allocation13 + $0x608] sm:$0xff]
    %v7537 = vld [vmem:[#allocation13 + $0x620] sm:$0xff]
    %v7538 = vld [vmem:[#allocation13 + $0x628] sm:$0xff]
    %v7539 = vld [vmem:[#allocation13 + $0x640] sm:$0xff]
    %v7540 = vld [vmem:[#allocation13 + $0x648] sm:$0xff]
    %v7541 = vld [vmem:[#allocation13 + $0x660] sm:$0xff]
    %v7542 = vld [vmem:[#allocation13 + $0x668] sm:$0xff]
    %v7543 = vld [vmem:[#allocation13 + $0x680] sm:$0xff]
    %v7544 = vld [vmem:[#allocation13 + $0x688] sm:$0xff]
    %v7545 = vld [vmem:[#allocation13 + $0x6a0] sm:$0xff]
    %v7546 = vld [vmem:[#allocation13 + $0x6a8] sm:$0xff]
    %v7547 = vld [vmem:[#allocation13 + $0x6c0] sm:$0xff]
    %v7548 = vld [vmem:[#allocation13 + $0x6c8] sm:$0xff]
    %v7549 = vld [vmem:[#allocation13 + $0x6e0] sm:$0xff]
    %v7550 = vld [vmem:[#allocation13 + $0x6e8] sm:$0xff]
    %v7551 = vld [vmem:[#allocation13 + $0x700] sm:$0xff]
    %v7552 = vld [vmem:[#allocation13 + $0x708] sm:$0xff]
    %v7553 = vld [vmem:[#allocation13 + $0x720] sm:$0xff]
    %v7554 = vld [vmem:[#allocation13 + $0x728] sm:$0xff]
    %v7555 = vld [vmem:[#allocation13 + $0x740] sm:$0xff]
    %v7556 = vld [vmem:[#allocation13 + $0x748] sm:$0xff]
    %v7557 = vld [vmem:[#allocation13 + $0x760] sm:$0xff]
    %v7558 = vld [vmem:[#allocation13 + $0x768] sm:$0xff]
    %v7559 = vld [vmem:[#allocation13 + $0x780] sm:$0xff]
    %v7560 = vld [vmem:[#allocation13 + $0x788] sm:$0xff]
    %v7561 = vld [vmem:[#allocation13 + $0x7a0] sm:$0xff]
    %v7562 = vld [vmem:[#allocation13 + $0x7a8] sm:$0xff]
    %v7563 = vld [vmem:[#allocation13 + $0x7c0] sm:$0xff]
    %v7564 = vld [vmem:[#allocation13 + $0x7c8] sm:$0xff]
    %v7565 = vld [vmem:[#allocation13 + $0x7e0] sm:$0xff]
    %v7566 = vld [vmem:[#allocation13 + $0x7e8] sm:$0xff]
    %v7567 = vld [vmem:[#allocation14] sm:$0xf]
    %v7569 = vperm.slane %v7567, 0
    %v7570 = vperm.slane %v7567, 1
    %v7571 = vperm.slane %v7567, 2
    %v7572 = vperm.slane %v7567, 3
    %v7705 = vunpack.c.l.b16 %v7439
    %v7706 = vunpack.c.h.b16 %v7439
    %v7707 = vunpack.c.l.b16 %v7440
    %v7708 = vunpack.c.h.b16 %v7440
    %v7709 = vunpack.c.l.b16 %v7441
    %v7710 = vunpack.c.h.b16 %v7441
    %v7711 = vunpack.c.l.b16 %v7442
    %v7712 = vunpack.c.h.b16 %v7442
    %v7713 = vunpack.c.l.b16 %v7443
    %v7714 = vunpack.c.h.b16 %v7443
    %v7715 = vunpack.c.l.b16 %v7444
    %v7716 = vunpack.c.h.b16 %v7444
    %v7717 = vunpack.c.l.b16 %v7445
    %v7718 = vunpack.c.h.b16 %v7445
    %v7719 = vunpack.c.l.b16 %v7446
    %v7720 = vunpack.c.h.b16 %v7446
    %v7721 = vunpack.c.l.b16 %v7447
    %v7722 = vunpack.c.h.b16 %v7447
    %v7723 = vunpack.c.l.b16 %v7448
    %v7724 = vunpack.c.h.b16 %v7448
    %v7725 = vunpack.c.l.b16 %v7449
    %v7726 = vunpack.c.h.b16 %v7449
    %v7727 = vunpack.c.l.b16 %v7450
    %v7728 = vunpack.c.h.b16 %v7450
    %v7729 = vunpack.c.l.b16 %v7451
    %v7730 = vunpack.c.h.b16 %v7451
    %v7731 = vunpack.c.l.b16 %v7452
    %v7732 = vunpack.c.h.b16 %v7452
    %v7733 = vunpack.c.l.b16 %v7453
    %v7734 = vunpack.c.h.b16 %v7453
    %v7735 = vunpack.c.l.b16 %v7454
    %v7736 = vunpack.c.h.b16 %v7454
    %v7737 = vunpack.c.l.b16 %v7455
    %v7738 = vunpack.c.h.b16 %v7455
    %v7739 = vunpack.c.l.b16 %v7456
    %v7740 = vunpack.c.h.b16 %v7456
    %v7741 = vunpack.c.l.b16 %v7457
    %v7742 = vunpack.c.h.b16 %v7457
    %v7743 = vunpack.c.l.b16 %v7458
    %v7744 = vunpack.c.h.b16 %v7458
    %v7745 = vunpack.c.l.b16 %v7459
    %v7746 = vunpack.c.h.b16 %v7459
    %v7747 = vunpack.c.l.b16 %v7460
    %v7748 = vunpack.c.h.b16 %v7460
    %v7749 = vunpack.c.l.b16 %v7461
    %v7750 = vunpack.c.h.b16 %v7461
    %v7751 = vunpack.c.l.b16 %v7462
    %v7752 = vunpack.c.h.b16 %v7462
    %v7753 = vunpack.c.l.b16 %v7463
    %v7754 = vunpack.c.h.b16 %v7463
    %v7755 = vunpack.c.l.b16 %v7464
    %v7756 = vunpack.c.h.b16 %v7464
    %v7757 = vunpack.c.l.b16 %v7465
    %v7758 = vunpack.c.h.b16 %v7465
    %v7759 = vunpack.c.l.b16 %v7466
    %v7760 = vunpack.c.h.b16 %v7466
    %v7761 = vunpack.c.l.b16 %v7467
    %v7762 = vunpack.c.h.b16 %v7467
    %v7763 = vunpack.c.l.b16 %v7468
    %v7764 = vunpack.c.h.b16 %v7468
    %v7765 = vunpack.c.l.b16 %v7469
    %v7766 = vunpack.c.h.b16 %v7469
    %v7767 = vunpack.c.l.b16 %v7470
    %v7768 = vunpack.c.h.b16 %v7470
    %v7769 = vunpack.c.l.b16 %v7471
    %v7770 = vunpack.c.h.b16 %v7471
    %v7771 = vunpack.c.l.b16 %v7472
    %v7772 = vunpack.c.h.b16 %v7472
    %v7773 = vunpack.c.l.b16 %v7473
    %v7774 = vunpack.c.h.b16 %v7473
    %v7775 = vunpack.c.l.b16 %v7474
    %v7776 = vunpack.c.h.b16 %v7474
    %v7777 = vunpack.c.l.b16 %v7475
    %v7778 = vunpack.c.h.b16 %v7475
    %v7779 = vunpack.c.l.b16 %v7476
    %v7780 = vunpack.c.h.b16 %v7476
    %v7781 = vunpack.c.l.b16 %v7477
    %v7782 = vunpack.c.h.b16 %v7477
    %v7783 = vunpack.c.l.b16 %v7478
    %v7784 = vunpack.c.h.b16 %v7478
    %v7785 = vunpack.c.l.b16 %v7479
    %v7786 = vunpack.c.h.b16 %v7479
    %v7787 = vunpack.c.l.b16 %v7480
    %v7788 = vunpack.c.h.b16 %v7480
    %v7789 = vunpack.c.l.b16 %v7481
    %v7790 = vunpack.c.h.b16 %v7481
    %v7791 = vunpack.c.l.b16 %v7482
    %v7792 = vunpack.c.h.b16 %v7482
    %v7793 = vunpack.c.l.b16 %v7483
    %v7794 = vunpack.c.h.b16 %v7483
    %v7795 = vunpack.c.l.b16 %v7484
    %v7796 = vunpack.c.h.b16 %v7484
    %v7797 = vunpack.c.l.b16 %v7485
    %v7798 = vunpack.c.h.b16 %v7485
    %v7799 = vunpack.c.l.b16 %v7486
    %v7800 = vunpack.c.h.b16 %v7486
    %v7801 = vunpack.c.l.b16 %v7487
    %v7802 = vunpack.c.h.b16 %v7487
    %v7803 = vunpack.c.l.b16 %v7488
    %v7804 = vunpack.c.h.b16 %v7488
    %v7805 = vunpack.c.l.b16 %v7489
    %v7806 = vunpack.c.h.b16 %v7489
    %v7807 = vunpack.c.l.b16 %v7490
    %v7808 = vunpack.c.h.b16 %v7490
    %v7809 = vunpack.c.l.b16 %v7491
    %v7810 = vunpack.c.h.b16 %v7491
    %v7811 = vunpack.c.l.b16 %v7492
    %v7812 = vunpack.c.h.b16 %v7492
    %v7813 = vunpack.c.l.b16 %v7493
    %v7814 = vunpack.c.h.b16 %v7493
    %v7815 = vunpack.c.l.b16 %v7494
    %v7816 = vunpack.c.h.b16 %v7494
    %v7817 = vunpack.c.l.b16 %v7495
    %v7818 = vunpack.c.h.b16 %v7495
    %v7819 = vunpack.c.l.b16 %v7496
    %v7820 = vunpack.c.h.b16 %v7496
    %v7821 = vunpack.c.l.b16 %v7497
    %v7822 = vunpack.c.h.b16 %v7497
    %v7823 = vunpack.c.l.b16 %v7498
    %v7824 = vunpack.c.h.b16 %v7498
    %v7825 = vunpack.c.l.b16 %v7499
    %v7826 = vunpack.c.h.b16 %v7499
    %v7827 = vunpack.c.l.b16 %v7500
    %v7828 = vunpack.c.h.b16 %v7500
    %v7829 = vunpack.c.l.b16 %v7501
    %v7830 = vunpack.c.h.b16 %v7501
    %v7831 = vunpack.c.l.b16 %v7502
    %v7832 = vunpack.c.h.b16 %v7502
    %v7833 = vunpack.c.l.b16 %v7503
    %v7834 = vunpack.c.h.b16 %v7503
    %v7835 = vunpack.c.l.b16 %v7504
    %v7836 = vunpack.c.h.b16 %v7504
    %v7837 = vunpack.c.l.b16 %v7505
    %v7838 = vunpack.c.h.b16 %v7505
    %v7839 = vunpack.c.l.b16 %v7506
    %v7840 = vunpack.c.h.b16 %v7506
    %v7841 = vunpack.c.l.b16 %v7507
    %v7842 = vunpack.c.h.b16 %v7507
    %v7843 = vunpack.c.l.b16 %v7508
    %v7844 = vunpack.c.h.b16 %v7508
    %v7845 = vunpack.c.l.b16 %v7509
    %v7846 = vunpack.c.h.b16 %v7509
    %v7847 = vunpack.c.l.b16 %v7510
    %v7848 = vunpack.c.h.b16 %v7510
    %v7849 = vunpack.c.l.b16 %v7511
    %v7850 = vunpack.c.h.b16 %v7511
    %v7851 = vunpack.c.l.b16 %v7512
    %v7852 = vunpack.c.h.b16 %v7512
    %v7853 = vunpack.c.l.b16 %v7513
    %v7854 = vunpack.c.h.b16 %v7513
    %v7855 = vunpack.c.l.b16 %v7514
    %v7856 = vunpack.c.h.b16 %v7514
    %v7857 = vunpack.c.l.b16 %v7515
    %v7858 = vunpack.c.h.b16 %v7515
    %v7859 = vunpack.c.l.b16 %v7516
    %v7860 = vunpack.c.h.b16 %v7516
    %v7861 = vunpack.c.l.b16 %v7517
    %v7862 = vunpack.c.h.b16 %v7517
    %v7863 = vunpack.c.l.b16 %v7518
    %v7864 = vunpack.c.h.b16 %v7518
    %v7865 = vunpack.c.l.b16 %v7519
    %v7866 = vunpack.c.h.b16 %v7519
    %v7867 = vunpack.c.l.b16 %v7520
    %v7868 = vunpack.c.h.b16 %v7520
    %v7869 = vunpack.c.l.b16 %v7521
    %v7870 = vunpack.c.h.b16 %v7521
    %v7871 = vunpack.c.l.b16 %v7522
    %v7872 = vunpack.c.h.b16 %v7522
    %v7873 = vunpack.c.l.b16 %v7523
    %v7874 = vunpack.c.h.b16 %v7523
    %v7875 = vunpack.c.l.b16 %v7524
    %v7876 = vunpack.c.h.b16 %v7524
    %v7877 = vunpack.c.l.b16 %v7525
    %v7878 = vunpack.c.h.b16 %v7525
    %v7879 = vunpack.c.l.b16 %v7526
    %v7880 = vunpack.c.h.b16 %v7526
    %v7881 = vunpack.c.l.b16 %v7527
    %v7882 = vunpack.c.h.b16 %v7527
    %v7883 = vunpack.c.l.b16 %v7528
    %v7884 = vunpack.c.h.b16 %v7528
    %v7885 = vunpack.c.l.b16 %v7529
    %v7886 = vunpack.c.h.b16 %v7529
    %v7887 = vunpack.c.l.b16 %v7530
    %v7888 = vunpack.c.h.b16 %v7530
    %v7889 = vunpack.c.l.b16 %v7531
    %v7890 = vunpack.c.h.b16 %v7531
    %v7891 = vunpack.c.l.b16 %v7532
    %v7892 = vunpack.c.h.b16 %v7532
    %v7893 = vunpack.c.l.b16 %v7533
    %v7894 = vunpack.c.h.b16 %v7533
    %v7895 = vunpack.c.l.b16 %v7534
    %v7896 = vunpack.c.h.b16 %v7534
    %v7897 = vunpack.c.l.b16 %v7535
    %v7898 = vunpack.c.h.b16 %v7535
    %v7899 = vunpack.c.l.b16 %v7536
    %v7900 = vunpack.c.h.b16 %v7536
    %v7901 = vunpack.c.l.b16 %v7537
    %v7902 = vunpack.c.h.b16 %v7537
    %v7903 = vunpack.c.l.b16 %v7538
    %v7904 = vunpack.c.h.b16 %v7538
    %v7905 = vunpack.c.l.b16 %v7539
    %v7906 = vunpack.c.h.b16 %v7539
    %v7907 = vunpack.c.l.b16 %v7540
    %v7908 = vunpack.c.h.b16 %v7540
    %v7909 = vunpack.c.l.b16 %v7541
    %v7910 = vunpack.c.h.b16 %v7541
    %v7911 = vunpack.c.l.b16 %v7542
    %v7912 = vunpack.c.h.b16 %v7542
    %v7913 = vunpack.c.l.b16 %v7543
    %v7914 = vunpack.c.h.b16 %v7543
    %v7915 = vunpack.c.l.b16 %v7544
    %v7916 = vunpack.c.h.b16 %v7544
    %v7917 = vunpack.c.l.b16 %v7545
    %v7918 = vunpack.c.h.b16 %v7545
    %v7919 = vunpack.c.l.b16 %v7546
    %v7920 = vunpack.c.h.b16 %v7546
    %v7921 = vunpack.c.l.b16 %v7547
    %v7922 = vunpack.c.h.b16 %v7547
    %v7923 = vunpack.c.l.b16 %v7548
    %v7924 = vunpack.c.h.b16 %v7548
    %v7925 = vunpack.c.l.b16 %v7549
    %v7926 = vunpack.c.h.b16 %v7549
    %v7927 = vunpack.c.l.b16 %v7550
    %v7928 = vunpack.c.h.b16 %v7550
    %v7929 = vunpack.c.l.b16 %v7551
    %v7930 = vunpack.c.h.b16 %v7551
    %v7931 = vunpack.c.l.b16 %v7552
    %v7932 = vunpack.c.h.b16 %v7552
    %v7933 = vunpack.c.l.b16 %v7553
    %v7934 = vunpack.c.h.b16 %v7553
    %v7935 = vunpack.c.l.b16 %v7554
    %v7936 = vunpack.c.h.b16 %v7554
    %v7937 = vunpack.c.l.b16 %v7555
    %v7938 = vunpack.c.h.b16 %v7555
    %v7939 = vunpack.c.l.b16 %v7556
    %v7940 = vunpack.c.h.b16 %v7556
    %v7941 = vunpack.c.l.b16 %v7557
    %v7942 = vunpack.c.h.b16 %v7557
    %v7943 = vunpack.c.l.b16 %v7558
    %v7944 = vunpack.c.h.b16 %v7558
    %v7945 = vunpack.c.l.b16 %v7559
    %v7946 = vunpack.c.h.b16 %v7559
    %v7947 = vunpack.c.l.b16 %v7560
    %v7948 = vunpack.c.h.b16 %v7560
    %v7949 = vunpack.c.l.b16 %v7561
    %v7950 = vunpack.c.h.b16 %v7561
    %v7951 = vunpack.c.l.b16 %v7562
    %v7952 = vunpack.c.h.b16 %v7562
    %v7953 = vunpack.c.l.b16 %v7563
    %v7954 = vunpack.c.h.b16 %v7563
    %v7955 = vunpack.c.l.b16 %v7564
    %v7956 = vunpack.c.h.b16 %v7564
    %v7957 = vunpack.c.l.b16 %v7565
    %v7958 = vunpack.c.h.b16 %v7565
    %v7959 = vunpack.c.l.b16 %v7566
    %v7960 = vunpack.c.h.b16 %v7566
    %v7961 = vpack.c.b16 %v7709, %v7705
    %v7962 = vpack.c.b16 %v7710, %v7706
    %v7963 = vpack.c.b16 %v7711, %v7707
    %v7964 = vpack.c.b16 %v7712, %v7708
    %v7965 = vpack.c.b16 %v7717, %v7713
    %v7966 = vpack.c.b16 %v7718, %v7714
    %v7967 = vpack.c.b16 %v7719, %v7715
    %v7968 = vpack.c.b16 %v7720, %v7716
    %v7969 = vpack.c.b16 %v7725, %v7721
    %v7970 = vpack.c.b16 %v7726, %v7722
    %v7971 = vpack.c.b16 %v7727, %v7723
    %v7972 = vpack.c.b16 %v7728, %v7724
    %v7973 = vpack.c.b16 %v7733, %v7729
    %v7974 = vpack.c.b16 %v7734, %v7730
    %v7975 = vpack.c.b16 %v7735, %v7731
    %v7976 = vpack.c.b16 %v7736, %v7732
    %v7977 = vpack.c.b16 %v7741, %v7737
    %v7978 = vpack.c.b16 %v7742, %v7738
    %v7979 = vpack.c.b16 %v7743, %v7739
    %v7980 = vpack.c.b16 %v7744, %v7740
    %v7981 = vpack.c.b16 %v7749, %v7745
    %v7982 = vpack.c.b16 %v7750, %v7746
    %v7983 = vpack.c.b16 %v7751, %v7747
    %v7984 = vpack.c.b16 %v7752, %v7748
    %v7985 = vpack.c.b16 %v7757, %v7753
    %v7986 = vpack.c.b16 %v7758, %v7754
    %v7987 = vpack.c.b16 %v7759, %v7755
    %v7988 = vpack.c.b16 %v7760, %v7756
    %v7989 = vpack.c.b16 %v7765, %v7761
    %v7990 = vpack.c.b16 %v7766, %v7762
    %v7991 = vpack.c.b16 %v7767, %v7763
    %v7992 = vpack.c.b16 %v7768, %v7764
    %v7993 = vpack.c.b16 %v7773, %v7769
    %v7994 = vpack.c.b16 %v7774, %v7770
    %v7995 = vpack.c.b16 %v7775, %v7771
    %v7996 = vpack.c.b16 %v7776, %v7772
    %v7997 = vpack.c.b16 %v7781, %v7777
    %v7998 = vpack.c.b16 %v7782, %v7778
    %v7999 = vpack.c.b16 %v7783, %v7779
    %v8000 = vpack.c.b16 %v7784, %v7780
    %v8001 = vpack.c.b16 %v7789, %v7785
    %v8002 = vpack.c.b16 %v7790, %v7786
    %v8003 = vpack.c.b16 %v7791, %v7787
    %v8004 = vpack.c.b16 %v7792, %v7788
    %v8005 = vpack.c.b16 %v7797, %v7793
    %v8006 = vpack.c.b16 %v7798, %v7794
    %v8007 = vpack.c.b16 %v7799, %v7795
    %v8008 = vpack.c.b16 %v7800, %v7796
    %v8009 = vpack.c.b16 %v7805, %v7801
    %v8010 = vpack.c.b16 %v7806, %v7802
    %v8011 = vpack.c.b16 %v7807, %v7803
    %v8012 = vpack.c.b16 %v7808, %v7804
    %v8013 = vpack.c.b16 %v7813, %v7809
    %v8014 = vpack.c.b16 %v7814, %v7810
    %v8015 = vpack.c.b16 %v7815, %v7811
    %v8016 = vpack.c.b16 %v7816, %v7812
    %v8017 = vpack.c.b16 %v7821, %v7817
    %v8018 = vpack.c.b16 %v7822, %v7818
    %v8019 = vpack.c.b16 %v7823, %v7819
    %v8020 = vpack.c.b16 %v7824, %v7820
    %v8021 = vpack.c.b16 %v7829, %v7825
    %v8022 = vpack.c.b16 %v7830, %v7826
    %v8023 = vpack.c.b16 %v7831, %v7827
    %v8024 = vpack.c.b16 %v7832, %v7828
    %v8025 = vpack.c.b16 %v7837, %v7833
    %v8026 = vpack.c.b16 %v7838, %v7834
    %v8027 = vpack.c.b16 %v7839, %v7835
    %v8028 = vpack.c.b16 %v7840, %v7836
    %v8029 = vpack.c.b16 %v7845, %v7841
    %v8030 = vpack.c.b16 %v7846, %v7842
    %v8031 = vpack.c.b16 %v7847, %v7843
    %v8032 = vpack.c.b16 %v7848, %v7844
    %v8033 = vpack.c.b16 %v7853, %v7849
    %v8034 = vpack.c.b16 %v7854, %v7850
    %v8035 = vpack.c.b16 %v7855, %v7851
    %v8036 = vpack.c.b16 %v7856, %v7852
    %v8037 = vpack.c.b16 %v7861, %v7857
    %v8038 = vpack.c.b16 %v7862, %v7858
    %v8039 = vpack.c.b16 %v7863, %v7859
    %v8040 = vpack.c.b16 %v7864, %v7860
    %v8041 = vpack.c.b16 %v7869, %v7865
    %v8042 = vpack.c.b16 %v7870, %v7866
    %v8043 = vpack.c.b16 %v7871, %v7867
    %v8044 = vpack.c.b16 %v7872, %v7868
    %v8045 = vpack.c.b16 %v7877, %v7873
    %v8046 = vpack.c.b16 %v7878, %v7874
    %v8047 = vpack.c.b16 %v7879, %v7875
    %v8048 = vpack.c.b16 %v7880, %v7876
    %v8049 = vpack.c.b16 %v7885, %v7881
    %v8050 = vpack.c.b16 %v7886, %v7882
    %v8051 = vpack.c.b16 %v7887, %v7883
    %v8052 = vpack.c.b16 %v7888, %v7884
    %v8053 = vpack.c.b16 %v7893, %v7889
    %v8054 = vpack.c.b16 %v7894, %v7890
    %v8055 = vpack.c.b16 %v7895, %v7891
    %v8056 = vpack.c.b16 %v7896, %v7892
    %v8057 = vpack.c.b16 %v7901, %v7897
    %v8058 = vpack.c.b16 %v7902, %v7898
    %v8059 = vpack.c.b16 %v7903, %v7899
    %v8060 = vpack.c.b16 %v7904, %v7900
    %v8061 = vpack.c.b16 %v7909, %v7905
    %v8062 = vpack.c.b16 %v7910, %v7906
    %v8063 = vpack.c.b16 %v7911, %v7907
    %v8064 = vpack.c.b16 %v7912, %v7908
    %v8065 = vpack.c.b16 %v7917, %v7913
    %v8066 = vpack.c.b16 %v7918, %v7914
    %v8067 = vpack.c.b16 %v7919, %v7915
    %v8068 = vpack.c.b16 %v7920, %v7916
    %v8069 = vpack.c.b16 %v7925, %v7921
    %v8070 = vpack.c.b16 %v7926, %v7922
    %v8071 = vpack.c.b16 %v7927, %v7923
    %v8072 = vpack.c.b16 %v7928, %v7924
    %v8073 = vpack.c.b16 %v7933, %v7929
    %v8074 = vpack.c.b16 %v7934, %v7930
    %v8075 = vpack.c.b16 %v7935, %v7931
    %v8076 = vpack.c.b16 %v7936, %v7932
    %v8077 = vpack.c.b16 %v7941, %v7937
    %v8078 = vpack.c.b16 %v7942, %v7938
    %v8079 = vpack.c.b16 %v7943, %v7939
    %v8080 = vpack.c.b16 %v7944, %v7940
    %v8081 = vpack.c.b16 %v7949, %v7945
    %v8082 = vpack.c.b16 %v7950, %v7946
    %v8083 = vpack.c.b16 %v7951, %v7947
    %v8084 = vpack.c.b16 %v7952, %v7948
    %v8085 = vpack.c.b16 %v7957, %v7953
    %v8086 = vpack.c.b16 %v7958, %v7954
    %v8087 = vpack.c.b16 %v7959, %v7955
    %v8088 = vpack.c.b16 %v7960, %v7956
    %8217 = vmatpush.bf16.msra.mxu0 %v7989
    %8218 = vmatpush.bf16.msra.mxu0 %v7985
    %8219 = vmatpush.bf16.msra.mxu0 %v7981
    %8220 = vmatpush.bf16.msra.mxu0 %v7977
    %8221 = vmatpush.bf16.msra.mxu0 %v7973
    %8222 = vmatpush.bf16.msra.mxu0 %v7969
    %8223 = vmatpush.bf16.msra.mxu0 %v7965
    %8224 = vmatpush.bf16.msra.mxu0 %v7961
    %8225 = vmatmul.bf16.gmra.mxu0 %v7435
    %v8226 = vpop.f32.mrf.mxu0
    %v8227 = vadd.f32 %v7569, %v8226
    %v8228 = vpop.f32.mrf.mxu0
    %8229 = vdwg.mxu0
    %8230 = vmatpush.bf16.msra.mxu0 %v8021
    %8231 = vmatpush.bf16.msra.mxu0 %v8017
    %8232 = vmatpush.bf16.msra.mxu0 %v8013
    %8233 = vmatpush.bf16.msra.mxu0 %v8009
    %8234 = vmatpush.bf16.msra.mxu0 %v8005
    %8235 = vmatpush.bf16.msra.mxu0 %v8001
    %8236 = vmatpush.bf16.msra.mxu0 %v7997
    %8237 = vmatpush.bf16.msra.mxu0 %v7993
    %8238 = vmatmul.bf16.gmra.mxu0 %v7436
    %v8239 = vpop.f32.mrf.mxu0
    %v8240 = vadd.f32 %v8227, %v8239
    %v8241 = vpop.f32.mrf.mxu0
    %8242 = vdwg.mxu0
    %8243 = vmatpush.bf16.msra.mxu0 %v8053
    %8244 = vmatpush.bf16.msra.mxu0 %v8049
    %8245 = vmatpush.bf16.msra.mxu0 %v8045
    %8246 = vmatpush.bf16.msra.mxu0 %v8041
    %8247 = vmatpush.bf16.msra.mxu0 %v8037
    %8248 = vmatpush.bf16.msra.mxu0 %v8033
    %8249 = vmatpush.bf16.msra.mxu0 %v8029
    %8250 = vmatpush.bf16.msra.mxu0 %v8025
    %8251 = vmatmul.bf16.gmra.mxu0 %v7437
    %v8252 = vpop.f32.mrf.mxu0
    %v8253 = vadd.f32 %v8240, %v8252
    %v8254 = vpop.f32.mrf.mxu0
    %8255 = vdwg.mxu0
    %8256 = vmatpush.bf16.msra.mxu0 %v8085
    %8257 = vmatpush.bf16.msra.mxu0 %v8081
    %8258 = vmatpush.bf16.msra.mxu0 %v8077
    %8259 = vmatpush.bf16.msra.mxu0 %v8073
    %8260 = vmatpush.bf16.msra.mxu0 %v8069
    %8261 = vmatpush.bf16.msra.mxu0 %v8065
    %8262 = vmatpush.bf16.msra.mxu0 %v8061
    %8263 = vmatpush.bf16.msra.mxu0 %v8057
    %8264 = vmatmul.bf16.gmra.mxu0 %v7438
    %v8265 = vpop.f32.mrf.mxu0
    %v8266 = vadd.f32 %v8253, %v8265
    %v8267 = vpop.f32.mrf.mxu0
    %8268 = vdwg.mxu0
    %8269 = vmatpush.bf16.msra.mxu0 %v7990
    %8270 = vmatpush.bf16.msra.mxu0 %v7986
    %8271 = vmatpush.bf16.msra.mxu0 %v7982
    %8272 = vmatpush.bf16.msra.mxu0 %v7978
    %8273 = vmatpush.bf16.msra.mxu0 %v7974
    %8274 = vmatpush.bf16.msra.mxu0 %v7970
    %8275 = vmatpush.bf16.msra.mxu0 %v7966
    %8276 = vmatpush.bf16.msra.mxu0 %v7962
    %8277 = vmatmul.bf16.gmra.mxu0 %v7435
    %v8278 = vpop.f32.mrf.mxu0
    %v8279 = vadd.f32 %v7570, %v8278
    %v8280 = vpop.f32.mrf.mxu0
    %8281 = vdwg.mxu0
    %8282 = vmatpush.bf16.msra.mxu0 %v8022
    %8283 = vmatpush.bf16.msra.mxu0 %v8018
    %8284 = vmatpush.bf16.msra.mxu0 %v8014
    %8285 = vmatpush.bf16.msra.mxu0 %v8010
    %8286 = vmatpush.bf16.msra.mxu0 %v8006
    %8287 = vmatpush.bf16.msra.mxu0 %v8002
    %8288 = vmatpush.bf16.msra.mxu0 %v7998
    %8289 = vmatpush.bf16.msra.mxu0 %v7994
    %8290 = vmatmul.bf16.gmra.mxu0 %v7436
    %v8291 = vpop.f32.mrf.mxu0
    %v8292 = vadd.f32 %v8279, %v8291
    %v8293 = vpop.f32.mrf.mxu0
    %8294 = vdwg.mxu0
    %8295 = vmatpush.bf16.msra.mxu0 %v8054
    %8296 = vmatpush.bf16.msra.mxu0 %v8050
    %8297 = vmatpush.bf16.msra.mxu0 %v8046
    %8298 = vmatpush.bf16.msra.mxu0 %v8042
    %8299 = vmatpush.bf16.msra.mxu0 %v8038
    %8300 = vmatpush.bf16.msra.mxu0 %v8034
    %8301 = vmatpush.bf16.msra.mxu0 %v8030
    %8302 = vmatpush.bf16.msra.mxu0 %v8026
    %8303 = vmatmul.bf16.gmra.mxu0 %v7437
    %v8304 = vpop.f32.mrf.mxu0
    %v8305 = vadd.f32 %v8292, %v8304
    %v8306 = vpop.f32.mrf.mxu0
    %8307 = vdwg.mxu0
    %8308 = vmatpush.bf16.msra.mxu0 %v8086
    %8309 = vmatpush.bf16.msra.mxu0 %v8082
    %8310 = vmatpush.bf16.msra.mxu0 %v8078
    %8311 = vmatpush.bf16.msra.mxu0 %v8074
    %8312 = vmatpush.bf16.msra.mxu0 %v8070
    %8313 = vmatpush.bf16.msra.mxu0 %v8066
    %8314 = vmatpush.bf16.msra.mxu0 %v8062
    %8315 = vmatpush.bf16.msra.mxu0 %v8058
    %8316 = vmatmul.bf16.gmra.mxu0 %v7438
    %v8317 = vpop.f32.mrf.mxu0
    %v8318 = vadd.f32 %v8305, %v8317
    %v8319 = vpop.f32.mrf.mxu0
    %8320 = vdwg.mxu0
    %8321 = vmatpush.bf16.msra.mxu0 %v7991
    %8322 = vmatpush.bf16.msra.mxu0 %v7987
    %8323 = vmatpush.bf16.msra.mxu0 %v7983
    %8324 = vmatpush.bf16.msra.mxu0 %v7979
    %8325 = vmatpush.bf16.msra.mxu0 %v7975
    %8326 = vmatpush.bf16.msra.mxu0 %v7971
    %8327 = vmatpush.bf16.msra.mxu0 %v7967
    %8328 = vmatpush.bf16.msra.mxu0 %v7963
    %8329 = vmatmul.bf16.gmra.mxu0 %v7435
    %v8330 = vpop.f32.mrf.mxu0
    %v8331 = vadd.f32 %v7571, %v8330
    %v8332 = vpop.f32.mrf.mxu0
    %8333 = vdwg.mxu0
    %8334 = vmatpush.bf16.msra.mxu0 %v8023
    %8335 = vmatpush.bf16.msra.mxu0 %v8019
    %8336 = vmatpush.bf16.msra.mxu0 %v8015
    %8337 = vmatpush.bf16.msra.mxu0 %v8011
    %8338 = vmatpush.bf16.msra.mxu0 %v8007
    %8339 = vmatpush.bf16.msra.mxu0 %v8003
    %8340 = vmatpush.bf16.msra.mxu0 %v7999
    %8341 = vmatpush.bf16.msra.mxu0 %v7995
    %8342 = vmatmul.bf16.gmra.mxu0 %v7436
    %v8343 = vpop.f32.mrf.mxu0
    %v8344 = vadd.f32 %v8331, %v8343
    %v8345 = vpop.f32.mrf.mxu0
    %8346 = vdwg.mxu0
    %8347 = vmatpush.bf16.msra.mxu0 %v8055
    %8348 = vmatpush.bf16.msra.mxu0 %v8051
    %8349 = vmatpush.bf16.msra.mxu0 %v8047
    %8350 = vmatpush.bf16.msra.mxu0 %v8043
    %8351 = vmatpush.bf16.msra.mxu0 %v8039
    %8352 = vmatpush.bf16.msra.mxu0 %v8035
    %8353 = vmatpush.bf16.msra.mxu0 %v8031
    %8354 = vmatpush.bf16.msra.mxu0 %v8027
    %8355 = vmatmul.bf16.gmra.mxu0 %v7437
    %v8356 = vpop.f32.mrf.mxu0
    %v8357 = vadd.f32 %v8344, %v8356
    %v8358 = vpop.f32.mrf.mxu0
    %8359 = vdwg.mxu0
    %8360 = vmatpush.bf16.msra.mxu0 %v8087
    %8361 = vmatpush.bf16.msra.mxu0 %v8083
    %8362 = vmatpush.bf16.msra.mxu0 %v8079
    %8363 = vmatpush.bf16.msra.mxu0 %v8075
    %8364 = vmatpush.bf16.msra.mxu0 %v8071
    %8365 = vmatpush.bf16.msra.mxu0 %v8067
    %8366 = vmatpush.bf16.msra.mxu0 %v8063
    %8367 = vmatpush.bf16.msra.mxu0 %v8059
    %8368 = vmatmul.bf16.gmra.mxu0 %v7438
    %v8369 = vpop.f32.mrf.mxu0
    %v8370 = vadd.f32 %v8357, %v8369
    %v8371 = vpop.f32.mrf.mxu0
    %8372 = vdwg.mxu0
    %8373 = vmatpush.bf16.msra.mxu0 %v7992
    %8374 = vmatpush.bf16.msra.mxu0 %v7988
    %8375 = vmatpush.bf16.msra.mxu0 %v7984
    %8376 = vmatpush.bf16.msra.mxu0 %v7980
    %8377 = vmatpush.bf16.msra.mxu0 %v7976
    %8378 = vmatpush.bf16.msra.mxu0 %v7972
    %8379 = vmatpush.bf16.msra.mxu0 %v7968
    %8380 = vmatpush.bf16.msra.mxu0 %v7964
    %8381 = vmatmul.bf16.gmra.mxu0 %v7435
    %v8382 = vpop.f32.mrf.mxu0
    %v8383 = vadd.f32 %v7572, %v8382
    %v8384 = vpop.f32.mrf.mxu0
    %8385 = vdwg.mxu0
    %8386 = vmatpush.bf16.msra.mxu0 %v8024
    %8387 = vmatpush.bf16.msra.mxu0 %v8020
    %8388 = vmatpush.bf16.msra.mxu0 %v8016
    %8389 = vmatpush.bf16.msra.mxu0 %v8012
    %8390 = vmatpush.bf16.msra.mxu0 %v8008
    %8391 = vmatpush.bf16.msra.mxu0 %v8004
    %8392 = vmatpush.bf16.msra.mxu0 %v8000
    %8393 = vmatpush.bf16.msra.mxu0 %v7996
    %8394 = vmatmul.bf16.gmra.mxu0 %v7436
    %v8395 = vpop.f32.mrf.mxu0
    %v8396 = vadd.f32 %v8383, %v8395
    %v8397 = vpop.f32.mrf.mxu0
    %8398 = vdwg.mxu0
    %8399 = vmatpush.bf16.msra.mxu0 %v8056
    %8400 = vmatpush.bf16.msra.mxu0 %v8052
    %8401 = vmatpush.bf16.msra.mxu0 %v8048
    %8402 = vmatpush.bf16.msra.mxu0 %v8044
    %8403 = vmatpush.bf16.msra.mxu0 %v8040
    %8404 = vmatpush.bf16.msra.mxu0 %v8036
    %8405 = vmatpush.bf16.msra.mxu0 %v8032
    %8406 = vmatpush.bf16.msra.mxu0 %v8028
    %8407 = vmatmul.bf16.gmra.mxu0 %v7437
    %v8408 = vpop.f32.mrf.mxu0
    %v8409 = vadd.f32 %v8396, %v8408
    %v8410 = vpop.f32.mrf.mxu0
    %8411 = vdwg.mxu0
    %8412 = vmatpush.bf16.msra.mxu0 %v8088
    %8413 = vmatpush.bf16.msra.mxu0 %v8084
    %8414 = vmatpush.bf16.msra.mxu0 %v8080
    %8415 = vmatpush.bf16.msra.mxu0 %v8076
    %8416 = vmatpush.bf16.msra.mxu0 %v8072
    %8417 = vmatpush.bf16.msra.mxu0 %v8068
    %8418 = vmatpush.bf16.msra.mxu0 %v8064
    %8419 = vmatpush.bf16.msra.mxu0 %v8060
    %8420 = vmatmul.bf16.gmra.mxu0 %v7438
    %v8421 = vpop.f32.mrf.mxu0
    %v8422 = vadd.f32 %v8409, %v8421
    %v8423 = vpop.f32.mrf.mxu0
    %8424 = vdwg.mxu0
    %vm8425 = vcmp.ge.f32.partialorder %v8266, 0.0
    %vm8426 = vcmp.ge.f32.partialorder %v8318, 0.0
    %vm8427 = vcmp.ge.f32.partialorder %v8370, 0.0
    %vm8428 = vcmp.ge.f32.partialorder %v8422, 0.0
    %v8429 = vmul.f32 %v8266, 0.01
    %v8430 = vmul.f32 %v8318, 0.01
    %v8431 = vmul.f32 %v8370, 0.01
    %v8432 = vmul.f32 %v8422, 0.01
    %v8433 = vsel %vm8425, %v8266, %v8429
    %v8434 = vsel %vm8426, %v8318, %v8430
    %v8435 = vsel %vm8427, %v8370, %v8431
    %v8436 = vsel %vm8428, %v8422, %v8432
    %v8437 = vpack.c.bf16 %v8433, %v8433
    %v8438 = vpack.c.bf16 %v8434, %v8434
    %v8439 = vpack.c.bf16 %v8435, %v8435
    %v8440 = vpack.c.bf16 %v8436, %v8436
    %v8441 = vld [vmem:[#allocation13 + $0x10] sm:$0xff]
    %v8442 = vld [vmem:[#allocation13 + $0x18] sm:$0xff]
    %v8443 = vld [vmem:[#allocation13 + $0x30] sm:$0xff]
    %v8444 = vld [vmem:[#allocation13 + $0x38] sm:$0xff]
    %v8445 = vld [vmem:[#allocation13 + $0x50] sm:$0xff]
    %v8446 = vld [vmem:[#allocation13 + $0x58] sm:$0xff]
    %v8447 = vld [vmem:[#allocation13 + $0x70] sm:$0xff]
    %v8448 = vld [vmem:[#allocation13 + $0x78] sm:$0xff]
    %v8449 = vld [vmem:[#allocation13 + $0x90] sm:$0xff]
    %v8450 = vld [vmem:[#allocation13 + $0x98] sm:$0xff]
    %v8451 = vld [vmem:[#allocation13 + $0xb0] sm:$0xff]
    %v8452 = vld [vmem:[#allocation13 + $0xb8] sm:$0xff]
    %v8453 = vld [vmem:[#allocation13 + $0xd0] sm:$0xff]
    %v8454 = vld [vmem:[#allocation13 + $0xd8] sm:$0xff]
    %v8455 = vld [vmem:[#allocation13 + $0xf0] sm:$0xff]
    %v8456 = vld [vmem:[#allocation13 + $0xf8] sm:$0xff]
    %v8457 = vld [vmem:[#allocation13 + $0x110] sm:$0xff]
    %v8458 = vld [vmem:[#allocation13 + $0x118] sm:$0xff]
    %v8459 = vld [vmem:[#allocation13 + $0x130] sm:$0xff]
    %v8460 = vld [vmem:[#allocation13 + $0x138] sm:$0xff]
    %v8461 = vld [vmem:[#allocation13 + $0x150] sm:$0xff]
    %v8462 = vld [vmem:[#allocation13 + $0x158] sm:$0xff]
    %v8463 = vld [vmem:[#allocation13 + $0x170] sm:$0xff]
    %v8464 = vld [vmem:[#allocation13 + $0x178] sm:$0xff]
    %v8465 = vld [vmem:[#allocation13 + $0x190] sm:$0xff]
    %v8466 = vld [vmem:[#allocation13 + $0x198] sm:$0xff]
    %v8467 = vld [vmem:[#allocation13 + $0x1b0] sm:$0xff]
    %v8468 = vld [vmem:[#allocation13 + $0x1b8] sm:$0xff]
    %v8469 = vld [vmem:[#allocation13 + $0x1d0] sm:$0xff]
    %v8470 = vld [vmem:[#allocation13 + $0x1d8] sm:$0xff]
    %v8471 = vld [vmem:[#allocation13 + $0x1f0] sm:$0xff]
    %v8472 = vld [vmem:[#allocation13 + $0x1f8] sm:$0xff]
    %v8473 = vld [vmem:[#allocation13 + $0x210] sm:$0xff]
    %v8474 = vld [vmem:[#allocation13 + $0x218] sm:$0xff]
    %v8475 = vld [vmem:[#allocation13 + $0x230] sm:$0xff]
    %v8476 = vld [vmem:[#allocation13 + $0x238] sm:$0xff]
    %v8477 = vld [vmem:[#allocation13 + $0x250] sm:$0xff]
    %v8478 = vld [vmem:[#allocation13 + $0x258] sm:$0xff]
    %v8479 = vld [vmem:[#allocation13 + $0x270] sm:$0xff]
    %v8480 = vld [vmem:[#allocation13 + $0x278] sm:$0xff]
    %v8481 = vld [vmem:[#allocation13 + $0x290] sm:$0xff]
    %v8482 = vld [vmem:[#allocation13 + $0x298] sm:$0xff]
    %v8483 = vld [vmem:[#allocation13 + $0x2b0] sm:$0xff]
    %v8484 = vld [vmem:[#allocation13 + $0x2b8] sm:$0xff]
    %v8485 = vld [vmem:[#allocation13 + $0x2d0] sm:$0xff]
    %v8486 = vld [vmem:[#allocation13 + $0x2d8] sm:$0xff]
    %v8487 = vld [vmem:[#allocation13 + $0x2f0] sm:$0xff]
    %v8488 = vld [vmem:[#allocation13 + $0x2f8] sm:$0xff]
    %v8489 = vld [vmem:[#allocation13 + $0x310] sm:$0xff]
    %v8490 = vld [vmem:[#allocation13 + $0x318] sm:$0xff]
    %v8491 = vld [vmem:[#allocation13 + $0x330] sm:$0xff]
    %v8492 = vld [vmem:[#allocation13 + $0x338] sm:$0xff]
    %v8493 = vld [vmem:[#allocation13 + $0x350] sm:$0xff]
    %v8494 = vld [vmem:[#allocation13 + $0x358] sm:$0xff]
    %v8495 = vld [vmem:[#allocation13 + $0x370] sm:$0xff]
    %v8496 = vld [vmem:[#allocation13 + $0x378] sm:$0xff]
    %v8497 = vld [vmem:[#allocation13 + $0x390] sm:$0xff]
    %v8498 = vld [vmem:[#allocation13 + $0x398] sm:$0xff]
    %v8499 = vld [vmem:[#allocation13 + $0x3b0] sm:$0xff]
    %v8500 = vld [vmem:[#allocation13 + $0x3b8] sm:$0xff]
    %v8501 = vld [vmem:[#allocation13 + $0x3d0] sm:$0xff]
    %v8502 = vld [vmem:[#allocation13 + $0x3d8] sm:$0xff]
    %v8503 = vld [vmem:[#allocation13 + $0x3f0] sm:$0xff]
    %v8504 = vld [vmem:[#allocation13 + $0x3f8] sm:$0xff]
    %v8505 = vld [vmem:[#allocation13 + $0x410] sm:$0xff]
    %v8506 = vld [vmem:[#allocation13 + $0x418] sm:$0xff]
    %v8507 = vld [vmem:[#allocation13 + $0x430] sm:$0xff]
    %v8508 = vld [vmem:[#allocation13 + $0x438] sm:$0xff]
    %v8509 = vld [vmem:[#allocation13 + $0x450] sm:$0xff]
    %v8510 = vld [vmem:[#allocation13 + $0x458] sm:$0xff]
    %v8511 = vld [vmem:[#allocation13 + $0x470] sm:$0xff]
    %v8512 = vld [vmem:[#allocation13 + $0x478] sm:$0xff]
    %v8513 = vld [vmem:[#allocation13 + $0x490] sm:$0xff]
    %v8514 = vld [vmem:[#allocation13 + $0x498] sm:$0xff]
    %v8515 = vld [vmem:[#allocation13 + $0x4b0] sm:$0xff]
    %v8516 = vld [vmem:[#allocation13 + $0x4b8] sm:$0xff]
    %v8517 = vld [vmem:[#allocation13 + $0x4d0] sm:$0xff]
    %v8518 = vld [vmem:[#allocation13 + $0x4d8] sm:$0xff]
    %v8519 = vld [vmem:[#allocation13 + $0x4f0] sm:$0xff]
    %v8520 = vld [vmem:[#allocation13 + $0x4f8] sm:$0xff]
    %v8521 = vld [vmem:[#allocation13 + $0x510] sm:$0xff]
    %v8522 = vld [vmem:[#allocation13 + $0x518] sm:$0xff]
    %v8523 = vld [vmem:[#allocation13 + $0x530] sm:$0xff]
    %v8524 = vld [vmem:[#allocation13 + $0x538] sm:$0xff]
    %v8525 = vld [vmem:[#allocation13 + $0x550] sm:$0xff]
    %v8526 = vld [vmem:[#allocation13 + $0x558] sm:$0xff]
    %v8527 = vld [vmem:[#allocation13 + $0x570] sm:$0xff]
    %v8528 = vld [vmem:[#allocation13 + $0x578] sm:$0xff]
    %v8529 = vld [vmem:[#allocation13 + $0x590] sm:$0xff]
    %v8530 = vld [vmem:[#allocation13 + $0x598] sm:$0xff]
    %v8531 = vld [vmem:[#allocation13 + $0x5b0] sm:$0xff]
    %v8532 = vld [vmem:[#allocation13 + $0x5b8] sm:$0xff]
    %v8533 = vld [vmem:[#allocation13 + $0x5d0] sm:$0xff]
    %v8534 = vld [vmem:[#allocation13 + $0x5d8] sm:$0xff]
    %v8535 = vld [vmem:[#allocation13 + $0x5f0] sm:$0xff]
    %v8536 = vld [vmem:[#allocation13 + $0x5f8] sm:$0xff]
    %v8537 = vld [vmem:[#allocation13 + $0x610] sm:$0xff]
    %v8538 = vld [vmem:[#allocation13 + $0x618] sm:$0xff]
    %v8539 = vld [vmem:[#allocation13 + $0x630] sm:$0xff]
    %v8540 = vld [vmem:[#allocation13 + $0x638] sm:$0xff]
    %v8541 = vld [vmem:[#allocation13 + $0x650] sm:$0xff]
    %v8542 = vld [vmem:[#allocation13 + $0x658] sm:$0xff]
    %v8543 = vld [vmem:[#allocation13 + $0x670] sm:$0xff]
    %v8544 = vld [vmem:[#allocation13 + $0x678] sm:$0xff]
    %v8545 = vld [vmem:[#allocation13 + $0x690] sm:$0xff]
    %v8546 = vld [vmem:[#allocation13 + $0x698] sm:$0xff]
    %v8547 = vld [vmem:[#allocation13 + $0x6b0] sm:$0xff]
    %v8548 = vld [vmem:[#allocation13 + $0x6b8] sm:$0xff]
    %v8549 = vld [vmem:[#allocation13 + $0x6d0] sm:$0xff]
    %v8550 = vld [vmem:[#allocation13 + $0x6d8] sm:$0xff]
    %v8551 = vld [vmem:[#allocation13 + $0x6f0] sm:$0xff]
    %v8552 = vld [vmem:[#allocation13 + $0x6f8] sm:$0xff]
    %v8553 = vld [vmem:[#allocation13 + $0x710] sm:$0xff]
    %v8554 = vld [vmem:[#allocation13 + $0x718] sm:$0xff]
    %v8555 = vld [vmem:[#allocation13 + $0x730] sm:$0xff]
    %v8556 = vld [vmem:[#allocation13 + $0x738] sm:$0xff]
    %v8557 = vld [vmem:[#allocation13 + $0x750] sm:$0xff]
    %v8558 = vld [vmem:[#allocation13 + $0x758] sm:$0xff]
    %v8559 = vld [vmem:[#allocation13 + $0x770] sm:$0xff]
    %v8560 = vld [vmem:[#allocation13 + $0x778] sm:$0xff]
    %v8561 = vld [vmem:[#allocation13 + $0x790] sm:$0xff]
    %v8562 = vld [vmem:[#allocation13 + $0x798] sm:$0xff]
    %v8563 = vld [vmem:[#allocation13 + $0x7b0] sm:$0xff]
    %v8564 = vld [vmem:[#allocation13 + $0x7b8] sm:$0xff]
    %v8565 = vld [vmem:[#allocation13 + $0x7d0] sm:$0xff]
    %v8566 = vld [vmem:[#allocation13 + $0x7d8] sm:$0xff]
    %v8567 = vld [vmem:[#allocation13 + $0x7f0] sm:$0xff]
    %v8568 = vld [vmem:[#allocation13 + $0x7f8] sm:$0xff]
    %v8569 = vld [vmem:[#allocation14 + $0x4] sm:$0xf]
    %v8571 = vperm.slane %v8569, 0
    %v8572 = vperm.slane %v8569, 1
    %v8573 = vperm.slane %v8569, 2
    %v8574 = vperm.slane %v8569, 3
    %v8707 = vunpack.c.l.b16 %v8441
    %v8708 = vunpack.c.h.b16 %v8441
    %v8709 = vunpack.c.l.b16 %v8442
    %v8710 = vunpack.c.h.b16 %v8442
    %v8711 = vunpack.c.l.b16 %v8443
    %v8712 = vunpack.c.h.b16 %v8443
    %v8713 = vunpack.c.l.b16 %v8444
    %v8714 = vunpack.c.h.b16 %v8444
    %v8715 = vunpack.c.l.b16 %v8445
    %v8716 = vunpack.c.h.b16 %v8445
    %v8717 = vunpack.c.l.b16 %v8446
    %v8718 = vunpack.c.h.b16 %v8446
    %v8719 = vunpack.c.l.b16 %v8447
    %v8720 = vunpack.c.h.b16 %v8447
    %v8721 = vunpack.c.l.b16 %v8448
    %v8722 = vunpack.c.h.b16 %v8448
    %v8723 = vunpack.c.l.b16 %v8449
    %v8724 = vunpack.c.h.b16 %v8449
    %v8725 = vunpack.c.l.b16 %v8450
    %v8726 = vunpack.c.h.b16 %v8450
    %v8727 = vunpack.c.l.b16 %v8451
    %v8728 = vunpack.c.h.b16 %v8451
    %v8729 = vunpack.c.l.b16 %v8452
    %v8730 = vunpack.c.h.b16 %v8452
    %v8731 = vunpack.c.l.b16 %v8453
    %v8732 = vunpack.c.h.b16 %v8453
    %v8733 = vunpack.c.l.b16 %v8454
    %v8734 = vunpack.c.h.b16 %v8454
    %v8735 = vunpack.c.l.b16 %v8455
    %v8736 = vunpack.c.h.b16 %v8455
    %v8737 = vunpack.c.l.b16 %v8456
    %v8738 = vunpack.c.h.b16 %v8456
    %v8739 = vunpack.c.l.b16 %v8457
    %v8740 = vunpack.c.h.b16 %v8457
    %v8741 = vunpack.c.l.b16 %v8458
    %v8742 = vunpack.c.h.b16 %v8458
    %v8743 = vunpack.c.l.b16 %v8459
    %v8744 = vunpack.c.h.b16 %v8459
    %v8745 = vunpack.c.l.b16 %v8460
    %v8746 = vunpack.c.h.b16 %v8460
    %v8747 = vunpack.c.l.b16 %v8461
    %v8748 = vunpack.c.h.b16 %v8461
    %v8749 = vunpack.c.l.b16 %v8462
    %v8750 = vunpack.c.h.b16 %v8462
    %v8751 = vunpack.c.l.b16 %v8463
    %v8752 = vunpack.c.h.b16 %v8463
    %v8753 = vunpack.c.l.b16 %v8464
    %v8754 = vunpack.c.h.b16 %v8464
    %v8755 = vunpack.c.l.b16 %v8465
    %v8756 = vunpack.c.h.b16 %v8465
    %v8757 = vunpack.c.l.b16 %v8466
    %v8758 = vunpack.c.h.b16 %v8466
    %v8759 = vunpack.c.l.b16 %v8467
    %v8760 = vunpack.c.h.b16 %v8467
    %v8761 = vunpack.c.l.b16 %v8468
    %v8762 = vunpack.c.h.b16 %v8468
    %v8763 = vunpack.c.l.b16 %v8469
    %v8764 = vunpack.c.h.b16 %v8469
    %v8765 = vunpack.c.l.b16 %v8470
    %v8766 = vunpack.c.h.b16 %v8470
    %v8767 = vunpack.c.l.b16 %v8471
    %v8768 = vunpack.c.h.b16 %v8471
    %v8769 = vunpack.c.l.b16 %v8472
    %v8770 = vunpack.c.h.b16 %v8472
    %v8771 = vunpack.c.l.b16 %v8473
    %v8772 = vunpack.c.h.b16 %v8473
    %v8773 = vunpack.c.l.b16 %v8474
    %v8774 = vunpack.c.h.b16 %v8474
    %v8775 = vunpack.c.l.b16 %v8475
    %v8776 = vunpack.c.h.b16 %v8475
    %v8777 = vunpack.c.l.b16 %v8476
    %v8778 = vunpack.c.h.b16 %v8476
    %v8779 = vunpack.c.l.b16 %v8477
    %v8780 = vunpack.c.h.b16 %v8477
    %v8781 = vunpack.c.l.b16 %v8478
    %v8782 = vunpack.c.h.b16 %v8478
    %v8783 = vunpack.c.l.b16 %v8479
    %v8784 = vunpack.c.h.b16 %v8479
    %v8785 = vunpack.c.l.b16 %v8480
    %v8786 = vunpack.c.h.b16 %v8480
    %v8787 = vunpack.c.l.b16 %v8481
    %v8788 = vunpack.c.h.b16 %v8481
    %v8789 = vunpack.c.l.b16 %v8482
    %v8790 = vunpack.c.h.b16 %v8482
    %v8791 = vunpack.c.l.b16 %v8483
    %v8792 = vunpack.c.h.b16 %v8483
    %v8793 = vunpack.c.l.b16 %v8484
    %v8794 = vunpack.c.h.b16 %v8484
    %v8795 = vunpack.c.l.b16 %v8485
    %v8796 = vunpack.c.h.b16 %v8485
    %v8797 = vunpack.c.l.b16 %v8486
    %v8798 = vunpack.c.h.b16 %v8486
    %v8799 = vunpack.c.l.b16 %v8487
    %v8800 = vunpack.c.h.b16 %v8487
    %v8801 = vunpack.c.l.b16 %v8488
    %v8802 = vunpack.c.h.b16 %v8488
    %v8803 = vunpack.c.l.b16 %v8489
    %v8804 = vunpack.c.h.b16 %v8489
    %v8805 = vunpack.c.l.b16 %v8490
    %v8806 = vunpack.c.h.b16 %v8490
    %v8807 = vunpack.c.l.b16 %v8491
    %v8808 = vunpack.c.h.b16 %v8491
    %v8809 = vunpack.c.l.b16 %v8492
    %v8810 = vunpack.c.h.b16 %v8492
    %v8811 = vunpack.c.l.b16 %v8493
    %v8812 = vunpack.c.h.b16 %v8493
    %v8813 = vunpack.c.l.b16 %v8494
    %v8814 = vunpack.c.h.b16 %v8494
    %v8815 = vunpack.c.l.b16 %v8495
    %v8816 = vunpack.c.h.b16 %v8495
    %v8817 = vunpack.c.l.b16 %v8496
    %v8818 = vunpack.c.h.b16 %v8496
    %v8819 = vunpack.c.l.b16 %v8497
    %v8820 = vunpack.c.h.b16 %v8497
    %v8821 = vunpack.c.l.b16 %v8498
    %v8822 = vunpack.c.h.b16 %v8498
    %v8823 = vunpack.c.l.b16 %v8499
    %v8824 = vunpack.c.h.b16 %v8499
    %v8825 = vunpack.c.l.b16 %v8500
    %v8826 = vunpack.c.h.b16 %v8500
    %v8827 = vunpack.c.l.b16 %v8501
    %v8828 = vunpack.c.h.b16 %v8501
    %v8829 = vunpack.c.l.b16 %v8502
    %v8830 = vunpack.c.h.b16 %v8502
    %v8831 = vunpack.c.l.b16 %v8503
    %v8832 = vunpack.c.h.b16 %v8503
    %v8833 = vunpack.c.l.b16 %v8504
    %v8834 = vunpack.c.h.b16 %v8504
    %v8835 = vunpack.c.l.b16 %v8505
    %v8836 = vunpack.c.h.b16 %v8505
    %v8837 = vunpack.c.l.b16 %v8506
    %v8838 = vunpack.c.h.b16 %v8506
    %v8839 = vunpack.c.l.b16 %v8507
    %v8840 = vunpack.c.h.b16 %v8507
    %v8841 = vunpack.c.l.b16 %v8508
    %v8842 = vunpack.c.h.b16 %v8508
    %v8843 = vunpack.c.l.b16 %v8509
    %v8844 = vunpack.c.h.b16 %v8509
    %v8845 = vunpack.c.l.b16 %v8510
    %v8846 = vunpack.c.h.b16 %v8510
    %v8847 = vunpack.c.l.b16 %v8511
    %v8848 = vunpack.c.h.b16 %v8511
    %v8849 = vunpack.c.l.b16 %v8512
    %v8850 = vunpack.c.h.b16 %v8512
    %v8851 = vunpack.c.l.b16 %v8513
    %v8852 = vunpack.c.h.b16 %v8513
    %v8853 = vunpack.c.l.b16 %v8514
    %v8854 = vunpack.c.h.b16 %v8514
    %v8855 = vunpack.c.l.b16 %v8515
    %v8856 = vunpack.c.h.b16 %v8515
    %v8857 = vunpack.c.l.b16 %v8516
    %v8858 = vunpack.c.h.b16 %v8516
    %v8859 = vunpack.c.l.b16 %v8517
    %v8860 = vunpack.c.h.b16 %v8517
    %v8861 = vunpack.c.l.b16 %v8518
    %v8862 = vunpack.c.h.b16 %v8518
    %v8863 = vunpack.c.l.b16 %v8519
    %v8864 = vunpack.c.h.b16 %v8519
    %v8865 = vunpack.c.l.b16 %v8520
    %v8866 = vunpack.c.h.b16 %v8520
    %v8867 = vunpack.c.l.b16 %v8521
    %v8868 = vunpack.c.h.b16 %v8521
    %v8869 = vunpack.c.l.b16 %v8522
    %v8870 = vunpack.c.h.b16 %v8522
    %v8871 = vunpack.c.l.b16 %v8523
    %v8872 = vunpack.c.h.b16 %v8523
    %v8873 = vunpack.c.l.b16 %v8524
    %v8874 = vunpack.c.h.b16 %v8524
    %v8875 = vunpack.c.l.b16 %v8525
    %v8876 = vunpack.c.h.b16 %v8525
    %v8877 = vunpack.c.l.b16 %v8526
    %v8878 = vunpack.c.h.b16 %v8526
    %v8879 = vunpack.c.l.b16 %v8527
    %v8880 = vunpack.c.h.b16 %v8527
    %v8881 = vunpack.c.l.b16 %v8528
    %v8882 = vunpack.c.h.b16 %v8528
    %v8883 = vunpack.c.l.b16 %v8529
    %v8884 = vunpack.c.h.b16 %v8529
    %v8885 = vunpack.c.l.b16 %v8530
    %v8886 = vunpack.c.h.b16 %v8530
    %v8887 = vunpack.c.l.b16 %v8531
    %v8888 = vunpack.c.h.b16 %v8531
    %v8889 = vunpack.c.l.b16 %v8532
    %v8890 = vunpack.c.h.b16 %v8532
    %v8891 = vunpack.c.l.b16 %v8533
    %v8892 = vunpack.c.h.b16 %v8533
    %v8893 = vunpack.c.l.b16 %v8534
    %v8894 = vunpack.c.h.b16 %v8534
    %v8895 = vunpack.c.l.b16 %v8535
    %v8896 = vunpack.c.h.b16 %v8535
    %v8897 = vunpack.c.l.b16 %v8536
    %v8898 = vunpack.c.h.b16 %v8536
    %v8899 = vunpack.c.l.b16 %v8537
    %v8900 = vunpack.c.h.b16 %v8537
    %v8901 = vunpack.c.l.b16 %v8538
    %v8902 = vunpack.c.h.b16 %v8538
    %v8903 = vunpack.c.l.b16 %v8539
    %v8904 = vunpack.c.h.b16 %v8539
    %v8905 = vunpack.c.l.b16 %v8540
    %v8906 = vunpack.c.h.b16 %v8540
    %v8907 = vunpack.c.l.b16 %v8541
    %v8908 = vunpack.c.h.b16 %v8541
    %v8909 = vunpack.c.l.b16 %v8542
    %v8910 = vunpack.c.h.b16 %v8542
    %v8911 = vunpack.c.l.b16 %v8543
    %v8912 = vunpack.c.h.b16 %v8543
    %v8913 = vunpack.c.l.b16 %v8544
    %v8914 = vunpack.c.h.b16 %v8544
    %v8915 = vunpack.c.l.b16 %v8545
    %v8916 = vunpack.c.h.b16 %v8545
    %v8917 = vunpack.c.l.b16 %v8546
    %v8918 = vunpack.c.h.b16 %v8546
    %v8919 = vunpack.c.l.b16 %v8547
    %v8920 = vunpack.c.h.b16 %v8547
    %v8921 = vunpack.c.l.b16 %v8548
    %v8922 = vunpack.c.h.b16 %v8548
    %v8923 = vunpack.c.l.b16 %v8549
    %v8924 = vunpack.c.h.b16 %v8549
    %v8925 = vunpack.c.l.b16 %v8550
    %v8926 = vunpack.c.h.b16 %v8550
    %v8927 = vunpack.c.l.b16 %v8551
    %v8928 = vunpack.c.h.b16 %v8551
    %v8929 = vunpack.c.l.b16 %v8552
    %v8930 = vunpack.c.h.b16 %v8552
    %v8931 = vunpack.c.l.b16 %v8553
    %v8932 = vunpack.c.h.b16 %v8553
    %v8933 = vunpack.c.l.b16 %v8554
    %v8934 = vunpack.c.h.b16 %v8554
    %v8935 = vunpack.c.l.b16 %v8555
    %v8936 = vunpack.c.h.b16 %v8555
    %v8937 = vunpack.c.l.b16 %v8556
    %v8938 = vunpack.c.h.b16 %v8556
    %v8939 = vunpack.c.l.b16 %v8557
    %v8940 = vunpack.c.h.b16 %v8557
    %v8941 = vunpack.c.l.b16 %v8558
    %v8942 = vunpack.c.h.b16 %v8558
    %v8943 = vunpack.c.l.b16 %v8559
    %v8944 = vunpack.c.h.b16 %v8559
    %v8945 = vunpack.c.l.b16 %v8560
    %v8946 = vunpack.c.h.b16 %v8560
    %v8947 = vunpack.c.l.b16 %v8561
    %v8948 = vunpack.c.h.b16 %v8561
    %v8949 = vunpack.c.l.b16 %v8562
    %v8950 = vunpack.c.h.b16 %v8562
    %v8951 = vunpack.c.l.b16 %v8563
    %v8952 = vunpack.c.h.b16 %v8563
    %v8953 = vunpack.c.l.b16 %v8564
    %v8954 = vunpack.c.h.b16 %v8564
    %v8955 = vunpack.c.l.b16 %v8565
    %v8956 = vunpack.c.h.b16 %v8565
    %v8957 = vunpack.c.l.b16 %v8566
    %v8958 = vunpack.c.h.b16 %v8566
    %v8959 = vunpack.c.l.b16 %v8567
    %v8960 = vunpack.c.h.b16 %v8567
    %v8961 = vunpack.c.l.b16 %v8568
    %v8962 = vunpack.c.h.b16 %v8568
    %v8963 = vpack.c.b16 %v8711, %v8707
    %v8964 = vpack.c.b16 %v8712, %v8708
    %v8965 = vpack.c.b16 %v8713, %v8709
    %v8966 = vpack.c.b16 %v8714, %v8710
    %v8967 = vpack.c.b16 %v8719, %v8715
    %v8968 = vpack.c.b16 %v8720, %v8716
    %v8969 = vpack.c.b16 %v8721, %v8717
    %v8970 = vpack.c.b16 %v8722, %v8718
    %v8971 = vpack.c.b16 %v8727, %v8723
    %v8972 = vpack.c.b16 %v8728, %v8724
    %v8973 = vpack.c.b16 %v8729, %v8725
    %v8974 = vpack.c.b16 %v8730, %v8726
    %v8975 = vpack.c.b16 %v8735, %v8731
    %v8976 = vpack.c.b16 %v8736, %v8732
    %v8977 = vpack.c.b16 %v8737, %v8733
    %v8978 = vpack.c.b16 %v8738, %v8734
    %v8979 = vpack.c.b16 %v8743, %v8739
    %v8980 = vpack.c.b16 %v8744, %v8740
    %v8981 = vpack.c.b16 %v8745, %v8741
    %v8982 = vpack.c.b16 %v8746, %v8742
    %v8983 = vpack.c.b16 %v8751, %v8747
    %v8984 = vpack.c.b16 %v8752, %v8748
    %v8985 = vpack.c.b16 %v8753, %v8749
    %v8986 = vpack.c.b16 %v8754, %v8750
    %v8987 = vpack.c.b16 %v8759, %v8755
    %v8988 = vpack.c.b16 %v8760, %v8756
    %v8989 = vpack.c.b16 %v8761, %v8757
    %v8990 = vpack.c.b16 %v8762, %v8758
    %v8991 = vpack.c.b16 %v8767, %v8763
    %v8992 = vpack.c.b16 %v8768, %v8764
    %v8993 = vpack.c.b16 %v8769, %v8765
    %v8994 = vpack.c.b16 %v8770, %v8766
    %v8995 = vpack.c.b16 %v8775, %v8771
    %v8996 = vpack.c.b16 %v8776, %v8772
    %v8997 = vpack.c.b16 %v8777, %v8773
    %v8998 = vpack.c.b16 %v8778, %v8774
    %v8999 = vpack.c.b16 %v8783, %v8779
    %v9000 = vpack.c.b16 %v8784, %v8780
    %v9001 = vpack.c.b16 %v8785, %v8781
    %v9002 = vpack.c.b16 %v8786, %v8782
    %v9003 = vpack.c.b16 %v8791, %v8787
    %v9004 = vpack.c.b16 %v8792, %v8788
    %v9005 = vpack.c.b16 %v8793, %v8789
    %v9006 = vpack.c.b16 %v8794, %v8790
    %v9007 = vpack.c.b16 %v8799, %v8795
    %v9008 = vpack.c.b16 %v8800, %v8796
    %v9009 = vpack.c.b16 %v8801, %v8797
    %v9010 = vpack.c.b16 %v8802, %v8798
    %v9011 = vpack.c.b16 %v8807, %v8803
    %v9012 = vpack.c.b16 %v8808, %v8804
    %v9013 = vpack.c.b16 %v8809, %v8805
    %v9014 = vpack.c.b16 %v8810, %v8806
    %v9015 = vpack.c.b16 %v8815, %v8811
    %v9016 = vpack.c.b16 %v8816, %v8812
    %v9017 = vpack.c.b16 %v8817, %v8813
    %v9018 = vpack.c.b16 %v8818, %v8814
    %v9019 = vpack.c.b16 %v8823, %v8819
    %v9020 = vpack.c.b16 %v8824, %v8820
    %v9021 = vpack.c.b16 %v8825, %v8821
    %v9022 = vpack.c.b16 %v8826, %v8822
    %v9023 = vpack.c.b16 %v8831, %v8827
    %v9024 = vpack.c.b16 %v8832, %v8828
    %v9025 = vpack.c.b16 %v8833, %v8829
    %v9026 = vpack.c.b16 %v8834, %v8830
    %v9027 = vpack.c.b16 %v8839, %v8835
    %v9028 = vpack.c.b16 %v8840, %v8836
    %v9029 = vpack.c.b16 %v8841, %v8837
    %v9030 = vpack.c.b16 %v8842, %v8838
    %v9031 = vpack.c.b16 %v8847, %v8843
    %v9032 = vpack.c.b16 %v8848, %v8844
    %v9033 = vpack.c.b16 %v8849, %v8845
    %v9034 = vpack.c.b16 %v8850, %v8846
    %v9035 = vpack.c.b16 %v8855, %v8851
    %v9036 = vpack.c.b16 %v8856, %v8852
    %v9037 = vpack.c.b16 %v8857, %v8853
    %v9038 = vpack.c.b16 %v8858, %v8854
    %v9039 = vpack.c.b16 %v8863, %v8859
    %v9040 = vpack.c.b16 %v8864, %v8860
    %v9041 = vpack.c.b16 %v8865, %v8861
    %v9042 = vpack.c.b16 %v8866, %v8862
    %v9043 = vpack.c.b16 %v8871, %v8867
    %v9044 = vpack.c.b16 %v8872, %v8868
    %v9045 = vpack.c.b16 %v8873, %v8869
    %v9046 = vpack.c.b16 %v8874, %v8870
    %v9047 = vpack.c.b16 %v8879, %v8875
    %v9048 = vpack.c.b16 %v8880, %v8876
    %v9049 = vpack.c.b16 %v8881, %v8877
    %v9050 = vpack.c.b16 %v8882, %v8878
    %v9051 = vpack.c.b16 %v8887, %v8883
    %v9052 = vpack.c.b16 %v8888, %v8884
    %v9053 = vpack.c.b16 %v8889, %v8885
    %v9054 = vpack.c.b16 %v8890, %v8886
    %v9055 = vpack.c.b16 %v8895, %v8891
    %v9056 = vpack.c.b16 %v8896, %v8892
    %v9057 = vpack.c.b16 %v8897, %v8893
    %v9058 = vpack.c.b16 %v8898, %v8894
    %v9059 = vpack.c.b16 %v8903, %v8899
    %v9060 = vpack.c.b16 %v8904, %v8900
    %v9061 = vpack.c.b16 %v8905, %v8901
    %v9062 = vpack.c.b16 %v8906, %v8902
    %v9063 = vpack.c.b16 %v8911, %v8907
    %v9064 = vpack.c.b16 %v8912, %v8908
    %v9065 = vpack.c.b16 %v8913, %v8909
    %v9066 = vpack.c.b16 %v8914, %v8910
    %v9067 = vpack.c.b16 %v8919, %v8915
    %v9068 = vpack.c.b16 %v8920, %v8916
    %v9069 = vpack.c.b16 %v8921, %v8917
    %v9070 = vpack.c.b16 %v8922, %v8918
    %v9071 = vpack.c.b16 %v8927, %v8923
    %v9072 = vpack.c.b16 %v8928, %v8924
    %v9073 = vpack.c.b16 %v8929, %v8925
    %v9074 = vpack.c.b16 %v8930, %v8926
    %v9075 = vpack.c.b16 %v8935, %v8931
    %v9076 = vpack.c.b16 %v8936, %v8932
    %v9077 = vpack.c.b16 %v8937, %v8933
    %v9078 = vpack.c.b16 %v8938, %v8934
    %v9079 = vpack.c.b16 %v8943, %v8939
    %v9080 = vpack.c.b16 %v8944, %v8940
    %v9081 = vpack.c.b16 %v8945, %v8941
    %v9082 = vpack.c.b16 %v8946, %v8942
    %v9083 = vpack.c.b16 %v8951, %v8947
    %v9084 = vpack.c.b16 %v8952, %v8948
    %v9085 = vpack.c.b16 %v8953, %v8949
    %v9086 = vpack.c.b16 %v8954, %v8950
    %v9087 = vpack.c.b16 %v8959, %v8955
    %v9088 = vpack.c.b16 %v8960, %v8956
    %v9089 = vpack.c.b16 %v8961, %v8957
    %v9090 = vpack.c.b16 %v8962, %v8958
    %9219 = vmatpush.bf16.msra.mxu0 %v8991
    %9220 = vmatpush.bf16.msra.mxu0 %v8987
    %9221 = vmatpush.bf16.msra.mxu0 %v8983
    %9222 = vmatpush.bf16.msra.mxu0 %v8979
    %9223 = vmatpush.bf16.msra.mxu0 %v8975
    %9224 = vmatpush.bf16.msra.mxu0 %v8971
    %9225 = vmatpush.bf16.msra.mxu0 %v8967
    %9226 = vmatpush.bf16.msra.mxu0 %v8963
    %9227 = vmatmul.bf16.gmra.mxu0 %v8437
    %v9228 = vpop.f32.mrf.mxu0
    %v9229 = vadd.f32 %v8571, %v9228
    %v9230 = vpop.f32.mrf.mxu0
    %9231 = vdwg.mxu0
    %9232 = vmatpush.bf16.msra.mxu0 %v9023
    %9233 = vmatpush.bf16.msra.mxu0 %v9019
    %9234 = vmatpush.bf16.msra.mxu0 %v9015
    %9235 = vmatpush.bf16.msra.mxu0 %v9011
    %9236 = vmatpush.bf16.msra.mxu0 %v9007
    %9237 = vmatpush.bf16.msra.mxu0 %v9003
    %9238 = vmatpush.bf16.msra.mxu0 %v8999
    %9239 = vmatpush.bf16.msra.mxu0 %v8995
    %9240 = vmatmul.bf16.gmra.mxu0 %v8438
    %v9241 = vpop.f32.mrf.mxu0
    %v9242 = vadd.f32 %v9229, %v9241
    %v9243 = vpop.f32.mrf.mxu0
    %9244 = vdwg.mxu0
    %9245 = vmatpush.bf16.msra.mxu0 %v9055
    %9246 = vmatpush.bf16.msra.mxu0 %v9051
    %9247 = vmatpush.bf16.msra.mxu0 %v9047
    %9248 = vmatpush.bf16.msra.mxu0 %v9043
    %9249 = vmatpush.bf16.msra.mxu0 %v9039
    %9250 = vmatpush.bf16.msra.mxu0 %v9035
    %9251 = vmatpush.bf16.msra.mxu0 %v9031
    %9252 = vmatpush.bf16.msra.mxu0 %v9027
    %9253 = vmatmul.bf16.gmra.mxu0 %v8439
    %v9254 = vpop.f32.mrf.mxu0
    %v9255 = vadd.f32 %v9242, %v9254
    %v9256 = vpop.f32.mrf.mxu0
    %9257 = vdwg.mxu0
    %9258 = vmatpush.bf16.msra.mxu0 %v9087
    %9259 = vmatpush.bf16.msra.mxu0 %v9083
    %9260 = vmatpush.bf16.msra.mxu0 %v9079
    %9261 = vmatpush.bf16.msra.mxu0 %v9075
    %9262 = vmatpush.bf16.msra.mxu0 %v9071
    %9263 = vmatpush.bf16.msra.mxu0 %v9067
    %9264 = vmatpush.bf16.msra.mxu0 %v9063
    %9265 = vmatpush.bf16.msra.mxu0 %v9059
    %9266 = vmatmul.bf16.gmra.mxu0 %v8440
    %v9267 = vpop.f32.mrf.mxu0
    %v9268 = vadd.f32 %v9255, %v9267
    %v9269 = vpop.f32.mrf.mxu0
    %9270 = vdwg.mxu0
    %9271 = vmatpush.bf16.msra.mxu0 %v8992
    %9272 = vmatpush.bf16.msra.mxu0 %v8988
    %9273 = vmatpush.bf16.msra.mxu0 %v8984
    %9274 = vmatpush.bf16.msra.mxu0 %v8980
    %9275 = vmatpush.bf16.msra.mxu0 %v8976
    %9276 = vmatpush.bf16.msra.mxu0 %v8972
    %9277 = vmatpush.bf16.msra.mxu0 %v8968
    %9278 = vmatpush.bf16.msra.mxu0 %v8964
    %9279 = vmatmul.bf16.gmra.mxu0 %v8437
    %v9280 = vpop.f32.mrf.mxu0
    %v9281 = vadd.f32 %v8572, %v9280
    %v9282 = vpop.f32.mrf.mxu0
    %9283 = vdwg.mxu0
    %9284 = vmatpush.bf16.msra.mxu0 %v9024
    %9285 = vmatpush.bf16.msra.mxu0 %v9020
    %9286 = vmatpush.bf16.msra.mxu0 %v9016
    %9287 = vmatpush.bf16.msra.mxu0 %v9012
    %9288 = vmatpush.bf16.msra.mxu0 %v9008
    %9289 = vmatpush.bf16.msra.mxu0 %v9004
    %9290 = vmatpush.bf16.msra.mxu0 %v9000
    %9291 = vmatpush.bf16.msra.mxu0 %v8996
    %9292 = vmatmul.bf16.gmra.mxu0 %v8438
    %v9293 = vpop.f32.mrf.mxu0
    %v9294 = vadd.f32 %v9281, %v9293
    %v9295 = vpop.f32.mrf.mxu0
    %9296 = vdwg.mxu0
    %9297 = vmatpush.bf16.msra.mxu0 %v9056
    %9298 = vmatpush.bf16.msra.mxu0 %v9052
    %9299 = vmatpush.bf16.msra.mxu0 %v9048
    %9300 = vmatpush.bf16.msra.mxu0 %v9044
    %9301 = vmatpush.bf16.msra.mxu0 %v9040
    %9302 = vmatpush.bf16.msra.mxu0 %v9036
    %9303 = vmatpush.bf16.msra.mxu0 %v9032
    %9304 = vmatpush.bf16.msra.mxu0 %v9028
    %9305 = vmatmul.bf16.gmra.mxu0 %v8439
    %v9306 = vpop.f32.mrf.mxu0
    %v9307 = vadd.f32 %v9294, %v9306
    %v9308 = vpop.f32.mrf.mxu0
    %9309 = vdwg.mxu0
    %9310 = vmatpush.bf16.msra.mxu0 %v9088
    %9311 = vmatpush.bf16.msra.mxu0 %v9084
    %9312 = vmatpush.bf16.msra.mxu0 %v9080
    %9313 = vmatpush.bf16.msra.mxu0 %v9076
    %9314 = vmatpush.bf16.msra.mxu0 %v9072
    %9315 = vmatpush.bf16.msra.mxu0 %v9068
    %9316 = vmatpush.bf16.msra.mxu0 %v9064
    %9317 = vmatpush.bf16.msra.mxu0 %v9060
    %9318 = vmatmul.bf16.gmra.mxu0 %v8440
    %v9319 = vpop.f32.mrf.mxu0
    %v9320 = vadd.f32 %v9307, %v9319
    %v9321 = vpop.f32.mrf.mxu0
    %9322 = vdwg.mxu0
    %9323 = vmatpush.bf16.msra.mxu0 %v8993
    %9324 = vmatpush.bf16.msra.mxu0 %v8989
    %9325 = vmatpush.bf16.msra.mxu0 %v8985
    %9326 = vmatpush.bf16.msra.mxu0 %v8981
    %9327 = vmatpush.bf16.msra.mxu0 %v8977
    %9328 = vmatpush.bf16.msra.mxu0 %v8973
    %9329 = vmatpush.bf16.msra.mxu0 %v8969
    %9330 = vmatpush.bf16.msra.mxu0 %v8965
    %9331 = vmatmul.bf16.gmra.mxu0 %v8437
    %v9332 = vpop.f32.mrf.mxu0
    %v9333 = vadd.f32 %v8573, %v9332
    %v9334 = vpop.f32.mrf.mxu0
    %9335 = vdwg.mxu0
    %9336 = vmatpush.bf16.msra.mxu0 %v9025
    %9337 = vmatpush.bf16.msra.mxu0 %v9021
    %9338 = vmatpush.bf16.msra.mxu0 %v9017
    %9339 = vmatpush.bf16.msra.mxu0 %v9013
    %9340 = vmatpush.bf16.msra.mxu0 %v9009
    %9341 = vmatpush.bf16.msra.mxu0 %v9005
    %9342 = vmatpush.bf16.msra.mxu0 %v9001
    %9343 = vmatpush.bf16.msra.mxu0 %v8997
    %9344 = vmatmul.bf16.gmra.mxu0 %v8438
    %v9345 = vpop.f32.mrf.mxu0
    %v9346 = vadd.f32 %v9333, %v9345
    %v9347 = vpop.f32.mrf.mxu0
    %9348 = vdwg.mxu0
    %9349 = vmatpush.bf16.msra.mxu0 %v9057
    %9350 = vmatpush.bf16.msra.mxu0 %v9053
    %9351 = vmatpush.bf16.msra.mxu0 %v9049
    %9352 = vmatpush.bf16.msra.mxu0 %v9045
    %9353 = vmatpush.bf16.msra.mxu0 %v9041
    %9354 = vmatpush.bf16.msra.mxu0 %v9037
    %9355 = vmatpush.bf16.msra.mxu0 %v9033
    %9356 = vmatpush.bf16.msra.mxu0 %v9029
    %9357 = vmatmul.bf16.gmra.mxu0 %v8439
    %v9358 = vpop.f32.mrf.mxu0
    %v9359 = vadd.f32 %v9346, %v9358
    %v9360 = vpop.f32.mrf.mxu0
    %9361 = vdwg.mxu0
    %9362 = vmatpush.bf16.msra.mxu0 %v9089
    %9363 = vmatpush.bf16.msra.mxu0 %v9085
    %9364 = vmatpush.bf16.msra.mxu0 %v9081
    %9365 = vmatpush.bf16.msra.mxu0 %v9077
    %9366 = vmatpush.bf16.msra.mxu0 %v9073
    %9367 = vmatpush.bf16.msra.mxu0 %v9069
    %9368 = vmatpush.bf16.msra.mxu0 %v9065
    %9369 = vmatpush.bf16.msra.mxu0 %v9061
    %9370 = vmatmul.bf16.gmra.mxu0 %v8440
    %v9371 = vpop.f32.mrf.mxu0
    %v9372 = vadd.f32 %v9359, %v9371
    %v9373 = vpop.f32.mrf.mxu0
    %9374 = vdwg.mxu0
    %9375 = vmatpush.bf16.msra.mxu0 %v8994
    %9376 = vmatpush.bf16.msra.mxu0 %v8990
    %9377 = vmatpush.bf16.msra.mxu0 %v8986
    %9378 = vmatpush.bf16.msra.mxu0 %v8982
    %9379 = vmatpush.bf16.msra.mxu0 %v8978
    %9380 = vmatpush.bf16.msra.mxu0 %v8974
    %9381 = vmatpush.bf16.msra.mxu0 %v8970
    %9382 = vmatpush.bf16.msra.mxu0 %v8966
    %9383 = vmatmul.bf16.gmra.mxu0 %v8437
    %v9384 = vpop.f32.mrf.mxu0
    %v9385 = vadd.f32 %v8574, %v9384
    %v9386 = vpop.f32.mrf.mxu0
    %9387 = vdwg.mxu0
    %9388 = vmatpush.bf16.msra.mxu0 %v9026
    %9389 = vmatpush.bf16.msra.mxu0 %v9022
    %9390 = vmatpush.bf16.msra.mxu0 %v9018
    %9391 = vmatpush.bf16.msra.mxu0 %v9014
    %9392 = vmatpush.bf16.msra.mxu0 %v9010
    %9393 = vmatpush.bf16.msra.mxu0 %v9006
    %9394 = vmatpush.bf16.msra.mxu0 %v9002
    %9395 = vmatpush.bf16.msra.mxu0 %v8998
    %9396 = vmatmul.bf16.gmra.mxu0 %v8438
    %v9397 = vpop.f32.mrf.mxu0
    %v9398 = vadd.f32 %v9385, %v9397
    %v9399 = vpop.f32.mrf.mxu0
    %9400 = vdwg.mxu0
    %9401 = vmatpush.bf16.msra.mxu0 %v9058
    %9402 = vmatpush.bf16.msra.mxu0 %v9054
    %9403 = vmatpush.bf16.msra.mxu0 %v9050
    %9404 = vmatpush.bf16.msra.mxu0 %v9046
    %9405 = vmatpush.bf16.msra.mxu0 %v9042
    %9406 = vmatpush.bf16.msra.mxu0 %v9038
    %9407 = vmatpush.bf16.msra.mxu0 %v9034
    %9408 = vmatpush.bf16.msra.mxu0 %v9030
    %9409 = vmatmul.bf16.gmra.mxu0 %v8439
    %v9410 = vpop.f32.mrf.mxu0
    %v9411 = vadd.f32 %v9398, %v9410
    %v9412 = vpop.f32.mrf.mxu0
    %9413 = vdwg.mxu0
    %9414 = vmatpush.bf16.msra.mxu0 %v9090
    %9415 = vmatpush.bf16.msra.mxu0 %v9086
    %9416 = vmatpush.bf16.msra.mxu0 %v9082
    %9417 = vmatpush.bf16.msra.mxu0 %v9078
    %9418 = vmatpush.bf16.msra.mxu0 %v9074
    %9419 = vmatpush.bf16.msra.mxu0 %v9070
    %9420 = vmatpush.bf16.msra.mxu0 %v9066
    %9421 = vmatpush.bf16.msra.mxu0 %v9062
    %9422 = vmatmul.bf16.gmra.mxu0 %v8440
    %v9423 = vpop.f32.mrf.mxu0
    %v9424 = vadd.f32 %v9411, %v9423
    %v9425 = vpop.f32.mrf.mxu0
    %9426 = vdwg.mxu0
    %vm9427 = vcmp.ge.f32.partialorder %v9268, 0.0
    %vm9428 = vcmp.ge.f32.partialorder %v9320, 0.0
    %vm9429 = vcmp.ge.f32.partialorder %v9372, 0.0
    %vm9430 = vcmp.ge.f32.partialorder %v9424, 0.0
    %v9431 = vmul.f32 %v9268, 0.01
    %v9432 = vmul.f32 %v9320, 0.01
    %v9433 = vmul.f32 %v9372, 0.01
    %v9434 = vmul.f32 %v9424, 0.01
    %v9435 = vsel %vm9427, %v9268, %v9431
    %v9436 = vsel %vm9428, %v9320, %v9432
    %v9437 = vsel %vm9429, %v9372, %v9433
    %v9438 = vsel %vm9430, %v9424, %v9434
    %v9439 = vpack.c.bf16 %v6846, %v6846
    %v9440 = vpack.c.bf16 %v7000, %v7000
    %v9441 = vpack.c.bf16 %v7154, %v7154
    %v9442 = vpack.c.bf16 %v7308, %v7308
    %v9443 = vpack.c.bf16 %v9435, %v9435
    %v9444 = vpack.c.bf16 %v9436, %v9436
    %v9445 = vpack.c.bf16 %v9437, %v9437
    %v9446 = vpack.c.bf16 %v9438, %v9438
    %v9447 = vld [vmem:[#allocation16] sm:$0xff]
    %v9448 = vld [vmem:[#allocation16 + $0x8] sm:$0xff]
    %v9449 = vld [vmem:[#allocation16 + $0x10] sm:$0xff]
    %v9450 = vld [vmem:[#allocation16 + $0x18] sm:$0xff]
    %v9451 = vld [vmem:[#allocation16 + $0x20] sm:$0xff]
    %v9452 = vld [vmem:[#allocation16 + $0x28] sm:$0xff]
    %v9453 = vld [vmem:[#allocation16 + $0x30] sm:$0xff]
    %v9454 = vld [vmem:[#allocation16 + $0x38] sm:$0xff]
    %v9455 = vld [vmem:[#allocation16 + $0x40] sm:$0xff]
    %v9456 = vld [vmem:[#allocation16 + $0x48] sm:$0xff]
    %v9457 = vld [vmem:[#allocation16 + $0x50] sm:$0xff]
    %v9458 = vld [vmem:[#allocation16 + $0x58] sm:$0xff]
    %v9459 = vld [vmem:[#allocation16 + $0x60] sm:$0xff]
    %v9460 = vld [vmem:[#allocation16 + $0x68] sm:$0xff]
    %v9461 = vld [vmem:[#allocation16 + $0x70] sm:$0xff]
    %v9462 = vld [vmem:[#allocation16 + $0x78] sm:$0xff]
    %v9463 = vld [vmem:[#allocation16 + $0x80] sm:$0xff]
    %v9464 = vld [vmem:[#allocation16 + $0x88] sm:$0xff]
    %v9465 = vld [vmem:[#allocation16 + $0x90] sm:$0xff]
    %v9466 = vld [vmem:[#allocation16 + $0x98] sm:$0xff]
    %v9467 = vld [vmem:[#allocation16 + $0xa0] sm:$0xff]
    %v9468 = vld [vmem:[#allocation16 + $0xa8] sm:$0xff]
    %v9469 = vld [vmem:[#allocation16 + $0xb0] sm:$0xff]
    %v9470 = vld [vmem:[#allocation16 + $0xb8] sm:$0xff]
    %v9471 = vld [vmem:[#allocation16 + $0xc0] sm:$0xff]
    %v9472 = vld [vmem:[#allocation16 + $0xc8] sm:$0xff]
    %v9473 = vld [vmem:[#allocation16 + $0xd0] sm:$0xff]
    %v9474 = vld [vmem:[#allocation16 + $0xd8] sm:$0xff]
    %v9475 = vld [vmem:[#allocation16 + $0xe0] sm:$0xff]
    %v9476 = vld [vmem:[#allocation16 + $0xe8] sm:$0xff]
    %v9477 = vld [vmem:[#allocation16 + $0xf0] sm:$0xff]
    %v9478 = vld [vmem:[#allocation16 + $0xf8] sm:$0xff]
    %v9479 = vld [vmem:[#allocation16 + $0x100] sm:$0xff]
    %v9480 = vld [vmem:[#allocation16 + $0x108] sm:$0xff]
    %v9481 = vld [vmem:[#allocation16 + $0x110] sm:$0xff]
    %v9482 = vld [vmem:[#allocation16 + $0x118] sm:$0xff]
    %v9483 = vld [vmem:[#allocation16 + $0x120] sm:$0xff]
    %v9484 = vld [vmem:[#allocation16 + $0x128] sm:$0xff]
    %v9485 = vld [vmem:[#allocation16 + $0x130] sm:$0xff]
    %v9486 = vld [vmem:[#allocation16 + $0x138] sm:$0xff]
    %v9487 = vld [vmem:[#allocation16 + $0x140] sm:$0xff]
    %v9488 = vld [vmem:[#allocation16 + $0x148] sm:$0xff]
    %v9489 = vld [vmem:[#allocation16 + $0x150] sm:$0xff]
    %v9490 = vld [vmem:[#allocation16 + $0x158] sm:$0xff]
    %v9491 = vld [vmem:[#allocation16 + $0x160] sm:$0xff]
    %v9492 = vld [vmem:[#allocation16 + $0x168] sm:$0xff]
    %v9493 = vld [vmem:[#allocation16 + $0x170] sm:$0xff]
    %v9494 = vld [vmem:[#allocation16 + $0x178] sm:$0xff]
    %v9495 = vld [vmem:[#allocation16 + $0x180] sm:$0xff]
    %v9496 = vld [vmem:[#allocation16 + $0x188] sm:$0xff]
    %v9497 = vld [vmem:[#allocation16 + $0x190] sm:$0xff]
    %v9498 = vld [vmem:[#allocation16 + $0x198] sm:$0xff]
    %v9499 = vld [vmem:[#allocation16 + $0x1a0] sm:$0xff]
    %v9500 = vld [vmem:[#allocation16 + $0x1a8] sm:$0xff]
    %v9501 = vld [vmem:[#allocation16 + $0x1b0] sm:$0xff]
    %v9502 = vld [vmem:[#allocation16 + $0x1b8] sm:$0xff]
    %v9503 = vld [vmem:[#allocation16 + $0x1c0] sm:$0xff]
    %v9504 = vld [vmem:[#allocation16 + $0x1c8] sm:$0xff]
    %v9505 = vld [vmem:[#allocation16 + $0x1d0] sm:$0xff]
    %v9506 = vld [vmem:[#allocation16 + $0x1d8] sm:$0xff]
    %v9507 = vld [vmem:[#allocation16 + $0x1e0] sm:$0xff]
    %v9508 = vld [vmem:[#allocation16 + $0x1e8] sm:$0xff]
    %v9509 = vld [vmem:[#allocation16 + $0x1f0] sm:$0xff]
    %v9510 = vld [vmem:[#allocation16 + $0x1f8] sm:$0xff]
    %v9511 = vld [vmem:[#allocation16 + $0x200] sm:$0xff]
    %v9512 = vld [vmem:[#allocation16 + $0x208] sm:$0xff]
    %v9513 = vld [vmem:[#allocation16 + $0x210] sm:$0xff]
    %v9514 = vld [vmem:[#allocation16 + $0x218] sm:$0xff]
    %v9515 = vld [vmem:[#allocation16 + $0x220] sm:$0xff]
    %v9516 = vld [vmem:[#allocation16 + $0x228] sm:$0xff]
    %v9517 = vld [vmem:[#allocation16 + $0x230] sm:$0xff]
    %v9518 = vld [vmem:[#allocation16 + $0x238] sm:$0xff]
    %v9519 = vld [vmem:[#allocation16 + $0x240] sm:$0xff]
    %v9520 = vld [vmem:[#allocation16 + $0x248] sm:$0xff]
    %v9521 = vld [vmem:[#allocation16 + $0x250] sm:$0xff]
    %v9522 = vld [vmem:[#allocation16 + $0x258] sm:$0xff]
    %v9523 = vld [vmem:[#allocation16 + $0x260] sm:$0xff]
    %v9524 = vld [vmem:[#allocation16 + $0x268] sm:$0xff]
    %v9525 = vld [vmem:[#allocation16 + $0x270] sm:$0xff]
    %v9526 = vld [vmem:[#allocation16 + $0x278] sm:$0xff]
    %v9527 = vld [vmem:[#allocation16 + $0x280] sm:$0xff]
    %v9528 = vld [vmem:[#allocation16 + $0x288] sm:$0xff]
    %v9529 = vld [vmem:[#allocation16 + $0x290] sm:$0xff]
    %v9530 = vld [vmem:[#allocation16 + $0x298] sm:$0xff]
    %v9531 = vld [vmem:[#allocation16 + $0x2a0] sm:$0xff]
    %v9532 = vld [vmem:[#allocation16 + $0x2a8] sm:$0xff]
    %v9533 = vld [vmem:[#allocation16 + $0x2b0] sm:$0xff]
    %v9534 = vld [vmem:[#allocation16 + $0x2b8] sm:$0xff]
    %v9535 = vld [vmem:[#allocation16 + $0x2c0] sm:$0xff]
    %v9536 = vld [vmem:[#allocation16 + $0x2c8] sm:$0xff]
    %v9537 = vld [vmem:[#allocation16 + $0x2d0] sm:$0xff]
    %v9538 = vld [vmem:[#allocation16 + $0x2d8] sm:$0xff]
    %v9539 = vld [vmem:[#allocation16 + $0x2e0] sm:$0xff]
    %v9540 = vld [vmem:[#allocation16 + $0x2e8] sm:$0xff]
    %v9541 = vld [vmem:[#allocation16 + $0x2f0] sm:$0xff]
    %v9542 = vld [vmem:[#allocation16 + $0x2f8] sm:$0xff]
    %v9543 = vld [vmem:[#allocation16 + $0x300] sm:$0xff]
    %v9544 = vld [vmem:[#allocation16 + $0x308] sm:$0xff]
    %v9545 = vld [vmem:[#allocation16 + $0x310] sm:$0xff]
    %v9546 = vld [vmem:[#allocation16 + $0x318] sm:$0xff]
    %v9547 = vld [vmem:[#allocation16 + $0x320] sm:$0xff]
    %v9548 = vld [vmem:[#allocation16 + $0x328] sm:$0xff]
    %v9549 = vld [vmem:[#allocation16 + $0x330] sm:$0xff]
    %v9550 = vld [vmem:[#allocation16 + $0x338] sm:$0xff]
    %v9551 = vld [vmem:[#allocation16 + $0x340] sm:$0xff]
    %v9552 = vld [vmem:[#allocation16 + $0x348] sm:$0xff]
    %v9553 = vld [vmem:[#allocation16 + $0x350] sm:$0xff]
    %v9554 = vld [vmem:[#allocation16 + $0x358] sm:$0xff]
    %v9555 = vld [vmem:[#allocation16 + $0x360] sm:$0xff]
    %v9556 = vld [vmem:[#allocation16 + $0x368] sm:$0xff]
    %v9557 = vld [vmem:[#allocation16 + $0x370] sm:$0xff]
    %v9558 = vld [vmem:[#allocation16 + $0x378] sm:$0xff]
    %v9559 = vld [vmem:[#allocation16 + $0x380] sm:$0xff]
    %v9560 = vld [vmem:[#allocation16 + $0x388] sm:$0xff]
    %v9561 = vld [vmem:[#allocation16 + $0x390] sm:$0xff]
    %v9562 = vld [vmem:[#allocation16 + $0x398] sm:$0xff]
    %v9563 = vld [vmem:[#allocation16 + $0x3a0] sm:$0xff]
    %v9564 = vld [vmem:[#allocation16 + $0x3a8] sm:$0xff]
    %v9565 = vld [vmem:[#allocation16 + $0x3b0] sm:$0xff]
    %v9566 = vld [vmem:[#allocation16 + $0x3b8] sm:$0xff]
    %v9567 = vld [vmem:[#allocation16 + $0x3c0] sm:$0xff]
    %v9568 = vld [vmem:[#allocation16 + $0x3c8] sm:$0xff]
    %v9569 = vld [vmem:[#allocation16 + $0x3d0] sm:$0xff]
    %v9570 = vld [vmem:[#allocation16 + $0x3d8] sm:$0xff]
    %v9571 = vld [vmem:[#allocation16 + $0x3e0] sm:$0xff]
    %v9572 = vld [vmem:[#allocation16 + $0x3e8] sm:$0xff]
    %v9573 = vld [vmem:[#allocation16 + $0x3f0] sm:$0xff]
    %v9574 = vld [vmem:[#allocation16 + $0x3f8] sm:$0xff]
    %v9575 = vld [vmem:[#allocation16 + $0x400] sm:$0xff]
    %v9576 = vld [vmem:[#allocation16 + $0x408] sm:$0xff]
    %v9577 = vld [vmem:[#allocation16 + $0x410] sm:$0xff]
    %v9578 = vld [vmem:[#allocation16 + $0x418] sm:$0xff]
    %v9579 = vld [vmem:[#allocation16 + $0x420] sm:$0xff]
    %v9580 = vld [vmem:[#allocation16 + $0x428] sm:$0xff]
    %v9581 = vld [vmem:[#allocation16 + $0x430] sm:$0xff]
    %v9582 = vld [vmem:[#allocation16 + $0x438] sm:$0xff]
    %v9583 = vld [vmem:[#allocation16 + $0x440] sm:$0xff]
    %v9584 = vld [vmem:[#allocation16 + $0x448] sm:$0xff]
    %v9585 = vld [vmem:[#allocation16 + $0x450] sm:$0xff]
    %v9586 = vld [vmem:[#allocation16 + $0x458] sm:$0xff]
    %v9587 = vld [vmem:[#allocation16 + $0x460] sm:$0xff]
    %v9588 = vld [vmem:[#allocation16 + $0x468] sm:$0xff]
    %v9589 = vld [vmem:[#allocation16 + $0x470] sm:$0xff]
    %v9590 = vld [vmem:[#allocation16 + $0x478] sm:$0xff]
    %v9591 = vld [vmem:[#allocation16 + $0x480] sm:$0xff]
    %v9592 = vld [vmem:[#allocation16 + $0x488] sm:$0xff]
    %v9593 = vld [vmem:[#allocation16 + $0x490] sm:$0xff]
    %v9594 = vld [vmem:[#allocation16 + $0x498] sm:$0xff]
    %v9595 = vld [vmem:[#allocation16 + $0x4a0] sm:$0xff]
    %v9596 = vld [vmem:[#allocation16 + $0x4a8] sm:$0xff]
    %v9597 = vld [vmem:[#allocation16 + $0x4b0] sm:$0xff]
    %v9598 = vld [vmem:[#allocation16 + $0x4b8] sm:$0xff]
    %v9599 = vld [vmem:[#allocation16 + $0x4c0] sm:$0xff]
    %v9600 = vld [vmem:[#allocation16 + $0x4c8] sm:$0xff]
    %v9601 = vld [vmem:[#allocation16 + $0x4d0] sm:$0xff]
    %v9602 = vld [vmem:[#allocation16 + $0x4d8] sm:$0xff]
    %v9603 = vld [vmem:[#allocation16 + $0x4e0] sm:$0xff]
    %v9604 = vld [vmem:[#allocation16 + $0x4e8] sm:$0xff]
    %v9605 = vld [vmem:[#allocation16 + $0x4f0] sm:$0xff]
    %v9606 = vld [vmem:[#allocation16 + $0x4f8] sm:$0xff]
    %v9607 = vld [vmem:[#allocation16 + $0x500] sm:$0xff]
    %v9608 = vld [vmem:[#allocation16 + $0x508] sm:$0xff]
    %v9609 = vld [vmem:[#allocation16 + $0x510] sm:$0xff]
    %v9610 = vld [vmem:[#allocation16 + $0x518] sm:$0xff]
    %v9611 = vld [vmem:[#allocation16 + $0x520] sm:$0xff]
    %v9612 = vld [vmem:[#allocation16 + $0x528] sm:$0xff]
    %v9613 = vld [vmem:[#allocation16 + $0x530] sm:$0xff]
    %v9614 = vld [vmem:[#allocation16 + $0x538] sm:$0xff]
    %v9615 = vld [vmem:[#allocation16 + $0x540] sm:$0xff]
    %v9616 = vld [vmem:[#allocation16 + $0x548] sm:$0xff]
    %v9617 = vld [vmem:[#allocation16 + $0x550] sm:$0xff]
    %v9618 = vld [vmem:[#allocation16 + $0x558] sm:$0xff]
    %v9619 = vld [vmem:[#allocation16 + $0x560] sm:$0xff]
    %v9620 = vld [vmem:[#allocation16 + $0x568] sm:$0xff]
    %v9621 = vld [vmem:[#allocation16 + $0x570] sm:$0xff]
    %v9622 = vld [vmem:[#allocation16 + $0x578] sm:$0xff]
    %v9623 = vld [vmem:[#allocation16 + $0x580] sm:$0xff]
    %v9624 = vld [vmem:[#allocation16 + $0x588] sm:$0xff]
    %v9625 = vld [vmem:[#allocation16 + $0x590] sm:$0xff]
    %v9626 = vld [vmem:[#allocation16 + $0x598] sm:$0xff]
    %v9627 = vld [vmem:[#allocation16 + $0x5a0] sm:$0xff]
    %v9628 = vld [vmem:[#allocation16 + $0x5a8] sm:$0xff]
    %v9629 = vld [vmem:[#allocation16 + $0x5b0] sm:$0xff]
    %v9630 = vld [vmem:[#allocation16 + $0x5b8] sm:$0xff]
    %v9631 = vld [vmem:[#allocation16 + $0x5c0] sm:$0xff]
    %v9632 = vld [vmem:[#allocation16 + $0x5c8] sm:$0xff]
    %v9633 = vld [vmem:[#allocation16 + $0x5d0] sm:$0xff]
    %v9634 = vld [vmem:[#allocation16 + $0x5d8] sm:$0xff]
    %v9635 = vld [vmem:[#allocation16 + $0x5e0] sm:$0xff]
    %v9636 = vld [vmem:[#allocation16 + $0x5e8] sm:$0xff]
    %v9637 = vld [vmem:[#allocation16 + $0x5f0] sm:$0xff]
    %v9638 = vld [vmem:[#allocation16 + $0x5f8] sm:$0xff]
    %v9639 = vld [vmem:[#allocation16 + $0x600] sm:$0xff]
    %v9640 = vld [vmem:[#allocation16 + $0x608] sm:$0xff]
    %v9641 = vld [vmem:[#allocation16 + $0x610] sm:$0xff]
    %v9642 = vld [vmem:[#allocation16 + $0x618] sm:$0xff]
    %v9643 = vld [vmem:[#allocation16 + $0x620] sm:$0xff]
    %v9644 = vld [vmem:[#allocation16 + $0x628] sm:$0xff]
    %v9645 = vld [vmem:[#allocation16 + $0x630] sm:$0xff]
    %v9646 = vld [vmem:[#allocation16 + $0x638] sm:$0xff]
    %v9647 = vld [vmem:[#allocation16 + $0x640] sm:$0xff]
    %v9648 = vld [vmem:[#allocation16 + $0x648] sm:$0xff]
    %v9649 = vld [vmem:[#allocation16 + $0x650] sm:$0xff]
    %v9650 = vld [vmem:[#allocation16 + $0x658] sm:$0xff]
    %v9651 = vld [vmem:[#allocation16 + $0x660] sm:$0xff]
    %v9652 = vld [vmem:[#allocation16 + $0x668] sm:$0xff]
    %v9653 = vld [vmem:[#allocation16 + $0x670] sm:$0xff]
    %v9654 = vld [vmem:[#allocation16 + $0x678] sm:$0xff]
    %v9655 = vld [vmem:[#allocation16 + $0x680] sm:$0xff]
    %v9656 = vld [vmem:[#allocation16 + $0x688] sm:$0xff]
    %v9657 = vld [vmem:[#allocation16 + $0x690] sm:$0xff]
    %v9658 = vld [vmem:[#allocation16 + $0x698] sm:$0xff]
    %v9659 = vld [vmem:[#allocation16 + $0x6a0] sm:$0xff]
    %v9660 = vld [vmem:[#allocation16 + $0x6a8] sm:$0xff]
    %v9661 = vld [vmem:[#allocation16 + $0x6b0] sm:$0xff]
    %v9662 = vld [vmem:[#allocation16 + $0x6b8] sm:$0xff]
    %v9663 = vld [vmem:[#allocation16 + $0x6c0] sm:$0xff]
    %v9664 = vld [vmem:[#allocation16 + $0x6c8] sm:$0xff]
    %v9665 = vld [vmem:[#allocation16 + $0x6d0] sm:$0xff]
    %v9666 = vld [vmem:[#allocation16 + $0x6d8] sm:$0xff]
    %v9667 = vld [vmem:[#allocation16 + $0x6e0] sm:$0xff]
    %v9668 = vld [vmem:[#allocation16 + $0x6e8] sm:$0xff]
    %v9669 = vld [vmem:[#allocation16 + $0x6f0] sm:$0xff]
    %v9670 = vld [vmem:[#allocation16 + $0x6f8] sm:$0xff]
    %v9671 = vld [vmem:[#allocation16 + $0x700] sm:$0xff]
    %v9672 = vld [vmem:[#allocation16 + $0x708] sm:$0xff]
    %v9673 = vld [vmem:[#allocation16 + $0x710] sm:$0xff]
    %v9674 = vld [vmem:[#allocation16 + $0x718] sm:$0xff]
    %v9675 = vld [vmem:[#allocation16 + $0x720] sm:$0xff]
    %v9676 = vld [vmem:[#allocation16 + $0x728] sm:$0xff]
    %v9677 = vld [vmem:[#allocation16 + $0x730] sm:$0xff]
    %v9678 = vld [vmem:[#allocation16 + $0x738] sm:$0xff]
    %v9679 = vld [vmem:[#allocation16 + $0x740] sm:$0xff]
    %v9680 = vld [vmem:[#allocation16 + $0x748] sm:$0xff]
    %v9681 = vld [vmem:[#allocation16 + $0x750] sm:$0xff]
    %v9682 = vld [vmem:[#allocation16 + $0x758] sm:$0xff]
    %v9683 = vld [vmem:[#allocation16 + $0x760] sm:$0xff]
    %v9684 = vld [vmem:[#allocation16 + $0x768] sm:$0xff]
    %v9685 = vld [vmem:[#allocation16 + $0x770] sm:$0xff]
    %v9686 = vld [vmem:[#allocation16 + $0x778] sm:$0xff]
    %v9687 = vld [vmem:[#allocation16 + $0x780] sm:$0xff]
    %v9688 = vld [vmem:[#allocation16 + $0x788] sm:$0xff]
    %v9689 = vld [vmem:[#allocation16 + $0x790] sm:$0xff]
    %v9690 = vld [vmem:[#allocation16 + $0x798] sm:$0xff]
    %v9691 = vld [vmem:[#allocation16 + $0x7a0] sm:$0xff]
    %v9692 = vld [vmem:[#allocation16 + $0x7a8] sm:$0xff]
    %v9693 = vld [vmem:[#allocation16 + $0x7b0] sm:$0xff]
    %v9694 = vld [vmem:[#allocation16 + $0x7b8] sm:$0xff]
    %v9695 = vld [vmem:[#allocation16 + $0x7c0] sm:$0xff]
    %v9696 = vld [vmem:[#allocation16 + $0x7c8] sm:$0xff]
    %v9697 = vld [vmem:[#allocation16 + $0x7d0] sm:$0xff]
    %v9698 = vld [vmem:[#allocation16 + $0x7d8] sm:$0xff]
    %v9699 = vld [vmem:[#allocation16 + $0x7e0] sm:$0xff]
    %v9700 = vld [vmem:[#allocation16 + $0x7e8] sm:$0xff]
    %v9701 = vld [vmem:[#allocation16 + $0x7f0] sm:$0xff]
    %v9702 = vld [vmem:[#allocation16 + $0x7f8] sm:$0xff]
    %v9703 = vld [vmem:[%s10] sm:$0xf]
    %v9705 = vperm.slane %v9703, 0
    %v9706 = vperm.slane %v9703, 1
    %v9707 = vperm.slane %v9703, 2
    %v9708 = vperm.slane %v9703, 3
    %v9969 = vunpack.c.l.b16 %v9447
    %v9970 = vunpack.c.h.b16 %v9447
    %v9971 = vunpack.c.l.b16 %v9448
    %v9972 = vunpack.c.h.b16 %v9448
    %v9973 = vunpack.c.l.b16 %v9449
    %v9974 = vunpack.c.h.b16 %v9449
    %v9975 = vunpack.c.l.b16 %v9450
    %v9976 = vunpack.c.h.b16 %v9450
    %v9977 = vunpack.c.l.b16 %v9451
    %v9978 = vunpack.c.h.b16 %v9451
    %v9979 = vunpack.c.l.b16 %v9452
    %v9980 = vunpack.c.h.b16 %v9452
    %v9981 = vunpack.c.l.b16 %v9453
    %v9982 = vunpack.c.h.b16 %v9453
    %v9983 = vunpack.c.l.b16 %v9454
    %v9984 = vunpack.c.h.b16 %v9454
    %v9985 = vunpack.c.l.b16 %v9455
    %v9986 = vunpack.c.h.b16 %v9455
    %v9987 = vunpack.c.l.b16 %v9456
    %v9988 = vunpack.c.h.b16 %v9456
    %v9989 = vunpack.c.l.b16 %v9457
    %v9990 = vunpack.c.h.b16 %v9457
    %v9991 = vunpack.c.l.b16 %v9458
    %v9992 = vunpack.c.h.b16 %v9458
    %v9993 = vunpack.c.l.b16 %v9459
    %v9994 = vunpack.c.h.b16 %v9459
    %v9995 = vunpack.c.l.b16 %v9460
    %v9996 = vunpack.c.h.b16 %v9460
    %v9997 = vunpack.c.l.b16 %v9461
    %v9998 = vunpack.c.h.b16 %v9461
    %v9999 = vunpack.c.l.b16 %v9462
    %v10000 = vunpack.c.h.b16 %v9462
    %v10001 = vunpack.c.l.b16 %v9463
    %v10002 = vunpack.c.h.b16 %v9463
    %v10003 = vunpack.c.l.b16 %v9464
    %v10004 = vunpack.c.h.b16 %v9464
    %v10005 = vunpack.c.l.b16 %v9465
    %v10006 = vunpack.c.h.b16 %v9465
    %v10007 = vunpack.c.l.b16 %v9466
    %v10008 = vunpack.c.h.b16 %v9466
    %v10009 = vunpack.c.l.b16 %v9467
    %v10010 = vunpack.c.h.b16 %v9467
    %v10011 = vunpack.c.l.b16 %v9468
    %v10012 = vunpack.c.h.b16 %v9468
    %v10013 = vunpack.c.l.b16 %v9469
    %v10014 = vunpack.c.h.b16 %v9469
    %v10015 = vunpack.c.l.b16 %v9470
    %v10016 = vunpack.c.h.b16 %v9470
    %v10017 = vunpack.c.l.b16 %v9471
    %v10018 = vunpack.c.h.b16 %v9471
    %v10019 = vunpack.c.l.b16 %v9472
    %v10020 = vunpack.c.h.b16 %v9472
    %v10021 = vunpack.c.l.b16 %v9473
    %v10022 = vunpack.c.h.b16 %v9473
    %v10023 = vunpack.c.l.b16 %v9474
    %v10024 = vunpack.c.h.b16 %v9474
    %v10025 = vunpack.c.l.b16 %v9475
    %v10026 = vunpack.c.h.b16 %v9475
    %v10027 = vunpack.c.l.b16 %v9476
    %v10028 = vunpack.c.h.b16 %v9476
    %v10029 = vunpack.c.l.b16 %v9477
    %v10030 = vunpack.c.h.b16 %v9477
    %v10031 = vunpack.c.l.b16 %v9478
    %v10032 = vunpack.c.h.b16 %v9478
    %v10033 = vunpack.c.l.b16 %v9479
    %v10034 = vunpack.c.h.b16 %v9479
    %v10035 = vunpack.c.l.b16 %v9480
    %v10036 = vunpack.c.h.b16 %v9480
    %v10037 = vunpack.c.l.b16 %v9481
    %v10038 = vunpack.c.h.b16 %v9481
    %v10039 = vunpack.c.l.b16 %v9482
    %v10040 = vunpack.c.h.b16 %v9482
    %v10041 = vunpack.c.l.b16 %v9483
    %v10042 = vunpack.c.h.b16 %v9483
    %v10043 = vunpack.c.l.b16 %v9484
    %v10044 = vunpack.c.h.b16 %v9484
    %v10045 = vunpack.c.l.b16 %v9485
    %v10046 = vunpack.c.h.b16 %v9485
    %v10047 = vunpack.c.l.b16 %v9486
    %v10048 = vunpack.c.h.b16 %v9486
    %v10049 = vunpack.c.l.b16 %v9487
    %v10050 = vunpack.c.h.b16 %v9487
    %v10051 = vunpack.c.l.b16 %v9488
    %v10052 = vunpack.c.h.b16 %v9488
    %v10053 = vunpack.c.l.b16 %v9489
    %v10054 = vunpack.c.h.b16 %v9489
    %v10055 = vunpack.c.l.b16 %v9490
    %v10056 = vunpack.c.h.b16 %v9490
    %v10057 = vunpack.c.l.b16 %v9491
    %v10058 = vunpack.c.h.b16 %v9491
    %v10059 = vunpack.c.l.b16 %v9492
    %v10060 = vunpack.c.h.b16 %v9492
    %v10061 = vunpack.c.l.b16 %v9493
    %v10062 = vunpack.c.h.b16 %v9493
    %v10063 = vunpack.c.l.b16 %v9494
    %v10064 = vunpack.c.h.b16 %v9494
    %v10065 = vunpack.c.l.b16 %v9495
    %v10066 = vunpack.c.h.b16 %v9495
    %v10067 = vunpack.c.l.b16 %v9496
    %v10068 = vunpack.c.h.b16 %v9496
    %v10069 = vunpack.c.l.b16 %v9497
    %v10070 = vunpack.c.h.b16 %v9497
    %v10071 = vunpack.c.l.b16 %v9498
    %v10072 = vunpack.c.h.b16 %v9498
    %v10073 = vunpack.c.l.b16 %v9499
    %v10074 = vunpack.c.h.b16 %v9499
    %v10075 = vunpack.c.l.b16 %v9500
    %v10076 = vunpack.c.h.b16 %v9500
    %v10077 = vunpack.c.l.b16 %v9501
    %v10078 = vunpack.c.h.b16 %v9501
    %v10079 = vunpack.c.l.b16 %v9502
    %v10080 = vunpack.c.h.b16 %v9502
    %v10081 = vunpack.c.l.b16 %v9503
    %v10082 = vunpack.c.h.b16 %v9503
    %v10083 = vunpack.c.l.b16 %v9504
    %v10084 = vunpack.c.h.b16 %v9504
    %v10085 = vunpack.c.l.b16 %v9505
    %v10086 = vunpack.c.h.b16 %v9505
    %v10087 = vunpack.c.l.b16 %v9506
    %v10088 = vunpack.c.h.b16 %v9506
    %v10089 = vunpack.c.l.b16 %v9507
    %v10090 = vunpack.c.h.b16 %v9507
    %v10091 = vunpack.c.l.b16 %v9508
    %v10092 = vunpack.c.h.b16 %v9508
    %v10093 = vunpack.c.l.b16 %v9509
    %v10094 = vunpack.c.h.b16 %v9509
    %v10095 = vunpack.c.l.b16 %v9510
    %v10096 = vunpack.c.h.b16 %v9510
    %v10097 = vunpack.c.l.b16 %v9511
    %v10098 = vunpack.c.h.b16 %v9511
    %v10099 = vunpack.c.l.b16 %v9512
    %v10100 = vunpack.c.h.b16 %v9512
    %v10101 = vunpack.c.l.b16 %v9513
    %v10102 = vunpack.c.h.b16 %v9513
    %v10103 = vunpack.c.l.b16 %v9514
    %v10104 = vunpack.c.h.b16 %v9514
    %v10105 = vunpack.c.l.b16 %v9515
    %v10106 = vunpack.c.h.b16 %v9515
    %v10107 = vunpack.c.l.b16 %v9516
    %v10108 = vunpack.c.h.b16 %v9516
    %v10109 = vunpack.c.l.b16 %v9517
    %v10110 = vunpack.c.h.b16 %v9517
    %v10111 = vunpack.c.l.b16 %v9518
    %v10112 = vunpack.c.h.b16 %v9518
    %v10113 = vunpack.c.l.b16 %v9519
    %v10114 = vunpack.c.h.b16 %v9519
    %v10115 = vunpack.c.l.b16 %v9520
    %v10116 = vunpack.c.h.b16 %v9520
    %v10117 = vunpack.c.l.b16 %v9521
    %v10118 = vunpack.c.h.b16 %v9521
    %v10119 = vunpack.c.l.b16 %v9522
    %v10120 = vunpack.c.h.b16 %v9522
    %v10121 = vunpack.c.l.b16 %v9523
    %v10122 = vunpack.c.h.b16 %v9523
    %v10123 = vunpack.c.l.b16 %v9524
    %v10124 = vunpack.c.h.b16 %v9524
    %v10125 = vunpack.c.l.b16 %v9525
    %v10126 = vunpack.c.h.b16 %v9525
    %v10127 = vunpack.c.l.b16 %v9526
    %v10128 = vunpack.c.h.b16 %v9526
    %v10129 = vunpack.c.l.b16 %v9527
    %v10130 = vunpack.c.h.b16 %v9527
    %v10131 = vunpack.c.l.b16 %v9528
    %v10132 = vunpack.c.h.b16 %v9528
    %v10133 = vunpack.c.l.b16 %v9529
    %v10134 = vunpack.c.h.b16 %v9529
    %v10135 = vunpack.c.l.b16 %v9530
    %v10136 = vunpack.c.h.b16 %v9530
    %v10137 = vunpack.c.l.b16 %v9531
    %v10138 = vunpack.c.h.b16 %v9531
    %v10139 = vunpack.c.l.b16 %v9532
    %v10140 = vunpack.c.h.b16 %v9532
    %v10141 = vunpack.c.l.b16 %v9533
    %v10142 = vunpack.c.h.b16 %v9533
    %v10143 = vunpack.c.l.b16 %v9534
    %v10144 = vunpack.c.h.b16 %v9534
    %v10145 = vunpack.c.l.b16 %v9535
    %v10146 = vunpack.c.h.b16 %v9535
    %v10147 = vunpack.c.l.b16 %v9536
    %v10148 = vunpack.c.h.b16 %v9536
    %v10149 = vunpack.c.l.b16 %v9537
    %v10150 = vunpack.c.h.b16 %v9537
    %v10151 = vunpack.c.l.b16 %v9538
    %v10152 = vunpack.c.h.b16 %v9538
    %v10153 = vunpack.c.l.b16 %v9539
    %v10154 = vunpack.c.h.b16 %v9539
    %v10155 = vunpack.c.l.b16 %v9540
    %v10156 = vunpack.c.h.b16 %v9540
    %v10157 = vunpack.c.l.b16 %v9541
    %v10158 = vunpack.c.h.b16 %v9541
    %v10159 = vunpack.c.l.b16 %v9542
    %v10160 = vunpack.c.h.b16 %v9542
    %v10161 = vunpack.c.l.b16 %v9543
    %v10162 = vunpack.c.h.b16 %v9543
    %v10163 = vunpack.c.l.b16 %v9544
    %v10164 = vunpack.c.h.b16 %v9544
    %v10165 = vunpack.c.l.b16 %v9545
    %v10166 = vunpack.c.h.b16 %v9545
    %v10167 = vunpack.c.l.b16 %v9546
    %v10168 = vunpack.c.h.b16 %v9546
    %v10169 = vunpack.c.l.b16 %v9547
    %v10170 = vunpack.c.h.b16 %v9547
    %v10171 = vunpack.c.l.b16 %v9548
    %v10172 = vunpack.c.h.b16 %v9548
    %v10173 = vunpack.c.l.b16 %v9549
    %v10174 = vunpack.c.h.b16 %v9549
    %v10175 = vunpack.c.l.b16 %v9550
    %v10176 = vunpack.c.h.b16 %v9550
    %v10177 = vunpack.c.l.b16 %v9551
    %v10178 = vunpack.c.h.b16 %v9551
    %v10179 = vunpack.c.l.b16 %v9552
    %v10180 = vunpack.c.h.b16 %v9552
    %v10181 = vunpack.c.l.b16 %v9553
    %v10182 = vunpack.c.h.b16 %v9553
    %v10183 = vunpack.c.l.b16 %v9554
    %v10184 = vunpack.c.h.b16 %v9554
    %v10185 = vunpack.c.l.b16 %v9555
    %v10186 = vunpack.c.h.b16 %v9555
    %v10187 = vunpack.c.l.b16 %v9556
    %v10188 = vunpack.c.h.b16 %v9556
    %v10189 = vunpack.c.l.b16 %v9557
    %v10190 = vunpack.c.h.b16 %v9557
    %v10191 = vunpack.c.l.b16 %v9558
    %v10192 = vunpack.c.h.b16 %v9558
    %v10193 = vunpack.c.l.b16 %v9559
    %v10194 = vunpack.c.h.b16 %v9559
    %v10195 = vunpack.c.l.b16 %v9560
    %v10196 = vunpack.c.h.b16 %v9560
    %v10197 = vunpack.c.l.b16 %v9561
    %v10198 = vunpack.c.h.b16 %v9561
    %v10199 = vunpack.c.l.b16 %v9562
    %v10200 = vunpack.c.h.b16 %v9562
    %v10201 = vunpack.c.l.b16 %v9563
    %v10202 = vunpack.c.h.b16 %v9563
    %v10203 = vunpack.c.l.b16 %v9564
    %v10204 = vunpack.c.h.b16 %v9564
    %v10205 = vunpack.c.l.b16 %v9565
    %v10206 = vunpack.c.h.b16 %v9565
    %v10207 = vunpack.c.l.b16 %v9566
    %v10208 = vunpack.c.h.b16 %v9566
    %v10209 = vunpack.c.l.b16 %v9567
    %v10210 = vunpack.c.h.b16 %v9567
    %v10211 = vunpack.c.l.b16 %v9568
    %v10212 = vunpack.c.h.b16 %v9568
    %v10213 = vunpack.c.l.b16 %v9569
    %v10214 = vunpack.c.h.b16 %v9569
    %v10215 = vunpack.c.l.b16 %v9570
    %v10216 = vunpack.c.h.b16 %v9570
    %v10217 = vunpack.c.l.b16 %v9571
    %v10218 = vunpack.c.h.b16 %v9571
    %v10219 = vunpack.c.l.b16 %v9572
    %v10220 = vunpack.c.h.b16 %v9572
    %v10221 = vunpack.c.l.b16 %v9573
    %v10222 = vunpack.c.h.b16 %v9573
    %v10223 = vunpack.c.l.b16 %v9574
    %v10224 = vunpack.c.h.b16 %v9574
    %v10225 = vunpack.c.l.b16 %v9575
    %v10226 = vunpack.c.h.b16 %v9575
    %v10227 = vunpack.c.l.b16 %v9576
    %v10228 = vunpack.c.h.b16 %v9576
    %v10229 = vunpack.c.l.b16 %v9577
    %v10230 = vunpack.c.h.b16 %v9577
    %v10231 = vunpack.c.l.b16 %v9578
    %v10232 = vunpack.c.h.b16 %v9578
    %v10233 = vunpack.c.l.b16 %v9579
    %v10234 = vunpack.c.h.b16 %v9579
    %v10235 = vunpack.c.l.b16 %v9580
    %v10236 = vunpack.c.h.b16 %v9580
    %v10237 = vunpack.c.l.b16 %v9581
    %v10238 = vunpack.c.h.b16 %v9581
    %v10239 = vunpack.c.l.b16 %v9582
    %v10240 = vunpack.c.h.b16 %v9582
    %v10241 = vunpack.c.l.b16 %v9583
    %v10242 = vunpack.c.h.b16 %v9583
    %v10243 = vunpack.c.l.b16 %v9584
    %v10244 = vunpack.c.h.b16 %v9584
    %v10245 = vunpack.c.l.b16 %v9585
    %v10246 = vunpack.c.h.b16 %v9585
    %v10247 = vunpack.c.l.b16 %v9586
    %v10248 = vunpack.c.h.b16 %v9586
    %v10249 = vunpack.c.l.b16 %v9587
    %v10250 = vunpack.c.h.b16 %v9587
    %v10251 = vunpack.c.l.b16 %v9588
    %v10252 = vunpack.c.h.b16 %v9588
    %v10253 = vunpack.c.l.b16 %v9589
    %v10254 = vunpack.c.h.b16 %v9589
    %v10255 = vunpack.c.l.b16 %v9590
    %v10256 = vunpack.c.h.b16 %v9590
    %v10257 = vunpack.c.l.b16 %v9591
    %v10258 = vunpack.c.h.b16 %v9591
    %v10259 = vunpack.c.l.b16 %v9592
    %v10260 = vunpack.c.h.b16 %v9592
    %v10261 = vunpack.c.l.b16 %v9593
    %v10262 = vunpack.c.h.b16 %v9593
    %v10263 = vunpack.c.l.b16 %v9594
    %v10264 = vunpack.c.h.b16 %v9594
    %v10265 = vunpack.c.l.b16 %v9595
    %v10266 = vunpack.c.h.b16 %v9595
    %v10267 = vunpack.c.l.b16 %v9596
    %v10268 = vunpack.c.h.b16 %v9596
    %v10269 = vunpack.c.l.b16 %v9597
    %v10270 = vunpack.c.h.b16 %v9597
    %v10271 = vunpack.c.l.b16 %v9598
    %v10272 = vunpack.c.h.b16 %v9598
    %v10273 = vunpack.c.l.b16 %v9599
    %v10274 = vunpack.c.h.b16 %v9599
    %v10275 = vunpack.c.l.b16 %v9600
    %v10276 = vunpack.c.h.b16 %v9600
    %v10277 = vunpack.c.l.b16 %v9601
    %v10278 = vunpack.c.h.b16 %v9601
    %v10279 = vunpack.c.l.b16 %v9602
    %v10280 = vunpack.c.h.b16 %v9602
    %v10281 = vunpack.c.l.b16 %v9603
    %v10282 = vunpack.c.h.b16 %v9603
    %v10283 = vunpack.c.l.b16 %v9604
    %v10284 = vunpack.c.h.b16 %v9604
    %v10285 = vunpack.c.l.b16 %v9605
    %v10286 = vunpack.c.h.b16 %v9605
    %v10287 = vunpack.c.l.b16 %v9606
    %v10288 = vunpack.c.h.b16 %v9606
    %v10289 = vunpack.c.l.b16 %v9607
    %v10290 = vunpack.c.h.b16 %v9607
    %v10291 = vunpack.c.l.b16 %v9608
    %v10292 = vunpack.c.h.b16 %v9608
    %v10293 = vunpack.c.l.b16 %v9609
    %v10294 = vunpack.c.h.b16 %v9609
    %v10295 = vunpack.c.l.b16 %v9610
    %v10296 = vunpack.c.h.b16 %v9610
    %v10297 = vunpack.c.l.b16 %v9611
    %v10298 = vunpack.c.h.b16 %v9611
    %v10299 = vunpack.c.l.b16 %v9612
    %v10300 = vunpack.c.h.b16 %v9612
    %v10301 = vunpack.c.l.b16 %v9613
    %v10302 = vunpack.c.h.b16 %v9613
    %v10303 = vunpack.c.l.b16 %v9614
    %v10304 = vunpack.c.h.b16 %v9614
    %v10305 = vunpack.c.l.b16 %v9615
    %v10306 = vunpack.c.h.b16 %v9615
    %v10307 = vunpack.c.l.b16 %v9616
    %v10308 = vunpack.c.h.b16 %v9616
    %v10309 = vunpack.c.l.b16 %v9617
    %v10310 = vunpack.c.h.b16 %v9617
    %v10311 = vunpack.c.l.b16 %v9618
    %v10312 = vunpack.c.h.b16 %v9618
    %v10313 = vunpack.c.l.b16 %v9619
    %v10314 = vunpack.c.h.b16 %v9619
    %v10315 = vunpack.c.l.b16 %v9620
    %v10316 = vunpack.c.h.b16 %v9620
    %v10317 = vunpack.c.l.b16 %v9621
    %v10318 = vunpack.c.h.b16 %v9621
    %v10319 = vunpack.c.l.b16 %v9622
    %v10320 = vunpack.c.h.b16 %v9622
    %v10321 = vunpack.c.l.b16 %v9623
    %v10322 = vunpack.c.h.b16 %v9623
    %v10323 = vunpack.c.l.b16 %v9624
    %v10324 = vunpack.c.h.b16 %v9624
    %v10325 = vunpack.c.l.b16 %v9625
    %v10326 = vunpack.c.h.b16 %v9625
    %v10327 = vunpack.c.l.b16 %v9626
    %v10328 = vunpack.c.h.b16 %v9626
    %v10329 = vunpack.c.l.b16 %v9627
    %v10330 = vunpack.c.h.b16 %v9627
    %v10331 = vunpack.c.l.b16 %v9628
    %v10332 = vunpack.c.h.b16 %v9628
    %v10333 = vunpack.c.l.b16 %v9629
    %v10334 = vunpack.c.h.b16 %v9629
    %v10335 = vunpack.c.l.b16 %v9630
    %v10336 = vunpack.c.h.b16 %v9630
    %v10337 = vunpack.c.l.b16 %v9631
    %v10338 = vunpack.c.h.b16 %v9631
    %v10339 = vunpack.c.l.b16 %v9632
    %v10340 = vunpack.c.h.b16 %v9632
    %v10341 = vunpack.c.l.b16 %v9633
    %v10342 = vunpack.c.h.b16 %v9633
    %v10343 = vunpack.c.l.b16 %v9634
    %v10344 = vunpack.c.h.b16 %v9634
    %v10345 = vunpack.c.l.b16 %v9635
    %v10346 = vunpack.c.h.b16 %v9635
    %v10347 = vunpack.c.l.b16 %v9636
    %v10348 = vunpack.c.h.b16 %v9636
    %v10349 = vunpack.c.l.b16 %v9637
    %v10350 = vunpack.c.h.b16 %v9637
    %v10351 = vunpack.c.l.b16 %v9638
    %v10352 = vunpack.c.h.b16 %v9638
    %v10353 = vunpack.c.l.b16 %v9639
    %v10354 = vunpack.c.h.b16 %v9639
    %v10355 = vunpack.c.l.b16 %v9640
    %v10356 = vunpack.c.h.b16 %v9640
    %v10357 = vunpack.c.l.b16 %v9641
    %v10358 = vunpack.c.h.b16 %v9641
    %v10359 = vunpack.c.l.b16 %v9642
    %v10360 = vunpack.c.h.b16 %v9642
    %v10361 = vunpack.c.l.b16 %v9643
    %v10362 = vunpack.c.h.b16 %v9643
    %v10363 = vunpack.c.l.b16 %v9644
    %v10364 = vunpack.c.h.b16 %v9644
    %v10365 = vunpack.c.l.b16 %v9645
    %v10366 = vunpack.c.h.b16 %v9645
    %v10367 = vunpack.c.l.b16 %v9646
    %v10368 = vunpack.c.h.b16 %v9646
    %v10369 = vunpack.c.l.b16 %v9647
    %v10370 = vunpack.c.h.b16 %v9647
    %v10371 = vunpack.c.l.b16 %v9648
    %v10372 = vunpack.c.h.b16 %v9648
    %v10373 = vunpack.c.l.b16 %v9649
    %v10374 = vunpack.c.h.b16 %v9649
    %v10375 = vunpack.c.l.b16 %v9650
    %v10376 = vunpack.c.h.b16 %v9650
    %v10377 = vunpack.c.l.b16 %v9651
    %v10378 = vunpack.c.h.b16 %v9651
    %v10379 = vunpack.c.l.b16 %v9652
    %v10380 = vunpack.c.h.b16 %v9652
    %v10381 = vunpack.c.l.b16 %v9653
    %v10382 = vunpack.c.h.b16 %v9653
    %v10383 = vunpack.c.l.b16 %v9654
    %v10384 = vunpack.c.h.b16 %v9654
    %v10385 = vunpack.c.l.b16 %v9655
    %v10386 = vunpack.c.h.b16 %v9655
    %v10387 = vunpack.c.l.b16 %v9656
    %v10388 = vunpack.c.h.b16 %v9656
    %v10389 = vunpack.c.l.b16 %v9657
    %v10390 = vunpack.c.h.b16 %v9657
    %v10391 = vunpack.c.l.b16 %v9658
    %v10392 = vunpack.c.h.b16 %v9658
    %v10393 = vunpack.c.l.b16 %v9659
    %v10394 = vunpack.c.h.b16 %v9659
    %v10395 = vunpack.c.l.b16 %v9660
    %v10396 = vunpack.c.h.b16 %v9660
    %v10397 = vunpack.c.l.b16 %v9661
    %v10398 = vunpack.c.h.b16 %v9661
    %v10399 = vunpack.c.l.b16 %v9662
    %v10400 = vunpack.c.h.b16 %v9662
    %v10401 = vunpack.c.l.b16 %v9663
    %v10402 = vunpack.c.h.b16 %v9663
    %v10403 = vunpack.c.l.b16 %v9664
    %v10404 = vunpack.c.h.b16 %v9664
    %v10405 = vunpack.c.l.b16 %v9665
    %v10406 = vunpack.c.h.b16 %v9665
    %v10407 = vunpack.c.l.b16 %v9666
    %v10408 = vunpack.c.h.b16 %v9666
    %v10409 = vunpack.c.l.b16 %v9667
    %v10410 = vunpack.c.h.b16 %v9667
    %v10411 = vunpack.c.l.b16 %v9668
    %v10412 = vunpack.c.h.b16 %v9668
    %v10413 = vunpack.c.l.b16 %v9669
    %v10414 = vunpack.c.h.b16 %v9669
    %v10415 = vunpack.c.l.b16 %v9670
    %v10416 = vunpack.c.h.b16 %v9670
    %v10417 = vunpack.c.l.b16 %v9671
    %v10418 = vunpack.c.h.b16 %v9671
    %v10419 = vunpack.c.l.b16 %v9672
    %v10420 = vunpack.c.h.b16 %v9672
    %v10421 = vunpack.c.l.b16 %v9673
    %v10422 = vunpack.c.h.b16 %v9673
    %v10423 = vunpack.c.l.b16 %v9674
    %v10424 = vunpack.c.h.b16 %v9674
    %v10425 = vunpack.c.l.b16 %v9675
    %v10426 = vunpack.c.h.b16 %v9675
    %v10427 = vunpack.c.l.b16 %v9676
    %v10428 = vunpack.c.h.b16 %v9676
    %v10429 = vunpack.c.l.b16 %v9677
    %v10430 = vunpack.c.h.b16 %v9677
    %v10431 = vunpack.c.l.b16 %v9678
    %v10432 = vunpack.c.h.b16 %v9678
    %v10433 = vunpack.c.l.b16 %v9679
    %v10434 = vunpack.c.h.b16 %v9679
    %v10435 = vunpack.c.l.b16 %v9680
    %v10436 = vunpack.c.h.b16 %v9680
    %v10437 = vunpack.c.l.b16 %v9681
    %v10438 = vunpack.c.h.b16 %v9681
    %v10439 = vunpack.c.l.b16 %v9682
    %v10440 = vunpack.c.h.b16 %v9682
    %v10441 = vunpack.c.l.b16 %v9683
    %v10442 = vunpack.c.h.b16 %v9683
    %v10443 = vunpack.c.l.b16 %v9684
    %v10444 = vunpack.c.h.b16 %v9684
    %v10445 = vunpack.c.l.b16 %v9685
    %v10446 = vunpack.c.h.b16 %v9685
    %v10447 = vunpack.c.l.b16 %v9686
    %v10448 = vunpack.c.h.b16 %v9686
    %v10449 = vunpack.c.l.b16 %v9687
    %v10450 = vunpack.c.h.b16 %v9687
    %v10451 = vunpack.c.l.b16 %v9688
    %v10452 = vunpack.c.h.b16 %v9688
    %v10453 = vunpack.c.l.b16 %v9689
    %v10454 = vunpack.c.h.b16 %v9689
    %v10455 = vunpack.c.l.b16 %v9690
    %v10456 = vunpack.c.h.b16 %v9690
    %v10457 = vunpack.c.l.b16 %v9691
    %v10458 = vunpack.c.h.b16 %v9691
    %v10459 = vunpack.c.l.b16 %v9692
    %v10460 = vunpack.c.h.b16 %v9692
    %v10461 = vunpack.c.l.b16 %v9693
    %v10462 = vunpack.c.h.b16 %v9693
    %v10463 = vunpack.c.l.b16 %v9694
    %v10464 = vunpack.c.h.b16 %v9694
    %v10465 = vunpack.c.l.b16 %v9695
    %v10466 = vunpack.c.h.b16 %v9695
    %v10467 = vunpack.c.l.b16 %v9696
    %v10468 = vunpack.c.h.b16 %v9696
    %v10469 = vunpack.c.l.b16 %v9697
    %v10470 = vunpack.c.h.b16 %v9697
    %v10471 = vunpack.c.l.b16 %v9698
    %v10472 = vunpack.c.h.b16 %v9698
    %v10473 = vunpack.c.l.b16 %v9699
    %v10474 = vunpack.c.h.b16 %v9699
    %v10475 = vunpack.c.l.b16 %v9700
    %v10476 = vunpack.c.h.b16 %v9700
    %v10477 = vunpack.c.l.b16 %v9701
    %v10478 = vunpack.c.h.b16 %v9701
    %v10479 = vunpack.c.l.b16 %v9702
    %v10480 = vunpack.c.h.b16 %v9702
    %v10481 = vpack.c.b16 %v9973, %v9969
    %v10482 = vpack.c.b16 %v9974, %v9970
    %v10483 = vpack.c.b16 %v9975, %v9971
    %v10484 = vpack.c.b16 %v9976, %v9972
    %v10485 = vpack.c.b16 %v9981, %v9977
    %v10486 = vpack.c.b16 %v9982, %v9978
    %v10487 = vpack.c.b16 %v9983, %v9979
    %v10488 = vpack.c.b16 %v9984, %v9980
    %v10489 = vpack.c.b16 %v9989, %v9985
    %v10490 = vpack.c.b16 %v9990, %v9986
    %v10491 = vpack.c.b16 %v9991, %v9987
    %v10492 = vpack.c.b16 %v9992, %v9988
    %v10493 = vpack.c.b16 %v9997, %v9993
    %v10494 = vpack.c.b16 %v9998, %v9994
    %v10495 = vpack.c.b16 %v9999, %v9995
    %v10496 = vpack.c.b16 %v10000, %v9996
    %v10497 = vpack.c.b16 %v10005, %v10001
    %v10498 = vpack.c.b16 %v10006, %v10002
    %v10499 = vpack.c.b16 %v10007, %v10003
    %v10500 = vpack.c.b16 %v10008, %v10004
    %v10501 = vpack.c.b16 %v10013, %v10009
    %v10502 = vpack.c.b16 %v10014, %v10010
    %v10503 = vpack.c.b16 %v10015, %v10011
    %v10504 = vpack.c.b16 %v10016, %v10012
    %v10505 = vpack.c.b16 %v10021, %v10017
    %v10506 = vpack.c.b16 %v10022, %v10018
    %v10507 = vpack.c.b16 %v10023, %v10019
    %v10508 = vpack.c.b16 %v10024, %v10020
    %v10509 = vpack.c.b16 %v10029, %v10025
    %v10510 = vpack.c.b16 %v10030, %v10026
    %v10511 = vpack.c.b16 %v10031, %v10027
    %v10512 = vpack.c.b16 %v10032, %v10028
    %v10513 = vpack.c.b16 %v10037, %v10033
    %v10514 = vpack.c.b16 %v10038, %v10034
    %v10515 = vpack.c.b16 %v10039, %v10035
    %v10516 = vpack.c.b16 %v10040, %v10036
    %v10517 = vpack.c.b16 %v10045, %v10041
    %v10518 = vpack.c.b16 %v10046, %v10042
    %v10519 = vpack.c.b16 %v10047, %v10043
    %v10520 = vpack.c.b16 %v10048, %v10044
    %v10521 = vpack.c.b16 %v10053, %v10049
    %v10522 = vpack.c.b16 %v10054, %v10050
    %v10523 = vpack.c.b16 %v10055, %v10051
    %v10524 = vpack.c.b16 %v10056, %v10052
    %v10525 = vpack.c.b16 %v10061, %v10057
    %v10526 = vpack.c.b16 %v10062, %v10058
    %v10527 = vpack.c.b16 %v10063, %v10059
    %v10528 = vpack.c.b16 %v10064, %v10060
    %v10529 = vpack.c.b16 %v10069, %v10065
    %v10530 = vpack.c.b16 %v10070, %v10066
    %v10531 = vpack.c.b16 %v10071, %v10067
    %v10532 = vpack.c.b16 %v10072, %v10068
    %v10533 = vpack.c.b16 %v10077, %v10073
    %v10534 = vpack.c.b16 %v10078, %v10074
    %v10535 = vpack.c.b16 %v10079, %v10075
    %v10536 = vpack.c.b16 %v10080, %v10076
    %v10537 = vpack.c.b16 %v10085, %v10081
    %v10538 = vpack.c.b16 %v10086, %v10082
    %v10539 = vpack.c.b16 %v10087, %v10083
    %v10540 = vpack.c.b16 %v10088, %v10084
    %v10541 = vpack.c.b16 %v10093, %v10089
    %v10542 = vpack.c.b16 %v10094, %v10090
    %v10543 = vpack.c.b16 %v10095, %v10091
    %v10544 = vpack.c.b16 %v10096, %v10092
    %v10545 = vpack.c.b16 %v10101, %v10097
    %v10546 = vpack.c.b16 %v10102, %v10098
    %v10547 = vpack.c.b16 %v10103, %v10099
    %v10548 = vpack.c.b16 %v10104, %v10100
    %v10549 = vpack.c.b16 %v10109, %v10105
    %v10550 = vpack.c.b16 %v10110, %v10106
    %v10551 = vpack.c.b16 %v10111, %v10107
    %v10552 = vpack.c.b16 %v10112, %v10108
    %v10553 = vpack.c.b16 %v10117, %v10113
    %v10554 = vpack.c.b16 %v10118, %v10114
    %v10555 = vpack.c.b16 %v10119, %v10115
    %v10556 = vpack.c.b16 %v10120, %v10116
    %v10557 = vpack.c.b16 %v10125, %v10121
    %v10558 = vpack.c.b16 %v10126, %v10122
    %v10559 = vpack.c.b16 %v10127, %v10123
    %v10560 = vpack.c.b16 %v10128, %v10124
    %v10561 = vpack.c.b16 %v10133, %v10129
    %v10562 = vpack.c.b16 %v10134, %v10130
    %v10563 = vpack.c.b16 %v10135, %v10131
    %v10564 = vpack.c.b16 %v10136, %v10132
    %v10565 = vpack.c.b16 %v10141, %v10137
    %v10566 = vpack.c.b16 %v10142, %v10138
    %v10567 = vpack.c.b16 %v10143, %v10139
    %v10568 = vpack.c.b16 %v10144, %v10140
    %v10569 = vpack.c.b16 %v10149, %v10145
    %v10570 = vpack.c.b16 %v10150, %v10146
    %v10571 = vpack.c.b16 %v10151, %v10147
    %v10572 = vpack.c.b16 %v10152, %v10148
    %v10573 = vpack.c.b16 %v10157, %v10153
    %v10574 = vpack.c.b16 %v10158, %v10154
    %v10575 = vpack.c.b16 %v10159, %v10155
    %v10576 = vpack.c.b16 %v10160, %v10156
    %v10577 = vpack.c.b16 %v10165, %v10161
    %v10578 = vpack.c.b16 %v10166, %v10162
    %v10579 = vpack.c.b16 %v10167, %v10163
    %v10580 = vpack.c.b16 %v10168, %v10164
    %v10581 = vpack.c.b16 %v10173, %v10169
    %v10582 = vpack.c.b16 %v10174, %v10170
    %v10583 = vpack.c.b16 %v10175, %v10171
    %v10584 = vpack.c.b16 %v10176, %v10172
    %v10585 = vpack.c.b16 %v10181, %v10177
    %v10586 = vpack.c.b16 %v10182, %v10178
    %v10587 = vpack.c.b16 %v10183, %v10179
    %v10588 = vpack.c.b16 %v10184, %v10180
    %v10589 = vpack.c.b16 %v10189, %v10185
    %v10590 = vpack.c.b16 %v10190, %v10186
    %v10591 = vpack.c.b16 %v10191, %v10187
    %v10592 = vpack.c.b16 %v10192, %v10188
    %v10593 = vpack.c.b16 %v10197, %v10193
    %v10594 = vpack.c.b16 %v10198, %v10194
    %v10595 = vpack.c.b16 %v10199, %v10195
    %v10596 = vpack.c.b16 %v10200, %v10196
    %v10597 = vpack.c.b16 %v10205, %v10201
    %v10598 = vpack.c.b16 %v10206, %v10202
    %v10599 = vpack.c.b16 %v10207, %v10203
    %v10600 = vpack.c.b16 %v10208, %v10204
    %v10601 = vpack.c.b16 %v10213, %v10209
    %v10602 = vpack.c.b16 %v10214, %v10210
    %v10603 = vpack.c.b16 %v10215, %v10211
    %v10604 = vpack.c.b16 %v10216, %v10212
    %v10605 = vpack.c.b16 %v10221, %v10217
    %v10606 = vpack.c.b16 %v10222, %v10218
    %v10607 = vpack.c.b16 %v10223, %v10219
    %v10608 = vpack.c.b16 %v10224, %v10220
    %v10609 = vpack.c.b16 %v10229, %v10225
    %v10610 = vpack.c.b16 %v10230, %v10226
    %v10611 = vpack.c.b16 %v10231, %v10227
    %v10612 = vpack.c.b16 %v10232, %v10228
    %v10613 = vpack.c.b16 %v10237, %v10233
    %v10614 = vpack.c.b16 %v10238, %v10234
    %v10615 = vpack.c.b16 %v10239, %v10235
    %v10616 = vpack.c.b16 %v10240, %v10236
    %v10617 = vpack.c.b16 %v10245, %v10241
    %v10618 = vpack.c.b16 %v10246, %v10242
    %v10619 = vpack.c.b16 %v10247, %v10243
    %v10620 = vpack.c.b16 %v10248, %v10244
    %v10621 = vpack.c.b16 %v10253, %v10249
    %v10622 = vpack.c.b16 %v10254, %v10250
    %v10623 = vpack.c.b16 %v10255, %v10251
    %v10624 = vpack.c.b16 %v10256, %v10252
    %v10625 = vpack.c.b16 %v10261, %v10257
    %v10626 = vpack.c.b16 %v10262, %v10258
    %v10627 = vpack.c.b16 %v10263, %v10259
    %v10628 = vpack.c.b16 %v10264, %v10260
    %v10629 = vpack.c.b16 %v10269, %v10265
    %v10630 = vpack.c.b16 %v10270, %v10266
    %v10631 = vpack.c.b16 %v10271, %v10267
    %v10632 = vpack.c.b16 %v10272, %v10268
    %v10633 = vpack.c.b16 %v10277, %v10273
    %v10634 = vpack.c.b16 %v10278, %v10274
    %v10635 = vpack.c.b16 %v10279, %v10275
    %v10636 = vpack.c.b16 %v10280, %v10276
    %v10637 = vpack.c.b16 %v10285, %v10281
    %v10638 = vpack.c.b16 %v10286, %v10282
    %v10639 = vpack.c.b16 %v10287, %v10283
    %v10640 = vpack.c.b16 %v10288, %v10284
    %v10641 = vpack.c.b16 %v10293, %v10289
    %v10642 = vpack.c.b16 %v10294, %v10290
    %v10643 = vpack.c.b16 %v10295, %v10291
    %v10644 = vpack.c.b16 %v10296, %v10292
    %v10645 = vpack.c.b16 %v10301, %v10297
    %v10646 = vpack.c.b16 %v10302, %v10298
    %v10647 = vpack.c.b16 %v10303, %v10299
    %v10648 = vpack.c.b16 %v10304, %v10300
    %v10649 = vpack.c.b16 %v10309, %v10305
    %v10650 = vpack.c.b16 %v10310, %v10306
    %v10651 = vpack.c.b16 %v10311, %v10307
    %v10652 = vpack.c.b16 %v10312, %v10308
    %v10653 = vpack.c.b16 %v10317, %v10313
    %v10654 = vpack.c.b16 %v10318, %v10314
    %v10655 = vpack.c.b16 %v10319, %v10315
    %v10656 = vpack.c.b16 %v10320, %v10316
    %v10657 = vpack.c.b16 %v10325, %v10321
    %v10658 = vpack.c.b16 %v10326, %v10322
    %v10659 = vpack.c.b16 %v10327, %v10323
    %v10660 = vpack.c.b16 %v10328, %v10324
    %v10661 = vpack.c.b16 %v10333, %v10329
    %v10662 = vpack.c.b16 %v10334, %v10330
    %v10663 = vpack.c.b16 %v10335, %v10331
    %v10664 = vpack.c.b16 %v10336, %v10332
    %v10665 = vpack.c.b16 %v10341, %v10337
    %v10666 = vpack.c.b16 %v10342, %v10338
    %v10667 = vpack.c.b16 %v10343, %v10339
    %v10668 = vpack.c.b16 %v10344, %v10340
    %v10669 = vpack.c.b16 %v10349, %v10345
    %v10670 = vpack.c.b16 %v10350, %v10346
    %v10671 = vpack.c.b16 %v10351, %v10347
    %v10672 = vpack.c.b16 %v10352, %v10348
    %v10673 = vpack.c.b16 %v10357, %v10353
    %v10674 = vpack.c.b16 %v10358, %v10354
    %v10675 = vpack.c.b16 %v10359, %v10355
    %v10676 = vpack.c.b16 %v10360, %v10356
    %v10677 = vpack.c.b16 %v10365, %v10361
    %v10678 = vpack.c.b16 %v10366, %v10362
    %v10679 = vpack.c.b16 %v10367, %v10363
    %v10680 = vpack.c.b16 %v10368, %v10364
    %v10681 = vpack.c.b16 %v10373, %v10369
    %v10682 = vpack.c.b16 %v10374, %v10370
    %v10683 = vpack.c.b16 %v10375, %v10371
    %v10684 = vpack.c.b16 %v10376, %v10372
    %v10685 = vpack.c.b16 %v10381, %v10377
    %v10686 = vpack.c.b16 %v10382, %v10378
    %v10687 = vpack.c.b16 %v10383, %v10379
    %v10688 = vpack.c.b16 %v10384, %v10380
    %v10689 = vpack.c.b16 %v10389, %v10385
    %v10690 = vpack.c.b16 %v10390, %v10386
    %v10691 = vpack.c.b16 %v10391, %v10387
    %v10692 = vpack.c.b16 %v10392, %v10388
    %v10693 = vpack.c.b16 %v10397, %v10393
    %v10694 = vpack.c.b16 %v10398, %v10394
    %v10695 = vpack.c.b16 %v10399, %v10395
    %v10696 = vpack.c.b16 %v10400, %v10396
    %v10697 = vpack.c.b16 %v10405, %v10401
    %v10698 = vpack.c.b16 %v10406, %v10402
    %v10699 = vpack.c.b16 %v10407, %v10403
    %v10700 = vpack.c.b16 %v10408, %v10404
    %v10701 = vpack.c.b16 %v10413, %v10409
    %v10702 = vpack.c.b16 %v10414, %v10410
    %v10703 = vpack.c.b16 %v10415, %v10411
    %v10704 = vpack.c.b16 %v10416, %v10412
    %v10705 = vpack.c.b16 %v10421, %v10417
    %v10706 = vpack.c.b16 %v10422, %v10418
    %v10707 = vpack.c.b16 %v10423, %v10419
    %v10708 = vpack.c.b16 %v10424, %v10420
    %v10709 = vpack.c.b16 %v10429, %v10425
    %v10710 = vpack.c.b16 %v10430, %v10426
    %v10711 = vpack.c.b16 %v10431, %v10427
    %v10712 = vpack.c.b16 %v10432, %v10428
    %v10713 = vpack.c.b16 %v10437, %v10433
    %v10714 = vpack.c.b16 %v10438, %v10434
    %v10715 = vpack.c.b16 %v10439, %v10435
    %v10716 = vpack.c.b16 %v10440, %v10436
    %v10717 = vpack.c.b16 %v10445, %v10441
    %v10718 = vpack.c.b16 %v10446, %v10442
    %v10719 = vpack.c.b16 %v10447, %v10443
    %v10720 = vpack.c.b16 %v10448, %v10444
    %v10721 = vpack.c.b16 %v10453, %v10449
    %v10722 = vpack.c.b16 %v10454, %v10450
    %v10723 = vpack.c.b16 %v10455, %v10451
    %v10724 = vpack.c.b16 %v10456, %v10452
    %v10725 = vpack.c.b16 %v10461, %v10457
    %v10726 = vpack.c.b16 %v10462, %v10458
    %v10727 = vpack.c.b16 %v10463, %v10459
    %v10728 = vpack.c.b16 %v10464, %v10460
    %v10729 = vpack.c.b16 %v10469, %v10465
    %v10730 = vpack.c.b16 %v10470, %v10466
    %v10731 = vpack.c.b16 %v10471, %v10467
    %v10732 = vpack.c.b16 %v10472, %v10468
    %v10733 = vpack.c.b16 %v10477, %v10473
    %v10734 = vpack.c.b16 %v10478, %v10474
    %v10735 = vpack.c.b16 %v10479, %v10475
    %v10736 = vpack.c.b16 %v10480, %v10476
    %10993 = vmatpush.bf16.msra.mxu0 %v10509
    %10994 = vmatpush.bf16.msra.mxu0 %v10505
    %10995 = vmatpush.bf16.msra.mxu0 %v10501
    %10996 = vmatpush.bf16.msra.mxu0 %v10497
    %10997 = vmatpush.bf16.msra.mxu0 %v10493
    %10998 = vmatpush.bf16.msra.mxu0 %v10489
    %10999 = vmatpush.bf16.msra.mxu0 %v10485
    %11000 = vmatpush.bf16.msra.mxu0 %v10481
    %11001 = vmatmul.bf16.gmra.mxu0 %v9439
    %v11002 = vpop.f32.mrf.mxu0
    %v11003 = vadd.f32 %v9705, %v11002
    %v11004 = vpop.f32.mrf.mxu0
    %11005 = vdwg.mxu0
    %11006 = vmatpush.bf16.msra.mxu0 %v10541
    %11007 = vmatpush.bf16.msra.mxu0 %v10537
    %11008 = vmatpush.bf16.msra.mxu0 %v10533
    %11009 = vmatpush.bf16.msra.mxu0 %v10529
    %11010 = vmatpush.bf16.msra.mxu0 %v10525
    %11011 = vmatpush.bf16.msra.mxu0 %v10521
    %11012 = vmatpush.bf16.msra.mxu0 %v10517
    %11013 = vmatpush.bf16.msra.mxu0 %v10513
    %11014 = vmatmul.bf16.gmra.mxu0 %v9440
    %v11015 = vpop.f32.mrf.mxu0
    %v11016 = vadd.f32 %v11003, %v11015
    %v11017 = vpop.f32.mrf.mxu0
    %11018 = vdwg.mxu0
    %11019 = vmatpush.bf16.msra.mxu0 %v10573
    %11020 = vmatpush.bf16.msra.mxu0 %v10569
    %11021 = vmatpush.bf16.msra.mxu0 %v10565
    %11022 = vmatpush.bf16.msra.mxu0 %v10561
    %11023 = vmatpush.bf16.msra.mxu0 %v10557
    %11024 = vmatpush.bf16.msra.mxu0 %v10553
    %11025 = vmatpush.bf16.msra.mxu0 %v10549
    %11026 = vmatpush.bf16.msra.mxu0 %v10545
    %11027 = vmatmul.bf16.gmra.mxu0 %v9441
    %v11028 = vpop.f32.mrf.mxu0
    %v11029 = vadd.f32 %v11016, %v11028
    %v11030 = vpop.f32.mrf.mxu0
    %11031 = vdwg.mxu0
    %11032 = vmatpush.bf16.msra.mxu0 %v10605
    %11033 = vmatpush.bf16.msra.mxu0 %v10601
    %11034 = vmatpush.bf16.msra.mxu0 %v10597
    %11035 = vmatpush.bf16.msra.mxu0 %v10593
    %11036 = vmatpush.bf16.msra.mxu0 %v10589
    %11037 = vmatpush.bf16.msra.mxu0 %v10585
    %11038 = vmatpush.bf16.msra.mxu0 %v10581
    %11039 = vmatpush.bf16.msra.mxu0 %v10577
    %11040 = vmatmul.bf16.gmra.mxu0 %v9442
    %v11041 = vpop.f32.mrf.mxu0
    %v11042 = vadd.f32 %v11029, %v11041
    %v11043 = vpop.f32.mrf.mxu0
    %11044 = vdwg.mxu0
    %11045 = vmatpush.bf16.msra.mxu0 %v10637
    %11046 = vmatpush.bf16.msra.mxu0 %v10633
    %11047 = vmatpush.bf16.msra.mxu0 %v10629
    %11048 = vmatpush.bf16.msra.mxu0 %v10625
    %11049 = vmatpush.bf16.msra.mxu0 %v10621
    %11050 = vmatpush.bf16.msra.mxu0 %v10617
    %11051 = vmatpush.bf16.msra.mxu0 %v10613
    %11052 = vmatpush.bf16.msra.mxu0 %v10609
    %11053 = vmatmul.bf16.gmra.mxu0 %v9443
    %v11054 = vpop.f32.mrf.mxu0
    %v11055 = vadd.f32 %v11042, %v11054
    %v11056 = vpop.f32.mrf.mxu0
    %11057 = vdwg.mxu0
    %11058 = vmatpush.bf16.msra.mxu0 %v10669
    %11059 = vmatpush.bf16.msra.mxu0 %v10665
    %11060 = vmatpush.bf16.msra.mxu0 %v10661
    %11061 = vmatpush.bf16.msra.mxu0 %v10657
    %11062 = vmatpush.bf16.msra.mxu0 %v10653
    %11063 = vmatpush.bf16.msra.mxu0 %v10649
    %11064 = vmatpush.bf16.msra.mxu0 %v10645
    %11065 = vmatpush.bf16.msra.mxu0 %v10641
    %11066 = vmatmul.bf16.gmra.mxu0 %v9444
    %v11067 = vpop.f32.mrf.mxu0
    %v11068 = vadd.f32 %v11055, %v11067
    %v11069 = vpop.f32.mrf.mxu0
    %11070 = vdwg.mxu0
    %11071 = vmatpush.bf16.msra.mxu0 %v10701
    %11072 = vmatpush.bf16.msra.mxu0 %v10697
    %11073 = vmatpush.bf16.msra.mxu0 %v10693
    %11074 = vmatpush.bf16.msra.mxu0 %v10689
    %11075 = vmatpush.bf16.msra.mxu0 %v10685
    %11076 = vmatpush.bf16.msra.mxu0 %v10681
    %11077 = vmatpush.bf16.msra.mxu0 %v10677
    %11078 = vmatpush.bf16.msra.mxu0 %v10673
    %11079 = vmatmul.bf16.gmra.mxu0 %v9445
    %v11080 = vpop.f32.mrf.mxu0
    %v11081 = vadd.f32 %v11068, %v11080
    %v11082 = vpop.f32.mrf.mxu0
    %11083 = vdwg.mxu0
    %11084 = vmatpush.bf16.msra.mxu0 %v10733
    %11085 = vmatpush.bf16.msra.mxu0 %v10729
    %11086 = vmatpush.bf16.msra.mxu0 %v10725
    %11087 = vmatpush.bf16.msra.mxu0 %v10721
    %11088 = vmatpush.bf16.msra.mxu0 %v10717
    %11089 = vmatpush.bf16.msra.mxu0 %v10713
    %11090 = vmatpush.bf16.msra.mxu0 %v10709
    %11091 = vmatpush.bf16.msra.mxu0 %v10705
    %11092 = vmatmul.bf16.gmra.mxu0 %v9446
    %v11093 = vpop.f32.mrf.mxu0
    %v11094 = vadd.f32 %v11081, %v11093
    %v11095 = vpop.f32.mrf.mxu0
    %11096 = vdwg.mxu0
    %11097 = vmatpush.bf16.msra.mxu0 %v10510
    %11098 = vmatpush.bf16.msra.mxu0 %v10506
    %11099 = vmatpush.bf16.msra.mxu0 %v10502
    %11100 = vmatpush.bf16.msra.mxu0 %v10498
    %11101 = vmatpush.bf16.msra.mxu0 %v10494
    %11102 = vmatpush.bf16.msra.mxu0 %v10490
    %11103 = vmatpush.bf16.msra.mxu0 %v10486
    %11104 = vmatpush.bf16.msra.mxu0 %v10482
    %11105 = vmatmul.bf16.gmra.mxu0 %v9439
    %v11106 = vpop.f32.mrf.mxu0
    %v11107 = vadd.f32 %v9706, %v11106
    %v11108 = vpop.f32.mrf.mxu0
    %11109 = vdwg.mxu0
    %11110 = vmatpush.bf16.msra.mxu0 %v10542
    %11111 = vmatpush.bf16.msra.mxu0 %v10538
    %11112 = vmatpush.bf16.msra.mxu0 %v10534
    %11113 = vmatpush.bf16.msra.mxu0 %v10530
    %11114 = vmatpush.bf16.msra.mxu0 %v10526
    %11115 = vmatpush.bf16.msra.mxu0 %v10522
    %11116 = vmatpush.bf16.msra.mxu0 %v10518
    %11117 = vmatpush.bf16.msra.mxu0 %v10514
    %11118 = vmatmul.bf16.gmra.mxu0 %v9440
    %v11119 = vpop.f32.mrf.mxu0
    %v11120 = vadd.f32 %v11107, %v11119
    %v11121 = vpop.f32.mrf.mxu0
    %11122 = vdwg.mxu0
    %11123 = vmatpush.bf16.msra.mxu0 %v10574
    %11124 = vmatpush.bf16.msra.mxu0 %v10570
    %11125 = vmatpush.bf16.msra.mxu0 %v10566
    %11126 = vmatpush.bf16.msra.mxu0 %v10562
    %11127 = vmatpush.bf16.msra.mxu0 %v10558
    %11128 = vmatpush.bf16.msra.mxu0 %v10554
    %11129 = vmatpush.bf16.msra.mxu0 %v10550
    %11130 = vmatpush.bf16.msra.mxu0 %v10546
    %11131 = vmatmul.bf16.gmra.mxu0 %v9441
    %v11132 = vpop.f32.mrf.mxu0
    %v11133 = vadd.f32 %v11120, %v11132
    %v11134 = vpop.f32.mrf.mxu0
    %11135 = vdwg.mxu0
    %11136 = vmatpush.bf16.msra.mxu0 %v10606
    %11137 = vmatpush.bf16.msra.mxu0 %v10602
    %11138 = vmatpush.bf16.msra.mxu0 %v10598
    %11139 = vmatpush.bf16.msra.mxu0 %v10594
    %11140 = vmatpush.bf16.msra.mxu0 %v10590
    %11141 = vmatpush.bf16.msra.mxu0 %v10586
    %11142 = vmatpush.bf16.msra.mxu0 %v10582
    %11143 = vmatpush.bf16.msra.mxu0 %v10578
    %11144 = vmatmul.bf16.gmra.mxu0 %v9442
    %v11145 = vpop.f32.mrf.mxu0
    %v11146 = vadd.f32 %v11133, %v11145
    %v11147 = vpop.f32.mrf.mxu0
    %11148 = vdwg.mxu0
    %11149 = vmatpush.bf16.msra.mxu0 %v10638
    %11150 = vmatpush.bf16.msra.mxu0 %v10634
    %11151 = vmatpush.bf16.msra.mxu0 %v10630
    %11152 = vmatpush.bf16.msra.mxu0 %v10626
    %11153 = vmatpush.bf16.msra.mxu0 %v10622
    %11154 = vmatpush.bf16.msra.mxu0 %v10618
    %11155 = vmatpush.bf16.msra.mxu0 %v10614
    %11156 = vmatpush.bf16.msra.mxu0 %v10610
    %11157 = vmatmul.bf16.gmra.mxu0 %v9443
    %v11158 = vpop.f32.mrf.mxu0
    %v11159 = vadd.f32 %v11146, %v11158
    %v11160 = vpop.f32.mrf.mxu0
    %11161 = vdwg.mxu0
    %11162 = vmatpush.bf16.msra.mxu0 %v10670
    %11163 = vmatpush.bf16.msra.mxu0 %v10666
    %11164 = vmatpush.bf16.msra.mxu0 %v10662
    %11165 = vmatpush.bf16.msra.mxu0 %v10658
    %11166 = vmatpush.bf16.msra.mxu0 %v10654
    %11167 = vmatpush.bf16.msra.mxu0 %v10650
    %11168 = vmatpush.bf16.msra.mxu0 %v10646
    %11169 = vmatpush.bf16.msra.mxu0 %v10642
    %11170 = vmatmul.bf16.gmra.mxu0 %v9444
    %v11171 = vpop.f32.mrf.mxu0
    %v11172 = vadd.f32 %v11159, %v11171
    %v11173 = vpop.f32.mrf.mxu0
    %11174 = vdwg.mxu0
    %11175 = vmatpush.bf16.msra.mxu0 %v10702
    %11176 = vmatpush.bf16.msra.mxu0 %v10698
    %11177 = vmatpush.bf16.msra.mxu0 %v10694
    %11178 = vmatpush.bf16.msra.mxu0 %v10690
    %11179 = vmatpush.bf16.msra.mxu0 %v10686
    %11180 = vmatpush.bf16.msra.mxu0 %v10682
    %11181 = vmatpush.bf16.msra.mxu0 %v10678
    %11182 = vmatpush.bf16.msra.mxu0 %v10674
    %11183 = vmatmul.bf16.gmra.mxu0 %v9445
    %v11184 = vpop.f32.mrf.mxu0
    %v11185 = vadd.f32 %v11172, %v11184
    %v11186 = vpop.f32.mrf.mxu0
    %11187 = vdwg.mxu0
    %11188 = vmatpush.bf16.msra.mxu0 %v10734
    %11189 = vmatpush.bf16.msra.mxu0 %v10730
    %11190 = vmatpush.bf16.msra.mxu0 %v10726
    %11191 = vmatpush.bf16.msra.mxu0 %v10722
    %11192 = vmatpush.bf16.msra.mxu0 %v10718
    %11193 = vmatpush.bf16.msra.mxu0 %v10714
    %11194 = vmatpush.bf16.msra.mxu0 %v10710
    %11195 = vmatpush.bf16.msra.mxu0 %v10706
    %11196 = vmatmul.bf16.gmra.mxu0 %v9446
    %v11197 = vpop.f32.mrf.mxu0
    %v11198 = vadd.f32 %v11185, %v11197
    %v11199 = vpop.f32.mrf.mxu0
    %11200 = vdwg.mxu0
    %11201 = vmatpush.bf16.msra.mxu0 %v10511
    %11202 = vmatpush.bf16.msra.mxu0 %v10507
    %11203 = vmatpush.bf16.msra.mxu0 %v10503
    %11204 = vmatpush.bf16.msra.mxu0 %v10499
    %11205 = vmatpush.bf16.msra.mxu0 %v10495
    %11206 = vmatpush.bf16.msra.mxu0 %v10491
    %11207 = vmatpush.bf16.msra.mxu0 %v10487
    %11208 = vmatpush.bf16.msra.mxu0 %v10483
    %11209 = vmatmul.bf16.gmra.mxu0 %v9439
    %v11210 = vpop.f32.mrf.mxu0
    %v11211 = vadd.f32 %v9707, %v11210
    %v11212 = vpop.f32.mrf.mxu0
    %11213 = vdwg.mxu0
    %11214 = vmatpush.bf16.msra.mxu0 %v10543
    %11215 = vmatpush.bf16.msra.mxu0 %v10539
    %11216 = vmatpush.bf16.msra.mxu0 %v10535
    %11217 = vmatpush.bf16.msra.mxu0 %v10531
    %11218 = vmatpush.bf16.msra.mxu0 %v10527
    %11219 = vmatpush.bf16.msra.mxu0 %v10523
    %11220 = vmatpush.bf16.msra.mxu0 %v10519
    %11221 = vmatpush.bf16.msra.mxu0 %v10515
    %11222 = vmatmul.bf16.gmra.mxu0 %v9440
    %v11223 = vpop.f32.mrf.mxu0
    %v11224 = vadd.f32 %v11211, %v11223
    %v11225 = vpop.f32.mrf.mxu0
    %11226 = vdwg.mxu0
    %11227 = vmatpush.bf16.msra.mxu0 %v10575
    %11228 = vmatpush.bf16.msra.mxu0 %v10571
    %11229 = vmatpush.bf16.msra.mxu0 %v10567
    %11230 = vmatpush.bf16.msra.mxu0 %v10563
    %11231 = vmatpush.bf16.msra.mxu0 %v10559
    %11232 = vmatpush.bf16.msra.mxu0 %v10555
    %11233 = vmatpush.bf16.msra.mxu0 %v10551
    %11234 = vmatpush.bf16.msra.mxu0 %v10547
    %11235 = vmatmul.bf16.gmra.mxu0 %v9441
    %v11236 = vpop.f32.mrf.mxu0
    %v11237 = vadd.f32 %v11224, %v11236
    %v11238 = vpop.f32.mrf.mxu0
    %11239 = vdwg.mxu0
    %11240 = vmatpush.bf16.msra.mxu0 %v10607
    %11241 = vmatpush.bf16.msra.mxu0 %v10603
    %11242 = vmatpush.bf16.msra.mxu0 %v10599
    %11243 = vmatpush.bf16.msra.mxu0 %v10595
    %11244 = vmatpush.bf16.msra.mxu0 %v10591
    %11245 = vmatpush.bf16.msra.mxu0 %v10587
    %11246 = vmatpush.bf16.msra.mxu0 %v10583
    %11247 = vmatpush.bf16.msra.mxu0 %v10579
    %11248 = vmatmul.bf16.gmra.mxu0 %v9442
    %v11249 = vpop.f32.mrf.mxu0
    %v11250 = vadd.f32 %v11237, %v11249
    %v11251 = vpop.f32.mrf.mxu0
    %11252 = vdwg.mxu0
    %11253 = vmatpush.bf16.msra.mxu0 %v10639
    %11254 = vmatpush.bf16.msra.mxu0 %v10635
    %11255 = vmatpush.bf16.msra.mxu0 %v10631
    %11256 = vmatpush.bf16.msra.mxu0 %v10627
    %11257 = vmatpush.bf16.msra.mxu0 %v10623
    %11258 = vmatpush.bf16.msra.mxu0 %v10619
    %11259 = vmatpush.bf16.msra.mxu0 %v10615
    %11260 = vmatpush.bf16.msra.mxu0 %v10611
    %11261 = vmatmul.bf16.gmra.mxu0 %v9443
    %v11262 = vpop.f32.mrf.mxu0
    %v11263 = vadd.f32 %v11250, %v11262
    %v11264 = vpop.f32.mrf.mxu0
    %11265 = vdwg.mxu0
    %11266 = vmatpush.bf16.msra.mxu0 %v10671
    %11267 = vmatpush.bf16.msra.mxu0 %v10667
    %11268 = vmatpush.bf16.msra.mxu0 %v10663
    %11269 = vmatpush.bf16.msra.mxu0 %v10659
    %11270 = vmatpush.bf16.msra.mxu0 %v10655
    %11271 = vmatpush.bf16.msra.mxu0 %v10651
    %11272 = vmatpush.bf16.msra.mxu0 %v10647
    %11273 = vmatpush.bf16.msra.mxu0 %v10643
    %11274 = vmatmul.bf16.gmra.mxu0 %v9444
    %v11275 = vpop.f32.mrf.mxu0
    %v11276 = vadd.f32 %v11263, %v11275
    %v11277 = vpop.f32.mrf.mxu0
    %11278 = vdwg.mxu0
    %11279 = vmatpush.bf16.msra.mxu0 %v10703
    %11280 = vmatpush.bf16.msra.mxu0 %v10699
    %11281 = vmatpush.bf16.msra.mxu0 %v10695
    %11282 = vmatpush.bf16.msra.mxu0 %v10691
    %11283 = vmatpush.bf16.msra.mxu0 %v10687
    %11284 = vmatpush.bf16.msra.mxu0 %v10683
    %11285 = vmatpush.bf16.msra.mxu0 %v10679
    %11286 = vmatpush.bf16.msra.mxu0 %v10675
    %11287 = vmatmul.bf16.gmra.mxu0 %v9445
    %v11288 = vpop.f32.mrf.mxu0
    %v11289 = vadd.f32 %v11276, %v11288
    %v11290 = vpop.f32.mrf.mxu0
    %11291 = vdwg.mxu0
    %11292 = vmatpush.bf16.msra.mxu0 %v10735
    %11293 = vmatpush.bf16.msra.mxu0 %v10731
    %11294 = vmatpush.bf16.msra.mxu0 %v10727
    %11295 = vmatpush.bf16.msra.mxu0 %v10723
    %11296 = vmatpush.bf16.msra.mxu0 %v10719
    %11297 = vmatpush.bf16.msra.mxu0 %v10715
    %11298 = vmatpush.bf16.msra.mxu0 %v10711
    %11299 = vmatpush.bf16.msra.mxu0 %v10707
    %11300 = vmatmul.bf16.gmra.mxu0 %v9446
    %v11301 = vpop.f32.mrf.mxu0
    %v11302 = vadd.f32 %v11289, %v11301
    %v11303 = vpop.f32.mrf.mxu0
    %11304 = vdwg.mxu0
    %11305 = vmatpush.bf16.msra.mxu0 %v10512
    %11306 = vmatpush.bf16.msra.mxu0 %v10508
    %11307 = vmatpush.bf16.msra.mxu0 %v10504
    %11308 = vmatpush.bf16.msra.mxu0 %v10500
    %11309 = vmatpush.bf16.msra.mxu0 %v10496
    %11310 = vmatpush.bf16.msra.mxu0 %v10492
    %11311 = vmatpush.bf16.msra.mxu0 %v10488
    %11312 = vmatpush.bf16.msra.mxu0 %v10484
    %11313 = vmatmul.bf16.gmra.mxu0 %v9439
    %v11314 = vpop.f32.mrf.mxu0
    %v11315 = vadd.f32 %v9708, %v11314
    %v11316 = vpop.f32.mrf.mxu0
    %11317 = vdwg.mxu0
    %11318 = vmatpush.bf16.msra.mxu0 %v10544
    %11319 = vmatpush.bf16.msra.mxu0 %v10540
    %11320 = vmatpush.bf16.msra.mxu0 %v10536
    %11321 = vmatpush.bf16.msra.mxu0 %v10532
    %11322 = vmatpush.bf16.msra.mxu0 %v10528
    %11323 = vmatpush.bf16.msra.mxu0 %v10524
    %11324 = vmatpush.bf16.msra.mxu0 %v10520
    %11325 = vmatpush.bf16.msra.mxu0 %v10516
    %11326 = vmatmul.bf16.gmra.mxu0 %v9440
    %v11327 = vpop.f32.mrf.mxu0
    %v11328 = vadd.f32 %v11315, %v11327
    %v11329 = vpop.f32.mrf.mxu0
    %11330 = vdwg.mxu0
    %11331 = vmatpush.bf16.msra.mxu0 %v10576
    %11332 = vmatpush.bf16.msra.mxu0 %v10572
    %11333 = vmatpush.bf16.msra.mxu0 %v10568
    %11334 = vmatpush.bf16.msra.mxu0 %v10564
    %11335 = vmatpush.bf16.msra.mxu0 %v10560
    %11336 = vmatpush.bf16.msra.mxu0 %v10556
    %11337 = vmatpush.bf16.msra.mxu0 %v10552
    %11338 = vmatpush.bf16.msra.mxu0 %v10548
    %11339 = vmatmul.bf16.gmra.mxu0 %v9441
    %v11340 = vpop.f32.mrf.mxu0
    %v11341 = vadd.f32 %v11328, %v11340
    %v11342 = vpop.f32.mrf.mxu0
    %11343 = vdwg.mxu0
    %11344 = vmatpush.bf16.msra.mxu0 %v10608
    %11345 = vmatpush.bf16.msra.mxu0 %v10604
    %11346 = vmatpush.bf16.msra.mxu0 %v10600
    %11347 = vmatpush.bf16.msra.mxu0 %v10596
    %11348 = vmatpush.bf16.msra.mxu0 %v10592
    %11349 = vmatpush.bf16.msra.mxu0 %v10588
    %11350 = vmatpush.bf16.msra.mxu0 %v10584
    %11351 = vmatpush.bf16.msra.mxu0 %v10580
    %11352 = vmatmul.bf16.gmra.mxu0 %v9442
    %v11353 = vpop.f32.mrf.mxu0
    %v11354 = vadd.f32 %v11341, %v11353
    %v11355 = vpop.f32.mrf.mxu0
    %11356 = vdwg.mxu0
    %11357 = vmatpush.bf16.msra.mxu0 %v10640
    %11358 = vmatpush.bf16.msra.mxu0 %v10636
    %11359 = vmatpush.bf16.msra.mxu0 %v10632
    %11360 = vmatpush.bf16.msra.mxu0 %v10628
    %11361 = vmatpush.bf16.msra.mxu0 %v10624
    %11362 = vmatpush.bf16.msra.mxu0 %v10620
    %11363 = vmatpush.bf16.msra.mxu0 %v10616
    %11364 = vmatpush.bf16.msra.mxu0 %v10612
    %11365 = vmatmul.bf16.gmra.mxu0 %v9443
    %v11366 = vpop.f32.mrf.mxu0
    %v11367 = vadd.f32 %v11354, %v11366
    %v11368 = vpop.f32.mrf.mxu0
    %11369 = vdwg.mxu0
    %11370 = vmatpush.bf16.msra.mxu0 %v10672
    %11371 = vmatpush.bf16.msra.mxu0 %v10668
    %11372 = vmatpush.bf16.msra.mxu0 %v10664
    %11373 = vmatpush.bf16.msra.mxu0 %v10660
    %11374 = vmatpush.bf16.msra.mxu0 %v10656
    %11375 = vmatpush.bf16.msra.mxu0 %v10652
    %11376 = vmatpush.bf16.msra.mxu0 %v10648
    %11377 = vmatpush.bf16.msra.mxu0 %v10644
    %11378 = vmatmul.bf16.gmra.mxu0 %v9444
    %v11379 = vpop.f32.mrf.mxu0
    %v11380 = vadd.f32 %v11367, %v11379
    %v11381 = vpop.f32.mrf.mxu0
    %11382 = vdwg.mxu0
    %11383 = vmatpush.bf16.msra.mxu0 %v10704
    %11384 = vmatpush.bf16.msra.mxu0 %v10700
    %11385 = vmatpush.bf16.msra.mxu0 %v10696
    %11386 = vmatpush.bf16.msra.mxu0 %v10692
    %11387 = vmatpush.bf16.msra.mxu0 %v10688
    %11388 = vmatpush.bf16.msra.mxu0 %v10684
    %11389 = vmatpush.bf16.msra.mxu0 %v10680
    %11390 = vmatpush.bf16.msra.mxu0 %v10676
    %11391 = vmatmul.bf16.gmra.mxu0 %v9445
    %v11392 = vpop.f32.mrf.mxu0
    %v11393 = vadd.f32 %v11380, %v11392
    %v11394 = vpop.f32.mrf.mxu0
    %11395 = vdwg.mxu0
    %11396 = vmatpush.bf16.msra.mxu0 %v10736
    %11397 = vmatpush.bf16.msra.mxu0 %v10732
    %11398 = vmatpush.bf16.msra.mxu0 %v10728
    %11399 = vmatpush.bf16.msra.mxu0 %v10724
    %11400 = vmatpush.bf16.msra.mxu0 %v10720
    %11401 = vmatpush.bf16.msra.mxu0 %v10716
    %11402 = vmatpush.bf16.msra.mxu0 %v10712
    %11403 = vmatpush.bf16.msra.mxu0 %v10708
    %11404 = vmatmul.bf16.gmra.mxu0 %v9446
    %v11405 = vpop.f32.mrf.mxu0
    %v11406 = vadd.f32 %v11393, %v11405
    %v11407 = vpop.f32.mrf.mxu0
    %11408 = vdwg.mxu0
    %v11409 = vmul.f32 %v11094, %v11094
    %v11410 = vmul.f32 %v11198, %v11198
    %v11411 = vmul.f32 %v11302, %v11302
    %v11412 = vmul.f32 %v11406, %v11406
    %v11413 = vadd.f32 %v11409, %v11410
    %v11414 = vadd.f32 %v11413, %v11411
    %v11415 = vadd.f32 %v11414, %v11412
    %11416 = vadd.xlane.f32.xlu0 %v11415
    %v11417 = vpop.xlane.xlu0 %11416
    %v11418 = vrcp.pop 512.0
    %v11419 = vmul.f32 512.0, %v11418
    %v11420 = vsub.f32 1.0, %v11419
    %v11421 = vmul.f32 %v11418, %v11420
    %v11422 = vadd.f32 %v11418, %v11421
    %vm11423 = vweird.f32 %v11418
    %v11424 = vsel %vm11423, %v11418, %v11422
    %v11425 = vmul.f32 %v11417, %v11424
    %v11427 = vlaneseq
    %v11428 = vand.u32 %v11427, 127
    %v11429 = vperm.slane %v11425, %v11428
    %vm11431 = vcmask 57344
    %11432 = vst.msk [vmem:[#allocation17] sm:$0x1] %vm11431, %v11429
    // Predicated region
    $region82: #{tpu_custom_call.1} parent=1 // pred_check
      _
    $region83: #{tpu_custom_call.1} parent=1 // pred_check_branch
      %11434 = sbr.rel (0) target = $region85
    $region84: #{tpu_custom_call.1} parent=1 // pred_region
      %11436 = vsyncadd [#allocation4], 0
      %s11438 = sshll.u32 [#allocation17], 4
      %s11439 = int_to_ptr.vmem [resolvable:$true] %s11438
      %s11440 = sshll.u32 %s11, 4
      %s11441 = int_to_ptr.hbm [resolvable:$true] %s11440
      %11443 = dma.vmem_to_hbm [thread:$0]  %s11439, 16, %s11441, [#allocation4]
    $region85: #{tpu_custom_call.1} parent=1 // pred_fallthru
      _
    // Predicated region
    $region86: #{tpu_custom_call.1} parent=1 // pred_check
      _
    $region87: #{tpu_custom_call.1} parent=1 // pred_check_branch
      %11445 = sbr.rel (0) target = $region89
    $region88: #{tpu_custom_call.1} parent=1 // pred_region
      %11447 = dma.done [#allocation4], 16
    $region89: #{tpu_custom_call.1} parent=1 // pred_fallthru
      _
    %11448 = vsyncpa [#allocation3], 1
    %11449 = vsyncpa [#allocation6], 1
    %11450 = vsyncpa [#allocation9], 1
    %11451 = vsyncpa [#allocation12], 1
    %11452 = vsyncpa [#allocation15], 1
    %11453 = vsyncpa [#allocation4], 1

</llo_original>
